<compile_context>
chip_gen: v7x
topology: tpu7x:2x2x1
jax: 0.10.0
libtpu: 0.0.40
codegen_flags: <defaults>
</compile_context>

<pallas_src>
import numpy as np
import jax
import jax.numpy as jnp
from jax import lax
from jax.experimental import pallas as pl
from jax.experimental.pallas import tpu as pltpu

# ---------------- small synthetic config (matches module structure) ----------------
IMG_SIZE = 16          # img_size
PATCH = 4              # patch embedding kernel/stride
HIDDEN = 32            # config.hidden_size
NUM_HEADS = 4          # config.transformer["num_heads"]
HEAD_DIM = HIDDEN // NUM_HEADS
MLP_DIM = 64           # config.transformer["mlp_dim"]
NUM_LAYERS = 2         # config.transformer["num_layers"]
HEAD_CHANNELS = 512    # hardcoded in DecoderCup
DECODER_CHANNELS = (16, 8)   # config.decoder_channels (2 decoder blocks: 4x4 -> 16x16)
NUM_CLASSES = 1
LN_EPS = 1e-6
BN_EPS = 1e-5

GRID = IMG_SIZE // PATCH              # token grid side (4)
N_TOKENS = GRID * GRID                # 16 tokens per image
OUT_HW = GRID * (2 ** len(DECODER_CHANNELS))   # 16 output spatial size
HW_OUT = OUT_HW * OUT_HW              # 256 output pixels per image


# ============================ in-kernel helpers (value level) ============================

def _layernorm(v, g, b):
    mu = jnp.mean(v, axis=-1, keepdims=True)
    c = v - mu
    var = jnp.mean(c * c, axis=-1, keepdims=True)
    return c * lax.rsqrt(var + LN_EPS) * g + b


def _gelu(v):
    # tanh approximation of GELU (see TODO at top of file).
    return 0.5 * v * (1.0 + jnp.tanh(0.7978845608028654 * (v + 0.044715 * v * v * v)))


def _conv3x3_rows(x, w_ref, m_ref, scale, shift, img_w):
    """3x3 'same' conv on a row-major (BT*HW, Cin) map, output (BT*HW, Cout), + BN + ReLU.

    Used only for conv_more (Cout=512 -> lane-dense output).  Tap (kh,kw) contributes the
    rows shifted by kh*W+kw-...; the shifted input is zeroed at image borders (and across
    stacked-image boundaries) by the precomputed mask m_ref[k] of shape (BT*HW, 1).
    """
    hwt = x.shape[0]
    acc = None
    for k in range(9):
        off = (k // 3 - 1) * img_w + (k % 3 - 1)
        if off == 0:
            xs = x                                           # center tap: mask is all ones
        else:
            s = off % hwt
            xs = jnp.concatenate([x[s:], x[:s]], axis=0) * m_ref[k]
        c = jnp.dot(xs, w_ref[k], preferred_element_type=jnp.float32)
        acc = c if acc is None else acc + c
    return jnp.maximum(acc * scale + shift, 0.0)


def _merge_taps(y, m_ref, cout, img_w, scale, shift, relu):
    """Shift + mask + accumulate the 9 tap outputs of a (C, HW)-lane-layout 3x3 conv.

    y: (9*Cout, BT*HW) = concatenated 9-tap weight applied once to the UNshifted input.
    Tap k's rows are rolled along the lane (spatial) axis and masked at image borders by
    m_ref[k] of shape (1, BT*HW).  BN scale/shift (Cout,1) + optional ReLU epilogue.
    """
    hwt = y.shape[1]
    acc = None
    for k in range(9):
        off = (k // 3 - 1) * img_w + (k % 3 - 1)
        yk = y[k * cout:(k + 1) * cout, :]
        if off == 0:
            c = yk
        else:
            s = off % hwt
            c = jnp.concatenate([yk[:, s:], yk[:, :s]], axis=1) * m_ref[k]
        acc = c if acc is None else acc + c
    if scale is not None:
        acc = acc * scale
    acc = acc + shift
    return jnp.maximum(acc, 0.0) if relu else acc


# ============================ the fused Pallas kernel ============================

def _transunet_kernel(patches_ref, pos_ref, amask_ref,
                      pw_ref, pb_ref,
                      ln1g_ref, ln1b_ref, wqkv_ref, bqkv_ref, wo_ref, bo_ref,
                      ln2g_ref, ln2b_ref, w1_ref, b1_ref, w2_ref, b2_ref,
                      encg_ref, encb_ref,
                      mA_ref, wA_ref, sA_ref, hA_ref,
                      u1_ref, mB_ref,
                      w11_ref, s11_ref, h11_ref,
                      w12_ref, s12_ref, h12_ref,
                      u2t_ref, mC_ref,
                      w21_ref, s21_ref, h21_ref,
                      w22_ref, s22_ref, h22_ref,
                      wsg_ref, bsg_ref,
                      out_ref):
    """Whole TransUnet forward for one batch tile (BT images).  Everything stays in VMEM."""
    f32 = jnp.float32
    c1, c2 = DECODER_CHANNELS

    # ---------------- ViT encoder ----------------
    # patch embedding (+ bias) + position embedding; dropout = identity at inference.
    x = jnp.dot(patches_ref[0], pw_ref[...], preferred_element_type=f32)
    x = x + pb_ref[...] + pos_ref[...]                        # (BT*16, 32)
    amask = amask_ref[...]                                    # block-diagonal (-1e9 cross-image)

    for l in range(NUM_LAYERS):
        # ---- multi-head self-attention (pre-norm), fused QKV / fused Wo ----
        resid = x
        xn = _layernorm(x, ln1g_ref[l], ln1b_ref[l])
        qkv = jnp.dot(xn, wqkv_ref[l], preferred_element_type=f32) + bqkv_ref[l]  # (M, 96)
        heads = []
        for h in range(NUM_HEADS):
            q = qkv[:, h * HEAD_DIM:(h + 1) * HEAD_DIM]               # 1/sqrt(d) folded in
            k = qkv[:, HIDDEN + h * HEAD_DIM:HIDDEN + (h + 1) * HEAD_DIM]
            v = qkv[:, 2 * HIDDEN + h * HEAD_DIM:2 * HIDDEN + (h + 1) * HEAD_DIM]
            s = lax.dot_general(q, k, (((1,), (1,)), ((), ())),
                                preferred_element_type=f32) + amask
            s = s - jnp.max(s, axis=-1, keepdims=True)
            p = jnp.exp(s)
            p = p * pl.reciprocal(jnp.sum(p, axis=-1, keepdims=True), approx=True)
            heads.append(jnp.dot(p, v, preferred_element_type=f32))
        ctx = jnp.concatenate(heads, axis=-1)                          # (M, 32)
        x = resid + jnp.dot(ctx, wo_ref[l], preferred_element_type=f32) + bo_ref[l]

        # ---- MLP (pre-norm) ----
        resid = x
        xn = _layernorm(x, ln2g_ref[l], ln2b_ref[l])
        ff = jnp.dot(xn, w1_ref[l], preferred_element_type=f32) + b1_ref[l]
        ff = _gelu(ff)
        x = resid + jnp.dot(ff, w2_ref[l], preferred_element_type=f32) + b2_ref[l]

    x = _layernorm(x, encg_ref[...], encb_ref[...])                    # (BT*16, 32)

    # ---------------- DecoderCup + SegmentationHead ----------------
    # conv_more in (HW, C) layout: lane-dense 512-channel output.
    y0 = _conv3x3_rows(x, wA_ref, mA_ref, sA_ref[...], hA_ref[...], GRID)     # (BT*16, 512)

    # bilinear x2 upsample (align_corners=True), still row layout.
    x1 = jnp.dot(u1_ref[...], y0, preferred_element_type=f32)                 # (BT*64, 512)

    # decoder block 1: switch to (C, HW) lane layout; the layout switch rides for free on
    # the transposed-RHS contraction of the concatenated 9-tap weight (Cout=16 << Cin=512).
    y = lax.dot_general(w11_ref[...], x1, (((1,), (1,)), ((), ())),
                        preferred_element_type=f32)                           # (144, BT*64)
    z = _merge_taps(y, mB_ref, c1, 2 * GRID, s11_ref[...], h11_ref[...], relu=True)
    y = jnp.dot(w12_ref[...], z, preferred_element_type=f32)                  # (144, BT*64)
    z = _merge_taps(y, mB_ref, c1, 2 * GRID, s12_ref[...], h12_ref[...], relu=True)

    # second bilinear x2 upsample in (C, HW) layout: x @ U^T keeps spatial on lanes.
    x2 = jnp.dot(z, u2t_ref[...], preferred_element_type=f32)                 # (16, BT*256)

    # decoder block 2
    y = jnp.dot(w21_ref[...], x2, preferred_element_type=f32)                 # (72, BT*256)
    z = _merge_taps(y, mC_ref, c2, 4 * GRID, s21_ref[...], h21_ref[...], relu=True)
    y = jnp.dot(w22_ref[...], z, preferred_element_type=f32)                  # (72, BT*256)
    z = _merge_taps(y, mC_ref, c2, 4 * GRID, s22_ref[...], h22_ref[...], relu=True)

    # SegmentationHead: conv3x3 + bias (no BN / ReLU); result is lane-dense (1, BT*256).
    y = jnp.dot(wsg_ref[...], z, preferred_element_type=f32)                  # (9, BT*256)
    seg = _merge_taps(y, mC_ref, NUM_CLASSES, 4 * GRID, None, bsg_ref[...], relu=False)

    out_ref[0] = seg                                                          # lane-dense store


# ============================ wrapper (pallas_call) ============================

def _const_spec(a):
    nd = a.ndim
    return pl.BlockSpec(a.shape, lambda b, _nd=nd: (0,) * _nd)


def _pick_bt(B):
    """Images per grid step: prefer >=2 grid steps (v7x dual TC) and BT up to 8."""
    for bt in (8, 4, 2, 1):
        if B % bt == 0 and B // bt >= 2:
            return bt
    return B


def _bilinear_matrix(out_size, in_size):
    # nn.UpsamplingBilinear2d uses align_corners=True.
    m = np.zeros((out_size, in_size), np.float32)
    if in_size == 1:
        m[:, 0] = 1.0
    else:
        for i in range(out_size):
            src = i * (in_size - 1) / (out_size - 1)
            i0 = int(np.floor(src))
            i1 = min(i0 + 1, in_size - 1)
            f = src - i0
            m[i, i0] += 1.0 - f
            m[i, i1] += f
    return m


def _upsample2x_matrix(size):
    # Row-major flattened 2x bilinear upsample: out = kron(A, A) @ in.
    a = _bilinear_matrix(2 * size, size)
    return np.kron(a, a).astype(np.float32)


def _img_mask(H, W):
    # mask[k, i*W+j] = 1 iff (i + kh - 1, j + kw - 1) lies inside the image, k = kh*3+kw.
    m = np.zeros((9, H * W), np.float32)
    for k in range(9):
        dh, dw = k // 3 - 1, k % 3 - 1
        for i in range(H):
            for j in range(W):
                if 0 <= i + dh < H and 0 <= j + dw < W:
                    m[k, i * W + j] = 1.0
    return m


def _run_fused(P, patches, BT, nb):
    assert len(DECODER_CHANNELS) == 2, "kernel is specialized to 2 decoder blocks"
    M = BT * N_TOKENS
    PF = patches.shape[-1]

    # per-block constants (BT images stacked): position embedding, block-diag attention
    # mask, border masks for each conv resolution, block-diag bilinear upsample matrices.
    pos = jnp.tile(P["pos_emb"], (BT, 1))                                      # (M, 32)
    img = np.repeat(np.arange(BT), N_TOKENS)
    amask = jnp.asarray(np.where(img[:, None] == img[None, :], 0.0, -1e9).astype(np.float32))
    mA = jnp.asarray(np.tile(_img_mask(GRID, GRID), (1, BT))[:, :, None])          # (9, M, 1)
    mB = jnp.asarray(np.tile(_img_mask(2 * GRID, 2 * GRID), (1, BT))[:, None, :])  # (9,1,BT*64)
    mC = jnp.asarray(np.tile(_img_mask(4 * GRID, 4 * GRID), (1, BT))[:, None, :])  # (9,1,BT*256)
    eye = np.eye(BT, dtype=np.float32)
    u1 = jnp.asarray(np.kron(eye, _upsample2x_matrix(GRID)))                   # (BT*64, BT*16)
    u2t = jnp.asarray(np.kron(eye, _upsample2x_matrix(2 * GRID).T))            # (BT*64, BT*256)

    cm = P["conv_more"]
    args = (patches, pos, amask,
            P["patch_w"], P["patch_b"],
            P["ln1_g"], P["ln1_b"], P["wqkv"], P["bqkv"], P["wo"], P["bo"],
            P["ln2_g"], P["ln2_b"], P["w1"], P["b1"], P["w2"], P["b2"],
            P["enc_g"], P["enc_b"],
            mA, cm["w"], cm["scale"], cm["shift"],
            u1, mB,
            P["d1c1"]["w"], P["d1c1"]["scale"], P["d1c1"]["shift"],
            P["d1c2"]["w"], P["d1c2"]["scale"], P["d1c2"]["shift"],
            u2t, mC,
            P["d2c1"]["w"], P["d2c1"]["scale"], P["d2c1"]["shift"],
            P["d2c2"]["w"], P["d2c2"]["scale"], P["d2c2"]["shift"],
            P["seg_w"], P["seg_b"])

    in_specs = ([pl.BlockSpec((1, M, PF), lambda b: (b, 0, 0))]
                + [_const_spec(a) for a in args[1:]])

    return pl.pallas_call(
        _transunet_kernel,
        out_shape=jax.ShapeDtypeStruct((nb, NUM_CLASSES, BT * HW_OUT), jnp.float32),
        grid=(nb,),
        in_specs=in_specs,
        out_specs=pl.BlockSpec((1, NUM_CLASSES, BT * HW_OUT), lambda b: (b, 0, 0)),
        compiler_params=pltpu.CompilerParams(dimension_semantics=("parallel",)),
    )(*args)


# ============================ parameter init ============================

def init_params(key):
    keys = iter(jax.random.split(key, 128))

    def nrm(shape, std=0.02):
        return jax.random.normal(next(keys), shape, jnp.float32) * std

    def small(shape):
        return jax.random.normal(next(keys), shape, jnp.float32) * 0.01

    inv_sqrt_d = 1.0 / float(np.sqrt(HEAD_DIM))
    P = {}

    # patch embedding: Conv2d(3, HIDDEN, kernel=PATCH, stride=PATCH) with bias.
    pw = nrm((HIDDEN, 3, PATCH, PATCH))
    P["patch_w"] = jnp.transpose(pw, (2, 3, 1, 0)).reshape(PATCH * PATCH * 3, HIDDEN)
    P["patch_b"] = small((1, HIDDEN))
    P["pos_emb"] = nrm((N_TOKENS, HIDDEN))

    def layer_stack(fn):
        return jnp.stack([fn() for _ in range(NUM_LAYERS)], axis=0)

    def qkv_w():   # fused (HIDDEN, 3*HIDDEN); softmax 1/sqrt(d) folded into the Q block
        wq = nrm((HIDDEN, HIDDEN)) * inv_sqrt_d
        wk = nrm((HIDDEN, HIDDEN))
        wv = nrm((HIDDEN, HIDDEN))
        return jnp.concatenate([wq, wk, wv], axis=1)

    def qkv_b():
        bq = small((HIDDEN,)) * inv_sqrt_d
        bk = small((HIDDEN,))
        bv = small((HIDDEN,))
        return jnp.concatenate([bq, bk, bv]).reshape(1, 3 * HIDDEN)

    def ln_g():
        return 1.0 + 0.05 * jax.random.normal(next(keys), (1, HIDDEN), jnp.float32)

    P["ln1_g"] = layer_stack(ln_g)
    P["ln1_b"] = layer_stack(lambda: small((1, HIDDEN)))
    P["wqkv"] = layer_stack(qkv_w)
    P["bqkv"] = layer_stack(qkv_b)
    P["wo"] = layer_stack(lambda: nrm((HIDDEN, HIDDEN)))
    P["bo"] = layer_stack(lambda: small((1, HIDDEN)))
    P["ln2_g"] = layer_stack(ln_g)
    P["ln2_b"] = layer_stack(lambda: small((1, HIDDEN)))
    P["w1"] = layer_stack(lambda: nrm((HIDDEN, MLP_DIM)))
    P["b1"] = layer_stack(lambda: small((1, MLP_DIM)))
    P["w2"] = layer_stack(lambda: nrm((MLP_DIM, HIDDEN)))
    P["b2"] = layer_stack(lambda: small((1, HIDDEN)))
    P["enc_g"] = 1.0 + 0.05 * jax.random.normal(next(keys), (1, HIDDEN), jnp.float32)
    P["enc_b"] = small((1, HIDDEN))

    def bn_fold(cout):
        gamma = 1.0 + 0.1 * jax.random.normal(next(keys), (cout,), jnp.float32)
        beta = 0.1 * jax.random.normal(next(keys), (cout,), jnp.float32)
        running_mean = jnp.zeros((cout,), jnp.float32)
        running_var = jnp.ones((cout,), jnp.float32)
        scale = gamma / jnp.sqrt(running_var + BN_EPS)
        shift = beta - running_mean * scale
        return scale, shift

    # Conv2dReLU (row layout, per-tap (Cin, Cout)): used for conv_more only.
    def conv_bn_rows(cin, cout):
        w = jax.random.normal(next(keys), (cout, cin, 3, 3), jnp.float32) / np.sqrt(9 * cin)
        w9 = jnp.transpose(w, (2, 3, 1, 0)).reshape(9, cin, cout)
        scale, shift = bn_fold(cout)
        return {"w": w9, "scale": scale.reshape(1, cout), "shift": shift.reshape(1, cout)}

    # Conv2dReLU (lane layout, concatenated taps (9*Cout, Cin)): decoder blocks.
    def conv_bn_lanes(cin, cout):
        w = jax.random.normal(next(keys), (cout, cin, 3, 3), jnp.float32) / np.sqrt(9 * cin)
        wcat = jnp.transpose(w, (2, 3, 0, 1)).reshape(9 * cout, cin)
        scale, shift = bn_fold(cout)
        return {"w": wcat, "scale": scale.reshape(cout, 1), "shift": shift.reshape(cout, 1)}

    P["conv_more"] = conv_bn_rows(HIDDEN, HEAD_CHANNELS)
    c1, c2 = DECODER_CHANNELS
    P["d1c1"] = conv_bn_lanes(HEAD_CHANNELS, c1)
    P["d1c2"] = conv_bn_lanes(c1, c1)
    P["d2c1"] = conv_bn_lanes(c1, c2)
    P["d2c2"] = conv_bn_lanes(c2, c2)

    # SegmentationHead: conv3x3 with bias (no BN).
    sw = nrm((NUM_CLASSES, c2, 3, 3), std=0.05)
    P["seg_w"] = jnp.transpose(sw, (2, 3, 0, 1)).reshape(9 * NUM_CLASSES, c2)
    P["seg_b"] = small((NUM_CLASSES,)).reshape(NUM_CLASSES, 1)
    return P


# ============================ forward ============================

def transunet_forward(params, x_nchw):
    x = x_nchw.astype(jnp.float32)
    if x.shape[1] == 1:                          # x.repeat(1, 3, 1, 1)
        x = jnp.repeat(x, 3, axis=1)
    x = jnp.transpose(x, (0, 2, 3, 1))           # NCHW -> NHWC
    B, H, W, C = x.shape
    gh, gw = H // PATCH, W // PATCH
    N = gh * gw

    # patch extraction (layout only; feature order (ph, pw, c) matches patch_w).
    patches = (x.reshape(B, gh, PATCH, gw, PATCH, C)
                .transpose(0, 1, 3, 2, 4, 5)
                .reshape(B, N, PATCH * PATCH * C))

    BT = _pick_bt(B)
    nb = B // BT
    patches = patches.reshape(nb, BT * N, PATCH * PATCH * C)

    logits = _run_fused(params, patches, BT, nb)         # (nb, NUM_CLASSES, BT*HW_OUT)

    # undo the lane-dense (classes, BT*HW) kernel layout outside the kernel.
    logits = (logits.reshape(nb, NUM_CLASSES, BT, HW_OUT)
                    .transpose(0, 2, 1, 3)
                    .reshape(B, NUM_CLASSES, OUT_HW, OUT_HW))
    return logits


# ============================ main ============================

if __name__ == "__main__":
    key = jax.random.PRNGKey(0)
    pkey, xkey = jax.random.split(key)
    params = init_params(pkey)

    # Grayscale input -> exercises the channel-repeat branch.
    x = jax.random.normal(xkey, (2, 1, IMG_SIZE, IMG_SIZE), jnp.float32)

    fwd = jax.jit(transunet_forward)
    logits = jax.block_until_ready(fwd(params, x))

    expected_hw = (IMG_SIZE // PATCH) * (2 ** len(DECODER_CHANNELS))
    assert logits.shape == (2, NUM_CLASSES, expected_hw, expected_hw), logits.shape
    assert bool(jnp.all(jnp.isfinite(logits)))
    print("KERNEL_OK")
</pallas_src>

<mosaic_0001>
module attributes {stable_mosaic.version = 11 : i64} {
  func.func @_transunet_kernel(%arg0: i32, %arg1: memref<1x16x48xf32, #tpu.memory_space<vmem>>, %arg2: memref<16x32xf32, #tpu.memory_space<vmem>>, %arg3: memref<16x16xf32, #tpu.memory_space<vmem>>, %arg4: memref<48x32xf32, #tpu.memory_space<vmem>>, %arg5: memref<1x32xf32, #tpu.memory_space<vmem>>, %arg6: memref<2x1x32xf32, #tpu.memory_space<vmem>>, %arg7: memref<2x1x32xf32, #tpu.memory_space<vmem>>, %arg8: memref<2x32x96xf32, #tpu.memory_space<vmem>>, %arg9: memref<2x1x96xf32, #tpu.memory_space<vmem>>, %arg10: memref<2x32x32xf32, #tpu.memory_space<vmem>>, %arg11: memref<2x1x32xf32, #tpu.memory_space<vmem>>, %arg12: memref<2x1x32xf32, #tpu.memory_space<vmem>>, %arg13: memref<2x1x32xf32, #tpu.memory_space<vmem>>, %arg14: memref<2x32x64xf32, #tpu.memory_space<vmem>>, %arg15: memref<2x1x64xf32, #tpu.memory_space<vmem>>, %arg16: memref<2x64x32xf32, #tpu.memory_space<vmem>>, %arg17: memref<2x1x32xf32, #tpu.memory_space<vmem>>, %arg18: memref<1x32xf32, #tpu.memory_space<vmem>>, %arg19: memref<1x32xf32, #tpu.memory_space<vmem>>, %arg20: memref<9x16x1xf32, #tpu.memory_space<vmem>>, %arg21: memref<9x32x512xf32, #tpu.memory_space<vmem>>, %arg22: memref<1x512xf32, #tpu.memory_space<vmem>>, %arg23: memref<1x512xf32, #tpu.memory_space<vmem>>, %arg24: memref<64x16xf32, #tpu.memory_space<vmem>>, %arg25: memref<9x1x64xf32, #tpu.memory_space<vmem>>, %arg26: memref<144x512xf32, #tpu.memory_space<vmem>>, %arg27: memref<16x1xf32, #tpu.memory_space<vmem>>, %arg28: memref<16x1xf32, #tpu.memory_space<vmem>>, %arg29: memref<144x16xf32, #tpu.memory_space<vmem>>, %arg30: memref<16x1xf32, #tpu.memory_space<vmem>>, %arg31: memref<16x1xf32, #tpu.memory_space<vmem>>, %arg32: memref<64x256xf32, #tpu.memory_space<vmem>>, %arg33: memref<9x1x256xf32, #tpu.memory_space<vmem>>, %arg34: memref<72x16xf32, #tpu.memory_space<vmem>>, %arg35: memref<8x1xf32, #tpu.memory_space<vmem>>, %arg36: memref<8x1xf32, #tpu.memory_space<vmem>>, %arg37: memref<72x8xf32, #tpu.memory_space<vmem>>, %arg38: memref<8x1xf32, #tpu.memory_space<vmem>>, %arg39: memref<8x1xf32, #tpu.memory_space<vmem>>, %arg40: memref<9x8xf32, #tpu.memory_space<vmem>>, %arg41: memref<1x1xf32, #tpu.memory_space<vmem>>, %arg42: memref<1x1x256xf32, #tpu.memory_space<vmem>>) attributes {dimension_semantics = [#tpu.dimension_semantics<parallel>], iteration_bounds = array<i64: 2>, scalar_prefetch = 0 : i64, scratch_operands = 0 : i64, tpu.core_type = #tpu.core_type<tc>, window_params = [{transform_indices = @transform_0, window_bounds = array<i64: 1, 16, 48>}, {pipeline_mode = #tpu.pipeline_mode<synchronous>, transform_indices = @transform_1, window_bounds = array<i64: 16, 32>}, {pipeline_mode = #tpu.pipeline_mode<synchronous>, transform_indices = @transform_2, window_bounds = array<i64: 16, 16>}, {pipeline_mode = #tpu.pipeline_mode<synchronous>, transform_indices = @transform_3, window_bounds = array<i64: 48, 32>}, {pipeline_mode = #tpu.pipeline_mode<synchronous>, transform_indices = @transform_4, window_bounds = array<i64: 1, 32>}, {pipeline_mode = #tpu.pipeline_mode<synchronous>, transform_indices = @transform_5, window_bounds = array<i64: 2, 1, 32>}, {pipeline_mode = #tpu.pipeline_mode<synchronous>, transform_indices = @transform_6, window_bounds = array<i64: 2, 1, 32>}, {pipeline_mode = #tpu.pipeline_mode<synchronous>, transform_indices = @transform_7, window_bounds = array<i64: 2, 32, 96>}, {pipeline_mode = #tpu.pipeline_mode<synchronous>, transform_indices = @transform_8, window_bounds = array<i64: 2, 1, 96>}, {pipeline_mode = #tpu.pipeline_mode<synchronous>, transform_indices = @transform_9, window_bounds = array<i64: 2, 32, 32>}, {pipeline_mode = #tpu.pipeline_mode<synchronous>, transform_indices = @transform_10, window_bounds = array<i64: 2, 1, 32>}, {pipeline_mode = #tpu.pipeline_mode<synchronous>, transform_indices = @transform_11, window_bounds = array<i64: 2, 1, 32>}, {pipeline_mode = #tpu.pipeline_mode<synchronous>, transform_indices = @transform_12, window_bounds = array<i64: 2, 1, 32>}, {pipeline_mode = #tpu.pipeline_mode<synchronous>, transform_indices = @transform_13, window_bounds = array<i64: 2, 32, 64>}, {pipeline_mode = #tpu.pipeline_mode<synchronous>, transform_indices = @transform_14, window_bounds = array<i64: 2, 1, 64>}, {pipeline_mode = #tpu.pipeline_mode<synchronous>, transform_indices = @transform_15, window_bounds = array<i64: 2, 64, 32>}, {pipeline_mode = #tpu.pipeline_mode<synchronous>, transform_indices = @transform_16, window_bounds = array<i64: 2, 1, 32>}, {pipeline_mode = #tpu.pipeline_mode<synchronous>, transform_indices = @transform_17, window_bounds = array<i64: 1, 32>}, {pipeline_mode = #tpu.pipeline_mode<synchronous>, transform_indices = @transform_18, window_bounds = array<i64: 1, 32>}, {pipeline_mode = #tpu.pipeline_mode<synchronous>, transform_indices = @transform_19, window_bounds = array<i64: 9, 16, 1>}, {pipeline_mode = #tpu.pipeline_mode<synchronous>, transform_indices = @transform_20, window_bounds = array<i64: 9, 32, 512>}, {pipeline_mode = #tpu.pipeline_mode<synchronous>, transform_indices = @transform_21, window_bounds = array<i64: 1, 512>}, {pipeline_mode = #tpu.pipeline_mode<synchronous>, transform_indices = @transform_22, window_bounds = array<i64: 1, 512>}, {pipeline_mode = #tpu.pipeline_mode<synchronous>, transform_indices = @transform_23, window_bounds = array<i64: 64, 16>}, {pipeline_mode = #tpu.pipeline_mode<synchronous>, transform_indices = @transform_24, window_bounds = array<i64: 9, 1, 64>}, {pipeline_mode = #tpu.pipeline_mode<synchronous>, transform_indices = @transform_25, window_bounds = array<i64: 144, 512>}, {pipeline_mode = #tpu.pipeline_mode<synchronous>, transform_indices = @transform_26, window_bounds = array<i64: 16, 1>}, {pipeline_mode = #tpu.pipeline_mode<synchronous>, transform_indices = @transform_27, window_bounds = array<i64: 16, 1>}, {pipeline_mode = #tpu.pipeline_mode<synchronous>, transform_indices = @transform_28, window_bounds = array<i64: 144, 16>}, {pipeline_mode = #tpu.pipeline_mode<synchronous>, transform_indices = @transform_29, window_bounds = array<i64: 16, 1>}, {pipeline_mode = #tpu.pipeline_mode<synchronous>, transform_indices = @transform_30, window_bounds = array<i64: 16, 1>}, {pipeline_mode = #tpu.pipeline_mode<synchronous>, transform_indices = @transform_31, window_bounds = array<i64: 64, 256>}, {pipeline_mode = #tpu.pipeline_mode<synchronous>, transform_indices = @transform_32, window_bounds = array<i64: 9, 1, 256>}, {pipeline_mode = #tpu.pipeline_mode<synchronous>, transform_indices = @transform_33, window_bounds = array<i64: 72, 16>}, {pipeline_mode = #tpu.pipeline_mode<synchronous>, transform_indices = @transform_34, window_bounds = array<i64: 8, 1>}, {pipeline_mode = #tpu.pipeline_mode<synchronous>, transform_indices = @transform_35, window_bounds = array<i64: 8, 1>}, {pipeline_mode = #tpu.pipeline_mode<synchronous>, transform_indices = @transform_36, window_bounds = array<i64: 72, 8>}, {pipeline_mode = #tpu.pipeline_mode<synchronous>, transform_indices = @transform_37, window_bounds = array<i64: 8, 1>}, {pipeline_mode = #tpu.pipeline_mode<synchronous>, transform_indices = @transform_38, window_bounds = array<i64: 8, 1>}, {pipeline_mode = #tpu.pipeline_mode<synchronous>, transform_indices = @transform_39, window_bounds = array<i64: 9, 8>}, {pipeline_mode = #tpu.pipeline_mode<synchronous>, transform_indices = @transform_40, window_bounds = array<i64: 1, 1>}, {transform_indices = @transform_41, window_bounds = array<i64: 1, 1, 256>}]} {
    %c0 = arith.constant 0 : index
    %c0_0 = arith.constant 0 : index
    %c0_1 = arith.constant 0 : index
    %0 = vector.load %arg1[%c0, %c0_0, %c0_1] : memref<1x16x48xf32, #tpu.memory_space<vmem>>, vector<1x16x48xf32>
    %1 = vector.shape_cast %0 : vector<1x16x48xf32> to vector<16x48xf32>
    %c0_2 = arith.constant 0 : index
    %c0_3 = arith.constant 0 : index
    %2 = vector.load %arg4[%c0_2, %c0_3] : memref<48x32xf32, #tpu.memory_space<vmem>>, vector<48x32xf32>
    %cst = arith.constant dense<0.000000e+00> : vector<16x32xf32>
    %3 = tpu.matmul %1, %2, %cst {dimension_numbers = #tpu.dot_dimension_numbers<[1], [0], [0], [1], [0, 0, 1, 1], [], []>} : vector<16x48xf32>, vector<48x32xf32>, vector<16x32xf32> -> vector<16x32xf32>
    %c0_4 = arith.constant 0 : index
    %c0_5 = arith.constant 0 : index
    %4 = vector.load %arg5[%c0_4, %c0_5] : memref<1x32xf32, #tpu.memory_space<vmem>>, vector<1x32xf32>
    %5 = vector.broadcast %4 : vector<1x32xf32> to vector<16x32xf32>
    %6 = arith.addf %3, %5 : vector<16x32xf32>
    %c0_6 = arith.constant 0 : index
    %c0_7 = arith.constant 0 : index
    %7 = vector.load %arg2[%c0_6, %c0_7] : memref<16x32xf32, #tpu.memory_space<vmem>>, vector<16x32xf32>
    %8 = arith.addf %6, %7 : vector<16x32xf32>
    %c0_8 = arith.constant 0 : index
    %c0_9 = arith.constant 0 : index
    %9 = vector.load %arg3[%c0_8, %c0_9] : memref<16x16xf32, #tpu.memory_space<vmem>>, vector<16x16xf32>
    %c0_10 = arith.constant 0 : index
    %c0_11 = arith.constant 0 : index
    %c0_12 = arith.constant 0 : index
    %10 = vector.load %arg6[%c0_10, %c0_11, %c0_12] : memref<2x1x32xf32, #tpu.memory_space<vmem>>, vector<1x1x32xf32>
    %11 = vector.shape_cast %10 : vector<1x1x32xf32> to vector<1x32xf32>
    %c0_13 = arith.constant 0 : index
    %c0_14 = arith.constant 0 : index
    %c0_15 = arith.constant 0 : index
    %12 = vector.load %arg7[%c0_13, %c0_14, %c0_15] : memref<2x1x32xf32, #tpu.memory_space<vmem>>, vector<1x1x32xf32>
    %13 = vector.shape_cast %12 : vector<1x1x32xf32> to vector<1x32xf32>
    %cst_16 = arith.constant dense<0.000000e+00> : vector<16xf32>
    %14 = vector.multi_reduction <add>, %8, %cst_16 [1] : vector<16x32xf32> to vector<16xf32>
    %15 = vector.shape_cast %14 : vector<16xf32> to vector<16x1xf32>
    %cst_17 = arith.constant 3.200000e+01 : f32
    %16 = vector.broadcast %cst_17 : f32 to vector<16x1xf32>
    %17 = arith.divf %15, %16 : vector<16x1xf32>
    %18 = vector.broadcast %17 : vector<16x1xf32> to vector<16x32xf32>
    %19 = arith.subf %8, %18 : vector<16x32xf32>
    %20 = arith.mulf %19, %19 : vector<16x32xf32>
    %cst_18 = arith.constant dense<0.000000e+00> : vector<16xf32>
    %21 = vector.multi_reduction <add>, %20, %cst_18 [1] : vector<16x32xf32> to vector<16xf32>
    %22 = vector.shape_cast %21 : vector<16xf32> to vector<16x1xf32>
    %cst_19 = arith.constant 3.200000e+01 : f32
    %23 = vector.broadcast %cst_19 : f32 to vector<16x1xf32>
    %24 = arith.divf %22, %23 : vector<16x1xf32>
    %cst_20 = arith.constant 9.99999997E-7 : f32
    %25 = vector.broadcast %cst_20 : f32 to vector<16x1xf32>
    %26 = arith.addf %24, %25 : vector<16x1xf32>
    %27 = math.rsqrt %26 : vector<16x1xf32>
    %28 = vector.broadcast %27 : vector<16x1xf32> to vector<16x32xf32>
    %29 = arith.mulf %19, %28 : vector<16x32xf32>
    %30 = vector.broadcast %11 : vector<1x32xf32> to vector<16x32xf32>
    %31 = arith.mulf %29, %30 : vector<16x32xf32>
    %32 = vector.broadcast %13 : vector<1x32xf32> to vector<16x32xf32>
    %33 = arith.addf %31, %32 : vector<16x32xf32>
    %c0_21 = arith.constant 0 : index
    %c0_22 = arith.constant 0 : index
    %c0_23 = arith.constant 0 : index
    %34 = vector.load %arg8[%c0_21, %c0_22, %c0_23] : memref<2x32x96xf32, #tpu.memory_space<vmem>>, vector<1x32x96xf32>
    %35 = vector.shape_cast %34 : vector<1x32x96xf32> to vector<32x96xf32>
    %cst_24 = arith.constant dense<0.000000e+00> : vector<16x96xf32>
    %36 = tpu.matmul %33, %35, %cst_24 {dimension_numbers = #tpu.dot_dimension_numbers<[1], [0], [0], [1], [0, 0, 1, 1], [], []>} : vector<16x32xf32>, vector<32x96xf32>, vector<16x96xf32> -> vector<16x96xf32>
    %c0_25 = arith.constant 0 : index
    %c0_26 = arith.constant 0 : index
    %c0_27 = arith.constant 0 : index
    %37 = vector.load %arg9[%c0_25, %c0_26, %c0_27] : memref<2x1x96xf32, #tpu.memory_space<vmem>>, vector<1x1x96xf32>
    %38 = vector.shape_cast %37 : vector<1x1x96xf32> to vector<1x96xf32>
    %39 = vector.broadcast %38 : vector<1x96xf32> to vector<16x96xf32>
    %40 = arith.addf %36, %39 : vector<16x96xf32>
    %41 = vector.extract_strided_slice %40 {offsets = [0, 0], sizes = [16, 8], strides = [1, 1]} : vector<16x96xf32> to vector<16x8xf32>
    %42 = vector.extract_strided_slice %40 {offsets = [0, 32], sizes = [16, 8], strides = [1, 1]} : vector<16x96xf32> to vector<16x8xf32>
    %43 = vector.extract_strided_slice %40 {offsets = [0, 64], sizes = [16, 8], strides = [1, 1]} : vector<16x96xf32> to vector<16x8xf32>
    %cst_28 = arith.constant dense<0.000000e+00> : vector<16x16xf32>
    %44 = tpu.matmul %41, %42, %cst_28 {dimension_numbers = #tpu.dot_dimension_numbers<[1], [1], [0], [0], [0, 0, 1, 0], [], []>} : vector<16x8xf32>, vector<16x8xf32>, vector<16x16xf32> -> vector<16x16xf32>
    %45 = arith.addf %44, %9 : vector<16x16xf32>
    %cst_29 = arith.constant dense<0xFF800000> : vector<16xf32>
    %46 = vector.multi_reduction <maximumf>, %45, %cst_29 [1] : vector<16x16xf32> to vector<16xf32>
    %47 = vector.shape_cast %46 : vector<16xf32> to vector<16x1xf32>
    %48 = vector.broadcast %47 : vector<16x1xf32> to vector<16x16xf32>
    %49 = arith.subf %45, %48 : vector<16x16xf32>
    %50 = math.exp %49 : vector<16x16xf32>
    %cst_30 = arith.constant dense<0.000000e+00> : vector<16xf32>
    %51 = vector.multi_reduction <add>, %50, %cst_30 [1] : vector<16x16xf32> to vector<16xf32>
    %52 = vector.shape_cast %51 : vector<16xf32> to vector<16x1xf32>
    %53 = tpu.reciprocal %52 {approx = true} : vector<16x1xf32> -> vector<16x1xf32>
    %54 = vector.broadcast %53 : vector<16x1xf32> to vector<16x16xf32>
    %55 = arith.mulf %50, %54 : vector<16x16xf32>
    %cst_31 = arith.constant dense<0.000000e+00> : vector<16x8xf32>
    %56 = tpu.matmul %55, %43, %cst_31 {dimension_numbers = #tpu.dot_dimension_numbers<[1], [0], [0], [1], [0, 0, 1, 1], [], []>} : vector<16x16xf32>, vector<16x8xf32>, vector<16x8xf32> -> vector<16x8xf32>
    %57 = vector.extract_strided_slice %40 {offsets = [0, 8], sizes = [16, 8], strides = [1, 1]} : vector<16x96xf32> to vector<16x8xf32>
    %58 = vector.extract_strided_slice %40 {offsets = [0, 40], sizes = [16, 8], strides = [1, 1]} : vector<16x96xf32> to vector<16x8xf32>
    %59 = vector.extract_strided_slice %40 {offsets = [0, 72], sizes = [16, 8], strides = [1, 1]} : vector<16x96xf32> to vector<16x8xf32>
    %cst_32 = arith.constant dense<0.000000e+00> : vector<16x16xf32>
    %60 = tpu.matmul %57, %58, %cst_32 {dimension_numbers = #tpu.dot_dimension_numbers<[1], [1], [0], [0], [0, 0, 1, 0], [], []>} : vector<16x8xf32>, vector<16x8xf32>, vector<16x16xf32> -> vector<16x16xf32>
    %61 = arith.addf %60, %9 : vector<16x16xf32>
    %cst_33 = arith.constant dense<0xFF800000> : vector<16xf32>
    %62 = vector.multi_reduction <maximumf>, %61, %cst_33 [1] : vector<16x16xf32> to vector<16xf32>
    %63 = vector.shape_cast %62 : vector<16xf32> to vector<16x1xf32>
    %64 = vector.broadcast %63 : vector<16x1xf32> to vector<16x16xf32>
    %65 = arith.subf %61, %64 : vector<16x16xf32>
    %66 = math.exp %65 : vector<16x16xf32>
    %cst_34 = arith.constant dense<0.000000e+00> : vector<16xf32>
    %67 = vector.multi_reduction <add>, %66, %cst_34 [1] : vector<16x16xf32> to vector<16xf32>
    %68 = vector.shape_cast %67 : vector<16xf32> to vector<16x1xf32>
    %69 = tpu.reciprocal %68 {approx = true} : vector<16x1xf32> -> vector<16x1xf32>
    %70 = vector.broadcast %69 : vector<16x1xf32> to vector<16x16xf32>
    %71 = arith.mulf %66, %70 : vector<16x16xf32>
    %cst_35 = arith.constant dense<0.000000e+00> : vector<16x8xf32>
    %72 = tpu.matmul %71, %59, %cst_35 {dimension_numbers = #tpu.dot_dimension_numbers<[1], [0], [0], [1], [0, 0, 1, 1], [], []>} : vector<16x16xf32>, vector<16x8xf32>, vector<16x8xf32> -> vector<16x8xf32>
    %73 = vector.extract_strided_slice %40 {offsets = [0, 16], sizes = [16, 8], strides = [1, 1]} : vector<16x96xf32> to vector<16x8xf32>
    %74 = vector.extract_strided_slice %40 {offsets = [0, 48], sizes = [16, 8], strides = [1, 1]} : vector<16x96xf32> to vector<16x8xf32>
    %75 = vector.extract_strided_slice %40 {offsets = [0, 80], sizes = [16, 8], strides = [1, 1]} : vector<16x96xf32> to vector<16x8xf32>
    %cst_36 = arith.constant dense<0.000000e+00> : vector<16x16xf32>
    %76 = tpu.matmul %73, %74, %cst_36 {dimension_numbers = #tpu.dot_dimension_numbers<[1], [1], [0], [0], [0, 0, 1, 0], [], []>} : vector<16x8xf32>, vector<16x8xf32>, vector<16x16xf32> -> vector<16x16xf32>
    %77 = arith.addf %76, %9 : vector<16x16xf32>
    %cst_37 = arith.constant dense<0xFF800000> : vector<16xf32>
    %78 = vector.multi_reduction <maximumf>, %77, %cst_37 [1] : vector<16x16xf32> to vector<16xf32>
    %79 = vector.shape_cast %78 : vector<16xf32> to vector<16x1xf32>
    %80 = vector.broadcast %79 : vector<16x1xf32> to vector<16x16xf32>
    %81 = arith.subf %77, %80 : vector<16x16xf32>
    %82 = math.exp %81 : vector<16x16xf32>
    %cst_38 = arith.constant dense<0.000000e+00> : vector<16xf32>
    %83 = vector.multi_reduction <add>, %82, %cst_38 [1] : vector<16x16xf32> to vector<16xf32>
    %84 = vector.shape_cast %83 : vector<16xf32> to vector<16x1xf32>
    %85 = tpu.reciprocal %84 {approx = true} : vector<16x1xf32> -> vector<16x1xf32>
    %86 = vector.broadcast %85 : vector<16x1xf32> to vector<16x16xf32>
    %87 = arith.mulf %82, %86 : vector<16x16xf32>
    %cst_39 = arith.constant dense<0.000000e+00> : vector<16x8xf32>
    %88 = tpu.matmul %87, %75, %cst_39 {dimension_numbers = #tpu.dot_dimension_numbers<[1], [0], [0], [1], [0, 0, 1, 1], [], []>} : vector<16x16xf32>, vector<16x8xf32>, vector<16x8xf32> -> vector<16x8xf32>
    %89 = vector.extract_strided_slice %40 {offsets = [0, 24], sizes = [16, 8], strides = [1, 1]} : vector<16x96xf32> to vector<16x8xf32>
    %90 = vector.extract_strided_slice %40 {offsets = [0, 56], sizes = [16, 8], strides = [1, 1]} : vector<16x96xf32> to vector<16x8xf32>
    %91 = vector.extract_strided_slice %40 {offsets = [0, 88], sizes = [16, 8], strides = [1, 1]} : vector<16x96xf32> to vector<16x8xf32>
    %cst_40 = arith.constant dense<0.000000e+00> : vector<16x16xf32>
    %92 = tpu.matmul %89, %90, %cst_40 {dimension_numbers = #tpu.dot_dimension_numbers<[1], [1], [0], [0], [0, 0, 1, 0], [], []>} : vector<16x8xf32>, vector<16x8xf32>, vector<16x16xf32> -> vector<16x16xf32>
    %93 = arith.addf %92, %9 : vector<16x16xf32>
    %cst_41 = arith.constant dense<0xFF800000> : vector<16xf32>
    %94 = vector.multi_reduction <maximumf>, %93, %cst_41 [1] : vector<16x16xf32> to vector<16xf32>
    %95 = vector.shape_cast %94 : vector<16xf32> to vector<16x1xf32>
    %96 = vector.broadcast %95 : vector<16x1xf32> to vector<16x16xf32>
    %97 = arith.subf %93, %96 : vector<16x16xf32>
    %98 = math.exp %97 : vector<16x16xf32>
    %cst_42 = arith.constant dense<0.000000e+00> : vector<16xf32>
    %99 = vector.multi_reduction <add>, %98, %cst_42 [1] : vector<16x16xf32> to vector<16xf32>
    %100 = vector.shape_cast %99 : vector<16xf32> to vector<16x1xf32>
    %101 = tpu.reciprocal %100 {approx = true} : vector<16x1xf32> -> vector<16x1xf32>
    %102 = vector.broadcast %101 : vector<16x1xf32> to vector<16x16xf32>
    %103 = arith.mulf %98, %102 : vector<16x16xf32>
    %cst_43 = arith.constant dense<0.000000e+00> : vector<16x8xf32>
    %104 = tpu.matmul %103, %91, %cst_43 {dimension_numbers = #tpu.dot_dimension_numbers<[1], [0], [0], [1], [0, 0, 1, 1], [], []>} : vector<16x16xf32>, vector<16x8xf32>, vector<16x8xf32> -> vector<16x8xf32>
    %105 = tpu.concatenate %56, %72, %88, %104 in 1 : vector<16x8xf32>, vector<16x8xf32>, vector<16x8xf32>, vector<16x8xf32> -> vector<16x32xf32>
    %c0_44 = arith.constant 0 : index
    %c0_45 = arith.constant 0 : index
    %c0_46 = arith.constant 0 : index
    %106 = vector.load %arg10[%c0_44, %c0_45, %c0_46] : memref<2x32x32xf32, #tpu.memory_space<vmem>>, vector<1x32x32xf32>
    %107 = vector.shape_cast %106 : vector<1x32x32xf32> to vector<32x32xf32>
    %cst_47 = arith.constant dense<0.000000e+00> : vector<16x32xf32>
    %108 = tpu.matmul %105, %107, %cst_47 {dimension_numbers = #tpu.dot_dimension_numbers<[1], [0], [0], [1], [0, 0, 1, 1], [], []>} : vector<16x32xf32>, vector<32x32xf32>, vector<16x32xf32> -> vector<16x32xf32>
    %109 = arith.addf %8, %108 : vector<16x32xf32>
    %c0_48 = arith.constant 0 : index
    %c0_49 = arith.constant 0 : index
    %c0_50 = arith.constant 0 : index
    %110 = vector.load %arg11[%c0_48, %c0_49, %c0_50] : memref<2x1x32xf32, #tpu.memory_space<vmem>>, vector<1x1x32xf32>
    %111 = vector.shape_cast %110 : vector<1x1x32xf32> to vector<1x32xf32>
    %112 = vector.broadcast %111 : vector<1x32xf32> to vector<16x32xf32>
    %113 = arith.addf %109, %112 : vector<16x32xf32>
    %c0_51 = arith.constant 0 : index
    %c0_52 = arith.constant 0 : index
    %c0_53 = arith.constant 0 : index
    %114 = vector.load %arg12[%c0_51, %c0_52, %c0_53] : memref<2x1x32xf32, #tpu.memory_space<vmem>>, vector<1x1x32xf32>
    %115 = vector.shape_cast %114 : vector<1x1x32xf32> to vector<1x32xf32>
    %c0_54 = arith.constant 0 : index
    %c0_55 = arith.constant 0 : index
    %c0_56 = arith.constant 0 : index
    %116 = vector.load %arg13[%c0_54, %c0_55, %c0_56] : memref<2x1x32xf32, #tpu.memory_space<vmem>>, vector<1x1x32xf32>
    %117 = vector.shape_cast %116 : vector<1x1x32xf32> to vector<1x32xf32>
    %cst_57 = arith.constant dense<0.000000e+00> : vector<16xf32>
    %118 = vector.multi_reduction <add>, %113, %cst_57 [1] : vector<16x32xf32> to vector<16xf32>
    %119 = vector.shape_cast %118 : vector<16xf32> to vector<16x1xf32>
    %cst_58 = arith.constant 3.200000e+01 : f32
    %120 = vector.broadcast %cst_58 : f32 to vector<16x1xf32>
    %121 = arith.divf %119, %120 : vector<16x1xf32>
    %122 = vector.broadcast %121 : vector<16x1xf32> to vector<16x32xf32>
    %123 = arith.subf %113, %122 : vector<16x32xf32>
    %124 = arith.mulf %123, %123 : vector<16x32xf32>
    %cst_59 = arith.constant dense<0.000000e+00> : vector<16xf32>
    %125 = vector.multi_reduction <add>, %124, %cst_59 [1] : vector<16x32xf32> to vector<16xf32>
    %126 = vector.shape_cast %125 : vector<16xf32> to vector<16x1xf32>
    %cst_60 = arith.constant 3.200000e+01 : f32
    %127 = vector.broadcast %cst_60 : f32 to vector<16x1xf32>
    %128 = arith.divf %126, %127 : vector<16x1xf32>
    %cst_61 = arith.constant 9.99999997E-7 : f32
    %129 = vector.broadcast %cst_61 : f32 to vector<16x1xf32>
    %130 = arith.addf %128, %129 : vector<16x1xf32>
    %131 = math.rsqrt %130 : vector<16x1xf32>
    %132 = vector.broadcast %131 : vector<16x1xf32> to vector<16x32xf32>
    %133 = arith.mulf %123, %132 : vector<16x32xf32>
    %134 = vector.broadcast %115 : vector<1x32xf32> to vector<16x32xf32>
    %135 = arith.mulf %133, %134 : vector<16x32xf32>
    %136 = vector.broadcast %117 : vector<1x32xf32> to vector<16x32xf32>
    %137 = arith.addf %135, %136 : vector<16x32xf32>
    %c0_62 = arith.constant 0 : index
    %c0_63 = arith.constant 0 : index
    %c0_64 = arith.constant 0 : index
    %138 = vector.load %arg14[%c0_62, %c0_63, %c0_64] : memref<2x32x64xf32, #tpu.memory_space<vmem>>, vector<1x32x64xf32>
    %139 = vector.shape_cast %138 : vector<1x32x64xf32> to vector<32x64xf32>
    %cst_65 = arith.constant dense<0.000000e+00> : vector<16x64xf32>
    %140 = tpu.matmul %137, %139, %cst_65 {dimension_numbers = #tpu.dot_dimension_numbers<[1], [0], [0], [1], [0, 0, 1, 1], [], []>} : vector<16x32xf32>, vector<32x64xf32>, vector<16x64xf32> -> vector<16x64xf32>
    %c0_66 = arith.constant 0 : index
    %c0_67 = arith.constant 0 : index
    %c0_68 = arith.constant 0 : index
    %141 = vector.load %arg15[%c0_66, %c0_67, %c0_68] : memref<2x1x64xf32, #tpu.memory_space<vmem>>, vector<1x1x64xf32>
    %142 = vector.shape_cast %141 : vector<1x1x64xf32> to vector<1x64xf32>
    %143 = vector.broadcast %142 : vector<1x64xf32> to vector<16x64xf32>
    %144 = arith.addf %140, %143 : vector<16x64xf32>
    %cst_69 = arith.constant 5.000000e-01 : f32
    %145 = vector.broadcast %cst_69 : f32 to vector<16x64xf32>
    %146 = arith.mulf %145, %144 : vector<16x64xf32>
    %cst_70 = arith.constant 4.471500e-02 : f32
    %147 = vector.broadcast %cst_70 : f32 to vector<16x64xf32>
    %148 = arith.mulf %147, %144 : vector<16x64xf32>
    %149 = arith.mulf %148, %144 : vector<16x64xf32>
    %150 = arith.mulf %149, %144 : vector<16x64xf32>
    %151 = arith.addf %144, %150 : vector<16x64xf32>
    %cst_71 = arith.constant 0.797884583 : f32
    %152 = vector.broadcast %cst_71 : f32 to vector<16x64xf32>
    %153 = arith.mulf %152, %151 : vector<16x64xf32>
    %154 = math.tanh %153 : vector<16x64xf32>
    %cst_72 = arith.constant 1.000000e+00 : f32
    %155 = vector.broadcast %cst_72 : f32 to vector<16x64xf32>
    %156 = arith.addf %155, %154 : vector<16x64xf32>
    %157 = arith.mulf %146, %156 : vector<16x64xf32>
    %c0_73 = arith.constant 0 : index
    %c0_74 = arith.constant 0 : index
    %c0_75 = arith.constant 0 : index
    %158 = vector.load %arg16[%c0_73, %c0_74, %c0_75] : memref<2x64x32xf32, #tpu.memory_space<vmem>>, vector<1x64x32xf32>
    %159 = vector.shape_cast %158 : vector<1x64x32xf32> to vector<64x32xf32>
    %cst_76 = arith.constant dense<0.000000e+00> : vector<16x32xf32>
    %160 = tpu.matmul %157, %159, %cst_76 {dimension_numbers = #tpu.dot_dimension_numbers<[1], [0], [0], [1], [0, 0, 1, 1], [], []>} : vector<16x64xf32>, vector<64x32xf32>, vector<16x32xf32> -> vector<16x32xf32>
    %161 = arith.addf %113, %160 : vector<16x32xf32>
    %c0_77 = arith.constant 0 : index
    %c0_78 = arith.constant 0 : index
    %c0_79 = arith.constant 0 : index
    %162 = vector.load %arg17[%c0_77, %c0_78, %c0_79] : memref<2x1x32xf32, #tpu.memory_space<vmem>>, vector<1x1x32xf32>
    %163 = vector.shape_cast %162 : vector<1x1x32xf32> to vector<1x32xf32>
    %164 = vector.broadcast %163 : vector<1x32xf32> to vector<16x32xf32>
    %165 = arith.addf %161, %164 : vector<16x32xf32>
    %c1 = arith.constant 1 : index
    %c0_80 = arith.constant 0 : index
    %c0_81 = arith.constant 0 : index
    %166 = vector.load %arg6[%c1, %c0_80, %c0_81] : memref<2x1x32xf32, #tpu.memory_space<vmem>>, vector<1x1x32xf32>
    %167 = vector.shape_cast %166 : vector<1x1x32xf32> to vector<1x32xf32>
    %c1_82 = arith.constant 1 : index
    %c0_83 = arith.constant 0 : index
    %c0_84 = arith.constant 0 : index
    %168 = vector.load %arg7[%c1_82, %c0_83, %c0_84] : memref<2x1x32xf32, #tpu.memory_space<vmem>>, vector<1x1x32xf32>
    %169 = vector.shape_cast %168 : vector<1x1x32xf32> to vector<1x32xf32>
    %cst_85 = arith.constant dense<0.000000e+00> : vector<16xf32>
    %170 = vector.multi_reduction <add>, %165, %cst_85 [1] : vector<16x32xf32> to vector<16xf32>
    %171 = vector.shape_cast %170 : vector<16xf32> to vector<16x1xf32>
    %cst_86 = arith.constant 3.200000e+01 : f32
    %172 = vector.broadcast %cst_86 : f32 to vector<16x1xf32>
    %173 = arith.divf %171, %172 : vector<16x1xf32>
    %174 = vector.broadcast %173 : vector<16x1xf32> to vector<16x32xf32>
    %175 = arith.subf %165, %174 : vector<16x32xf32>
    %176 = arith.mulf %175, %175 : vector<16x32xf32>
    %cst_87 = arith.constant dense<0.000000e+00> : vector<16xf32>
    %177 = vector.multi_reduction <add>, %176, %cst_87 [1] : vector<16x32xf32> to vector<16xf32>
    %178 = vector.shape_cast %177 : vector<16xf32> to vector<16x1xf32>
    %cst_88 = arith.constant 3.200000e+01 : f32
    %179 = vector.broadcast %cst_88 : f32 to vector<16x1xf32>
    %180 = arith.divf %178, %179 : vector<16x1xf32>
    %cst_89 = arith.constant 9.99999997E-7 : f32
    %181 = vector.broadcast %cst_89 : f32 to vector<16x1xf32>
    %182 = arith.addf %180, %181 : vector<16x1xf32>
    %183 = math.rsqrt %182 : vector<16x1xf32>
    %184 = vector.broadcast %183 : vector<16x1xf32> to vector<16x32xf32>
    %185 = arith.mulf %175, %184 : vector<16x32xf32>
    %186 = vector.broadcast %167 : vector<1x32xf32> to vector<16x32xf32>
    %187 = arith.mulf %185, %186 : vector<16x32xf32>
    %188 = vector.broadcast %169 : vector<1x32xf32> to vector<16x32xf32>
    %189 = arith.addf %187, %188 : vector<16x32xf32>
    %c1_90 = arith.constant 1 : index
    %c0_91 = arith.constant 0 : index
    %c0_92 = arith.constant 0 : index
    %190 = vector.load %arg8[%c1_90, %c0_91, %c0_92] : memref<2x32x96xf32, #tpu.memory_space<vmem>>, vector<1x32x96xf32>
    %191 = vector.shape_cast %190 : vector<1x32x96xf32> to vector<32x96xf32>
    %cst_93 = arith.constant dense<0.000000e+00> : vector<16x96xf32>
    %192 = tpu.matmul %189, %191, %cst_93 {dimension_numbers = #tpu.dot_dimension_numbers<[1], [0], [0], [1], [0, 0, 1, 1], [], []>} : vector<16x32xf32>, vector<32x96xf32>, vector<16x96xf32> -> vector<16x96xf32>
    %c1_94 = arith.constant 1 : index
    %c0_95 = arith.constant 0 : index
    %c0_96 = arith.constant 0 : index
    %193 = vector.load %arg9[%c1_94, %c0_95, %c0_96] : memref<2x1x96xf32, #tpu.memory_space<vmem>>, vector<1x1x96xf32>
    %194 = vector.shape_cast %193 : vector<1x1x96xf32> to vector<1x96xf32>
    %195 = vector.broadcast %194 : vector<1x96xf32> to vector<16x96xf32>
    %196 = arith.addf %192, %195 : vector<16x96xf32>
    %197 = vector.extract_strided_slice %196 {offsets = [0, 0], sizes = [16, 8], strides = [1, 1]} : vector<16x96xf32> to vector<16x8xf32>
    %198 = vector.extract_strided_slice %196 {offsets = [0, 32], sizes = [16, 8], strides = [1, 1]} : vector<16x96xf32> to vector<16x8xf32>
    %199 = vector.extract_strided_slice %196 {offsets = [0, 64], sizes = [16, 8], strides = [1, 1]} : vector<16x96xf32> to vector<16x8xf32>
    %cst_97 = arith.constant dense<0.000000e+00> : vector<16x16xf32>
    %200 = tpu.matmul %197, %198, %cst_97 {dimension_numbers = #tpu.dot_dimension_numbers<[1], [1], [0], [0], [0, 0, 1, 0], [], []>} : vector<16x8xf32>, vector<16x8xf32>, vector<16x16xf32> -> vector<16x16xf32>
    %201 = arith.addf %200, %9 : vector<16x16xf32>
    %cst_98 = arith.constant dense<0xFF800000> : vector<16xf32>
    %202 = vector.multi_reduction <maximumf>, %201, %cst_98 [1] : vector<16x16xf32> to vector<16xf32>
    %203 = vector.shape_cast %202 : vector<16xf32> to vector<16x1xf32>
    %204 = vector.broadcast %203 : vector<16x1xf32> to vector<16x16xf32>
    %205 = arith.subf %201, %204 : vector<16x16xf32>
    %206 = math.exp %205 : vector<16x16xf32>
    %cst_99 = arith.constant dense<0.000000e+00> : vector<16xf32>
    %207 = vector.multi_reduction <add>, %206, %cst_99 [1] : vector<16x16xf32> to vector<16xf32>
    %208 = vector.shape_cast %207 : vector<16xf32> to vector<16x1xf32>
    %209 = tpu.reciprocal %208 {approx = true} : vector<16x1xf32> -> vector<16x1xf32>
    %210 = vector.broadcast %209 : vector<16x1xf32> to vector<16x16xf32>
    %211 = arith.mulf %206, %210 : vector<16x16xf32>
    %cst_100 = arith.constant dense<0.000000e+00> : vector<16x8xf32>
    %212 = tpu.matmul %211, %199, %cst_100 {dimension_numbers = #tpu.dot_dimension_numbers<[1], [0], [0], [1], [0, 0, 1, 1], [], []>} : vector<16x16xf32>, vector<16x8xf32>, vector<16x8xf32> -> vector<16x8xf32>
    %213 = vector.extract_strided_slice %196 {offsets = [0, 8], sizes = [16, 8], strides = [1, 1]} : vector<16x96xf32> to vector<16x8xf32>
    %214 = vector.extract_strided_slice %196 {offsets = [0, 40], sizes = [16, 8], strides = [1, 1]} : vector<16x96xf32> to vector<16x8xf32>
    %215 = vector.extract_strided_slice %196 {offsets = [0, 72], sizes = [16, 8], strides = [1, 1]} : vector<16x96xf32> to vector<16x8xf32>
    %cst_101 = arith.constant dense<0.000000e+00> : vector<16x16xf32>
    %216 = tpu.matmul %213, %214, %cst_101 {dimension_numbers = #tpu.dot_dimension_numbers<[1], [1], [0], [0], [0, 0, 1, 0], [], []>} : vector<16x8xf32>, vector<16x8xf32>, vector<16x16xf32> -> vector<16x16xf32>
    %217 = arith.addf %216, %9 : vector<16x16xf32>
    %cst_102 = arith.constant dense<0xFF800000> : vector<16xf32>
    %218 = vector.multi_reduction <maximumf>, %217, %cst_102 [1] : vector<16x16xf32> to vector<16xf32>
    %219 = vector.shape_cast %218 : vector<16xf32> to vector<16x1xf32>
    %220 = vector.broadcast %219 : vector<16x1xf32> to vector<16x16xf32>
    %221 = arith.subf %217, %220 : vector<16x16xf32>
    %222 = math.exp %221 : vector<16x16xf32>
    %cst_103 = arith.constant dense<0.000000e+00> : vector<16xf32>
    %223 = vector.multi_reduction <add>, %222, %cst_103 [1] : vector<16x16xf32> to vector<16xf32>
    %224 = vector.shape_cast %223 : vector<16xf32> to vector<16x1xf32>
    %225 = tpu.reciprocal %224 {approx = true} : vector<16x1xf32> -> vector<16x1xf32>
    %226 = vector.broadcast %225 : vector<16x1xf32> to vector<16x16xf32>
    %227 = arith.mulf %222, %226 : vector<16x16xf32>
    %cst_104 = arith.constant dense<0.000000e+00> : vector<16x8xf32>
    %228 = tpu.matmul %227, %215, %cst_104 {dimension_numbers = #tpu.dot_dimension_numbers<[1], [0], [0], [1], [0, 0, 1, 1], [], []>} : vector<16x16xf32>, vector<16x8xf32>, vector<16x8xf32> -> vector<16x8xf32>
    %229 = vector.extract_strided_slice %196 {offsets = [0, 16], sizes = [16, 8], strides = [1, 1]} : vector<16x96xf32> to vector<16x8xf32>
    %230 = vector.extract_strided_slice %196 {offsets = [0, 48], sizes = [16, 8], strides = [1, 1]} : vector<16x96xf32> to vector<16x8xf32>
    %231 = vector.extract_strided_slice %196 {offsets = [0, 80], sizes = [16, 8], strides = [1, 1]} : vector<16x96xf32> to vector<16x8xf32>
    %cst_105 = arith.constant dense<0.000000e+00> : vector<16x16xf32>
    %232 = tpu.matmul %229, %230, %cst_105 {dimension_numbers = #tpu.dot_dimension_numbers<[1], [1], [0], [0], [0, 0, 1, 0], [], []>} : vector<16x8xf32>, vector<16x8xf32>, vector<16x16xf32> -> vector<16x16xf32>
    %233 = arith.addf %232, %9 : vector<16x16xf32>
    %cst_106 = arith.constant dense<0xFF800000> : vector<16xf32>
    %234 = vector.multi_reduction <maximumf>, %233, %cst_106 [1] : vector<16x16xf32> to vector<16xf32>
    %235 = vector.shape_cast %234 : vector<16xf32> to vector<16x1xf32>
    %236 = vector.broadcast %235 : vector<16x1xf32> to vector<16x16xf32>
    %237 = arith.subf %233, %236 : vector<16x16xf32>
    %238 = math.exp %237 : vector<16x16xf32>
    %cst_107 = arith.constant dense<0.000000e+00> : vector<16xf32>
    %239 = vector.multi_reduction <add>, %238, %cst_107 [1] : vector<16x16xf32> to vector<16xf32>
    %240 = vector.shape_cast %239 : vector<16xf32> to vector<16x1xf32>
    %241 = tpu.reciprocal %240 {approx = true} : vector<16x1xf32> -> vector<16x1xf32>
    %242 = vector.broadcast %241 : vector<16x1xf32> to vector<16x16xf32>
    %243 = arith.mulf %238, %242 : vector<16x16xf32>
    %cst_108 = arith.constant dense<0.000000e+00> : vector<16x8xf32>
    %244 = tpu.matmul %243, %231, %cst_108 {dimension_numbers = #tpu.dot_dimension_numbers<[1], [0], [0], [1], [0, 0, 1, 1], [], []>} : vector<16x16xf32>, vector<16x8xf32>, vector<16x8xf32> -> vector<16x8xf32>
    %245 = vector.extract_strided_slice %196 {offsets = [0, 24], sizes = [16, 8], strides = [1, 1]} : vector<16x96xf32> to vector<16x8xf32>
    %246 = vector.extract_strided_slice %196 {offsets = [0, 56], sizes = [16, 8], strides = [1, 1]} : vector<16x96xf32> to vector<16x8xf32>
    %247 = vector.extract_strided_slice %196 {offsets = [0, 88], sizes = [16, 8], strides = [1, 1]} : vector<16x96xf32> to vector<16x8xf32>
    %cst_109 = arith.constant dense<0.000000e+00> : vector<16x16xf32>
    %248 = tpu.matmul %245, %246, %cst_109 {dimension_numbers = #tpu.dot_dimension_numbers<[1], [1], [0], [0], [0, 0, 1, 0], [], []>} : vector<16x8xf32>, vector<16x8xf32>, vector<16x16xf32> -> vector<16x16xf32>
    %249 = arith.addf %248, %9 : vector<16x16xf32>
    %cst_110 = arith.constant dense<0xFF800000> : vector<16xf32>
    %250 = vector.multi_reduction <maximumf>, %249, %cst_110 [1] : vector<16x16xf32> to vector<16xf32>
    %251 = vector.shape_cast %250 : vector<16xf32> to vector<16x1xf32>
    %252 = vector.broadcast %251 : vector<16x1xf32> to vector<16x16xf32>
    %253 = arith.subf %249, %252 : vector<16x16xf32>
    %254 = math.exp %253 : vector<16x16xf32>
    %cst_111 = arith.constant dense<0.000000e+00> : vector<16xf32>
    %255 = vector.multi_reduction <add>, %254, %cst_111 [1] : vector<16x16xf32> to vector<16xf32>
    %256 = vector.shape_cast %255 : vector<16xf32> to vector<16x1xf32>
    %257 = tpu.reciprocal %256 {approx = true} : vector<16x1xf32> -> vector<16x1xf32>
    %258 = vector.broadcast %257 : vector<16x1xf32> to vector<16x16xf32>
    %259 = arith.mulf %254, %258 : vector<16x16xf32>
    %cst_112 = arith.constant dense<0.000000e+00> : vector<16x8xf32>
    %260 = tpu.matmul %259, %247, %cst_112 {dimension_numbers = #tpu.dot_dimension_numbers<[1], [0], [0], [1], [0, 0, 1, 1], [], []>} : vector<16x16xf32>, vector<16x8xf32>, vector<16x8xf32> -> vector<16x8xf32>
    %261 = tpu.concatenate %212, %228, %244, %260 in 1 : vector<16x8xf32>, vector<16x8xf32>, vector<16x8xf32>, vector<16x8xf32> -> vector<16x32xf32>
    %c1_113 = arith.constant 1 : index
    %c0_114 = arith.constant 0 : index
    %c0_115 = arith.constant 0 : index
    %262 = vector.load %arg10[%c1_113, %c0_114, %c0_115] : memref<2x32x32xf32, #tpu.memory_space<vmem>>, vector<1x32x32xf32>
    %263 = vector.shape_cast %262 : vector<1x32x32xf32> to vector<32x32xf32>
    %cst_116 = arith.constant dense<0.000000e+00> : vector<16x32xf32>
    %264 = tpu.matmul %261, %263, %cst_116 {dimension_numbers = #tpu.dot_dimension_numbers<[1], [0], [0], [1], [0, 0, 1, 1], [], []>} : vector<16x32xf32>, vector<32x32xf32>, vector<16x32xf32> -> vector<16x32xf32>
    %265 = arith.addf %165, %264 : vector<16x32xf32>
    %c1_117 = arith.constant 1 : index
    %c0_118 = arith.constant 0 : index
    %c0_119 = arith.constant 0 : index
    %266 = vector.load %arg11[%c1_117, %c0_118, %c0_119] : memref<2x1x32xf32, #tpu.memory_space<vmem>>, vector<1x1x32xf32>
    %267 = vector.shape_cast %266 : vector<1x1x32xf32> to vector<1x32xf32>
    %268 = vector.broadcast %267 : vector<1x32xf32> to vector<16x32xf32>
    %269 = arith.addf %265, %268 : vector<16x32xf32>
    %c1_120 = arith.constant 1 : index
    %c0_121 = arith.constant 0 : index
    %c0_122 = arith.constant 0 : index
    %270 = vector.load %arg12[%c1_120, %c0_121, %c0_122] : memref<2x1x32xf32, #tpu.memory_space<vmem>>, vector<1x1x32xf32>
    %271 = vector.shape_cast %270 : vector<1x1x32xf32> to vector<1x32xf32>
    %c1_123 = arith.constant 1 : index
    %c0_124 = arith.constant 0 : index
    %c0_125 = arith.constant 0 : index
    %272 = vector.load %arg13[%c1_123, %c0_124, %c0_125] : memref<2x1x32xf32, #tpu.memory_space<vmem>>, vector<1x1x32xf32>
    %273 = vector.shape_cast %272 : vector<1x1x32xf32> to vector<1x32xf32>
    %cst_126 = arith.constant dense<0.000000e+00> : vector<16xf32>
    %274 = vector.multi_reduction <add>, %269, %cst_126 [1] : vector<16x32xf32> to vector<16xf32>
    %275 = vector.shape_cast %274 : vector<16xf32> to vector<16x1xf32>
    %cst_127 = arith.constant 3.200000e+01 : f32
    %276 = vector.broadcast %cst_127 : f32 to vector<16x1xf32>
    %277 = arith.divf %275, %276 : vector<16x1xf32>
    %278 = vector.broadcast %277 : vector<16x1xf32> to vector<16x32xf32>
    %279 = arith.subf %269, %278 : vector<16x32xf32>
    %280 = arith.mulf %279, %279 : vector<16x32xf32>
    %cst_128 = arith.constant dense<0.000000e+00> : vector<16xf32>
    %281 = vector.multi_reduction <add>, %280, %cst_128 [1] : vector<16x32xf32> to vector<16xf32>
    %282 = vector.shape_cast %281 : vector<16xf32> to vector<16x1xf32>
    %cst_129 = arith.constant 3.200000e+01 : f32
    %283 = vector.broadcast %cst_129 : f32 to vector<16x1xf32>
    %284 = arith.divf %282, %283 : vector<16x1xf32>
    %cst_130 = arith.constant 9.99999997E-7 : f32
    %285 = vector.broadcast %cst_130 : f32 to vector<16x1xf32>
    %286 = arith.addf %284, %285 : vector<16x1xf32>
    %287 = math.rsqrt %286 : vector<16x1xf32>
    %288 = vector.broadcast %287 : vector<16x1xf32> to vector<16x32xf32>
    %289 = arith.mulf %279, %288 : vector<16x32xf32>
    %290 = vector.broadcast %271 : vector<1x32xf32> to vector<16x32xf32>
    %291 = arith.mulf %289, %290 : vector<16x32xf32>
    %292 = vector.broadcast %273 : vector<1x32xf32> to vector<16x32xf32>
    %293 = arith.addf %291, %292 : vector<16x32xf32>
    %c1_131 = arith.constant 1 : index
    %c0_132 = arith.constant 0 : index
    %c0_133 = arith.constant 0 : index
    %294 = vector.load %arg14[%c1_131, %c0_132, %c0_133] : memref<2x32x64xf32, #tpu.memory_space<vmem>>, vector<1x32x64xf32>
    %295 = vector.shape_cast %294 : vector<1x32x64xf32> to vector<32x64xf32>
    %cst_134 = arith.constant dense<0.000000e+00> : vector<16x64xf32>
    %296 = tpu.matmul %293, %295, %cst_134 {dimension_numbers = #tpu.dot_dimension_numbers<[1], [0], [0], [1], [0, 0, 1, 1], [], []>} : vector<16x32xf32>, vector<32x64xf32>, vector<16x64xf32> -> vector<16x64xf32>
    %c1_135 = arith.constant 1 : index
    %c0_136 = arith.constant 0 : index
    %c0_137 = arith.constant 0 : index
    %297 = vector.load %arg15[%c1_135, %c0_136, %c0_137] : memref<2x1x64xf32, #tpu.memory_space<vmem>>, vector<1x1x64xf32>
    %298 = vector.shape_cast %297 : vector<1x1x64xf32> to vector<1x64xf32>
    %299 = vector.broadcast %298 : vector<1x64xf32> to vector<16x64xf32>
    %300 = arith.addf %296, %299 : vector<16x64xf32>
    %cst_138 = arith.constant 5.000000e-01 : f32
    %301 = vector.broadcast %cst_138 : f32 to vector<16x64xf32>
    %302 = arith.mulf %301, %300 : vector<16x64xf32>
    %cst_139 = arith.constant 4.471500e-02 : f32
    %303 = vector.broadcast %cst_139 : f32 to vector<16x64xf32>
    %304 = arith.mulf %303, %300 : vector<16x64xf32>
    %305 = arith.mulf %304, %300 : vector<16x64xf32>
    %306 = arith.mulf %305, %300 : vector<16x64xf32>
    %307 = arith.addf %300, %306 : vector<16x64xf32>
    %cst_140 = arith.constant 0.797884583 : f32
    %308 = vector.broadcast %cst_140 : f32 to vector<16x64xf32>
    %309 = arith.mulf %308, %307 : vector<16x64xf32>
    %310 = math.tanh %309 : vector<16x64xf32>
    %cst_141 = arith.constant 1.000000e+00 : f32
    %311 = vector.broadcast %cst_141 : f32 to vector<16x64xf32>
    %312 = arith.addf %311, %310 : vector<16x64xf32>
    %313 = arith.mulf %302, %312 : vector<16x64xf32>
    %c1_142 = arith.constant 1 : index
    %c0_143 = arith.constant 0 : index
    %c0_144 = arith.constant 0 : index
    %314 = vector.load %arg16[%c1_142, %c0_143, %c0_144] : memref<2x64x32xf32, #tpu.memory_space<vmem>>, vector<1x64x32xf32>
    %315 = vector.shape_cast %314 : vector<1x64x32xf32> to vector<64x32xf32>
    %cst_145 = arith.constant dense<0.000000e+00> : vector<16x32xf32>
    %316 = tpu.matmul %313, %315, %cst_145 {dimension_numbers = #tpu.dot_dimension_numbers<[1], [0], [0], [1], [0, 0, 1, 1], [], []>} : vector<16x64xf32>, vector<64x32xf32>, vector<16x32xf32> -> vector<16x32xf32>
    %317 = arith.addf %269, %316 : vector<16x32xf32>
    %c1_146 = arith.constant 1 : index
    %c0_147 = arith.constant 0 : index
    %c0_148 = arith.constant 0 : index
    %318 = vector.load %arg17[%c1_146, %c0_147, %c0_148] : memref<2x1x32xf32, #tpu.memory_space<vmem>>, vector<1x1x32xf32>
    %319 = vector.shape_cast %318 : vector<1x1x32xf32> to vector<1x32xf32>
    %320 = vector.broadcast %319 : vector<1x32xf32> to vector<16x32xf32>
    %321 = arith.addf %317, %320 : vector<16x32xf32>
    %c0_149 = arith.constant 0 : index
    %c0_150 = arith.constant 0 : index
    %322 = vector.load %arg18[%c0_149, %c0_150] : memref<1x32xf32, #tpu.memory_space<vmem>>, vector<1x32xf32>
    %c0_151 = arith.constant 0 : index
    %c0_152 = arith.constant 0 : index
    %323 = vector.load %arg19[%c0_151, %c0_152] : memref<1x32xf32, #tpu.memory_space<vmem>>, vector<1x32xf32>
    %cst_153 = arith.constant dense<0.000000e+00> : vector<16xf32>
    %324 = vector.multi_reduction <add>, %321, %cst_153 [1] : vector<16x32xf32> to vector<16xf32>
    %325 = vector.shape_cast %324 : vector<16xf32> to vector<16x1xf32>
    %cst_154 = arith.constant 3.200000e+01 : f32
    %326 = vector.broadcast %cst_154 : f32 to vector<16x1xf32>
    %327 = arith.divf %325, %326 : vector<16x1xf32>
    %328 = vector.broadcast %327 : vector<16x1xf32> to vector<16x32xf32>
    %329 = arith.subf %321, %328 : vector<16x32xf32>
    %330 = arith.mulf %329, %329 : vector<16x32xf32>
    %cst_155 = arith.constant dense<0.000000e+00> : vector<16xf32>
    %331 = vector.multi_reduction <add>, %330, %cst_155 [1] : vector<16x32xf32> to vector<16xf32>
    %332 = vector.shape_cast %331 : vector<16xf32> to vector<16x1xf32>
    %cst_156 = arith.constant 3.200000e+01 : f32
    %333 = vector.broadcast %cst_156 : f32 to vector<16x1xf32>
    %334 = arith.divf %332, %333 : vector<16x1xf32>
    %cst_157 = arith.constant 9.99999997E-7 : f32
    %335 = vector.broadcast %cst_157 : f32 to vector<16x1xf32>
    %336 = arith.addf %334, %335 : vector<16x1xf32>
    %337 = math.rsqrt %336 : vector<16x1xf32>
    %338 = vector.broadcast %337 : vector<16x1xf32> to vector<16x32xf32>
    %339 = arith.mulf %329, %338 : vector<16x32xf32>
    %340 = vector.broadcast %322 : vector<1x32xf32> to vector<16x32xf32>
    %341 = arith.mulf %339, %340 : vector<16x32xf32>
    %342 = vector.broadcast %323 : vector<1x32xf32> to vector<16x32xf32>
    %343 = arith.addf %341, %342 : vector<16x32xf32>
    %c0_158 = arith.constant 0 : index
    %c0_159 = arith.constant 0 : index
    %344 = vector.load %arg22[%c0_158, %c0_159] : memref<1x512xf32, #tpu.memory_space<vmem>>, vector<1x512xf32>
    %c0_160 = arith.constant 0 : index
    %c0_161 = arith.constant 0 : index
    %345 = vector.load %arg23[%c0_160, %c0_161] : memref<1x512xf32, #tpu.memory_space<vmem>>, vector<1x512xf32>
    %346 = vector.extract_strided_slice %343 {offsets = [11, 0], sizes = [5, 32], strides = [1, 1]} : vector<16x32xf32> to vector<5x32xf32>
    %347 = vector.extract_strided_slice %343 {offsets = [0, 0], sizes = [11, 32], strides = [1, 1]} : vector<16x32xf32> to vector<11x32xf32>
    %348 = tpu.concatenate %346, %347 in 0 : vector<5x32xf32>, vector<11x32xf32> -> vector<16x32xf32>
    %c0_162 = arith.constant 0 : index
    %c0_163 = arith.constant 0 : index
    %c0_164 = arith.constant 0 : index
    %349 = vector.load %arg20[%c0_162, %c0_163, %c0_164] : memref<9x16x1xf32, #tpu.memory_space<vmem>>, vector<1x16x1xf32>
    %350 = vector.shape_cast %349 : vector<1x16x1xf32> to vector<16x1xf32>
    %351 = vector.broadcast %350 : vector<16x1xf32> to vector<16x32xf32>
    %352 = arith.mulf %348, %351 : vector<16x32xf32>
    %c0_165 = arith.constant 0 : index
    %c0_166 = arith.constant 0 : index
    %c0_167 = arith.constant 0 : index
    %353 = vector.load %arg21[%c0_165, %c0_166, %c0_167] : memref<9x32x512xf32, #tpu.memory_space<vmem>>, vector<1x32x512xf32>
    %354 = vector.shape_cast %353 : vector<1x32x512xf32> to vector<32x512xf32>
    %cst_168 = arith.constant dense<0.000000e+00> : vector<16x512xf32>
    %355 = tpu.matmul %352, %354, %cst_168 {dimension_numbers = #tpu.dot_dimension_numbers<[1], [0], [0], [1], [0, 0, 1, 1], [], []>} : vector<16x32xf32>, vector<32x512xf32>, vector<16x512xf32> -> vector<16x512xf32>
    %356 = vector.extract_strided_slice %343 {offsets = [12, 0], sizes = [4, 32], strides = [1, 1]} : vector<16x32xf32> to vector<4x32xf32>
    %357 = vector.extract_strided_slice %343 {offsets = [0, 0], sizes = [12, 32], strides = [1, 1]} : vector<16x32xf32> to vector<12x32xf32>
    %358 = tpu.concatenate %356, %357 in 0 : vector<4x32xf32>, vector<12x32xf32> -> vector<16x32xf32>
    %c1_169 = arith.constant 1 : index
    %c0_170 = arith.constant 0 : index
    %c0_171 = arith.constant 0 : index
    %359 = vector.load %arg20[%c1_169, %c0_170, %c0_171] : memref<9x16x1xf32, #tpu.memory_space<vmem>>, vector<1x16x1xf32>
    %360 = vector.shape_cast %359 : vector<1x16x1xf32> to vector<16x1xf32>
    %361 = vector.broadcast %360 : vector<16x1xf32> to vector<16x32xf32>
    %362 = arith.mulf %358, %361 : vector<16x32xf32>
    %c1_172 = arith.constant 1 : index
    %c0_173 = arith.constant 0 : index
    %c0_174 = arith.constant 0 : index
    %363 = vector.load %arg21[%c1_172, %c0_173, %c0_174] : memref<9x32x512xf32, #tpu.memory_space<vmem>>, vector<1x32x512xf32>
    %364 = vector.shape_cast %363 : vector<1x32x512xf32> to vector<32x512xf32>
    %cst_175 = arith.constant dense<0.000000e+00> : vector<16x512xf32>
    %365 = tpu.matmul %362, %364, %cst_175 {dimension_numbers = #tpu.dot_dimension_numbers<[1], [0], [0], [1], [0, 0, 1, 1], [], []>} : vector<16x32xf32>, vector<32x512xf32>, vector<16x512xf32> -> vector<16x512xf32>
    %366 = arith.addf %355, %365 : vector<16x512xf32>
    %367 = vector.extract_strided_slice %343 {offsets = [13, 0], sizes = [3, 32], strides = [1, 1]} : vector<16x32xf32> to vector<3x32xf32>
    %368 = vector.extract_strided_slice %343 {offsets = [0, 0], sizes = [13, 32], strides = [1, 1]} : vector<16x32xf32> to vector<13x32xf32>
    %369 = tpu.concatenate %367, %368 in 0 : vector<3x32xf32>, vector<13x32xf32> -> vector<16x32xf32>
    %c2 = arith.constant 2 : index
    %c0_176 = arith.constant 0 : index
    %c0_177 = arith.constant 0 : index
    %370 = vector.load %arg20[%c2, %c0_176, %c0_177] : memref<9x16x1xf32, #tpu.memory_space<vmem>>, vector<1x16x1xf32>
    %371 = vector.shape_cast %370 : vector<1x16x1xf32> to vector<16x1xf32>
    %372 = vector.broadcast %371 : vector<16x1xf32> to vector<16x32xf32>
    %373 = arith.mulf %369, %372 : vector<16x32xf32>
    %c2_178 = arith.constant 2 : index
    %c0_179 = arith.constant 0 : index
    %c0_180 = arith.constant 0 : index
    %374 = vector.load %arg21[%c2_178, %c0_179, %c0_180] : memref<9x32x512xf32, #tpu.memory_space<vmem>>, vector<1x32x512xf32>
    %375 = vector.shape_cast %374 : vector<1x32x512xf32> to vector<32x512xf32>
    %cst_181 = arith.constant dense<0.000000e+00> : vector<16x512xf32>
    %376 = tpu.matmul %373, %375, %cst_181 {dimension_numbers = #tpu.dot_dimension_numbers<[1], [0], [0], [1], [0, 0, 1, 1], [], []>} : vector<16x32xf32>, vector<32x512xf32>, vector<16x512xf32> -> vector<16x512xf32>
    %377 = arith.addf %366, %376 : vector<16x512xf32>
    %378 = vector.extract_strided_slice %343 {offsets = [15, 0], sizes = [1, 32], strides = [1, 1]} : vector<16x32xf32> to vector<1x32xf32>
    %379 = vector.extract_strided_slice %343 {offsets = [0, 0], sizes = [15, 32], strides = [1, 1]} : vector<16x32xf32> to vector<15x32xf32>
    %380 = tpu.concatenate %378, %379 in 0 : vector<1x32xf32>, vector<15x32xf32> -> vector<16x32xf32>
    %c3 = arith.constant 3 : index
    %c0_182 = arith.constant 0 : index
    %c0_183 = arith.constant 0 : index
    %381 = vector.load %arg20[%c3, %c0_182, %c0_183] : memref<9x16x1xf32, #tpu.memory_space<vmem>>, vector<1x16x1xf32>
    %382 = vector.shape_cast %381 : vector<1x16x1xf32> to vector<16x1xf32>
    %383 = vector.broadcast %382 : vector<16x1xf32> to vector<16x32xf32>
    %384 = arith.mulf %380, %383 : vector<16x32xf32>
    %c3_184 = arith.constant 3 : index
    %c0_185 = arith.constant 0 : index
    %c0_186 = arith.constant 0 : index
    %385 = vector.load %arg21[%c3_184, %c0_185, %c0_186] : memref<9x32x512xf32, #tpu.memory_space<vmem>>, vector<1x32x512xf32>
    %386 = vector.shape_cast %385 : vector<1x32x512xf32> to vector<32x512xf32>
    %cst_187 = arith.constant dense<0.000000e+00> : vector<16x512xf32>
    %387 = tpu.matmul %384, %386, %cst_187 {dimension_numbers = #tpu.dot_dimension_numbers<[1], [0], [0], [1], [0, 0, 1, 1], [], []>} : vector<16x32xf32>, vector<32x512xf32>, vector<16x512xf32> -> vector<16x512xf32>
    %388 = arith.addf %377, %387 : vector<16x512xf32>
    %c4 = arith.constant 4 : index
    %c0_188 = arith.constant 0 : index
    %c0_189 = arith.constant 0 : index
    %389 = vector.load %arg21[%c4, %c0_188, %c0_189] : memref<9x32x512xf32, #tpu.memory_space<vmem>>, vector<1x32x512xf32>
    %390 = vector.shape_cast %389 : vector<1x32x512xf32> to vector<32x512xf32>
    %cst_190 = arith.constant dense<0.000000e+00> : vector<16x512xf32>
    %391 = tpu.matmul %343, %390, %cst_190 {dimension_numbers = #tpu.dot_dimension_numbers<[1], [0], [0], [1], [0, 0, 1, 1], [], []>} : vector<16x32xf32>, vector<32x512xf32>, vector<16x512xf32> -> vector<16x512xf32>
    %392 = arith.addf %388, %391 : vector<16x512xf32>
    %393 = vector.extract_strided_slice %343 {offsets = [1, 0], sizes = [15, 32], strides = [1, 1]} : vector<16x32xf32> to vector<15x32xf32>
    %394 = vector.extract_strided_slice %343 {offsets = [0, 0], sizes = [1, 32], strides = [1, 1]} : vector<16x32xf32> to vector<1x32xf32>
    %395 = tpu.concatenate %393, %394 in 0 : vector<15x32xf32>, vector<1x32xf32> -> vector<16x32xf32>
    %c5 = arith.constant 5 : index
    %c0_191 = arith.constant 0 : index
    %c0_192 = arith.constant 0 : index
    %396 = vector.load %arg20[%c5, %c0_191, %c0_192] : memref<9x16x1xf32, #tpu.memory_space<vmem>>, vector<1x16x1xf32>
    %397 = vector.shape_cast %396 : vector<1x16x1xf32> to vector<16x1xf32>
    %398 = vector.broadcast %397 : vector<16x1xf32> to vector<16x32xf32>
    %399 = arith.mulf %395, %398 : vector<16x32xf32>
    %c5_193 = arith.constant 5 : index
    %c0_194 = arith.constant 0 : index
    %c0_195 = arith.constant 0 : index
    %400 = vector.load %arg21[%c5_193, %c0_194, %c0_195] : memref<9x32x512xf32, #tpu.memory_space<vmem>>, vector<1x32x512xf32>
    %401 = vector.shape_cast %400 : vector<1x32x512xf32> to vector<32x512xf32>
    %cst_196 = arith.constant dense<0.000000e+00> : vector<16x512xf32>
    %402 = tpu.matmul %399, %401, %cst_196 {dimension_numbers = #tpu.dot_dimension_numbers<[1], [0], [0], [1], [0, 0, 1, 1], [], []>} : vector<16x32xf32>, vector<32x512xf32>, vector<16x512xf32> -> vector<16x512xf32>
    %403 = arith.addf %392, %402 : vector<16x512xf32>
    %404 = vector.extract_strided_slice %343 {offsets = [3, 0], sizes = [13, 32], strides = [1, 1]} : vector<16x32xf32> to vector<13x32xf32>
    %405 = vector.extract_strided_slice %343 {offsets = [0, 0], sizes = [3, 32], strides = [1, 1]} : vector<16x32xf32> to vector<3x32xf32>
    %406 = tpu.concatenate %404, %405 in 0 : vector<13x32xf32>, vector<3x32xf32> -> vector<16x32xf32>
    %c6 = arith.constant 6 : index
    %c0_197 = arith.constant 0 : index
    %c0_198 = arith.constant 0 : index
    %407 = vector.load %arg20[%c6, %c0_197, %c0_198] : memref<9x16x1xf32, #tpu.memory_space<vmem>>, vector<1x16x1xf32>
    %408 = vector.shape_cast %407 : vector<1x16x1xf32> to vector<16x1xf32>
    %409 = vector.broadcast %408 : vector<16x1xf32> to vector<16x32xf32>
    %410 = arith.mulf %406, %409 : vector<16x32xf32>
    %c6_199 = arith.constant 6 : index
    %c0_200 = arith.constant 0 : index
    %c0_201 = arith.constant 0 : index
    %411 = vector.load %arg21[%c6_199, %c0_200, %c0_201] : memref<9x32x512xf32, #tpu.memory_space<vmem>>, vector<1x32x512xf32>
    %412 = vector.shape_cast %411 : vector<1x32x512xf32> to vector<32x512xf32>
    %cst_202 = arith.constant dense<0.000000e+00> : vector<16x512xf32>
    %413 = tpu.matmul %410, %412, %cst_202 {dimension_numbers = #tpu.dot_dimension_numbers<[1], [0], [0], [1], [0, 0, 1, 1], [], []>} : vector<16x32xf32>, vector<32x512xf32>, vector<16x512xf32> -> vector<16x512xf32>
    %414 = arith.addf %403, %413 : vector<16x512xf32>
    %415 = vector.extract_strided_slice %343 {offsets = [4, 0], sizes = [12, 32], strides = [1, 1]} : vector<16x32xf32> to vector<12x32xf32>
    %416 = vector.extract_strided_slice %343 {offsets = [0, 0], sizes = [4, 32], strides = [1, 1]} : vector<16x32xf32> to vector<4x32xf32>
    %417 = tpu.concatenate %415, %416 in 0 : vector<12x32xf32>, vector<4x32xf32> -> vector<16x32xf32>
    %c7 = arith.constant 7 : index
    %c0_203 = arith.constant 0 : index
    %c0_204 = arith.constant 0 : index
    %418 = vector.load %arg20[%c7, %c0_203, %c0_204] : memref<9x16x1xf32, #tpu.memory_space<vmem>>, vector<1x16x1xf32>
    %419 = vector.shape_cast %418 : vector<1x16x1xf32> to vector<16x1xf32>
    %420 = vector.broadcast %419 : vector<16x1xf32> to vector<16x32xf32>
    %421 = arith.mulf %417, %420 : vector<16x32xf32>
    %c7_205 = arith.constant 7 : index
    %c0_206 = arith.constant 0 : index
    %c0_207 = arith.constant 0 : index
    %422 = vector.load %arg21[%c7_205, %c0_206, %c0_207] : memref<9x32x512xf32, #tpu.memory_space<vmem>>, vector<1x32x512xf32>
    %423 = vector.shape_cast %422 : vector<1x32x512xf32> to vector<32x512xf32>
    %cst_208 = arith.constant dense<0.000000e+00> : vector<16x512xf32>
    %424 = tpu.matmul %421, %423, %cst_208 {dimension_numbers = #tpu.dot_dimension_numbers<[1], [0], [0], [1], [0, 0, 1, 1], [], []>} : vector<16x32xf32>, vector<32x512xf32>, vector<16x512xf32> -> vector<16x512xf32>
    %425 = arith.addf %414, %424 : vector<16x512xf32>
    %426 = vector.extract_strided_slice %343 {offsets = [5, 0], sizes = [11, 32], strides = [1, 1]} : vector<16x32xf32> to vector<11x32xf32>
    %427 = vector.extract_strided_slice %343 {offsets = [0, 0], sizes = [5, 32], strides = [1, 1]} : vector<16x32xf32> to vector<5x32xf32>
    %428 = tpu.concatenate %426, %427 in 0 : vector<11x32xf32>, vector<5x32xf32> -> vector<16x32xf32>
    %c8 = arith.constant 8 : index
    %c0_209 = arith.constant 0 : index
    %c0_210 = arith.constant 0 : index
    %429 = vector.load %arg20[%c8, %c0_209, %c0_210] : memref<9x16x1xf32, #tpu.memory_space<vmem>>, vector<1x16x1xf32>
    %430 = vector.shape_cast %429 : vector<1x16x1xf32> to vector<16x1xf32>
    %431 = vector.broadcast %430 : vector<16x1xf32> to vector<16x32xf32>
    %432 = arith.mulf %428, %431 : vector<16x32xf32>
    %c8_211 = arith.constant 8 : index
    %c0_212 = arith.constant 0 : index
    %c0_213 = arith.constant 0 : index
    %433 = vector.load %arg21[%c8_211, %c0_212, %c0_213] : memref<9x32x512xf32, #tpu.memory_space<vmem>>, vector<1x32x512xf32>
    %434 = vector.shape_cast %433 : vector<1x32x512xf32> to vector<32x512xf32>
    %cst_214 = arith.constant dense<0.000000e+00> : vector<16x512xf32>
    %435 = tpu.matmul %432, %434, %cst_214 {dimension_numbers = #tpu.dot_dimension_numbers<[1], [0], [0], [1], [0, 0, 1, 1], [], []>} : vector<16x32xf32>, vector<32x512xf32>, vector<16x512xf32> -> vector<16x512xf32>
    %436 = arith.addf %425, %435 : vector<16x512xf32>
    %437 = vector.broadcast %344 : vector<1x512xf32> to vector<16x512xf32>
    %438 = arith.mulf %436, %437 : vector<16x512xf32>
    %439 = vector.broadcast %345 : vector<1x512xf32> to vector<16x512xf32>
    %440 = arith.addf %438, %439 : vector<16x512xf32>
    %cst_215 = arith.constant 0.000000e+00 : f32
    %441 = vector.broadcast %cst_215 : f32 to vector<16x512xf32>
    %442 = arith.maximumf %440, %441 : vector<16x512xf32>
    %c0_216 = arith.constant 0 : index
    %c0_217 = arith.constant 0 : index
    %443 = vector.load %arg24[%c0_216, %c0_217] : memref<64x16xf32, #tpu.memory_space<vmem>>, vector<64x16xf32>
    %cst_218 = arith.constant dense<0.000000e+00> : vector<64x512xf32>
    %444 = tpu.matmul %443, %442, %cst_218 {dimension_numbers = #tpu.dot_dimension_numbers<[1], [0], [0], [1], [0, 0, 1, 1], [], []>} : vector<64x16xf32>, vector<16x512xf32>, vector<64x512xf32> -> vector<64x512xf32>
    %c0_219 = arith.constant 0 : index
    %c0_220 = arith.constant 0 : index
    %445 = vector.load %arg26[%c0_219, %c0_220] : memref<144x512xf32, #tpu.memory_space<vmem>>, vector<144x512xf32>
    %cst_221 = arith.constant dense<0.000000e+00> : vector<144x64xf32>
    %446 = tpu.matmul %445, %444, %cst_221 {dimension_numbers = #tpu.dot_dimension_numbers<[1], [1], [0], [0], [0, 0, 1, 0], [], []>} : vector<144x512xf32>, vector<64x512xf32>, vector<144x64xf32> -> vector<144x64xf32>
    %c0_222 = arith.constant 0 : index
    %c0_223 = arith.constant 0 : index
    %447 = vector.load %arg27[%c0_222, %c0_223] : memref<16x1xf32, #tpu.memory_space<vmem>>, vector<16x1xf32>
    %c0_224 = arith.constant 0 : index
    %c0_225 = arith.constant 0 : index
    %448 = vector.load %arg28[%c0_224, %c0_225] : memref<16x1xf32, #tpu.memory_space<vmem>>, vector<16x1xf32>
    %449 = vector.extract_strided_slice %446 {offsets = [0, 0], sizes = [16, 64], strides = [1, 1]} : vector<144x64xf32> to vector<16x64xf32>
    %450 = vector.extract_strided_slice %449 {offsets = [0, 55], sizes = [16, 9], strides = [1, 1]} : vector<16x64xf32> to vector<16x9xf32>
    %451 = vector.extract_strided_slice %449 {offsets = [0, 0], sizes = [16, 55], strides = [1, 1]} : vector<16x64xf32> to vector<16x55xf32>
    %452 = tpu.concatenate %450, %451 in 1 : vector<16x9xf32>, vector<16x55xf32> -> vector<16x64xf32>
    %c0_226 = arith.constant 0 : index
    %c0_227 = arith.constant 0 : index
    %c0_228 = arith.constant 0 : index
    %453 = vector.load %arg25[%c0_226, %c0_227, %c0_228] : memref<9x1x64xf32, #tpu.memory_space<vmem>>, vector<1x1x64xf32>
    %454 = vector.shape_cast %453 : vector<1x1x64xf32> to vector<1x64xf32>
    %455 = vector.broadcast %454 : vector<1x64xf32> to vector<16x64xf32>
    %456 = arith.mulf %452, %455 : vector<16x64xf32>
    %457 = vector.extract_strided_slice %446 {offsets = [16, 0], sizes = [16, 64], strides = [1, 1]} : vector<144x64xf32> to vector<16x64xf32>
    %458 = vector.extract_strided_slice %457 {offsets = [0, 56], sizes = [16, 8], strides = [1, 1]} : vector<16x64xf32> to vector<16x8xf32>
    %459 = vector.extract_strided_slice %457 {offsets = [0, 0], sizes = [16, 56], strides = [1, 1]} : vector<16x64xf32> to vector<16x56xf32>
    %460 = tpu.concatenate %458, %459 in 1 : vector<16x8xf32>, vector<16x56xf32> -> vector<16x64xf32>
    %c1_229 = arith.constant 1 : index
    %c0_230 = arith.constant 0 : index
    %c0_231 = arith.constant 0 : index
    %461 = vector.load %arg25[%c1_229, %c0_230, %c0_231] : memref<9x1x64xf32, #tpu.memory_space<vmem>>, vector<1x1x64xf32>
    %462 = vector.shape_cast %461 : vector<1x1x64xf32> to vector<1x64xf32>
    %463 = vector.broadcast %462 : vector<1x64xf32> to vector<16x64xf32>
    %464 = arith.mulf %460, %463 : vector<16x64xf32>
    %465 = arith.addf %456, %464 : vector<16x64xf32>
    %466 = vector.extract_strided_slice %446 {offsets = [32, 0], sizes = [16, 64], strides = [1, 1]} : vector<144x64xf32> to vector<16x64xf32>
    %467 = vector.extract_strided_slice %466 {offsets = [0, 57], sizes = [16, 7], strides = [1, 1]} : vector<16x64xf32> to vector<16x7xf32>
    %468 = vector.extract_strided_slice %466 {offsets = [0, 0], sizes = [16, 57], strides = [1, 1]} : vector<16x64xf32> to vector<16x57xf32>
    %469 = tpu.concatenate %467, %468 in 1 : vector<16x7xf32>, vector<16x57xf32> -> vector<16x64xf32>
    %c2_232 = arith.constant 2 : index
    %c0_233 = arith.constant 0 : index
    %c0_234 = arith.constant 0 : index
    %470 = vector.load %arg25[%c2_232, %c0_233, %c0_234] : memref<9x1x64xf32, #tpu.memory_space<vmem>>, vector<1x1x64xf32>
    %471 = vector.shape_cast %470 : vector<1x1x64xf32> to vector<1x64xf32>
    %472 = vector.broadcast %471 : vector<1x64xf32> to vector<16x64xf32>
    %473 = arith.mulf %469, %472 : vector<16x64xf32>
    %474 = arith.addf %465, %473 : vector<16x64xf32>
    %475 = vector.extract_strided_slice %446 {offsets = [48, 0], sizes = [16, 64], strides = [1, 1]} : vector<144x64xf32> to vector<16x64xf32>
    %476 = vector.extract_strided_slice %475 {offsets = [0, 63], sizes = [16, 1], strides = [1, 1]} : vector<16x64xf32> to vector<16x1xf32>
    %477 = vector.extract_strided_slice %475 {offsets = [0, 0], sizes = [16, 63], strides = [1, 1]} : vector<16x64xf32> to vector<16x63xf32>
    %478 = tpu.concatenate %476, %477 in 1 : vector<16x1xf32>, vector<16x63xf32> -> vector<16x64xf32>
    %c3_235 = arith.constant 3 : index
    %c0_236 = arith.constant 0 : index
    %c0_237 = arith.constant 0 : index
    %479 = vector.load %arg25[%c3_235, %c0_236, %c0_237] : memref<9x1x64xf32, #tpu.memory_space<vmem>>, vector<1x1x64xf32>
    %480 = vector.shape_cast %479 : vector<1x1x64xf32> to vector<1x64xf32>
    %481 = vector.broadcast %480 : vector<1x64xf32> to vector<16x64xf32>
    %482 = arith.mulf %478, %481 : vector<16x64xf32>
    %483 = arith.addf %474, %482 : vector<16x64xf32>
    %484 = vector.extract_strided_slice %446 {offsets = [64, 0], sizes = [16, 64], strides = [1, 1]} : vector<144x64xf32> to vector<16x64xf32>
    %485 = arith.addf %483, %484 : vector<16x64xf32>
    %486 = vector.extract_strided_slice %446 {offsets = [80, 0], sizes = [16, 64], strides = [1, 1]} : vector<144x64xf32> to vector<16x64xf32>
    %487 = vector.extract_strided_slice %486 {offsets = [0, 1], sizes = [16, 63], strides = [1, 1]} : vector<16x64xf32> to vector<16x63xf32>
    %488 = vector.extract_strided_slice %486 {offsets = [0, 0], sizes = [16, 1], strides = [1, 1]} : vector<16x64xf32> to vector<16x1xf32>
    %489 = tpu.concatenate %487, %488 in 1 : vector<16x63xf32>, vector<16x1xf32> -> vector<16x64xf32>
    %c5_238 = arith.constant 5 : index
    %c0_239 = arith.constant 0 : index
    %c0_240 = arith.constant 0 : index
    %490 = vector.load %arg25[%c5_238, %c0_239, %c0_240] : memref<9x1x64xf32, #tpu.memory_space<vmem>>, vector<1x1x64xf32>
    %491 = vector.shape_cast %490 : vector<1x1x64xf32> to vector<1x64xf32>
    %492 = vector.broadcast %491 : vector<1x64xf32> to vector<16x64xf32>
    %493 = arith.mulf %489, %492 : vector<16x64xf32>
    %494 = arith.addf %485, %493 : vector<16x64xf32>
    %495 = vector.extract_strided_slice %446 {offsets = [96, 0], sizes = [16, 64], strides = [1, 1]} : vector<144x64xf32> to vector<16x64xf32>
    %496 = vector.extract_strided_slice %495 {offsets = [0, 7], sizes = [16, 57], strides = [1, 1]} : vector<16x64xf32> to vector<16x57xf32>
    %497 = vector.extract_strided_slice %495 {offsets = [0, 0], sizes = [16, 7], strides = [1, 1]} : vector<16x64xf32> to vector<16x7xf32>
    %498 = tpu.concatenate %496, %497 in 1 : vector<16x57xf32>, vector<16x7xf32> -> vector<16x64xf32>
    %c6_241 = arith.constant 6 : index
    %c0_242 = arith.constant 0 : index
    %c0_243 = arith.constant 0 : index
    %499 = vector.load %arg25[%c6_241, %c0_242, %c0_243] : memref<9x1x64xf32, #tpu.memory_space<vmem>>, vector<1x1x64xf32>
    %500 = vector.shape_cast %499 : vector<1x1x64xf32> to vector<1x64xf32>
    %501 = vector.broadcast %500 : vector<1x64xf32> to vector<16x64xf32>
    %502 = arith.mulf %498, %501 : vector<16x64xf32>
    %503 = arith.addf %494, %502 : vector<16x64xf32>
    %504 = vector.extract_strided_slice %446 {offsets = [112, 0], sizes = [16, 64], strides = [1, 1]} : vector<144x64xf32> to vector<16x64xf32>
    %505 = vector.extract_strided_slice %504 {offsets = [0, 8], sizes = [16, 56], strides = [1, 1]} : vector<16x64xf32> to vector<16x56xf32>
    %506 = vector.extract_strided_slice %504 {offsets = [0, 0], sizes = [16, 8], strides = [1, 1]} : vector<16x64xf32> to vector<16x8xf32>
    %507 = tpu.concatenate %505, %506 in 1 : vector<16x56xf32>, vector<16x8xf32> -> vector<16x64xf32>
    %c7_244 = arith.constant 7 : index
    %c0_245 = arith.constant 0 : index
    %c0_246 = arith.constant 0 : index
    %508 = vector.load %arg25[%c7_244, %c0_245, %c0_246] : memref<9x1x64xf32, #tpu.memory_space<vmem>>, vector<1x1x64xf32>
    %509 = vector.shape_cast %508 : vector<1x1x64xf32> to vector<1x64xf32>
    %510 = vector.broadcast %509 : vector<1x64xf32> to vector<16x64xf32>
    %511 = arith.mulf %507, %510 : vector<16x64xf32>
    %512 = arith.addf %503, %511 : vector<16x64xf32>
    %513 = vector.extract_strided_slice %446 {offsets = [128, 0], sizes = [16, 64], strides = [1, 1]} : vector<144x64xf32> to vector<16x64xf32>
    %514 = vector.extract_strided_slice %513 {offsets = [0, 9], sizes = [16, 55], strides = [1, 1]} : vector<16x64xf32> to vector<16x55xf32>
    %515 = vector.extract_strided_slice %513 {offsets = [0, 0], sizes = [16, 9], strides = [1, 1]} : vector<16x64xf32> to vector<16x9xf32>
    %516 = tpu.concatenate %514, %515 in 1 : vector<16x55xf32>, vector<16x9xf32> -> vector<16x64xf32>
    %c8_247 = arith.constant 8 : index
    %c0_248 = arith.constant 0 : index
    %c0_249 = arith.constant 0 : index
    %517 = vector.load %arg25[%c8_247, %c0_248, %c0_249] : memref<9x1x64xf32, #tpu.memory_space<vmem>>, vector<1x1x64xf32>
    %518 = vector.shape_cast %517 : vector<1x1x64xf32> to vector<1x64xf32>
    %519 = vector.broadcast %518 : vector<1x64xf32> to vector<16x64xf32>
    %520 = arith.mulf %516, %519 : vector<16x64xf32>
    %521 = arith.addf %512, %520 : vector<16x64xf32>
    %522 = vector.broadcast %447 : vector<16x1xf32> to vector<16x64xf32>
    %523 = arith.mulf %521, %522 : vector<16x64xf32>
    %524 = vector.broadcast %448 : vector<16x1xf32> to vector<16x64xf32>
    %525 = arith.addf %523, %524 : vector<16x64xf32>
    %cst_250 = arith.constant 0.000000e+00 : f32
    %526 = vector.broadcast %cst_250 : f32 to vector<16x64xf32>
    %527 = arith.maximumf %525, %526 : vector<16x64xf32>
    %c0_251 = arith.constant 0 : index
    %c0_252 = arith.constant 0 : index
    %528 = vector.load %arg29[%c0_251, %c0_252] : memref<144x16xf32, #tpu.memory_space<vmem>>, vector<144x16xf32>
    %cst_253 = arith.constant dense<0.000000e+00> : vector<144x64xf32>
    %529 = tpu.matmul %528, %527, %cst_253 {dimension_numbers = #tpu.dot_dimension_numbers<[1], [0], [0], [1], [0, 0, 1, 1], [], []>} : vector<144x16xf32>, vector<16x64xf32>, vector<144x64xf32> -> vector<144x64xf32>
    %c0_254 = arith.constant 0 : index
    %c0_255 = arith.constant 0 : index
    %530 = vector.load %arg30[%c0_254, %c0_255] : memref<16x1xf32, #tpu.memory_space<vmem>>, vector<16x1xf32>
    %c0_256 = arith.constant 0 : index
    %c0_257 = arith.constant 0 : index
    %531 = vector.load %arg31[%c0_256, %c0_257] : memref<16x1xf32, #tpu.memory_space<vmem>>, vector<16x1xf32>
    %532 = vector.extract_strided_slice %529 {offsets = [0, 0], sizes = [16, 64], strides = [1, 1]} : vector<144x64xf32> to vector<16x64xf32>
    %533 = vector.extract_strided_slice %532 {offsets = [0, 55], sizes = [16, 9], strides = [1, 1]} : vector<16x64xf32> to vector<16x9xf32>
    %534 = vector.extract_strided_slice %532 {offsets = [0, 0], sizes = [16, 55], strides = [1, 1]} : vector<16x64xf32> to vector<16x55xf32>
    %535 = tpu.concatenate %533, %534 in 1 : vector<16x9xf32>, vector<16x55xf32> -> vector<16x64xf32>
    %c0_258 = arith.constant 0 : index
    %c0_259 = arith.constant 0 : index
    %c0_260 = arith.constant 0 : index
    %536 = vector.load %arg25[%c0_258, %c0_259, %c0_260] : memref<9x1x64xf32, #tpu.memory_space<vmem>>, vector<1x1x64xf32>
    %537 = vector.shape_cast %536 : vector<1x1x64xf32> to vector<1x64xf32>
    %538 = vector.broadcast %537 : vector<1x64xf32> to vector<16x64xf32>
    %539 = arith.mulf %535, %538 : vector<16x64xf32>
    %540 = vector.extract_strided_slice %529 {offsets = [16, 0], sizes = [16, 64], strides = [1, 1]} : vector<144x64xf32> to vector<16x64xf32>
    %541 = vector.extract_strided_slice %540 {offsets = [0, 56], sizes = [16, 8], strides = [1, 1]} : vector<16x64xf32> to vector<16x8xf32>
    %542 = vector.extract_strided_slice %540 {offsets = [0, 0], sizes = [16, 56], strides = [1, 1]} : vector<16x64xf32> to vector<16x56xf32>
    %543 = tpu.concatenate %541, %542 in 1 : vector<16x8xf32>, vector<16x56xf32> -> vector<16x64xf32>
    %c1_261 = arith.constant 1 : index
    %c0_262 = arith.constant 0 : index
    %c0_263 = arith.constant 0 : index
    %544 = vector.load %arg25[%c1_261, %c0_262, %c0_263] : memref<9x1x64xf32, #tpu.memory_space<vmem>>, vector<1x1x64xf32>
    %545 = vector.shape_cast %544 : vector<1x1x64xf32> to vector<1x64xf32>
    %546 = vector.broadcast %545 : vector<1x64xf32> to vector<16x64xf32>
    %547 = arith.mulf %543, %546 : vector<16x64xf32>
    %548 = arith.addf %539, %547 : vector<16x64xf32>
    %549 = vector.extract_strided_slice %529 {offsets = [32, 0], sizes = [16, 64], strides = [1, 1]} : vector<144x64xf32> to vector<16x64xf32>
    %550 = vector.extract_strided_slice %549 {offsets = [0, 57], sizes = [16, 7], strides = [1, 1]} : vector<16x64xf32> to vector<16x7xf32>
    %551 = vector.extract_strided_slice %549 {offsets = [0, 0], sizes = [16, 57], strides = [1, 1]} : vector<16x64xf32> to vector<16x57xf32>
    %552 = tpu.concatenate %550, %551 in 1 : vector<16x7xf32>, vector<16x57xf32> -> vector<16x64xf32>
    %c2_264 = arith.constant 2 : index
    %c0_265 = arith.constant 0 : index
    %c0_266 = arith.constant 0 : index
    %553 = vector.load %arg25[%c2_264, %c0_265, %c0_266] : memref<9x1x64xf32, #tpu.memory_space<vmem>>, vector<1x1x64xf32>
    %554 = vector.shape_cast %553 : vector<1x1x64xf32> to vector<1x64xf32>
    %555 = vector.broadcast %554 : vector<1x64xf32> to vector<16x64xf32>
    %556 = arith.mulf %552, %555 : vector<16x64xf32>
    %557 = arith.addf %548, %556 : vector<16x64xf32>
    %558 = vector.extract_strided_slice %529 {offsets = [48, 0], sizes = [16, 64], strides = [1, 1]} : vector<144x64xf32> to vector<16x64xf32>
    %559 = vector.extract_strided_slice %558 {offsets = [0, 63], sizes = [16, 1], strides = [1, 1]} : vector<16x64xf32> to vector<16x1xf32>
    %560 = vector.extract_strided_slice %558 {offsets = [0, 0], sizes = [16, 63], strides = [1, 1]} : vector<16x64xf32> to vector<16x63xf32>
    %561 = tpu.concatenate %559, %560 in 1 : vector<16x1xf32>, vector<16x63xf32> -> vector<16x64xf32>
    %c3_267 = arith.constant 3 : index
    %c0_268 = arith.constant 0 : index
    %c0_269 = arith.constant 0 : index
    %562 = vector.load %arg25[%c3_267, %c0_268, %c0_269] : memref<9x1x64xf32, #tpu.memory_space<vmem>>, vector<1x1x64xf32>
    %563 = vector.shape_cast %562 : vector<1x1x64xf32> to vector<1x64xf32>
    %564 = vector.broadcast %563 : vector<1x64xf32> to vector<16x64xf32>
    %565 = arith.mulf %561, %564 : vector<16x64xf32>
    %566 = arith.addf %557, %565 : vector<16x64xf32>
    %567 = vector.extract_strided_slice %529 {offsets = [64, 0], sizes = [16, 64], strides = [1, 1]} : vector<144x64xf32> to vector<16x64xf32>
    %568 = arith.addf %566, %567 : vector<16x64xf32>
    %569 = vector.extract_strided_slice %529 {offsets = [80, 0], sizes = [16, 64], strides = [1, 1]} : vector<144x64xf32> to vector<16x64xf32>
    %570 = vector.extract_strided_slice %569 {offsets = [0, 1], sizes = [16, 63], strides = [1, 1]} : vector<16x64xf32> to vector<16x63xf32>
    %571 = vector.extract_strided_slice %569 {offsets = [0, 0], sizes = [16, 1], strides = [1, 1]} : vector<16x64xf32> to vector<16x1xf32>
    %572 = tpu.concatenate %570, %571 in 1 : vector<16x63xf32>, vector<16x1xf32> -> vector<16x64xf32>
    %c5_270 = arith.constant 5 : index
    %c0_271 = arith.constant 0 : index
    %c0_272 = arith.constant 0 : index
    %573 = vector.load %arg25[%c5_270, %c0_271, %c0_272] : memref<9x1x64xf32, #tpu.memory_space<vmem>>, vector<1x1x64xf32>
    %574 = vector.shape_cast %573 : vector<1x1x64xf32> to vector<1x64xf32>
    %575 = vector.broadcast %574 : vector<1x64xf32> to vector<16x64xf32>
    %576 = arith.mulf %572, %575 : vector<16x64xf32>
    %577 = arith.addf %568, %576 : vector<16x64xf32>
    %578 = vector.extract_strided_slice %529 {offsets = [96, 0], sizes = [16, 64], strides = [1, 1]} : vector<144x64xf32> to vector<16x64xf32>
    %579 = vector.extract_strided_slice %578 {offsets = [0, 7], sizes = [16, 57], strides = [1, 1]} : vector<16x64xf32> to vector<16x57xf32>
    %580 = vector.extract_strided_slice %578 {offsets = [0, 0], sizes = [16, 7], strides = [1, 1]} : vector<16x64xf32> to vector<16x7xf32>
    %581 = tpu.concatenate %579, %580 in 1 : vector<16x57xf32>, vector<16x7xf32> -> vector<16x64xf32>
    %c6_273 = arith.constant 6 : index
    %c0_274 = arith.constant 0 : index
    %c0_275 = arith.constant 0 : index
    %582 = vector.load %arg25[%c6_273, %c0_274, %c0_275] : memref<9x1x64xf32, #tpu.memory_space<vmem>>, vector<1x1x64xf32>
    %583 = vector.shape_cast %582 : vector<1x1x64xf32> to vector<1x64xf32>
    %584 = vector.broadcast %583 : vector<1x64xf32> to vector<16x64xf32>
    %585 = arith.mulf %581, %584 : vector<16x64xf32>
    %586 = arith.addf %577, %585 : vector<16x64xf32>
    %587 = vector.extract_strided_slice %529 {offsets = [112, 0], sizes = [16, 64], strides = [1, 1]} : vector<144x64xf32> to vector<16x64xf32>
    %588 = vector.extract_strided_slice %587 {offsets = [0, 8], sizes = [16, 56], strides = [1, 1]} : vector<16x64xf32> to vector<16x56xf32>
    %589 = vector.extract_strided_slice %587 {offsets = [0, 0], sizes = [16, 8], strides = [1, 1]} : vector<16x64xf32> to vector<16x8xf32>
    %590 = tpu.concatenate %588, %589 in 1 : vector<16x56xf32>, vector<16x8xf32> -> vector<16x64xf32>
    %c7_276 = arith.constant 7 : index
    %c0_277 = arith.constant 0 : index
    %c0_278 = arith.constant 0 : index
    %591 = vector.load %arg25[%c7_276, %c0_277, %c0_278] : memref<9x1x64xf32, #tpu.memory_space<vmem>>, vector<1x1x64xf32>
    %592 = vector.shape_cast %591 : vector<1x1x64xf32> to vector<1x64xf32>
    %593 = vector.broadcast %592 : vector<1x64xf32> to vector<16x64xf32>
    %594 = arith.mulf %590, %593 : vector<16x64xf32>
    %595 = arith.addf %586, %594 : vector<16x64xf32>
    %596 = vector.extract_strided_slice %529 {offsets = [128, 0], sizes = [16, 64], strides = [1, 1]} : vector<144x64xf32> to vector<16x64xf32>
    %597 = vector.extract_strided_slice %596 {offsets = [0, 9], sizes = [16, 55], strides = [1, 1]} : vector<16x64xf32> to vector<16x55xf32>
    %598 = vector.extract_strided_slice %596 {offsets = [0, 0], sizes = [16, 9], strides = [1, 1]} : vector<16x64xf32> to vector<16x9xf32>
    %599 = tpu.concatenate %597, %598 in 1 : vector<16x55xf32>, vector<16x9xf32> -> vector<16x64xf32>
    %c8_279 = arith.constant 8 : index
    %c0_280 = arith.constant 0 : index
    %c0_281 = arith.constant 0 : index
    %600 = vector.load %arg25[%c8_279, %c0_280, %c0_281] : memref<9x1x64xf32, #tpu.memory_space<vmem>>, vector<1x1x64xf32>
    %601 = vector.shape_cast %600 : vector<1x1x64xf32> to vector<1x64xf32>
    %602 = vector.broadcast %601 : vector<1x64xf32> to vector<16x64xf32>
    %603 = arith.mulf %599, %602 : vector<16x64xf32>
    %604 = arith.addf %595, %603 : vector<16x64xf32>
    %605 = vector.broadcast %530 : vector<16x1xf32> to vector<16x64xf32>
    %606 = arith.mulf %604, %605 : vector<16x64xf32>
    %607 = vector.broadcast %531 : vector<16x1xf32> to vector<16x64xf32>
    %608 = arith.addf %606, %607 : vector<16x64xf32>
    %cst_282 = arith.constant 0.000000e+00 : f32
    %609 = vector.broadcast %cst_282 : f32 to vector<16x64xf32>
    %610 = arith.maximumf %608, %609 : vector<16x64xf32>
    %c0_283 = arith.constant 0 : index
    %c0_284 = arith.constant 0 : index
    %611 = vector.load %arg32[%c0_283, %c0_284] : memref<64x256xf32, #tpu.memory_space<vmem>>, vector<64x256xf32>
    %cst_285 = arith.constant dense<0.000000e+00> : vector<16x256xf32>
    %612 = tpu.matmul %610, %611, %cst_285 {dimension_numbers = #tpu.dot_dimension_numbers<[1], [0], [0], [1], [0, 0, 1, 1], [], []>} : vector<16x64xf32>, vector<64x256xf32>, vector<16x256xf32> -> vector<16x256xf32>
    %c0_286 = arith.constant 0 : index
    %c0_287 = arith.constant 0 : index
    %613 = vector.load %arg34[%c0_286, %c0_287] : memref<72x16xf32, #tpu.memory_space<vmem>>, vector<72x16xf32>
    %cst_288 = arith.constant dense<0.000000e+00> : vector<72x256xf32>
    %614 = tpu.matmul %613, %612, %cst_288 {dimension_numbers = #tpu.dot_dimension_numbers<[1], [0], [0], [1], [0, 0, 1, 1], [], []>} : vector<72x16xf32>, vector<16x256xf32>, vector<72x256xf32> -> vector<72x256xf32>
    %c0_289 = arith.constant 0 : index
    %c0_290 = arith.constant 0 : index
    %615 = vector.load %arg35[%c0_289, %c0_290] : memref<8x1xf32, #tpu.memory_space<vmem>>, vector<8x1xf32>
    %c0_291 = arith.constant 0 : index
    %c0_292 = arith.constant 0 : index
    %616 = vector.load %arg36[%c0_291, %c0_292] : memref<8x1xf32, #tpu.memory_space<vmem>>, vector<8x1xf32>
    %617 = vector.extract_strided_slice %614 {offsets = [0, 0], sizes = [8, 256], strides = [1, 1]} : vector<72x256xf32> to vector<8x256xf32>
    %618 = vector.extract_strided_slice %617 {offsets = [0, 239], sizes = [8, 17], strides = [1, 1]} : vector<8x256xf32> to vector<8x17xf32>
    %619 = vector.extract_strided_slice %617 {offsets = [0, 0], sizes = [8, 239], strides = [1, 1]} : vector<8x256xf32> to vector<8x239xf32>
    %620 = tpu.concatenate %618, %619 in 1 : vector<8x17xf32>, vector<8x239xf32> -> vector<8x256xf32>
    %c0_293 = arith.constant 0 : index
    %c0_294 = arith.constant 0 : index
    %c0_295 = arith.constant 0 : index
    %621 = vector.load %arg33[%c0_293, %c0_294, %c0_295] : memref<9x1x256xf32, #tpu.memory_space<vmem>>, vector<1x1x256xf32>
    %622 = vector.shape_cast %621 : vector<1x1x256xf32> to vector<1x256xf32>
    %623 = vector.broadcast %622 : vector<1x256xf32> to vector<8x256xf32>
    %624 = arith.mulf %620, %623 : vector<8x256xf32>
    %625 = vector.extract_strided_slice %614 {offsets = [8, 0], sizes = [8, 256], strides = [1, 1]} : vector<72x256xf32> to vector<8x256xf32>
    %626 = vector.extract_strided_slice %625 {offsets = [0, 240], sizes = [8, 16], strides = [1, 1]} : vector<8x256xf32> to vector<8x16xf32>
    %627 = vector.extract_strided_slice %625 {offsets = [0, 0], sizes = [8, 240], strides = [1, 1]} : vector<8x256xf32> to vector<8x240xf32>
    %628 = tpu.concatenate %626, %627 in 1 : vector<8x16xf32>, vector<8x240xf32> -> vector<8x256xf32>
    %c1_296 = arith.constant 1 : index
    %c0_297 = arith.constant 0 : index
    %c0_298 = arith.constant 0 : index
    %629 = vector.load %arg33[%c1_296, %c0_297, %c0_298] : memref<9x1x256xf32, #tpu.memory_space<vmem>>, vector<1x1x256xf32>
    %630 = vector.shape_cast %629 : vector<1x1x256xf32> to vector<1x256xf32>
    %631 = vector.broadcast %630 : vector<1x256xf32> to vector<8x256xf32>
    %632 = arith.mulf %628, %631 : vector<8x256xf32>
    %633 = arith.addf %624, %632 : vector<8x256xf32>
    %634 = vector.extract_strided_slice %614 {offsets = [16, 0], sizes = [8, 256], strides = [1, 1]} : vector<72x256xf32> to vector<8x256xf32>
    %635 = vector.extract_strided_slice %634 {offsets = [0, 241], sizes = [8, 15], strides = [1, 1]} : vector<8x256xf32> to vector<8x15xf32>
    %636 = vector.extract_strided_slice %634 {offsets = [0, 0], sizes = [8, 241], strides = [1, 1]} : vector<8x256xf32> to vector<8x241xf32>
    %637 = tpu.concatenate %635, %636 in 1 : vector<8x15xf32>, vector<8x241xf32> -> vector<8x256xf32>
    %c2_299 = arith.constant 2 : index
    %c0_300 = arith.constant 0 : index
    %c0_301 = arith.constant 0 : index
    %638 = vector.load %arg33[%c2_299, %c0_300, %c0_301] : memref<9x1x256xf32, #tpu.memory_space<vmem>>, vector<1x1x256xf32>
    %639 = vector.shape_cast %638 : vector<1x1x256xf32> to vector<1x256xf32>
    %640 = vector.broadcast %639 : vector<1x256xf32> to vector<8x256xf32>
    %641 = arith.mulf %637, %640 : vector<8x256xf32>
    %642 = arith.addf %633, %641 : vector<8x256xf32>
    %643 = vector.extract_strided_slice %614 {offsets = [24, 0], sizes = [8, 256], strides = [1, 1]} : vector<72x256xf32> to vector<8x256xf32>
    %644 = vector.extract_strided_slice %643 {offsets = [0, 255], sizes = [8, 1], strides = [1, 1]} : vector<8x256xf32> to vector<8x1xf32>
    %645 = vector.extract_strided_slice %643 {offsets = [0, 0], sizes = [8, 255], strides = [1, 1]} : vector<8x256xf32> to vector<8x255xf32>
    %646 = tpu.concatenate %644, %645 in 1 : vector<8x1xf32>, vector<8x255xf32> -> vector<8x256xf32>
    %c3_302 = arith.constant 3 : index
    %c0_303 = arith.constant 0 : index
    %c0_304 = arith.constant 0 : index
    %647 = vector.load %arg33[%c3_302, %c0_303, %c0_304] : memref<9x1x256xf32, #tpu.memory_space<vmem>>, vector<1x1x256xf32>
    %648 = vector.shape_cast %647 : vector<1x1x256xf32> to vector<1x256xf32>
    %649 = vector.broadcast %648 : vector<1x256xf32> to vector<8x256xf32>
    %650 = arith.mulf %646, %649 : vector<8x256xf32>
    %651 = arith.addf %642, %650 : vector<8x256xf32>
    %652 = vector.extract_strided_slice %614 {offsets = [32, 0], sizes = [8, 256], strides = [1, 1]} : vector<72x256xf32> to vector<8x256xf32>
    %653 = arith.addf %651, %652 : vector<8x256xf32>
    %654 = vector.extract_strided_slice %614 {offsets = [40, 0], sizes = [8, 256], strides = [1, 1]} : vector<72x256xf32> to vector<8x256xf32>
    %655 = vector.extract_strided_slice %654 {offsets = [0, 1], sizes = [8, 255], strides = [1, 1]} : vector<8x256xf32> to vector<8x255xf32>
    %656 = vector.extract_strided_slice %654 {offsets = [0, 0], sizes = [8, 1], strides = [1, 1]} : vector<8x256xf32> to vector<8x1xf32>
    %657 = tpu.concatenate %655, %656 in 1 : vector<8x255xf32>, vector<8x1xf32> -> vector<8x256xf32>
    %c5_305 = arith.constant 5 : index
    %c0_306 = arith.constant 0 : index
    %c0_307 = arith.constant 0 : index
    %658 = vector.load %arg33[%c5_305, %c0_306, %c0_307] : memref<9x1x256xf32, #tpu.memory_space<vmem>>, vector<1x1x256xf32>
    %659 = vector.shape_cast %658 : vector<1x1x256xf32> to vector<1x256xf32>
    %660 = vector.broadcast %659 : vector<1x256xf32> to vector<8x256xf32>
    %661 = arith.mulf %657, %660 : vector<8x256xf32>
    %662 = arith.addf %653, %661 : vector<8x256xf32>
    %663 = vector.extract_strided_slice %614 {offsets = [48, 0], sizes = [8, 256], strides = [1, 1]} : vector<72x256xf32> to vector<8x256xf32>
    %664 = vector.extract_strided_slice %663 {offsets = [0, 15], sizes = [8, 241], strides = [1, 1]} : vector<8x256xf32> to vector<8x241xf32>
    %665 = vector.extract_strided_slice %663 {offsets = [0, 0], sizes = [8, 15], strides = [1, 1]} : vector<8x256xf32> to vector<8x15xf32>
    %666 = tpu.concatenate %664, %665 in 1 : vector<8x241xf32>, vector<8x15xf32> -> vector<8x256xf32>
    %c6_308 = arith.constant 6 : index
    %c0_309 = arith.constant 0 : index
    %c0_310 = arith.constant 0 : index
    %667 = vector.load %arg33[%c6_308, %c0_309, %c0_310] : memref<9x1x256xf32, #tpu.memory_space<vmem>>, vector<1x1x256xf32>
    %668 = vector.shape_cast %667 : vector<1x1x256xf32> to vector<1x256xf32>
    %669 = vector.broadcast %668 : vector<1x256xf32> to vector<8x256xf32>
    %670 = arith.mulf %666, %669 : vector<8x256xf32>
    %671 = arith.addf %662, %670 : vector<8x256xf32>
    %672 = vector.extract_strided_slice %614 {offsets = [56, 0], sizes = [8, 256], strides = [1, 1]} : vector<72x256xf32> to vector<8x256xf32>
    %673 = vector.extract_strided_slice %672 {offsets = [0, 16], sizes = [8, 240], strides = [1, 1]} : vector<8x256xf32> to vector<8x240xf32>
    %674 = vector.extract_strided_slice %672 {offsets = [0, 0], sizes = [8, 16], strides = [1, 1]} : vector<8x256xf32> to vector<8x16xf32>
    %675 = tpu.concatenate %673, %674 in 1 : vector<8x240xf32>, vector<8x16xf32> -> vector<8x256xf32>
    %c7_311 = arith.constant 7 : index
    %c0_312 = arith.constant 0 : index
    %c0_313 = arith.constant 0 : index
    %676 = vector.load %arg33[%c7_311, %c0_312, %c0_313] : memref<9x1x256xf32, #tpu.memory_space<vmem>>, vector<1x1x256xf32>
    %677 = vector.shape_cast %676 : vector<1x1x256xf32> to vector<1x256xf32>
    %678 = vector.broadcast %677 : vector<1x256xf32> to vector<8x256xf32>
    %679 = arith.mulf %675, %678 : vector<8x256xf32>
    %680 = arith.addf %671, %679 : vector<8x256xf32>
    %681 = vector.extract_strided_slice %614 {offsets = [64, 0], sizes = [8, 256], strides = [1, 1]} : vector<72x256xf32> to vector<8x256xf32>
    %682 = vector.extract_strided_slice %681 {offsets = [0, 17], sizes = [8, 239], strides = [1, 1]} : vector<8x256xf32> to vector<8x239xf32>
    %683 = vector.extract_strided_slice %681 {offsets = [0, 0], sizes = [8, 17], strides = [1, 1]} : vector<8x256xf32> to vector<8x17xf32>
    %684 = tpu.concatenate %682, %683 in 1 : vector<8x239xf32>, vector<8x17xf32> -> vector<8x256xf32>
    %c8_314 = arith.constant 8 : index
    %c0_315 = arith.constant 0 : index
    %c0_316 = arith.constant 0 : index
    %685 = vector.load %arg33[%c8_314, %c0_315, %c0_316] : memref<9x1x256xf32, #tpu.memory_space<vmem>>, vector<1x1x256xf32>
    %686 = vector.shape_cast %685 : vector<1x1x256xf32> to vector<1x256xf32>
    %687 = vector.broadcast %686 : vector<1x256xf32> to vector<8x256xf32>
    %688 = arith.mulf %684, %687 : vector<8x256xf32>
    %689 = arith.addf %680, %688 : vector<8x256xf32>
    %690 = vector.broadcast %615 : vector<8x1xf32> to vector<8x256xf32>
    %691 = arith.mulf %689, %690 : vector<8x256xf32>
    %692 = vector.broadcast %616 : vector<8x1xf32> to vector<8x256xf32>
    %693 = arith.addf %691, %692 : vector<8x256xf32>
    %cst_317 = arith.constant 0.000000e+00 : f32
    %694 = vector.broadcast %cst_317 : f32 to vector<8x256xf32>
    %695 = arith.maximumf %693, %694 : vector<8x256xf32>
    %c0_318 = arith.constant 0 : index
    %c0_319 = arith.constant 0 : index
    %696 = vector.load %arg37[%c0_318, %c0_319] : memref<72x8xf32, #tpu.memory_space<vmem>>, vector<72x8xf32>
    %cst_320 = arith.constant dense<0.000000e+00> : vector<72x256xf32>
    %697 = tpu.matmul %696, %695, %cst_320 {dimension_numbers = #tpu.dot_dimension_numbers<[1], [0], [0], [1], [0, 0, 1, 1], [], []>} : vector<72x8xf32>, vector<8x256xf32>, vector<72x256xf32> -> vector<72x256xf32>
    %c0_321 = arith.constant 0 : index
    %c0_322 = arith.constant 0 : index
    %698 = vector.load %arg38[%c0_321, %c0_322] : memref<8x1xf32, #tpu.memory_space<vmem>>, vector<8x1xf32>
    %c0_323 = arith.constant 0 : index
    %c0_324 = arith.constant 0 : index
    %699 = vector.load %arg39[%c0_323, %c0_324] : memref<8x1xf32, #tpu.memory_space<vmem>>, vector<8x1xf32>
    %700 = vector.extract_strided_slice %697 {offsets = [0, 0], sizes = [8, 256], strides = [1, 1]} : vector<72x256xf32> to vector<8x256xf32>
    %701 = vector.extract_strided_slice %700 {offsets = [0, 239], sizes = [8, 17], strides = [1, 1]} : vector<8x256xf32> to vector<8x17xf32>
    %702 = vector.extract_strided_slice %700 {offsets = [0, 0], sizes = [8, 239], strides = [1, 1]} : vector<8x256xf32> to vector<8x239xf32>
    %703 = tpu.concatenate %701, %702 in 1 : vector<8x17xf32>, vector<8x239xf32> -> vector<8x256xf32>
    %c0_325 = arith.constant 0 : index
    %c0_326 = arith.constant 0 : index
    %c0_327 = arith.constant 0 : index
    %704 = vector.load %arg33[%c0_325, %c0_326, %c0_327] : memref<9x1x256xf32, #tpu.memory_space<vmem>>, vector<1x1x256xf32>
    %705 = vector.shape_cast %704 : vector<1x1x256xf32> to vector<1x256xf32>
    %706 = vector.broadcast %705 : vector<1x256xf32> to vector<8x256xf32>
    %707 = arith.mulf %703, %706 : vector<8x256xf32>
    %708 = vector.extract_strided_slice %697 {offsets = [8, 0], sizes = [8, 256], strides = [1, 1]} : vector<72x256xf32> to vector<8x256xf32>
    %709 = vector.extract_strided_slice %708 {offsets = [0, 240], sizes = [8, 16], strides = [1, 1]} : vector<8x256xf32> to vector<8x16xf32>
    %710 = vector.extract_strided_slice %708 {offsets = [0, 0], sizes = [8, 240], strides = [1, 1]} : vector<8x256xf32> to vector<8x240xf32>
    %711 = tpu.concatenate %709, %710 in 1 : vector<8x16xf32>, vector<8x240xf32> -> vector<8x256xf32>
    %c1_328 = arith.constant 1 : index
    %c0_329 = arith.constant 0 : index
    %c0_330 = arith.constant 0 : index
    %712 = vector.load %arg33[%c1_328, %c0_329, %c0_330] : memref<9x1x256xf32, #tpu.memory_space<vmem>>, vector<1x1x256xf32>
    %713 = vector.shape_cast %712 : vector<1x1x256xf32> to vector<1x256xf32>
    %714 = vector.broadcast %713 : vector<1x256xf32> to vector<8x256xf32>
    %715 = arith.mulf %711, %714 : vector<8x256xf32>
    %716 = arith.addf %707, %715 : vector<8x256xf32>
    %717 = vector.extract_strided_slice %697 {offsets = [16, 0], sizes = [8, 256], strides = [1, 1]} : vector<72x256xf32> to vector<8x256xf32>
    %718 = vector.extract_strided_slice %717 {offsets = [0, 241], sizes = [8, 15], strides = [1, 1]} : vector<8x256xf32> to vector<8x15xf32>
    %719 = vector.extract_strided_slice %717 {offsets = [0, 0], sizes = [8, 241], strides = [1, 1]} : vector<8x256xf32> to vector<8x241xf32>
    %720 = tpu.concatenate %718, %719 in 1 : vector<8x15xf32>, vector<8x241xf32> -> vector<8x256xf32>
    %c2_331 = arith.constant 2 : index
    %c0_332 = arith.constant 0 : index
    %c0_333 = arith.constant 0 : index
    %721 = vector.load %arg33[%c2_331, %c0_332, %c0_333] : memref<9x1x256xf32, #tpu.memory_space<vmem>>, vector<1x1x256xf32>
    %722 = vector.shape_cast %721 : vector<1x1x256xf32> to vector<1x256xf32>
    %723 = vector.broadcast %722 : vector<1x256xf32> to vector<8x256xf32>
    %724 = arith.mulf %720, %723 : vector<8x256xf32>
    %725 = arith.addf %716, %724 : vector<8x256xf32>
    %726 = vector.extract_strided_slice %697 {offsets = [24, 0], sizes = [8, 256], strides = [1, 1]} : vector<72x256xf32> to vector<8x256xf32>
    %727 = vector.extract_strided_slice %726 {offsets = [0, 255], sizes = [8, 1], strides = [1, 1]} : vector<8x256xf32> to vector<8x1xf32>
    %728 = vector.extract_strided_slice %726 {offsets = [0, 0], sizes = [8, 255], strides = [1, 1]} : vector<8x256xf32> to vector<8x255xf32>
    %729 = tpu.concatenate %727, %728 in 1 : vector<8x1xf32>, vector<8x255xf32> -> vector<8x256xf32>
    %c3_334 = arith.constant 3 : index
    %c0_335 = arith.constant 0 : index
    %c0_336 = arith.constant 0 : index
    %730 = vector.load %arg33[%c3_334, %c0_335, %c0_336] : memref<9x1x256xf32, #tpu.memory_space<vmem>>, vector<1x1x256xf32>
    %731 = vector.shape_cast %730 : vector<1x1x256xf32> to vector<1x256xf32>
    %732 = vector.broadcast %731 : vector<1x256xf32> to vector<8x256xf32>
    %733 = arith.mulf %729, %732 : vector<8x256xf32>
    %734 = arith.addf %725, %733 : vector<8x256xf32>
    %735 = vector.extract_strided_slice %697 {offsets = [32, 0], sizes = [8, 256], strides = [1, 1]} : vector<72x256xf32> to vector<8x256xf32>
    %736 = arith.addf %734, %735 : vector<8x256xf32>
    %737 = vector.extract_strided_slice %697 {offsets = [40, 0], sizes = [8, 256], strides = [1, 1]} : vector<72x256xf32> to vector<8x256xf32>
    %738 = vector.extract_strided_slice %737 {offsets = [0, 1], sizes = [8, 255], strides = [1, 1]} : vector<8x256xf32> to vector<8x255xf32>
    %739 = vector.extract_strided_slice %737 {offsets = [0, 0], sizes = [8, 1], strides = [1, 1]} : vector<8x256xf32> to vector<8x1xf32>
    %740 = tpu.concatenate %738, %739 in 1 : vector<8x255xf32>, vector<8x1xf32> -> vector<8x256xf32>
    %c5_337 = arith.constant 5 : index
    %c0_338 = arith.constant 0 : index
    %c0_339 = arith.constant 0 : index
    %741 = vector.load %arg33[%c5_337, %c0_338, %c0_339] : memref<9x1x256xf32, #tpu.memory_space<vmem>>, vector<1x1x256xf32>
    %742 = vector.shape_cast %741 : vector<1x1x256xf32> to vector<1x256xf32>
    %743 = vector.broadcast %742 : vector<1x256xf32> to vector<8x256xf32>
    %744 = arith.mulf %740, %743 : vector<8x256xf32>
    %745 = arith.addf %736, %744 : vector<8x256xf32>
    %746 = vector.extract_strided_slice %697 {offsets = [48, 0], sizes = [8, 256], strides = [1, 1]} : vector<72x256xf32> to vector<8x256xf32>
    %747 = vector.extract_strided_slice %746 {offsets = [0, 15], sizes = [8, 241], strides = [1, 1]} : vector<8x256xf32> to vector<8x241xf32>
    %748 = vector.extract_strided_slice %746 {offsets = [0, 0], sizes = [8, 15], strides = [1, 1]} : vector<8x256xf32> to vector<8x15xf32>
    %749 = tpu.concatenate %747, %748 in 1 : vector<8x241xf32>, vector<8x15xf32> -> vector<8x256xf32>
    %c6_340 = arith.constant 6 : index
    %c0_341 = arith.constant 0 : index
    %c0_342 = arith.constant 0 : index
    %750 = vector.load %arg33[%c6_340, %c0_341, %c0_342] : memref<9x1x256xf32, #tpu.memory_space<vmem>>, vector<1x1x256xf32>
    %751 = vector.shape_cast %750 : vector<1x1x256xf32> to vector<1x256xf32>
    %752 = vector.broadcast %751 : vector<1x256xf32> to vector<8x256xf32>
    %753 = arith.mulf %749, %752 : vector<8x256xf32>
    %754 = arith.addf %745, %753 : vector<8x256xf32>
    %755 = vector.extract_strided_slice %697 {offsets = [56, 0], sizes = [8, 256], strides = [1, 1]} : vector<72x256xf32> to vector<8x256xf32>
    %756 = vector.extract_strided_slice %755 {offsets = [0, 16], sizes = [8, 240], strides = [1, 1]} : vector<8x256xf32> to vector<8x240xf32>
    %757 = vector.extract_strided_slice %755 {offsets = [0, 0], sizes = [8, 16], strides = [1, 1]} : vector<8x256xf32> to vector<8x16xf32>
    %758 = tpu.concatenate %756, %757 in 1 : vector<8x240xf32>, vector<8x16xf32> -> vector<8x256xf32>
    %c7_343 = arith.constant 7 : index
    %c0_344 = arith.constant 0 : index
    %c0_345 = arith.constant 0 : index
    %759 = vector.load %arg33[%c7_343, %c0_344, %c0_345] : memref<9x1x256xf32, #tpu.memory_space<vmem>>, vector<1x1x256xf32>
    %760 = vector.shape_cast %759 : vector<1x1x256xf32> to vector<1x256xf32>
    %761 = vector.broadcast %760 : vector<1x256xf32> to vector<8x256xf32>
    %762 = arith.mulf %758, %761 : vector<8x256xf32>
    %763 = arith.addf %754, %762 : vector<8x256xf32>
    %764 = vector.extract_strided_slice %697 {offsets = [64, 0], sizes = [8, 256], strides = [1, 1]} : vector<72x256xf32> to vector<8x256xf32>
    %765 = vector.extract_strided_slice %764 {offsets = [0, 17], sizes = [8, 239], strides = [1, 1]} : vector<8x256xf32> to vector<8x239xf32>
    %766 = vector.extract_strided_slice %764 {offsets = [0, 0], sizes = [8, 17], strides = [1, 1]} : vector<8x256xf32> to vector<8x17xf32>
    %767 = tpu.concatenate %765, %766 in 1 : vector<8x239xf32>, vector<8x17xf32> -> vector<8x256xf32>
    %c8_346 = arith.constant 8 : index
    %c0_347 = arith.constant 0 : index
    %c0_348 = arith.constant 0 : index
    %768 = vector.load %arg33[%c8_346, %c0_347, %c0_348] : memref<9x1x256xf32, #tpu.memory_space<vmem>>, vector<1x1x256xf32>
    %769 = vector.shape_cast %768 : vector<1x1x256xf32> to vector<1x256xf32>
    %770 = vector.broadcast %769 : vector<1x256xf32> to vector<8x256xf32>
    %771 = arith.mulf %767, %770 : vector<8x256xf32>
    %772 = arith.addf %763, %771 : vector<8x256xf32>
    %773 = vector.broadcast %698 : vector<8x1xf32> to vector<8x256xf32>
    %774 = arith.mulf %772, %773 : vector<8x256xf32>
    %775 = vector.broadcast %699 : vector<8x1xf32> to vector<8x256xf32>
    %776 = arith.addf %774, %775 : vector<8x256xf32>
    %cst_349 = arith.constant 0.000000e+00 : f32
    %777 = vector.broadcast %cst_349 : f32 to vector<8x256xf32>
    %778 = arith.maximumf %776, %777 : vector<8x256xf32>
    %c0_350 = arith.constant 0 : index
    %c0_351 = arith.constant 0 : index
    %779 = vector.load %arg40[%c0_350, %c0_351] : memref<9x8xf32, #tpu.memory_space<vmem>>, vector<9x8xf32>
    %cst_352 = arith.constant dense<0.000000e+00> : vector<9x256xf32>
    %780 = tpu.matmul %779, %778, %cst_352 {dimension_numbers = #tpu.dot_dimension_numbers<[1], [0], [0], [1], [0, 0, 1, 1], [], []>} : vector<9x8xf32>, vector<8x256xf32>, vector<9x256xf32> -> vector<9x256xf32>
    %c0_353 = arith.constant 0 : index
    %c0_354 = arith.constant 0 : index
    %781 = vector.load %arg41[%c0_353, %c0_354] : memref<1x1xf32, #tpu.memory_space<vmem>>, vector<1x1xf32>
    %782 = vector.extract_strided_slice %780 {offsets = [0, 0], sizes = [1, 256], strides = [1, 1]} : vector<9x256xf32> to vector<1x256xf32>
    %783 = vector.extract_strided_slice %782 {offsets = [0, 239], sizes = [1, 17], strides = [1, 1]} : vector<1x256xf32> to vector<1x17xf32>
    %784 = vector.extract_strided_slice %782 {offsets = [0, 0], sizes = [1, 239], strides = [1, 1]} : vector<1x256xf32> to vector<1x239xf32>
    %785 = tpu.concatenate %783, %784 in 1 : vector<1x17xf32>, vector<1x239xf32> -> vector<1x256xf32>
    %c0_355 = arith.constant 0 : index
    %c0_356 = arith.constant 0 : index
    %c0_357 = arith.constant 0 : index
    %786 = vector.load %arg33[%c0_355, %c0_356, %c0_357] : memref<9x1x256xf32, #tpu.memory_space<vmem>>, vector<1x1x256xf32>
    %787 = vector.shape_cast %786 : vector<1x1x256xf32> to vector<1x256xf32>
    %788 = arith.mulf %785, %787 : vector<1x256xf32>
    %789 = vector.extract_strided_slice %780 {offsets = [1, 0], sizes = [1, 256], strides = [1, 1]} : vector<9x256xf32> to vector<1x256xf32>
    %790 = vector.extract_strided_slice %789 {offsets = [0, 240], sizes = [1, 16], strides = [1, 1]} : vector<1x256xf32> to vector<1x16xf32>
    %791 = vector.extract_strided_slice %789 {offsets = [0, 0], sizes = [1, 240], strides = [1, 1]} : vector<1x256xf32> to vector<1x240xf32>
    %792 = tpu.concatenate %790, %791 in 1 : vector<1x16xf32>, vector<1x240xf32> -> vector<1x256xf32>
    %c1_358 = arith.constant 1 : index
    %c0_359 = arith.constant 0 : index
    %c0_360 = arith.constant 0 : index
    %793 = vector.load %arg33[%c1_358, %c0_359, %c0_360] : memref<9x1x256xf32, #tpu.memory_space<vmem>>, vector<1x1x256xf32>
    %794 = vector.shape_cast %793 : vector<1x1x256xf32> to vector<1x256xf32>
    %795 = arith.mulf %792, %794 : vector<1x256xf32>
    %796 = arith.addf %788, %795 : vector<1x256xf32>
    %797 = vector.extract_strided_slice %780 {offsets = [2, 0], sizes = [1, 256], strides = [1, 1]} : vector<9x256xf32> to vector<1x256xf32>
    %798 = vector.extract_strided_slice %797 {offsets = [0, 241], sizes = [1, 15], strides = [1, 1]} : vector<1x256xf32> to vector<1x15xf32>
    %799 = vector.extract_strided_slice %797 {offsets = [0, 0], sizes = [1, 241], strides = [1, 1]} : vector<1x256xf32> to vector<1x241xf32>
    %800 = tpu.concatenate %798, %799 in 1 : vector<1x15xf32>, vector<1x241xf32> -> vector<1x256xf32>
    %c2_361 = arith.constant 2 : index
    %c0_362 = arith.constant 0 : index
    %c0_363 = arith.constant 0 : index
    %801 = vector.load %arg33[%c2_361, %c0_362, %c0_363] : memref<9x1x256xf32, #tpu.memory_space<vmem>>, vector<1x1x256xf32>
    %802 = vector.shape_cast %801 : vector<1x1x256xf32> to vector<1x256xf32>
    %803 = arith.mulf %800, %802 : vector<1x256xf32>
    %804 = arith.addf %796, %803 : vector<1x256xf32>
    %805 = vector.extract_strided_slice %780 {offsets = [3, 0], sizes = [1, 256], strides = [1, 1]} : vector<9x256xf32> to vector<1x256xf32>
    %806 = vector.extract_strided_slice %805 {offsets = [0, 255], sizes = [1, 1], strides = [1, 1]} : vector<1x256xf32> to vector<1x1xf32>
    %807 = vector.extract_strided_slice %805 {offsets = [0, 0], sizes = [1, 255], strides = [1, 1]} : vector<1x256xf32> to vector<1x255xf32>
    %808 = tpu.concatenate %806, %807 in 1 : vector<1x1xf32>, vector<1x255xf32> -> vector<1x256xf32>
    %c3_364 = arith.constant 3 : index
    %c0_365 = arith.constant 0 : index
    %c0_366 = arith.constant 0 : index
    %809 = vector.load %arg33[%c3_364, %c0_365, %c0_366] : memref<9x1x256xf32, #tpu.memory_space<vmem>>, vector<1x1x256xf32>
    %810 = vector.shape_cast %809 : vector<1x1x256xf32> to vector<1x256xf32>
    %811 = arith.mulf %808, %810 : vector<1x256xf32>
    %812 = arith.addf %804, %811 : vector<1x256xf32>
    %813 = vector.extract_strided_slice %780 {offsets = [4, 0], sizes = [1, 256], strides = [1, 1]} : vector<9x256xf32> to vector<1x256xf32>
    %814 = arith.addf %812, %813 : vector<1x256xf32>
    %815 = vector.extract_strided_slice %780 {offsets = [5, 0], sizes = [1, 256], strides = [1, 1]} : vector<9x256xf32> to vector<1x256xf32>
    %816 = vector.extract_strided_slice %815 {offsets = [0, 1], sizes = [1, 255], strides = [1, 1]} : vector<1x256xf32> to vector<1x255xf32>
    %817 = vector.extract_strided_slice %815 {offsets = [0, 0], sizes = [1, 1], strides = [1, 1]} : vector<1x256xf32> to vector<1x1xf32>
    %818 = tpu.concatenate %816, %817 in 1 : vector<1x255xf32>, vector<1x1xf32> -> vector<1x256xf32>
    %c5_367 = arith.constant 5 : index
    %c0_368 = arith.constant 0 : index
    %c0_369 = arith.constant 0 : index
    %819 = vector.load %arg33[%c5_367, %c0_368, %c0_369] : memref<9x1x256xf32, #tpu.memory_space<vmem>>, vector<1x1x256xf32>
    %820 = vector.shape_cast %819 : vector<1x1x256xf32> to vector<1x256xf32>
    %821 = arith.mulf %818, %820 : vector<1x256xf32>
    %822 = arith.addf %814, %821 : vector<1x256xf32>
    %823 = vector.extract_strided_slice %780 {offsets = [6, 0], sizes = [1, 256], strides = [1, 1]} : vector<9x256xf32> to vector<1x256xf32>
    %824 = vector.extract_strided_slice %823 {offsets = [0, 15], sizes = [1, 241], strides = [1, 1]} : vector<1x256xf32> to vector<1x241xf32>
    %825 = vector.extract_strided_slice %823 {offsets = [0, 0], sizes = [1, 15], strides = [1, 1]} : vector<1x256xf32> to vector<1x15xf32>
    %826 = tpu.concatenate %824, %825 in 1 : vector<1x241xf32>, vector<1x15xf32> -> vector<1x256xf32>
    %c6_370 = arith.constant 6 : index
    %c0_371 = arith.constant 0 : index
    %c0_372 = arith.constant 0 : index
    %827 = vector.load %arg33[%c6_370, %c0_371, %c0_372] : memref<9x1x256xf32, #tpu.memory_space<vmem>>, vector<1x1x256xf32>
    %828 = vector.shape_cast %827 : vector<1x1x256xf32> to vector<1x256xf32>
    %829 = arith.mulf %826, %828 : vector<1x256xf32>
    %830 = arith.addf %822, %829 : vector<1x256xf32>
    %831 = vector.extract_strided_slice %780 {offsets = [7, 0], sizes = [1, 256], strides = [1, 1]} : vector<9x256xf32> to vector<1x256xf32>
    %832 = vector.extract_strided_slice %831 {offsets = [0, 16], sizes = [1, 240], strides = [1, 1]} : vector<1x256xf32> to vector<1x240xf32>
    %833 = vector.extract_strided_slice %831 {offsets = [0, 0], sizes = [1, 16], strides = [1, 1]} : vector<1x256xf32> to vector<1x16xf32>
    %834 = tpu.concatenate %832, %833 in 1 : vector<1x240xf32>, vector<1x16xf32> -> vector<1x256xf32>
    %c7_373 = arith.constant 7 : index
    %c0_374 = arith.constant 0 : index
    %c0_375 = arith.constant 0 : index
    %835 = vector.load %arg33[%c7_373, %c0_374, %c0_375] : memref<9x1x256xf32, #tpu.memory_space<vmem>>, vector<1x1x256xf32>
    %836 = vector.shape_cast %835 : vector<1x1x256xf32> to vector<1x256xf32>
    %837 = arith.mulf %834, %836 : vector<1x256xf32>
    %838 = arith.addf %830, %837 : vector<1x256xf32>
    %839 = vector.extract_strided_slice %780 {offsets = [8, 0], sizes = [1, 256], strides = [1, 1]} : vector<9x256xf32> to vector<1x256xf32>
    %840 = vector.extract_strided_slice %839 {offsets = [0, 17], sizes = [1, 239], strides = [1, 1]} : vector<1x256xf32> to vector<1x239xf32>
    %841 = vector.extract_strided_slice %839 {offsets = [0, 0], sizes = [1, 17], strides = [1, 1]} : vector<1x256xf32> to vector<1x17xf32>
    %842 = tpu.concatenate %840, %841 in 1 : vector<1x239xf32>, vector<1x17xf32> -> vector<1x256xf32>
    %c8_376 = arith.constant 8 : index
    %c0_377 = arith.constant 0 : index
    %c0_378 = arith.constant 0 : index
    %843 = vector.load %arg33[%c8_376, %c0_377, %c0_378] : memref<9x1x256xf32, #tpu.memory_space<vmem>>, vector<1x1x256xf32>
    %844 = vector.shape_cast %843 : vector<1x1x256xf32> to vector<1x256xf32>
    %845 = arith.mulf %842, %844 : vector<1x256xf32>
    %846 = arith.addf %838, %845 : vector<1x256xf32>
    %847 = vector.broadcast %781 : vector<1x1xf32> to vector<1x256xf32>
    %848 = arith.addf %846, %847 : vector<1x256xf32>
    %c0_379 = arith.constant 0 : index
    %c0_380 = arith.constant 0 : index
    %c0_381 = arith.constant 0 : index
    %849 = vector.load %arg42[%c0_379, %c0_380, %c0_381] : memref<1x1x256xf32, #tpu.memory_space<vmem>>, vector<1x1x256xf32>
    %850 = vector.shape_cast %849 : vector<1x1x256xf32> to vector<1x256xf32>
    %851 = vector.shape_cast %848 : vector<1x256xf32> to vector<1x1x256xf32>
    tpu.vector_store %arg42[%c0_379, %c0_380, %c0_381], %851 {strides = array<i32>} : memref<1x1x256xf32, #tpu.memory_space<vmem>>, vector<1x1x256xf32>,
    return
  }
  func.func @transform_0(%arg0: i32) -> (i32, i32, i32) {
    %c0_i32 = arith.constant 0 : i32
    %c0_i32_0 = arith.constant 0 : i32
    %c0_i32_1 = arith.constant 0 : i32
    return %arg0, %c0_i32, %c0_i32_0 : i32, i32, i32
  }
  func.func @transform_1(%arg0: i32) -> (i32, i32) {
    %c0_i32 = arith.constant 0 : i32
    %c0_i32_0 = arith.constant 0 : i32
    %c0_i32_1 = arith.constant 0 : i32
    return %c0_i32, %c0_i32_0 : i32, i32
  }
  func.func @transform_2(%arg0: i32) -> (i32, i32) {
    %c0_i32 = arith.constant 0 : i32
    %c0_i32_0 = arith.constant 0 : i32
    %c0_i32_1 = arith.constant 0 : i32
    return %c0_i32, %c0_i32_0 : i32, i32
  }
  func.func @transform_3(%arg0: i32) -> (i32, i32) {
    %c0_i32 = arith.constant 0 : i32
    %c0_i32_0 = arith.constant 0 : i32
    %c0_i32_1 = arith.constant 0 : i32
    return %c0_i32, %c0_i32_0 : i32, i32
  }
  func.func @transform_4(%arg0: i32) -> (i32, i32) {
    %c0_i32 = arith.constant 0 : i32
    %c0_i32_0 = arith.constant 0 : i32
    %c0_i32_1 = arith.constant 0 : i32
    return %c0_i32, %c0_i32_0 : i32, i32
  }
  func.func @transform_5(%arg0: i32) -> (i32, i32, i32) {
    %c0_i32 = arith.constant 0 : i32
    %c0_i32_0 = arith.constant 0 : i32
    %c0_i32_1 = arith.constant 0 : i32
    %c0_i32_2 = arith.constant 0 : i32
    return %c0_i32, %c0_i32_0, %c0_i32_1 : i32, i32, i32
  }
  func.func @transform_6(%arg0: i32) -> (i32, i32, i32) {
    %c0_i32 = arith.constant 0 : i32
    %c0_i32_0 = arith.constant 0 : i32
    %c0_i32_1 = arith.constant 0 : i32
    %c0_i32_2 = arith.constant 0 : i32
    return %c0_i32, %c0_i32_0, %c0_i32_1 : i32, i32, i32
  }
  func.func @transform_7(%arg0: i32) -> (i32, i32, i32) {
    %c0_i32 = arith.constant 0 : i32
    %c0_i32_0 = arith.constant 0 : i32
    %c0_i32_1 = arith.constant 0 : i32
    %c0_i32_2 = arith.constant 0 : i32
    return %c0_i32, %c0_i32_0, %c0_i32_1 : i32, i32, i32
  }
  func.func @transform_8(%arg0: i32) -> (i32, i32, i32) {
    %c0_i32 = arith.constant 0 : i32
    %c0_i32_0 = arith.constant 0 : i32
    %c0_i32_1 = arith.constant 0 : i32
    %c0_i32_2 = arith.constant 0 : i32
    return %c0_i32, %c0_i32_0, %c0_i32_1 : i32, i32, i32
  }
  func.func @transform_9(%arg0: i32) -> (i32, i32, i32) {
    %c0_i32 = arith.constant 0 : i32
    %c0_i32_0 = arith.constant 0 : i32
    %c0_i32_1 = arith.constant 0 : i32
    %c0_i32_2 = arith.constant 0 : i32
    return %c0_i32, %c0_i32_0, %c0_i32_1 : i32, i32, i32
  }
  func.func @transform_10(%arg0: i32) -> (i32, i32, i32) {
    %c0_i32 = arith.constant 0 : i32
    %c0_i32_0 = arith.constant 0 : i32
    %c0_i32_1 = arith.constant 0 : i32
    %c0_i32_2 = arith.constant 0 : i32
    return %c0_i32, %c0_i32_0, %c0_i32_1 : i32, i32, i32
  }
  func.func @transform_11(%arg0: i32) -> (i32, i32, i32) {
    %c0_i32 = arith.constant 0 : i32
    %c0_i32_0 = arith.constant 0 : i32
    %c0_i32_1 = arith.constant 0 : i32
    %c0_i32_2 = arith.constant 0 : i32
    return %c0_i32, %c0_i32_0, %c0_i32_1 : i32, i32, i32
  }
  func.func @transform_12(%arg0: i32) -> (i32, i32, i32) {
    %c0_i32 = arith.constant 0 : i32
    %c0_i32_0 = arith.constant 0 : i32
    %c0_i32_1 = arith.constant 0 : i32
    %c0_i32_2 = arith.constant 0 : i32
    return %c0_i32, %c0_i32_0, %c0_i32_1 : i32, i32, i32
  }
  func.func @transform_13(%arg0: i32) -> (i32, i32, i32) {
    %c0_i32 = arith.constant 0 : i32
    %c0_i32_0 = arith.constant 0 : i32
    %c0_i32_1 = arith.constant 0 : i32
    %c0_i32_2 = arith.constant 0 : i32
    return %c0_i32, %c0_i32_0, %c0_i32_1 : i32, i32, i32
  }
  func.func @transform_14(%arg0: i32) -> (i32, i32, i32) {
    %c0_i32 = arith.constant 0 : i32
    %c0_i32_0 = arith.constant 0 : i32
    %c0_i32_1 = arith.constant 0 : i32
    %c0_i32_2 = arith.constant 0 : i32
    return %c0_i32, %c0_i32_0, %c0_i32_1 : i32, i32, i32
  }
  func.func @transform_15(%arg0: i32) -> (i32, i32, i32) {
    %c0_i32 = arith.constant 0 : i32
    %c0_i32_0 = arith.constant 0 : i32
    %c0_i32_1 = arith.constant 0 : i32
    %c0_i32_2 = arith.constant 0 : i32
    return %c0_i32, %c0_i32_0, %c0_i32_1 : i32, i32, i32
  }
  func.func @transform_16(%arg0: i32) -> (i32, i32, i32) {
    %c0_i32 = arith.constant 0 : i32
    %c0_i32_0 = arith.constant 0 : i32
    %c0_i32_1 = arith.constant 0 : i32
    %c0_i32_2 = arith.constant 0 : i32
    return %c0_i32, %c0_i32_0, %c0_i32_1 : i32, i32, i32
  }
  func.func @transform_17(%arg0: i32) -> (i32, i32) {
    %c0_i32 = arith.constant 0 : i32
    %c0_i32_0 = arith.constant 0 : i32
    %c0_i32_1 = arith.constant 0 : i32
    return %c0_i32, %c0_i32_0 : i32, i32
  }
  func.func @transform_18(%arg0: i32) -> (i32, i32) {
    %c0_i32 = arith.constant 0 : i32
    %c0_i32_0 = arith.constant 0 : i32
    %c0_i32_1 = arith.constant 0 : i32
    return %c0_i32, %c0_i32_0 : i32, i32
  }
  func.func @transform_19(%arg0: i32) -> (i32, i32, i32) {
    %c0_i32 = arith.constant 0 : i32
    %c0_i32_0 = arith.constant 0 : i32
    %c0_i32_1 = arith.constant 0 : i32
    %c0_i32_2 = arith.constant 0 : i32
    return %c0_i32, %c0_i32_0, %c0_i32_1 : i32, i32, i32
  }
  func.func @transform_20(%arg0: i32) -> (i32, i32, i32) {
    %c0_i32 = arith.constant 0 : i32
    %c0_i32_0 = arith.constant 0 : i32
    %c0_i32_1 = arith.constant 0 : i32
    %c0_i32_2 = arith.constant 0 : i32
    return %c0_i32, %c0_i32_0, %c0_i32_1 : i32, i32, i32
  }
  func.func @transform_21(%arg0: i32) -> (i32, i32) {
    %c0_i32 = arith.constant 0 : i32
    %c0_i32_0 = arith.constant 0 : i32
    %c0_i32_1 = arith.constant 0 : i32
    return %c0_i32, %c0_i32_0 : i32, i32
  }
  func.func @transform_22(%arg0: i32) -> (i32, i32) {
    %c0_i32 = arith.constant 0 : i32
    %c0_i32_0 = arith.constant 0 : i32
    %c0_i32_1 = arith.constant 0 : i32
    return %c0_i32, %c0_i32_0 : i32, i32
  }
  func.func @transform_23(%arg0: i32) -> (i32, i32) {
    %c0_i32 = arith.constant 0 : i32
    %c0_i32_0 = arith.constant 0 : i32
    %c0_i32_1 = arith.constant 0 : i32
    return %c0_i32, %c0_i32_0 : i32, i32
  }
  func.func @transform_24(%arg0: i32) -> (i32, i32, i32) {
    %c0_i32 = arith.constant 0 : i32
    %c0_i32_0 = arith.constant 0 : i32
    %c0_i32_1 = arith.constant 0 : i32
    %c0_i32_2 = arith.constant 0 : i32
    return %c0_i32, %c0_i32_0, %c0_i32_1 : i32, i32, i32
  }
  func.func @transform_25(%arg0: i32) -> (i32, i32) {
    %c0_i32 = arith.constant 0 : i32
    %c0_i32_0 = arith.constant 0 : i32
    %c0_i32_1 = arith.constant 0 : i32
    return %c0_i32, %c0_i32_0 : i32, i32
  }
  func.func @transform_26(%arg0: i32) -> (i32, i32) {
    %c0_i32 = arith.constant 0 : i32
    %c0_i32_0 = arith.constant 0 : i32
    %c0_i32_1 = arith.constant 0 : i32
    return %c0_i32, %c0_i32_0 : i32, i32
  }
  func.func @transform_27(%arg0: i32) -> (i32, i32) {
    %c0_i32 = arith.constant 0 : i32
    %c0_i32_0 = arith.constant 0 : i32
    %c0_i32_1 = arith.constant 0 : i32
    return %c0_i32, %c0_i32_0 : i32, i32
  }
  func.func @transform_28(%arg0: i32) -> (i32, i32) {
    %c0_i32 = arith.constant 0 : i32
    %c0_i32_0 = arith.constant 0 : i32
    %c0_i32_1 = arith.constant 0 : i32
    return %c0_i32, %c0_i32_0 : i32, i32
  }
  func.func @transform_29(%arg0: i32) -> (i32, i32) {
    %c0_i32 = arith.constant 0 : i32
    %c0_i32_0 = arith.constant 0 : i32
    %c0_i32_1 = arith.constant 0 : i32
    return %c0_i32, %c0_i32_0 : i32, i32
  }
  func.func @transform_30(%arg0: i32) -> (i32, i32) {
    %c0_i32 = arith.constant 0 : i32
    %c0_i32_0 = arith.constant 0 : i32
    %c0_i32_1 = arith.constant 0 : i32
    return %c0_i32, %c0_i32_0 : i32, i32
  }
  func.func @transform_31(%arg0: i32) -> (i32, i32) {
    %c0_i32 = arith.constant 0 : i32
    %c0_i32_0 = arith.constant 0 : i32
    %c0_i32_1 = arith.constant 0 : i32
    return %c0_i32, %c0_i32_0 : i32, i32
  }
  func.func @transform_32(%arg0: i32) -> (i32, i32, i32) {
    %c0_i32 = arith.constant 0 : i32
    %c0_i32_0 = arith.constant 0 : i32
    %c0_i32_1 = arith.constant 0 : i32
    %c0_i32_2 = arith.constant 0 : i32
    return %c0_i32, %c0_i32_0, %c0_i32_1 : i32, i32, i32
  }
  func.func @transform_33(%arg0: i32) -> (i32, i32) {
    %c0_i32 = arith.constant 0 : i32
    %c0_i32_0 = arith.constant 0 : i32
    %c0_i32_1 = arith.constant 0 : i32
    return %c0_i32, %c0_i32_0 : i32, i32
  }
  func.func @transform_34(%arg0: i32) -> (i32, i32) {
    %c0_i32 = arith.constant 0 : i32
    %c0_i32_0 = arith.constant 0 : i32
    %c0_i32_1 = arith.constant 0 : i32
    return %c0_i32, %c0_i32_0 : i32, i32
  }
  func.func @transform_35(%arg0: i32) -> (i32, i32) {
    %c0_i32 = arith.constant 0 : i32
    %c0_i32_0 = arith.constant 0 : i32
    %c0_i32_1 = arith.constant 0 : i32
    return %c0_i32, %c0_i32_0 : i32, i32
  }
  func.func @transform_36(%arg0: i32) -> (i32, i32) {
    %c0_i32 = arith.constant 0 : i32
    %c0_i32_0 = arith.constant 0 : i32
    %c0_i32_1 = arith.constant 0 : i32
    return %c0_i32, %c0_i32_0 : i32, i32
  }
  func.func @transform_37(%arg0: i32) -> (i32, i32) {
    %c0_i32 = arith.constant 0 : i32
    %c0_i32_0 = arith.constant 0 : i32
    %c0_i32_1 = arith.constant 0 : i32
    return %c0_i32, %c0_i32_0 : i32, i32
  }
  func.func @transform_38(%arg0: i32) -> (i32, i32) {
    %c0_i32 = arith.constant 0 : i32
    %c0_i32_0 = arith.constant 0 : i32
    %c0_i32_1 = arith.constant 0 : i32
    return %c0_i32, %c0_i32_0 : i32, i32
  }
  func.func @transform_39(%arg0: i32) -> (i32, i32) {
    %c0_i32 = arith.constant 0 : i32
    %c0_i32_0 = arith.constant 0 : i32
    %c0_i32_1 = arith.constant 0 : i32
    return %c0_i32, %c0_i32_0 : i32, i32
  }
  func.func @transform_40(%arg0: i32) -> (i32, i32) {
    %c0_i32 = arith.constant 0 : i32
    %c0_i32_0 = arith.constant 0 : i32
    %c0_i32_1 = arith.constant 0 : i32
    return %c0_i32, %c0_i32_0 : i32, i32
  }
  func.func @transform_41(%arg0: i32) -> (i32, i32, i32) {
    %c0_i32 = arith.constant 0 : i32
    %c0_i32_0 = arith.constant 0 : i32
    %c0_i32_1 = arith.constant 0 : i32
    return %arg0, %c0_i32, %c0_i32_0 : i32, i32, i32
  }
}

</mosaic_0001>

<llo_original>
// kernel: transunet_forward.1
$region0: #{transunet_forward.1}
  #allocation0 [shape = 'u32[]', space=smem, size = 0x4, offset = 0x4, fixed_abs, tag = 'smem constant byte address 0x4 - core index']
  #allocation1 [shape = 'u32[144,128]{1,0:T(1,128)}', space=vmem, size = 0x12000, scoped, tag = 'internal scratch']
  #allocation2 [shape = 'f32[1,1]{1,0:T(1,128)S(1)}', space=vmem, size = 0x200, scoped, tag = 'scoped memory for transunet_forward.1']
  %s0 = inlined_call_operand.smem [shape: u32[42], index: -1, kind: input, shape index: {}]
  %s1 = sld [smem:[%s0]]
  %s2 = scalar_lea.smem %s0, 1
  %s3 = sld [smem:[%s2]]
  %s4 = scalar_lea.smem %s0, 2
  %s5 = sld [smem:[%s4]]
  %s6 = scalar_lea.smem %s0, 3
  %s7 = sld [smem:[%s6]]
  %s8 = scalar_lea.smem %s0, 4
  %s9 = sld [smem:[%s8]]
  %s10 = scalar_lea.smem %s0, 5
  %s11 = sld [smem:[%s10]]
  %s12 = scalar_lea.smem %s0, 6
  %s13 = sld [smem:[%s12]]
  %s14 = scalar_lea.smem %s0, 7
  %s15 = sld [smem:[%s14]]
  %s16 = scalar_lea.smem %s0, 8
  %s17 = sld [smem:[%s16]]
  %s18 = scalar_lea.smem %s0, 9
  %s19 = sld [smem:[%s18]]
  %s20 = scalar_lea.smem %s0, 10
  %s21 = sld [smem:[%s20]]
  %s22 = scalar_lea.smem %s0, 11
  %s23 = sld [smem:[%s22]]
  %s24 = scalar_lea.smem %s0, 12
  %s25 = sld [smem:[%s24]]
  %s26 = scalar_lea.smem %s0, 13
  %s27 = sld [smem:[%s26]]
  %s28 = scalar_lea.smem %s0, 14
  %s29 = sld [smem:[%s28]]
  %s30 = scalar_lea.smem %s0, 15
  %s31 = sld [smem:[%s30]]
  %s32 = scalar_lea.smem %s0, 16
  %s33 = sld [smem:[%s32]]
  %s34 = scalar_lea.smem %s0, 17
  %s35 = sld [smem:[%s34]]
  %s36 = scalar_lea.smem %s0, 18
  %s37 = sld [smem:[%s36]]
  %s38 = scalar_lea.smem %s0, 19
  %s39 = sld [smem:[%s38]]
  %s40 = scalar_lea.smem %s0, 20
  %s41 = sld [smem:[%s40]]
  %s42 = scalar_lea.smem %s0, 21
  %s43 = sld [smem:[%s42]]
  %s44 = scalar_lea.smem %s0, 22
  %s45 = sld [smem:[%s44]]
  %s46 = scalar_lea.smem %s0, 23
  %s47 = sld [smem:[%s46]]
  %s48 = scalar_lea.smem %s0, 24
  %s49 = sld [smem:[%s48]]
  %s50 = scalar_lea.smem %s0, 25
  %s51 = sld [smem:[%s50]]
  %s52 = scalar_lea.smem %s0, 26
  %s53 = sld [smem:[%s52]]
  %s54 = scalar_lea.smem %s0, 27
  %s55 = sld [smem:[%s54]]
  %s56 = scalar_lea.smem %s0, 28
  %s57 = sld [smem:[%s56]]
  %s58 = scalar_lea.smem %s0, 29
  %s59 = sld [smem:[%s58]]
  %s60 = scalar_lea.smem %s0, 30
  %s61 = sld [smem:[%s60]]
  %s62 = scalar_lea.smem %s0, 31
  %s63 = sld [smem:[%s62]]
  %s64 = scalar_lea.smem %s0, 32
  %s65 = sld [smem:[%s64]]
  %s66 = scalar_lea.smem %s0, 33
  %s67 = sld [smem:[%s66]]
  %s68 = scalar_lea.smem %s0, 34
  %s69 = sld [smem:[%s68]]
  %s70 = scalar_lea.smem %s0, 35
  %s71 = sld [smem:[%s70]]
  %s72 = scalar_lea.smem %s0, 36
  %s73 = sld [smem:[%s72]]
  %s74 = scalar_lea.smem %s0, 37
  %s75 = sld [smem:[%s74]]
  %s76 = scalar_lea.smem %s0, 38
  %s77 = sld [smem:[%s76]]
  %s78 = scalar_lea.smem %s0, 39
  %s79 = sld [smem:[%s78]]
  %s80 = scalar_lea.smem %s0, 40
  %s81 = sld [smem:[%s80]]
  %s82 = scalar_lea.smem %s0, 41
  %s83 = sld [smem:[%s82]]
  %s84 = sld [smem:[#allocation0]]
  $region249: #{transunet_forward.1} parent=0
    _
  %s86 = ssub.s32 1, %s84
  %s87 = scalar_select 0, %s86, %s84
  %v88 = vstv %s81
  %89 = vst [vmem:[#allocation2] sm:$0x1] %v88
  $region1: #{transunet_forward.1} parent=0
    #allocation3 [shape = 'u8[8192]{0}', space=vmem, size = 0x2000, scoped, tag = 'input window, operand 1, single buffered']
    #allocation4 [shape = 's32[2]{0}', space=sflag, size = 0x8, scoped, tag = 'scoped memory for transunet_forward.1']
    #allocation5 [shape = 'u8[512]{0}', space=vmem, size = 0x400, scoped, tag = 'input window, operand 4, single buffered']
    #allocation6 [shape = 's32[1]{0}', space=sflag, size = 0x4, scoped, tag = 'scoped memory for transunet_forward.1']
    #allocation7 [shape = 'u8[1024]{0}', space=vmem, size = 0x400, scoped, tag = 'input window, operand 5, single buffered']
    #allocation8 [shape = 'u8[1024]{0}', space=vmem, size = 0x400, scoped, tag = 'input window, operand 6, single buffered']
    #allocation9 [shape = 's32[1]{0}', space=sflag, size = 0x4, scoped, tag = 'scoped memory for transunet_forward.1']
    #allocation10 [shape = 'u8[1024]{0}', space=vmem, size = 0x400, scoped, tag = 'input window, operand 8, single buffered']
    #allocation11 [shape = 'u8[1024]{0}', space=vmem, size = 0x400, scoped, tag = 'input window, operand 10, single buffered']
    #allocation12 [shape = 's32[1]{0}', space=sflag, size = 0x4, scoped, tag = 'scoped memory for transunet_forward.1']
    #allocation13 [shape = 'u8[1024]{0}', space=vmem, size = 0x400, scoped, tag = 'input window, operand 11, single buffered']
    #allocation14 [shape = 'u8[1024]{0}', space=vmem, size = 0x400, scoped, tag = 'input window, operand 12, single buffered']
    #allocation15 [shape = 's32[1]{0}', space=sflag, size = 0x4, scoped, tag = 'scoped memory for transunet_forward.1']
    #allocation16 [shape = 'u8[1024]{0}', space=vmem, size = 0x400, scoped, tag = 'input window, operand 14, single buffered']
    #allocation17 [shape = 'u8[1024]{0}', space=vmem, size = 0x400, scoped, tag = 'input window, operand 16, single buffered']
    #allocation18 [shape = 's32[1]{0}', space=sflag, size = 0x4, scoped, tag = 'scoped memory for transunet_forward.1']
    #allocation19 [shape = 'u8[512]{0}', space=vmem, size = 0x400, scoped, tag = 'input window, operand 17, single buffered']
    #allocation20 [shape = 'u8[512]{0}', space=vmem, size = 0x400, scoped, tag = 'input window, operand 18, single buffered']
    #allocation21 [shape = 's32[1]{0}', space=sflag, size = 0x4, scoped, tag = 'scoped memory for transunet_forward.1']
    #allocation22 [shape = 'u8[2048]{0}', space=vmem, size = 0x800, scoped, tag = 'input window, operand 22, single buffered']
    %90 = vsyncpa [#allocation4], 0
    %91 = vsyncpa [#allocation6], 0
    %92 = vsyncpa [#allocation9], 0
    %93 = vsyncpa [#allocation12], 0
    %94 = vsyncpa [#allocation15], 0
    %95 = vsyncpa [#allocation18], 0
    %96 = vsyncpa [#allocation21], 0
    loop: start=0, step=1, limit=4
    $region2: #{transunet_forward.1} parent=1 // loop_pre_header
      _
    $region3: #{transunet_forward.1} parent=1 // loop_header
      %s98 = sphi 0, %s102
      %p99 = scmp.ge.s32.totalorder %s98, 4
      %s108 = sphi 0, %s110
      %s111 = sphi 0, %s108
      %s112 = sphi 0, %s111
      %s128 = sphi 0, %s112
      %s132 = sphi 0, %s132
      %s134 = sphi 0, %s132
      %s135 = sphi 0, %s134
      %s149 = sphi 0, %s135
      %s153 = sphi 0, %s153
      %s155 = sphi 0, %s153
      %s156 = sphi 0, %s155
      %s170 = sphi 0, %s156
      %s174 = sphi 0, %s174
      %s176 = sphi 0, %s174
      %s177 = sphi 0, %s176
      %s191 = sphi 0, %s177
      %s195 = sphi 0, %s195
      %s197 = sphi 0, %s195
      %s198 = sphi 0, %s197
      %s212 = sphi 0, %s198
      %s216 = sphi 0, %s216
      %s218 = sphi 0, %s216
      %s219 = sphi 0, %s218
      %s233 = sphi 0, %s219
      %s237 = sphi 0, %s237
      %s239 = sphi 0, %s237
      %s240 = sphi 0, %s239
      %s254 = sphi 0, %s240
      %s258 = sphi 0, %s258
      %s260 = sphi 0, %s258
      %s261 = sphi 0, %s260
      %s275 = sphi 0, %s261
      %s279 = sphi 0, %s279
      %s281 = sphi 0, %s279
      %s282 = sphi 0, %s281
      %s296 = sphi 0, %s282
      %s300 = sphi 0, %s300
      %s302 = sphi 0, %s300
      %s303 = sphi 0, %s302
      %s317 = sphi 0, %s303
      %s321 = sphi 0, %s321
      %s323 = sphi 0, %s321
      %s324 = sphi 0, %s323
      %s338 = sphi 0, %s324
      %s342 = sphi 0, %s342
      %s344 = sphi 0, %s342
      %s345 = sphi 0, %s344
      %s359 = sphi 0, %s345
      %s363 = sphi 0, %s363
      %s365 = sphi 0, %s363
      %s366 = sphi 0, %s365
      %s380 = sphi 0, %s366
      %s384 = sphi 0, %s384
      %s386 = sphi 0, %s384
      %s387 = sphi 0, %s386
      %s401 = sphi 0, %s387
      %s405 = sphi 0, %s405
      %s407 = sphi 0, %s405
      %s408 = sphi 0, %s407
      %s422 = sphi 0, %s408
      %s426 = sphi 0, %s426
      %s428 = sphi 0, %s426
      %s429 = sphi 0, %s428
      %s443 = sphi 0, %s429
      %s447 = sphi 0, %s447
      %s449 = sphi 0, %s447
      %s450 = sphi 0, %s449
      %s464 = sphi 0, %s450
      %s468 = sphi 0, %s468
      %s470 = sphi 0, %s468
      %s471 = sphi 0, %s470
      %s485 = sphi 0, %s471
      %s489 = sphi 0, %s489
      %s491 = sphi 0, %s489
      %s492 = sphi 0, %s491
      %s506 = sphi 0, %s492
      %s510 = sphi 0, %s510
      %s512 = sphi 0, %s510
      %s513 = sphi 0, %s512
      %s527 = sphi 0, %s513
      %s531 = sphi 0, %s531
      %s533 = sphi 0, %s531
      %s534 = sphi 0, %s533
      %s548 = sphi 0, %s534
      %s552 = sphi 0, %s552
      %s554 = sphi 0, %s552
      %s555 = sphi 0, %s554
      %s569 = sphi 0, %s555
      %s573 = sphi 0, %s573
      %s575 = sphi 0, %s573
      %s576 = sphi 0, %s575
      %s590 = sphi 0, %s576
      %s594 = sphi 0, %s594
      %s596 = sphi 0, %s594
      %s597 = sphi 0, %s596
      %s611 = sphi 0, %s597
      %s615 = sphi 0, %s615
      %s617 = sphi 0, %s615
      %s618 = sphi 0, %s617
      %s632 = sphi 0, %s618
      %s636 = sphi 0, %s636
      %s638 = sphi 0, %s636
      %s639 = sphi 0, %s638
      %s653 = sphi 0, %s639
      %s657 = sphi 0, %s657
      %s659 = sphi 0, %s657
      %s660 = sphi 0, %s659
      %s674 = sphi 0, %s660
      %s678 = sphi 0, %s678
      %s680 = sphi 0, %s678
      %s681 = sphi 0, %s680
      %s695 = sphi 0, %s681
      %s699 = sphi 0, %s699
      %s701 = sphi 0, %s699
      %s702 = sphi 0, %s701
      %s716 = sphi 0, %s702
      %s720 = sphi 0, %s720
      %s722 = sphi 0, %s720
      %s723 = sphi 0, %s722
      %s737 = sphi 0, %s723
      %s741 = sphi 0, %s741
      %s743 = sphi 0, %s741
      %s744 = sphi 0, %s743
      %s758 = sphi 0, %s744
      %s762 = sphi 0, %s762
      %s764 = sphi 0, %s762
      %s765 = sphi 0, %s764
      %s779 = sphi 0, %s765
      %s783 = sphi 0, %s783
      %s785 = sphi 0, %s783
      %s786 = sphi 0, %s785
      %s800 = sphi 0, %s786
      %s804 = sphi 0, %s804
      %s806 = sphi 0, %s804
      %s807 = sphi 0, %s806
      %s821 = sphi 0, %s807
      %s825 = sphi 0, %s825
      %s827 = sphi 0, %s825
      %s828 = sphi 0, %s827
      %s842 = sphi 0, %s828
      %s846 = sphi 0, %s846
      %s848 = sphi 0, %s846
      %s849 = sphi 0, %s848
      %s863 = sphi 0, %s849
      %s867 = sphi 0, %s867
      %s869 = sphi 0, %s867
      %s870 = sphi 0, %s869
      %s884 = sphi 0, %s870
      %s888 = sphi 0, %s888
      %s890 = sphi 0, %s888
      %s891 = sphi 0, %s890
      %s905 = sphi 0, %s891
      %s909 = sphi 0, %s909
      %s911 = sphi 0, %s909
      %s912 = sphi 0, %s911
      %s926 = sphi 0, %s912
      %s930 = sphi 0, %s930
      %s932 = sphi 0, %s930
      %s933 = sphi 0, %s932
      %s947 = sphi 0, %s933
      %s951 = sphi 0, %s951
      %s953 = sphi 0, %s951
      %s954 = sphi 0, %s953
      %s968 = sphi 0, %s954
      %s974 = sphi 0, %s976
      %s977 = sphi 0, %s974
      %s978 = sphi 0, %s977
      %s994 = sphi 0, %s978
    $region4: #{transunet_forward.1} parent=1 // loop_header_branch
      %101 = sbr.rel (%p99) target = $region8
    $region5: #{transunet_forward.1} parent=1 // loop_body
      %s103 = ssub.s32 %s98, 1
      %s104 = ssub.s32 %s98, 2
      %s105 = sadd.s32 %s98, 1
      %s106 = ssub.s32 %s98, %s105
      %p107 = scmp.eq.s32.totalorder %s106, 0
      %s109 = sadd.s32 %s108, 1
      %s110 = scalar_select %p107, %s108, %s109
      %p113 = pneg %p107
      %p114 = scmp.eq.s32.totalorder %s98, 1
      %p115 = por %p113, %p114
      %p116 = scmp.ne.s32.totalorder %s108, %s111
      %p117 = scmp.eq.s32.totalorder %s98, 0
      %p118 = por %p116, %p117
      %p119 = scmp.ne.s32.totalorder %s108, %s111
      %p120 = scmp.eq.s32.totalorder %s103, 1
      %p121 = por %p119, %p120
      %p122 = scmp.ne.s32.totalorder %s111, %s112
      %p123 = scmp.eq.s32.totalorder %s103, 0
      %p124 = por %p122, %p123
      %p125 = scmp.ne.s32.totalorder %s111, %s112
      %p126 = scmp.eq.s32.totalorder %s104, 1
      %p127 = por %p125, %p126
      %p129 = scmp.ne.s32.totalorder %s112, %s128
      %p130 = scmp.eq.s32.totalorder %s104, 0
      %p131 = por %p129, %p130
      %s133 = sadd.s32 %s132, 1
      %p136 = scmp.eq.s32.totalorder %s98, 1
      %p137 = scmp.ne.s32.totalorder %s132, %s134
      %p138 = scmp.eq.s32.totalorder %s98, 0
      %p139 = por %p137, %p138
      %p140 = scmp.ne.s32.totalorder %s132, %s134
      %p141 = scmp.eq.s32.totalorder %s103, 1
      %p142 = por %p140, %p141
      %p143 = scmp.ne.s32.totalorder %s134, %s135
      %p144 = scmp.eq.s32.totalorder %s103, 0
      %p145 = por %p143, %p144
      %p146 = scmp.ne.s32.totalorder %s134, %s135
      %p147 = scmp.eq.s32.totalorder %s104, 1
      %p148 = por %p146, %p147
      %p150 = scmp.ne.s32.totalorder %s135, %s149
      %p151 = scmp.eq.s32.totalorder %s104, 0
      %p152 = por %p150, %p151
      %s154 = sadd.s32 %s153, 1
      %p157 = scmp.eq.s32.totalorder %s98, 1
      %p158 = scmp.ne.s32.totalorder %s153, %s155
      %p159 = scmp.eq.s32.totalorder %s98, 0
      %p160 = por %p158, %p159
      %p161 = scmp.ne.s32.totalorder %s153, %s155
      %p162 = scmp.eq.s32.totalorder %s103, 1
      %p163 = por %p161, %p162
      %p164 = scmp.ne.s32.totalorder %s155, %s156
      %p165 = scmp.eq.s32.totalorder %s103, 0
      %p166 = por %p164, %p165
      %p167 = scmp.ne.s32.totalorder %s155, %s156
      %p168 = scmp.eq.s32.totalorder %s104, 1
      %p169 = por %p167, %p168
      %p171 = scmp.ne.s32.totalorder %s156, %s170
      %p172 = scmp.eq.s32.totalorder %s104, 0
      %p173 = por %p171, %p172
      %s175 = sadd.s32 %s174, 1
      %p178 = scmp.eq.s32.totalorder %s98, 1
      %p179 = scmp.ne.s32.totalorder %s174, %s176
      %p180 = scmp.eq.s32.totalorder %s98, 0
      %p181 = por %p179, %p180
      %p182 = scmp.ne.s32.totalorder %s174, %s176
      %p183 = scmp.eq.s32.totalorder %s103, 1
      %p184 = por %p182, %p183
      %p185 = scmp.ne.s32.totalorder %s176, %s177
      %p186 = scmp.eq.s32.totalorder %s103, 0
      %p187 = por %p185, %p186
      %p188 = scmp.ne.s32.totalorder %s176, %s177
      %p189 = scmp.eq.s32.totalorder %s104, 1
      %p190 = por %p188, %p189
      %p192 = scmp.ne.s32.totalorder %s177, %s191
      %p193 = scmp.eq.s32.totalorder %s104, 0
      %p194 = por %p192, %p193
      %s196 = sadd.s32 %s195, 1
      %p199 = scmp.eq.s32.totalorder %s98, 1
      %p200 = scmp.ne.s32.totalorder %s195, %s197
      %p201 = scmp.eq.s32.totalorder %s98, 0
      %p202 = por %p200, %p201
      %p203 = scmp.ne.s32.totalorder %s195, %s197
      %p204 = scmp.eq.s32.totalorder %s103, 1
      %p205 = por %p203, %p204
      %p206 = scmp.ne.s32.totalorder %s197, %s198
      %p207 = scmp.eq.s32.totalorder %s103, 0
      %p208 = por %p206, %p207
      %p209 = scmp.ne.s32.totalorder %s197, %s198
      %p210 = scmp.eq.s32.totalorder %s104, 1
      %p211 = por %p209, %p210
      %p213 = scmp.ne.s32.totalorder %s198, %s212
      %p214 = scmp.eq.s32.totalorder %s104, 0
      %p215 = por %p213, %p214
      %s217 = sadd.s32 %s216, 1
      %p220 = scmp.eq.s32.totalorder %s98, 1
      %p221 = scmp.ne.s32.totalorder %s216, %s218
      %p222 = scmp.eq.s32.totalorder %s98, 0
      %p223 = por %p221, %p222
      %p224 = scmp.ne.s32.totalorder %s216, %s218
      %p225 = scmp.eq.s32.totalorder %s103, 1
      %p226 = por %p224, %p225
      %p227 = scmp.ne.s32.totalorder %s218, %s219
      %p228 = scmp.eq.s32.totalorder %s103, 0
      %p229 = por %p227, %p228
      %p230 = scmp.ne.s32.totalorder %s218, %s219
      %p231 = scmp.eq.s32.totalorder %s104, 1
      %p232 = por %p230, %p231
      %p234 = scmp.ne.s32.totalorder %s219, %s233
      %p235 = scmp.eq.s32.totalorder %s104, 0
      %p236 = por %p234, %p235
      %s238 = sadd.s32 %s237, 1
      %p241 = scmp.eq.s32.totalorder %s98, 1
      %p242 = scmp.ne.s32.totalorder %s237, %s239
      %p243 = scmp.eq.s32.totalorder %s98, 0
      %p244 = por %p242, %p243
      %p245 = scmp.ne.s32.totalorder %s237, %s239
      %p246 = scmp.eq.s32.totalorder %s103, 1
      %p247 = por %p245, %p246
      %p248 = scmp.ne.s32.totalorder %s239, %s240
      %p249 = scmp.eq.s32.totalorder %s103, 0
      %p250 = por %p248, %p249
      %p251 = scmp.ne.s32.totalorder %s239, %s240
      %p252 = scmp.eq.s32.totalorder %s104, 1
      %p253 = por %p251, %p252
      %p255 = scmp.ne.s32.totalorder %s240, %s254
      %p256 = scmp.eq.s32.totalorder %s104, 0
      %p257 = por %p255, %p256
      %s259 = sadd.s32 %s258, 1
      %p262 = scmp.eq.s32.totalorder %s98, 1
      %p263 = scmp.ne.s32.totalorder %s258, %s260
      %p264 = scmp.eq.s32.totalorder %s98, 0
      %p265 = por %p263, %p264
      %p266 = scmp.ne.s32.totalorder %s258, %s260
      %p267 = scmp.eq.s32.totalorder %s103, 1
      %p268 = por %p266, %p267
      %p269 = scmp.ne.s32.totalorder %s260, %s261
      %p270 = scmp.eq.s32.totalorder %s103, 0
      %p271 = por %p269, %p270
      %p272 = scmp.ne.s32.totalorder %s260, %s261
      %p273 = scmp.eq.s32.totalorder %s104, 1
      %p274 = por %p272, %p273
      %p276 = scmp.ne.s32.totalorder %s261, %s275
      %p277 = scmp.eq.s32.totalorder %s104, 0
      %p278 = por %p276, %p277
      %s280 = sadd.s32 %s279, 1
      %p283 = scmp.eq.s32.totalorder %s98, 1
      %p284 = scmp.ne.s32.totalorder %s279, %s281
      %p285 = scmp.eq.s32.totalorder %s98, 0
      %p286 = por %p284, %p285
      %p287 = scmp.ne.s32.totalorder %s279, %s281
      %p288 = scmp.eq.s32.totalorder %s103, 1
      %p289 = por %p287, %p288
      %p290 = scmp.ne.s32.totalorder %s281, %s282
      %p291 = scmp.eq.s32.totalorder %s103, 0
      %p292 = por %p290, %p291
      %p293 = scmp.ne.s32.totalorder %s281, %s282
      %p294 = scmp.eq.s32.totalorder %s104, 1
      %p295 = por %p293, %p294
      %p297 = scmp.ne.s32.totalorder %s282, %s296
      %p298 = scmp.eq.s32.totalorder %s104, 0
      %p299 = por %p297, %p298
      %s301 = sadd.s32 %s300, 1
      %p304 = scmp.eq.s32.totalorder %s98, 1
      %p305 = scmp.ne.s32.totalorder %s300, %s302
      %p306 = scmp.eq.s32.totalorder %s98, 0
      %p307 = por %p305, %p306
      %p308 = scmp.ne.s32.totalorder %s300, %s302
      %p309 = scmp.eq.s32.totalorder %s103, 1
      %p310 = por %p308, %p309
      %p311 = scmp.ne.s32.totalorder %s302, %s303
      %p312 = scmp.eq.s32.totalorder %s103, 0
      %p313 = por %p311, %p312
      %p314 = scmp.ne.s32.totalorder %s302, %s303
      %p315 = scmp.eq.s32.totalorder %s104, 1
      %p316 = por %p314, %p315
      %p318 = scmp.ne.s32.totalorder %s303, %s317
      %p319 = scmp.eq.s32.totalorder %s104, 0
      %p320 = por %p318, %p319
      %s322 = sadd.s32 %s321, 1
      %p325 = scmp.eq.s32.totalorder %s98, 1
      %p326 = scmp.ne.s32.totalorder %s321, %s323
      %p327 = scmp.eq.s32.totalorder %s98, 0
      %p328 = por %p326, %p327
      %p329 = scmp.ne.s32.totalorder %s321, %s323
      %p330 = scmp.eq.s32.totalorder %s103, 1
      %p331 = por %p329, %p330
      %p332 = scmp.ne.s32.totalorder %s323, %s324
      %p333 = scmp.eq.s32.totalorder %s103, 0
      %p334 = por %p332, %p333
      %p335 = scmp.ne.s32.totalorder %s323, %s324
      %p336 = scmp.eq.s32.totalorder %s104, 1
      %p337 = por %p335, %p336
      %p339 = scmp.ne.s32.totalorder %s324, %s338
      %p340 = scmp.eq.s32.totalorder %s104, 0
      %p341 = por %p339, %p340
      %s343 = sadd.s32 %s342, 1
      %p346 = scmp.eq.s32.totalorder %s98, 1
      %p347 = scmp.ne.s32.totalorder %s342, %s344
      %p348 = scmp.eq.s32.totalorder %s98, 0
      %p349 = por %p347, %p348
      %p350 = scmp.ne.s32.totalorder %s342, %s344
      %p351 = scmp.eq.s32.totalorder %s103, 1
      %p352 = por %p350, %p351
      %p353 = scmp.ne.s32.totalorder %s344, %s345
      %p354 = scmp.eq.s32.totalorder %s103, 0
      %p355 = por %p353, %p354
      %p356 = scmp.ne.s32.totalorder %s344, %s345
      %p357 = scmp.eq.s32.totalorder %s104, 1
      %p358 = por %p356, %p357
      %p360 = scmp.ne.s32.totalorder %s345, %s359
      %p361 = scmp.eq.s32.totalorder %s104, 0
      %p362 = por %p360, %p361
      %s364 = sadd.s32 %s363, 1
      %p367 = scmp.eq.s32.totalorder %s98, 1
      %p368 = scmp.ne.s32.totalorder %s363, %s365
      %p369 = scmp.eq.s32.totalorder %s98, 0
      %p370 = por %p368, %p369
      %p371 = scmp.ne.s32.totalorder %s363, %s365
      %p372 = scmp.eq.s32.totalorder %s103, 1
      %p373 = por %p371, %p372
      %p374 = scmp.ne.s32.totalorder %s365, %s366
      %p375 = scmp.eq.s32.totalorder %s103, 0
      %p376 = por %p374, %p375
      %p377 = scmp.ne.s32.totalorder %s365, %s366
      %p378 = scmp.eq.s32.totalorder %s104, 1
      %p379 = por %p377, %p378
      %p381 = scmp.ne.s32.totalorder %s366, %s380
      %p382 = scmp.eq.s32.totalorder %s104, 0
      %p383 = por %p381, %p382
      %s385 = sadd.s32 %s384, 1
      %p388 = scmp.eq.s32.totalorder %s98, 1
      %p389 = scmp.ne.s32.totalorder %s384, %s386
      %p390 = scmp.eq.s32.totalorder %s98, 0
      %p391 = por %p389, %p390
      %p392 = scmp.ne.s32.totalorder %s384, %s386
      %p393 = scmp.eq.s32.totalorder %s103, 1
      %p394 = por %p392, %p393
      %p395 = scmp.ne.s32.totalorder %s386, %s387
      %p396 = scmp.eq.s32.totalorder %s103, 0
      %p397 = por %p395, %p396
      %p398 = scmp.ne.s32.totalorder %s386, %s387
      %p399 = scmp.eq.s32.totalorder %s104, 1
      %p400 = por %p398, %p399
      %p402 = scmp.ne.s32.totalorder %s387, %s401
      %p403 = scmp.eq.s32.totalorder %s104, 0
      %p404 = por %p402, %p403
      %s406 = sadd.s32 %s405, 1
      %p409 = scmp.eq.s32.totalorder %s98, 1
      %p410 = scmp.ne.s32.totalorder %s405, %s407
      %p411 = scmp.eq.s32.totalorder %s98, 0
      %p412 = por %p410, %p411
      %p413 = scmp.ne.s32.totalorder %s405, %s407
      %p414 = scmp.eq.s32.totalorder %s103, 1
      %p415 = por %p413, %p414
      %p416 = scmp.ne.s32.totalorder %s407, %s408
      %p417 = scmp.eq.s32.totalorder %s103, 0
      %p418 = por %p416, %p417
      %p419 = scmp.ne.s32.totalorder %s407, %s408
      %p420 = scmp.eq.s32.totalorder %s104, 1
      %p421 = por %p419, %p420
      %p423 = scmp.ne.s32.totalorder %s408, %s422
      %p424 = scmp.eq.s32.totalorder %s104, 0
      %p425 = por %p423, %p424
      %s427 = sadd.s32 %s426, 1
      %p430 = scmp.eq.s32.totalorder %s98, 1
      %p431 = scmp.ne.s32.totalorder %s426, %s428
      %p432 = scmp.eq.s32.totalorder %s98, 0
      %p433 = por %p431, %p432
      %p434 = scmp.ne.s32.totalorder %s426, %s428
      %p435 = scmp.eq.s32.totalorder %s103, 1
      %p436 = por %p434, %p435
      %p437 = scmp.ne.s32.totalorder %s428, %s429
      %p438 = scmp.eq.s32.totalorder %s103, 0
      %p439 = por %p437, %p438
      %p440 = scmp.ne.s32.totalorder %s428, %s429
      %p441 = scmp.eq.s32.totalorder %s104, 1
      %p442 = por %p440, %p441
      %p444 = scmp.ne.s32.totalorder %s429, %s443
      %p445 = scmp.eq.s32.totalorder %s104, 0
      %p446 = por %p444, %p445
      %s448 = sadd.s32 %s447, 1
      %p451 = scmp.eq.s32.totalorder %s98, 1
      %p452 = scmp.ne.s32.totalorder %s447, %s449
      %p453 = scmp.eq.s32.totalorder %s98, 0
      %p454 = por %p452, %p453
      %p455 = scmp.ne.s32.totalorder %s447, %s449
      %p456 = scmp.eq.s32.totalorder %s103, 1
      %p457 = por %p455, %p456
      %p458 = scmp.ne.s32.totalorder %s449, %s450
      %p459 = scmp.eq.s32.totalorder %s103, 0
      %p460 = por %p458, %p459
      %p461 = scmp.ne.s32.totalorder %s449, %s450
      %p462 = scmp.eq.s32.totalorder %s104, 1
      %p463 = por %p461, %p462
      %p465 = scmp.ne.s32.totalorder %s450, %s464
      %p466 = scmp.eq.s32.totalorder %s104, 0
      %p467 = por %p465, %p466
      %s469 = sadd.s32 %s468, 1
      %p472 = scmp.eq.s32.totalorder %s98, 1
      %p473 = scmp.ne.s32.totalorder %s468, %s470
      %p474 = scmp.eq.s32.totalorder %s98, 0
      %p475 = por %p473, %p474
      %p476 = scmp.ne.s32.totalorder %s468, %s470
      %p477 = scmp.eq.s32.totalorder %s103, 1
      %p478 = por %p476, %p477
      %p479 = scmp.ne.s32.totalorder %s470, %s471
      %p480 = scmp.eq.s32.totalorder %s103, 0
      %p481 = por %p479, %p480
      %p482 = scmp.ne.s32.totalorder %s470, %s471
      %p483 = scmp.eq.s32.totalorder %s104, 1
      %p484 = por %p482, %p483
      %p486 = scmp.ne.s32.totalorder %s471, %s485
      %p487 = scmp.eq.s32.totalorder %s104, 0
      %p488 = por %p486, %p487
      %s490 = sadd.s32 %s489, 1
      %p493 = scmp.eq.s32.totalorder %s98, 1
      %p494 = scmp.ne.s32.totalorder %s489, %s491
      %p495 = scmp.eq.s32.totalorder %s98, 0
      %p496 = por %p494, %p495
      %p497 = scmp.ne.s32.totalorder %s489, %s491
      %p498 = scmp.eq.s32.totalorder %s103, 1
      %p499 = por %p497, %p498
      %p500 = scmp.ne.s32.totalorder %s491, %s492
      %p501 = scmp.eq.s32.totalorder %s103, 0
      %p502 = por %p500, %p501
      %p503 = scmp.ne.s32.totalorder %s491, %s492
      %p504 = scmp.eq.s32.totalorder %s104, 1
      %p505 = por %p503, %p504
      %p507 = scmp.ne.s32.totalorder %s492, %s506
      %p508 = scmp.eq.s32.totalorder %s104, 0
      %p509 = por %p507, %p508
      %s511 = sadd.s32 %s510, 1
      %p514 = scmp.eq.s32.totalorder %s98, 1
      %p515 = scmp.ne.s32.totalorder %s510, %s512
      %p516 = scmp.eq.s32.totalorder %s98, 0
      %p517 = por %p515, %p516
      %p518 = scmp.ne.s32.totalorder %s510, %s512
      %p519 = scmp.eq.s32.totalorder %s103, 1
      %p520 = por %p518, %p519
      %p521 = scmp.ne.s32.totalorder %s512, %s513
      %p522 = scmp.eq.s32.totalorder %s103, 0
      %p523 = por %p521, %p522
      %p524 = scmp.ne.s32.totalorder %s512, %s513
      %p525 = scmp.eq.s32.totalorder %s104, 1
      %p526 = por %p524, %p525
      %p528 = scmp.ne.s32.totalorder %s513, %s527
      %p529 = scmp.eq.s32.totalorder %s104, 0
      %p530 = por %p528, %p529
      %s532 = sadd.s32 %s531, 1
      %p535 = scmp.eq.s32.totalorder %s98, 1
      %p536 = scmp.ne.s32.totalorder %s531, %s533
      %p537 = scmp.eq.s32.totalorder %s98, 0
      %p538 = por %p536, %p537
      %p539 = scmp.ne.s32.totalorder %s531, %s533
      %p540 = scmp.eq.s32.totalorder %s103, 1
      %p541 = por %p539, %p540
      %p542 = scmp.ne.s32.totalorder %s533, %s534
      %p543 = scmp.eq.s32.totalorder %s103, 0
      %p544 = por %p542, %p543
      %p545 = scmp.ne.s32.totalorder %s533, %s534
      %p546 = scmp.eq.s32.totalorder %s104, 1
      %p547 = por %p545, %p546
      %p549 = scmp.ne.s32.totalorder %s534, %s548
      %p550 = scmp.eq.s32.totalorder %s104, 0
      %p551 = por %p549, %p550
      %s553 = sadd.s32 %s552, 1
      %p556 = scmp.eq.s32.totalorder %s98, 1
      %p557 = scmp.ne.s32.totalorder %s552, %s554
      %p558 = scmp.eq.s32.totalorder %s98, 0
      %p559 = por %p557, %p558
      %p560 = scmp.ne.s32.totalorder %s552, %s554
      %p561 = scmp.eq.s32.totalorder %s103, 1
      %p562 = por %p560, %p561
      %p563 = scmp.ne.s32.totalorder %s554, %s555
      %p564 = scmp.eq.s32.totalorder %s103, 0
      %p565 = por %p563, %p564
      %p566 = scmp.ne.s32.totalorder %s554, %s555
      %p567 = scmp.eq.s32.totalorder %s104, 1
      %p568 = por %p566, %p567
      %p570 = scmp.ne.s32.totalorder %s555, %s569
      %p571 = scmp.eq.s32.totalorder %s104, 0
      %p572 = por %p570, %p571
      %s574 = sadd.s32 %s573, 1
      %p577 = scmp.eq.s32.totalorder %s98, 1
      %p578 = scmp.ne.s32.totalorder %s573, %s575
      %p579 = scmp.eq.s32.totalorder %s98, 0
      %p580 = por %p578, %p579
      %p581 = scmp.ne.s32.totalorder %s573, %s575
      %p582 = scmp.eq.s32.totalorder %s103, 1
      %p583 = por %p581, %p582
      %p584 = scmp.ne.s32.totalorder %s575, %s576
      %p585 = scmp.eq.s32.totalorder %s103, 0
      %p586 = por %p584, %p585
      %p587 = scmp.ne.s32.totalorder %s575, %s576
      %p588 = scmp.eq.s32.totalorder %s104, 1
      %p589 = por %p587, %p588
      %p591 = scmp.ne.s32.totalorder %s576, %s590
      %p592 = scmp.eq.s32.totalorder %s104, 0
      %p593 = por %p591, %p592
      %s595 = sadd.s32 %s594, 1
      %p598 = scmp.eq.s32.totalorder %s98, 1
      %p599 = scmp.ne.s32.totalorder %s594, %s596
      %p600 = scmp.eq.s32.totalorder %s98, 0
      %p601 = por %p599, %p600
      %p602 = scmp.ne.s32.totalorder %s594, %s596
      %p603 = scmp.eq.s32.totalorder %s103, 1
      %p604 = por %p602, %p603
      %p605 = scmp.ne.s32.totalorder %s596, %s597
      %p606 = scmp.eq.s32.totalorder %s103, 0
      %p607 = por %p605, %p606
      %p608 = scmp.ne.s32.totalorder %s596, %s597
      %p609 = scmp.eq.s32.totalorder %s104, 1
      %p610 = por %p608, %p609
      %p612 = scmp.ne.s32.totalorder %s597, %s611
      %p613 = scmp.eq.s32.totalorder %s104, 0
      %p614 = por %p612, %p613
      %s616 = sadd.s32 %s615, 1
      %p619 = scmp.eq.s32.totalorder %s98, 1
      %p620 = scmp.ne.s32.totalorder %s615, %s617
      %p621 = scmp.eq.s32.totalorder %s98, 0
      %p622 = por %p620, %p621
      %p623 = scmp.ne.s32.totalorder %s615, %s617
      %p624 = scmp.eq.s32.totalorder %s103, 1
      %p625 = por %p623, %p624
      %p626 = scmp.ne.s32.totalorder %s617, %s618
      %p627 = scmp.eq.s32.totalorder %s103, 0
      %p628 = por %p626, %p627
      %p629 = scmp.ne.s32.totalorder %s617, %s618
      %p630 = scmp.eq.s32.totalorder %s104, 1
      %p631 = por %p629, %p630
      %p633 = scmp.ne.s32.totalorder %s618, %s632
      %p634 = scmp.eq.s32.totalorder %s104, 0
      %p635 = por %p633, %p634
      %s637 = sadd.s32 %s636, 1
      %p640 = scmp.eq.s32.totalorder %s98, 1
      %p641 = scmp.ne.s32.totalorder %s636, %s638
      %p642 = scmp.eq.s32.totalorder %s98, 0
      %p643 = por %p641, %p642
      %p644 = scmp.ne.s32.totalorder %s636, %s638
      %p645 = scmp.eq.s32.totalorder %s103, 1
      %p646 = por %p644, %p645
      %p647 = scmp.ne.s32.totalorder %s638, %s639
      %p648 = scmp.eq.s32.totalorder %s103, 0
      %p649 = por %p647, %p648
      %p650 = scmp.ne.s32.totalorder %s638, %s639
      %p651 = scmp.eq.s32.totalorder %s104, 1
      %p652 = por %p650, %p651
      %p654 = scmp.ne.s32.totalorder %s639, %s653
      %p655 = scmp.eq.s32.totalorder %s104, 0
      %p656 = por %p654, %p655
      %s658 = sadd.s32 %s657, 1
      %p661 = scmp.eq.s32.totalorder %s98, 1
      %p662 = scmp.ne.s32.totalorder %s657, %s659
      %p663 = scmp.eq.s32.totalorder %s98, 0
      %p664 = por %p662, %p663
      %p665 = scmp.ne.s32.totalorder %s657, %s659
      %p666 = scmp.eq.s32.totalorder %s103, 1
      %p667 = por %p665, %p666
      %p668 = scmp.ne.s32.totalorder %s659, %s660
      %p669 = scmp.eq.s32.totalorder %s103, 0
      %p670 = por %p668, %p669
      %p671 = scmp.ne.s32.totalorder %s659, %s660
      %p672 = scmp.eq.s32.totalorder %s104, 1
      %p673 = por %p671, %p672
      %p675 = scmp.ne.s32.totalorder %s660, %s674
      %p676 = scmp.eq.s32.totalorder %s104, 0
      %p677 = por %p675, %p676
      %s679 = sadd.s32 %s678, 1
      %p682 = scmp.eq.s32.totalorder %s98, 1
      %p683 = scmp.ne.s32.totalorder %s678, %s680
      %p684 = scmp.eq.s32.totalorder %s98, 0
      %p685 = por %p683, %p684
      %p686 = scmp.ne.s32.totalorder %s678, %s680
      %p687 = scmp.eq.s32.totalorder %s103, 1
      %p688 = por %p686, %p687
      %p689 = scmp.ne.s32.totalorder %s680, %s681
      %p690 = scmp.eq.s32.totalorder %s103, 0
      %p691 = por %p689, %p690
      %p692 = scmp.ne.s32.totalorder %s680, %s681
      %p693 = scmp.eq.s32.totalorder %s104, 1
      %p694 = por %p692, %p693
      %p696 = scmp.ne.s32.totalorder %s681, %s695
      %p697 = scmp.eq.s32.totalorder %s104, 0
      %p698 = por %p696, %p697
      %s700 = sadd.s32 %s699, 1
      %p703 = scmp.eq.s32.totalorder %s98, 1
      %p704 = scmp.ne.s32.totalorder %s699, %s701
      %p705 = scmp.eq.s32.totalorder %s98, 0
      %p706 = por %p704, %p705
      %p707 = scmp.ne.s32.totalorder %s699, %s701
      %p708 = scmp.eq.s32.totalorder %s103, 1
      %p709 = por %p707, %p708
      %p710 = scmp.ne.s32.totalorder %s701, %s702
      %p711 = scmp.eq.s32.totalorder %s103, 0
      %p712 = por %p710, %p711
      %p713 = scmp.ne.s32.totalorder %s701, %s702
      %p714 = scmp.eq.s32.totalorder %s104, 1
      %p715 = por %p713, %p714
      %p717 = scmp.ne.s32.totalorder %s702, %s716
      %p718 = scmp.eq.s32.totalorder %s104, 0
      %p719 = por %p717, %p718
      %s721 = sadd.s32 %s720, 1
      %p724 = scmp.eq.s32.totalorder %s98, 1
      %p725 = scmp.ne.s32.totalorder %s720, %s722
      %p726 = scmp.eq.s32.totalorder %s98, 0
      %p727 = por %p725, %p726
      %p728 = scmp.ne.s32.totalorder %s720, %s722
      %p729 = scmp.eq.s32.totalorder %s103, 1
      %p730 = por %p728, %p729
      %p731 = scmp.ne.s32.totalorder %s722, %s723
      %p732 = scmp.eq.s32.totalorder %s103, 0
      %p733 = por %p731, %p732
      %p734 = scmp.ne.s32.totalorder %s722, %s723
      %p735 = scmp.eq.s32.totalorder %s104, 1
      %p736 = por %p734, %p735
      %p738 = scmp.ne.s32.totalorder %s723, %s737
      %p739 = scmp.eq.s32.totalorder %s104, 0
      %p740 = por %p738, %p739
      %s742 = sadd.s32 %s741, 1
      %p745 = scmp.eq.s32.totalorder %s98, 1
      %p746 = scmp.ne.s32.totalorder %s741, %s743
      %p747 = scmp.eq.s32.totalorder %s98, 0
      %p748 = por %p746, %p747
      %p749 = scmp.ne.s32.totalorder %s741, %s743
      %p750 = scmp.eq.s32.totalorder %s103, 1
      %p751 = por %p749, %p750
      %p752 = scmp.ne.s32.totalorder %s743, %s744
      %p753 = scmp.eq.s32.totalorder %s103, 0
      %p754 = por %p752, %p753
      %p755 = scmp.ne.s32.totalorder %s743, %s744
      %p756 = scmp.eq.s32.totalorder %s104, 1
      %p757 = por %p755, %p756
      %p759 = scmp.ne.s32.totalorder %s744, %s758
      %p760 = scmp.eq.s32.totalorder %s104, 0
      %p761 = por %p759, %p760
      %s763 = sadd.s32 %s762, 1
      %p766 = scmp.eq.s32.totalorder %s98, 1
      %p767 = scmp.ne.s32.totalorder %s762, %s764
      %p768 = scmp.eq.s32.totalorder %s98, 0
      %p769 = por %p767, %p768
      %p770 = scmp.ne.s32.totalorder %s762, %s764
      %p771 = scmp.eq.s32.totalorder %s103, 1
      %p772 = por %p770, %p771
      %p773 = scmp.ne.s32.totalorder %s764, %s765
      %p774 = scmp.eq.s32.totalorder %s103, 0
      %p775 = por %p773, %p774
      %p776 = scmp.ne.s32.totalorder %s764, %s765
      %p777 = scmp.eq.s32.totalorder %s104, 1
      %p778 = por %p776, %p777
      %p780 = scmp.ne.s32.totalorder %s765, %s779
      %p781 = scmp.eq.s32.totalorder %s104, 0
      %p782 = por %p780, %p781
      %s784 = sadd.s32 %s783, 1
      %p787 = scmp.eq.s32.totalorder %s98, 1
      %p788 = scmp.ne.s32.totalorder %s783, %s785
      %p789 = scmp.eq.s32.totalorder %s98, 0
      %p790 = por %p788, %p789
      %p791 = scmp.ne.s32.totalorder %s783, %s785
      %p792 = scmp.eq.s32.totalorder %s103, 1
      %p793 = por %p791, %p792
      %p794 = scmp.ne.s32.totalorder %s785, %s786
      %p795 = scmp.eq.s32.totalorder %s103, 0
      %p796 = por %p794, %p795
      %p797 = scmp.ne.s32.totalorder %s785, %s786
      %p798 = scmp.eq.s32.totalorder %s104, 1
      %p799 = por %p797, %p798
      %p801 = scmp.ne.s32.totalorder %s786, %s800
      %p802 = scmp.eq.s32.totalorder %s104, 0
      %p803 = por %p801, %p802
      %s805 = sadd.s32 %s804, 1
      %p808 = scmp.eq.s32.totalorder %s98, 1
      %p809 = scmp.ne.s32.totalorder %s804, %s806
      %p810 = scmp.eq.s32.totalorder %s98, 0
      %p811 = por %p809, %p810
      %p812 = scmp.ne.s32.totalorder %s804, %s806
      %p813 = scmp.eq.s32.totalorder %s103, 1
      %p814 = por %p812, %p813
      %p815 = scmp.ne.s32.totalorder %s806, %s807
      %p816 = scmp.eq.s32.totalorder %s103, 0
      %p817 = por %p815, %p816
      %p818 = scmp.ne.s32.totalorder %s806, %s807
      %p819 = scmp.eq.s32.totalorder %s104, 1
      %p820 = por %p818, %p819
      %p822 = scmp.ne.s32.totalorder %s807, %s821
      %p823 = scmp.eq.s32.totalorder %s104, 0
      %p824 = por %p822, %p823
      %s826 = sadd.s32 %s825, 1
      %p829 = scmp.eq.s32.totalorder %s98, 1
      %p830 = scmp.ne.s32.totalorder %s825, %s827
      %p831 = scmp.eq.s32.totalorder %s98, 0
      %p832 = por %p830, %p831
      %p833 = scmp.ne.s32.totalorder %s825, %s827
      %p834 = scmp.eq.s32.totalorder %s103, 1
      %p835 = por %p833, %p834
      %p836 = scmp.ne.s32.totalorder %s827, %s828
      %p837 = scmp.eq.s32.totalorder %s103, 0
      %p838 = por %p836, %p837
      %p839 = scmp.ne.s32.totalorder %s827, %s828
      %p840 = scmp.eq.s32.totalorder %s104, 1
      %p841 = por %p839, %p840
      %p843 = scmp.ne.s32.totalorder %s828, %s842
      %p844 = scmp.eq.s32.totalorder %s104, 0
      %p845 = por %p843, %p844
      %s847 = sadd.s32 %s846, 1
      %p850 = scmp.eq.s32.totalorder %s98, 1
      %p851 = scmp.ne.s32.totalorder %s846, %s848
      %p852 = scmp.eq.s32.totalorder %s98, 0
      %p853 = por %p851, %p852
      %p854 = scmp.ne.s32.totalorder %s846, %s848
      %p855 = scmp.eq.s32.totalorder %s103, 1
      %p856 = por %p854, %p855
      %p857 = scmp.ne.s32.totalorder %s848, %s849
      %p858 = scmp.eq.s32.totalorder %s103, 0
      %p859 = por %p857, %p858
      %p860 = scmp.ne.s32.totalorder %s848, %s849
      %p861 = scmp.eq.s32.totalorder %s104, 1
      %p862 = por %p860, %p861
      %p864 = scmp.ne.s32.totalorder %s849, %s863
      %p865 = scmp.eq.s32.totalorder %s104, 0
      %p866 = por %p864, %p865
      %s868 = sadd.s32 %s867, 1
      %p871 = scmp.eq.s32.totalorder %s98, 1
      %p872 = scmp.ne.s32.totalorder %s867, %s869
      %p873 = scmp.eq.s32.totalorder %s98, 0
      %p874 = por %p872, %p873
      %p875 = scmp.ne.s32.totalorder %s867, %s869
      %p876 = scmp.eq.s32.totalorder %s103, 1
      %p877 = por %p875, %p876
      %p878 = scmp.ne.s32.totalorder %s869, %s870
      %p879 = scmp.eq.s32.totalorder %s103, 0
      %p880 = por %p878, %p879
      %p881 = scmp.ne.s32.totalorder %s869, %s870
      %p882 = scmp.eq.s32.totalorder %s104, 1
      %p883 = por %p881, %p882
      %p885 = scmp.ne.s32.totalorder %s870, %s884
      %p886 = scmp.eq.s32.totalorder %s104, 0
      %p887 = por %p885, %p886
      %s889 = sadd.s32 %s888, 1
      %p892 = scmp.eq.s32.totalorder %s98, 1
      %p893 = scmp.ne.s32.totalorder %s888, %s890
      %p894 = scmp.eq.s32.totalorder %s98, 0
      %p895 = por %p893, %p894
      %p896 = scmp.ne.s32.totalorder %s888, %s890
      %p897 = scmp.eq.s32.totalorder %s103, 1
      %p898 = por %p896, %p897
      %p899 = scmp.ne.s32.totalorder %s890, %s891
      %p900 = scmp.eq.s32.totalorder %s103, 0
      %p901 = por %p899, %p900
      %p902 = scmp.ne.s32.totalorder %s890, %s891
      %p903 = scmp.eq.s32.totalorder %s104, 1
      %p904 = por %p902, %p903
      %p906 = scmp.ne.s32.totalorder %s891, %s905
      %p907 = scmp.eq.s32.totalorder %s104, 0
      %p908 = por %p906, %p907
      %s910 = sadd.s32 %s909, 1
      %p913 = scmp.eq.s32.totalorder %s98, 1
      %p914 = scmp.ne.s32.totalorder %s909, %s911
      %p915 = scmp.eq.s32.totalorder %s98, 0
      %p916 = por %p914, %p915
      %p917 = scmp.ne.s32.totalorder %s909, %s911
      %p918 = scmp.eq.s32.totalorder %s103, 1
      %p919 = por %p917, %p918
      %p920 = scmp.ne.s32.totalorder %s911, %s912
      %p921 = scmp.eq.s32.totalorder %s103, 0
      %p922 = por %p920, %p921
      %p923 = scmp.ne.s32.totalorder %s911, %s912
      %p924 = scmp.eq.s32.totalorder %s104, 1
      %p925 = por %p923, %p924
      %p927 = scmp.ne.s32.totalorder %s912, %s926
      %p928 = scmp.eq.s32.totalorder %s104, 0
      %p929 = por %p927, %p928
      %s931 = sadd.s32 %s930, 1
      %p934 = scmp.eq.s32.totalorder %s98, 1
      %p935 = scmp.ne.s32.totalorder %s930, %s932
      %p936 = scmp.eq.s32.totalorder %s98, 0
      %p937 = por %p935, %p936
      %p938 = scmp.ne.s32.totalorder %s930, %s932
      %p939 = scmp.eq.s32.totalorder %s103, 1
      %p940 = por %p938, %p939
      %p941 = scmp.ne.s32.totalorder %s932, %s933
      %p942 = scmp.eq.s32.totalorder %s103, 0
      %p943 = por %p941, %p942
      %p944 = scmp.ne.s32.totalorder %s932, %s933
      %p945 = scmp.eq.s32.totalorder %s104, 1
      %p946 = por %p944, %p945
      %p948 = scmp.ne.s32.totalorder %s933, %s947
      %p949 = scmp.eq.s32.totalorder %s104, 0
      %p950 = por %p948, %p949
      %s952 = sadd.s32 %s951, 1
      %p955 = scmp.eq.s32.totalorder %s98, 1
      %p956 = scmp.ne.s32.totalorder %s951, %s953
      %p957 = scmp.eq.s32.totalorder %s98, 0
      %p958 = por %p956, %p957
      %p959 = scmp.ne.s32.totalorder %s951, %s953
      %p960 = scmp.eq.s32.totalorder %s103, 1
      %p961 = por %p959, %p960
      %p962 = scmp.ne.s32.totalorder %s953, %s954
      %p963 = scmp.eq.s32.totalorder %s103, 0
      %p964 = por %p962, %p963
      %p965 = scmp.ne.s32.totalorder %s953, %s954
      %p966 = scmp.eq.s32.totalorder %s104, 1
      %p967 = por %p965, %p966
      %p969 = scmp.ne.s32.totalorder %s954, %s968
      %p970 = scmp.eq.s32.totalorder %s104, 0
      %p971 = por %p969, %p970
      %s972 = ssub.s32 %s98, %s105
      %p973 = scmp.eq.s32.totalorder %s972, 0
      %s975 = sadd.s32 %s974, 1
      %s976 = scalar_select %p973, %s974, %s975
      %p979 = pneg %p973
      %p980 = scmp.eq.s32.totalorder %s98, 1
      %p981 = por %p979, %p980
      %p982 = scmp.ne.s32.totalorder %s974, %s977
      %p983 = scmp.eq.s32.totalorder %s98, 0
      %p984 = por %p982, %p983
      %p985 = scmp.ne.s32.totalorder %s974, %s977
      %p986 = scmp.eq.s32.totalorder %s103, 1
      %p987 = por %p985, %p986
      %p988 = scmp.ne.s32.totalorder %s977, %s978
      %p989 = scmp.eq.s32.totalorder %s103, 0
      %p990 = por %p988, %p989
      %p991 = scmp.ne.s32.totalorder %s977, %s978
      %p992 = scmp.eq.s32.totalorder %s104, 1
      %p993 = por %p991, %p992
      %p995 = scmp.ne.s32.totalorder %s978, %s994
      %p996 = scmp.eq.s32.totalorder %s104, 0
      %p997 = por %p995, %p996
      %p998 = scmp.le.s32.totalorder 1, %s98
      %p999 = scmp.lt.s32.totalorder %s98, 3
      %p1000 = pnand %p998, %p999
      %p1001 = pneg %p1000
      // Predicated region
      $region9: #{transunet_forward.1} parent=5 // pred_check
        _
      $region10: #{transunet_forward.1} parent=5 // pred_check_branch
        %1003 = sbr.rel (%p1000) target = $region12
      $region11: #{transunet_forward.1} parent=5 // pred_region
        %s1004 = ssub.s32 %s98, 1
        // Predicated region
        $region13: #{transunet_forward.1} parent=11 // pred_check
          %p1005 = pneg %p145
        $region14: #{transunet_forward.1} parent=11 // pred_check_branch
          %1007 = sbr.rel (%p1005) target = $region16
        $region15: #{transunet_forward.1} parent=11 // pred_region
          %s1009 = ssub.s32 256, 256
          %1010 = vsyncadd [#allocation4], %s1009
          %s1011 = sshll.u32 [#allocation3], 4
          %s1012 = int_to_ptr.vmem [resolvable:$true] %s1011
          %1017 = dma.hbm_to_vmem [thread:$0]  %s3, 256, %s1012, [#allocation4], 128, 128, 8
        $region16: #{transunet_forward.1} parent=11 // pred_fallthru
          _
        // Predicated region
        $region17: #{transunet_forward.1} parent=11 // pred_check
          %p1018 = pneg %p166
        $region18: #{transunet_forward.1} parent=11 // pred_check_branch
          %1020 = sbr.rel (%p1018) target = $region20
        $region19: #{transunet_forward.1} parent=11 // pred_region
          _
        $region20: #{transunet_forward.1} parent=11 // pred_fallthru
          _
        // Predicated region
        $region21: #{transunet_forward.1} parent=11 // pred_check
          %p1021 = pneg %p187
        $region22: #{transunet_forward.1} parent=11 // pred_check_branch
          %1023 = sbr.rel (%p1021) target = $region24
        $region23: #{transunet_forward.1} parent=11 // pred_region
          _
        $region24: #{transunet_forward.1} parent=11 // pred_fallthru
          _
        // Predicated region
        $region25: #{transunet_forward.1} parent=11 // pred_check
          %p1024 = pneg %p208
        $region26: #{transunet_forward.1} parent=11 // pred_check_branch
          %1026 = sbr.rel (%p1024) target = $region28
        $region27: #{transunet_forward.1} parent=11 // pred_region
          %s1028 = ssub.s32 16, 16
          %1029 = vsyncadd [#allocation6], %s1028
          %s1031 = sshll.u32 [#allocation5], 4
          %s1032 = int_to_ptr.vmem [resolvable:$true] %s1031
          %1034 = dma.hbm_to_vmem [thread:$0]  %s9, 16, %s1032, [#allocation6]
        $region28: #{transunet_forward.1} parent=11 // pred_fallthru
          _
        // Predicated region
        $region29: #{transunet_forward.1} parent=11 // pred_check
          %p1035 = pneg %p229
        $region30: #{transunet_forward.1} parent=11 // pred_check_branch
          %1037 = sbr.rel (%p1035) target = $region32
        $region31: #{transunet_forward.1} parent=11 // pred_region
          %s1039 = ssub.s32 32, 32
          %1040 = vsyncadd [#allocation6], %s1039
          %s1041 = sshll.u32 [#allocation7], 4
          %s1042 = int_to_ptr.vmem [resolvable:$true] %s1041
          %1047 = dma.hbm_to_vmem [thread:$0]  %s11, 32, %s1042, [#allocation6], 16, 16, 1
        $region32: #{transunet_forward.1} parent=11 // pred_fallthru
          _
        // Predicated region
        $region33: #{transunet_forward.1} parent=11 // pred_check
          %p1048 = pneg %p250
        $region34: #{transunet_forward.1} parent=11 // pred_check_branch
          %1050 = sbr.rel (%p1048) target = $region36
        $region35: #{transunet_forward.1} parent=11 // pred_region
          %s1052 = ssub.s32 32, 32
          %1053 = vsyncadd [#allocation9], %s1052
          %s1054 = sshll.u32 [#allocation8], 4
          %s1055 = int_to_ptr.vmem [resolvable:$true] %s1054
          %1060 = dma.hbm_to_vmem [thread:$0]  %s13, 32, %s1055, [#allocation9], 16, 16, 1
        $region36: #{transunet_forward.1} parent=11 // pred_fallthru
          _
        // Predicated region
        $region37: #{transunet_forward.1} parent=11 // pred_check
          %p1061 = pneg %p271
        $region38: #{transunet_forward.1} parent=11 // pred_check_branch
          %1063 = sbr.rel (%p1061) target = $region40
        $region39: #{transunet_forward.1} parent=11 // pred_region
          _
        $region40: #{transunet_forward.1} parent=11 // pred_fallthru
          _
        // Predicated region
        $region41: #{transunet_forward.1} parent=11 // pred_check
          %p1064 = pneg %p292
        $region42: #{transunet_forward.1} parent=11 // pred_check_branch
          %1066 = sbr.rel (%p1064) target = $region44
        $region43: #{transunet_forward.1} parent=11 // pred_region
          %s1068 = ssub.s32 32, 32
          %1069 = vsyncadd [#allocation9], %s1068
          %s1070 = sshll.u32 [#allocation10], 4
          %s1071 = int_to_ptr.vmem [resolvable:$true] %s1070
          %1076 = dma.hbm_to_vmem [thread:$0]  %s17, 32, %s1071, [#allocation9], 16, 16, 1
        $region44: #{transunet_forward.1} parent=11 // pred_fallthru
          _
        // Predicated region
        $region45: #{transunet_forward.1} parent=11 // pred_check
          %p1077 = pneg %p313
        $region46: #{transunet_forward.1} parent=11 // pred_check_branch
          %1079 = sbr.rel (%p1077) target = $region48
        $region47: #{transunet_forward.1} parent=11 // pred_region
          _
        $region48: #{transunet_forward.1} parent=11 // pred_fallthru
          _
        // Predicated region
        $region49: #{transunet_forward.1} parent=11 // pred_check
          %p1080 = pneg %p334
        $region50: #{transunet_forward.1} parent=11 // pred_check_branch
          %1082 = sbr.rel (%p1080) target = $region52
        $region51: #{transunet_forward.1} parent=11 // pred_region
          %s1084 = ssub.s32 32, 32
          %1085 = vsyncadd [#allocation12], %s1084
          %s1086 = sshll.u32 [#allocation11], 4
          %s1087 = int_to_ptr.vmem [resolvable:$true] %s1086
          %1092 = dma.hbm_to_vmem [thread:$0]  %s21, 32, %s1087, [#allocation12], 16, 16, 1
        $region52: #{transunet_forward.1} parent=11 // pred_fallthru
          _
        // Predicated region
        $region53: #{transunet_forward.1} parent=11 // pred_check
          %p1093 = pneg %p355
        $region54: #{transunet_forward.1} parent=11 // pred_check_branch
          %1095 = sbr.rel (%p1093) target = $region56
        $region55: #{transunet_forward.1} parent=11 // pred_region
          %s1097 = ssub.s32 32, 32
          %1098 = vsyncadd [#allocation12], %s1097
          %s1099 = sshll.u32 [#allocation13], 4
          %s1100 = int_to_ptr.vmem [resolvable:$true] %s1099
          %1105 = dma.hbm_to_vmem [thread:$0]  %s23, 32, %s1100, [#allocation12], 16, 16, 1
        $region56: #{transunet_forward.1} parent=11 // pred_fallthru
          _
        // Predicated region
        $region57: #{transunet_forward.1} parent=11 // pred_check
          %p1106 = pneg %p376
        $region58: #{transunet_forward.1} parent=11 // pred_check_branch
          %1108 = sbr.rel (%p1106) target = $region60
        $region59: #{transunet_forward.1} parent=11 // pred_region
          %s1110 = ssub.s32 32, 32
          %1111 = vsyncadd [#allocation15], %s1110
          %s1112 = sshll.u32 [#allocation14], 4
          %s1113 = int_to_ptr.vmem [resolvable:$true] %s1112
          %1118 = dma.hbm_to_vmem [thread:$0]  %s25, 32, %s1113, [#allocation15], 16, 16, 1
        $region60: #{transunet_forward.1} parent=11 // pred_fallthru
          _
        // Predicated region
        $region61: #{transunet_forward.1} parent=11 // pred_check
          %p1119 = pneg %p397
        $region62: #{transunet_forward.1} parent=11 // pred_check_branch
          %1121 = sbr.rel (%p1119) target = $region64
        $region63: #{transunet_forward.1} parent=11 // pred_region
          _
        $region64: #{transunet_forward.1} parent=11 // pred_fallthru
          _
        // Predicated region
        $region65: #{transunet_forward.1} parent=11 // pred_check
          %p1122 = pneg %p418
        $region66: #{transunet_forward.1} parent=11 // pred_check_branch
          %1124 = sbr.rel (%p1122) target = $region68
        $region67: #{transunet_forward.1} parent=11 // pred_region
          %s1126 = ssub.s32 32, 32
          %1127 = vsyncadd [#allocation15], %s1126
          %s1128 = sshll.u32 [#allocation16], 4
          %s1129 = int_to_ptr.vmem [resolvable:$true] %s1128
          %1134 = dma.hbm_to_vmem [thread:$0]  %s29, 32, %s1129, [#allocation15], 16, 16, 1
        $region68: #{transunet_forward.1} parent=11 // pred_fallthru
          _
        // Predicated region
        $region69: #{transunet_forward.1} parent=11 // pred_check
          %p1135 = pneg %p439
        $region70: #{transunet_forward.1} parent=11 // pred_check_branch
          %1137 = sbr.rel (%p1135) target = $region72
        $region71: #{transunet_forward.1} parent=11 // pred_region
          _
        $region72: #{transunet_forward.1} parent=11 // pred_fallthru
          _
        // Predicated region
        $region73: #{transunet_forward.1} parent=11 // pred_check
          %p1138 = pneg %p460
        $region74: #{transunet_forward.1} parent=11 // pred_check_branch
          %1140 = sbr.rel (%p1138) target = $region76
        $region75: #{transunet_forward.1} parent=11 // pred_region
          %s1142 = ssub.s32 32, 32
          %1143 = vsyncadd [#allocation18], %s1142
          %s1144 = sshll.u32 [#allocation17], 4
          %s1145 = int_to_ptr.vmem [resolvable:$true] %s1144
          %1150 = dma.hbm_to_vmem [thread:$0]  %s33, 32, %s1145, [#allocation18], 16, 16, 1
        $region76: #{transunet_forward.1} parent=11 // pred_fallthru
          _
        // Predicated region
        $region77: #{transunet_forward.1} parent=11 // pred_check
          %p1151 = pneg %p481
        $region78: #{transunet_forward.1} parent=11 // pred_check_branch
          %1153 = sbr.rel (%p1151) target = $region80
        $region79: #{transunet_forward.1} parent=11 // pred_region
          %s1155 = ssub.s32 16, 16
          %1156 = vsyncadd [#allocation18], %s1155
          %s1158 = sshll.u32 [#allocation19], 4
          %s1159 = int_to_ptr.vmem [resolvable:$true] %s1158
          %1161 = dma.hbm_to_vmem [thread:$0]  %s35, 16, %s1159, [#allocation18]
        $region80: #{transunet_forward.1} parent=11 // pred_fallthru
          _
        // Predicated region
        $region81: #{transunet_forward.1} parent=11 // pred_check
          %p1162 = pneg %p502
        $region82: #{transunet_forward.1} parent=11 // pred_check_branch
          %1164 = sbr.rel (%p1162) target = $region84
        $region83: #{transunet_forward.1} parent=11 // pred_region
          %s1166 = ssub.s32 16, 16
          %1167 = vsyncadd [#allocation21], %s1166
          %s1169 = sshll.u32 [#allocation20], 4
          %s1170 = int_to_ptr.vmem [resolvable:$true] %s1169
          %1172 = dma.hbm_to_vmem [thread:$0]  %s37, 16, %s1170, [#allocation21]
        $region84: #{transunet_forward.1} parent=11 // pred_fallthru
          _
        // Predicated region
        $region85: #{transunet_forward.1} parent=11 // pred_check
          %p1173 = pneg %p523
        $region86: #{transunet_forward.1} parent=11 // pred_check_branch
          %1175 = sbr.rel (%p1173) target = $region88
        $region87: #{transunet_forward.1} parent=11 // pred_region
          _
        $region88: #{transunet_forward.1} parent=11 // pred_fallthru
          _
        // Predicated region
        $region89: #{transunet_forward.1} parent=11 // pred_check
          %p1176 = pneg %p544
        $region90: #{transunet_forward.1} parent=11 // pred_check_branch
          %1178 = sbr.rel (%p1176) target = $region92
        $region91: #{transunet_forward.1} parent=11 // pred_region
          _
        $region92: #{transunet_forward.1} parent=11 // pred_fallthru
          _
        // Predicated region
        $region93: #{transunet_forward.1} parent=11 // pred_check
          %p1179 = pneg %p565
        $region94: #{transunet_forward.1} parent=11 // pred_check_branch
          %1181 = sbr.rel (%p1179) target = $region96
        $region95: #{transunet_forward.1} parent=11 // pred_region
          _
        $region96: #{transunet_forward.1} parent=11 // pred_fallthru
          _
        // Predicated region
        $region97: #{transunet_forward.1} parent=11 // pred_check
          %p1182 = pneg %p586
        $region98: #{transunet_forward.1} parent=11 // pred_check_branch
          %1184 = sbr.rel (%p1182) target = $region100
        $region99: #{transunet_forward.1} parent=11 // pred_region
          %s1186 = ssub.s32 64, 64
          %1187 = vsyncadd [#allocation21], %s1186
          %s1189 = sshll.u32 [#allocation22], 4
          %s1190 = int_to_ptr.vmem [resolvable:$true] %s1189
          %1192 = dma.hbm_to_vmem [thread:$0]  %s45, 64, %s1190, [#allocation21]
        $region100: #{transunet_forward.1} parent=11 // pred_fallthru
          _
        // Predicated region
        $region101: #{transunet_forward.1} parent=11 // pred_check
          %p1193 = pneg %p607
        $region102: #{transunet_forward.1} parent=11 // pred_check_branch
          %1195 = sbr.rel (%p1193) target = $region104
        $region103: #{transunet_forward.1} parent=11 // pred_region
          _
        $region104: #{transunet_forward.1} parent=11 // pred_fallthru
          _
        // Predicated region
        $region105: #{transunet_forward.1} parent=11 // pred_check
          %p1196 = pneg %p628
        $region106: #{transunet_forward.1} parent=11 // pred_check_branch
          %1198 = sbr.rel (%p1196) target = $region108
        $region107: #{transunet_forward.1} parent=11 // pred_region
          _
        $region108: #{transunet_forward.1} parent=11 // pred_fallthru
          _
        // Predicated region
        $region109: #{transunet_forward.1} parent=11 // pred_check
          %p1199 = pneg %p649
        $region110: #{transunet_forward.1} parent=11 // pred_check_branch
          %1201 = sbr.rel (%p1199) target = $region112
        $region111: #{transunet_forward.1} parent=11 // pred_region
          _
        $region112: #{transunet_forward.1} parent=11 // pred_fallthru
          _
        // Predicated region
        $region113: #{transunet_forward.1} parent=11 // pred_check
          %p1202 = pneg %p670
        $region114: #{transunet_forward.1} parent=11 // pred_check_branch
          %1204 = sbr.rel (%p1202) target = $region116
        $region115: #{transunet_forward.1} parent=11 // pred_region
          _
        $region116: #{transunet_forward.1} parent=11 // pred_fallthru
          _
        // Predicated region
        $region117: #{transunet_forward.1} parent=11 // pred_check
          %p1205 = pneg %p691
        $region118: #{transunet_forward.1} parent=11 // pred_check_branch
          %1207 = sbr.rel (%p1205) target = $region120
        $region119: #{transunet_forward.1} parent=11 // pred_region
          _
        $region120: #{transunet_forward.1} parent=11 // pred_fallthru
          _
        // Predicated region
        $region121: #{transunet_forward.1} parent=11 // pred_check
          %p1208 = pneg %p712
        $region122: #{transunet_forward.1} parent=11 // pred_check_branch
          %1210 = sbr.rel (%p1208) target = $region124
        $region123: #{transunet_forward.1} parent=11 // pred_region
          _
        $region124: #{transunet_forward.1} parent=11 // pred_fallthru
          _
        // Predicated region
        $region125: #{transunet_forward.1} parent=11 // pred_check
          %p1211 = pneg %p733
        $region126: #{transunet_forward.1} parent=11 // pred_check_branch
          %1213 = sbr.rel (%p1211) target = $region128
        $region127: #{transunet_forward.1} parent=11 // pred_region
          _
        $region128: #{transunet_forward.1} parent=11 // pred_fallthru
          _
        // Predicated region
        $region129: #{transunet_forward.1} parent=11 // pred_check
          %p1214 = pneg %p754
        $region130: #{transunet_forward.1} parent=11 // pred_check_branch
          %1216 = sbr.rel (%p1214) target = $region132
        $region131: #{transunet_forward.1} parent=11 // pred_region
          _
        $region132: #{transunet_forward.1} parent=11 // pred_fallthru
          _
        // Predicated region
        $region133: #{transunet_forward.1} parent=11 // pred_check
          %p1217 = pneg %p775
        $region134: #{transunet_forward.1} parent=11 // pred_check_branch
          %1219 = sbr.rel (%p1217) target = $region136
        $region135: #{transunet_forward.1} parent=11 // pred_region
          _
        $region136: #{transunet_forward.1} parent=11 // pred_fallthru
          _
        // Predicated region
        $region137: #{transunet_forward.1} parent=11 // pred_check
          %p1220 = pneg %p796
        $region138: #{transunet_forward.1} parent=11 // pred_check_branch
          %1222 = sbr.rel (%p1220) target = $region140
        $region139: #{transunet_forward.1} parent=11 // pred_region
          _
        $region140: #{transunet_forward.1} parent=11 // pred_fallthru
          _
        // Predicated region
        $region141: #{transunet_forward.1} parent=11 // pred_check
          %p1223 = pneg %p817
        $region142: #{transunet_forward.1} parent=11 // pred_check_branch
          %1225 = sbr.rel (%p1223) target = $region144
        $region143: #{transunet_forward.1} parent=11 // pred_region
          _
        $region144: #{transunet_forward.1} parent=11 // pred_fallthru
          _
        // Predicated region
        $region145: #{transunet_forward.1} parent=11 // pred_check
          %p1226 = pneg %p838
        $region146: #{transunet_forward.1} parent=11 // pred_check_branch
          %1228 = sbr.rel (%p1226) target = $region148
        $region147: #{transunet_forward.1} parent=11 // pred_region
          _
        $region148: #{transunet_forward.1} parent=11 // pred_fallthru
          _
        // Predicated region
        $region149: #{transunet_forward.1} parent=11 // pred_check
          %p1229 = pneg %p859
        $region150: #{transunet_forward.1} parent=11 // pred_check_branch
          %1231 = sbr.rel (%p1229) target = $region152
        $region151: #{transunet_forward.1} parent=11 // pred_region
          _
        $region152: #{transunet_forward.1} parent=11 // pred_fallthru
          _
        // Predicated region
        $region153: #{transunet_forward.1} parent=11 // pred_check
          %p1232 = pneg %p880
        $region154: #{transunet_forward.1} parent=11 // pred_check_branch
          %1234 = sbr.rel (%p1232) target = $region156
        $region155: #{transunet_forward.1} parent=11 // pred_region
          _
        $region156: #{transunet_forward.1} parent=11 // pred_fallthru
          _
        // Predicated region
        $region157: #{transunet_forward.1} parent=11 // pred_check
          %p1235 = pneg %p901
        $region158: #{transunet_forward.1} parent=11 // pred_check_branch
          %1237 = sbr.rel (%p1235) target = $region160
        $region159: #{transunet_forward.1} parent=11 // pred_region
          _
        $region160: #{transunet_forward.1} parent=11 // pred_fallthru
          _
        // Predicated region
        $region161: #{transunet_forward.1} parent=11 // pred_check
          %p1238 = pneg %p922
        $region162: #{transunet_forward.1} parent=11 // pred_check_branch
          %1240 = sbr.rel (%p1238) target = $region164
        $region163: #{transunet_forward.1} parent=11 // pred_region
          _
        $region164: #{transunet_forward.1} parent=11 // pred_fallthru
          _
        // Predicated region
        $region165: #{transunet_forward.1} parent=11 // pred_check
          %p1241 = pneg %p943
        $region166: #{transunet_forward.1} parent=11 // pred_check_branch
          %1243 = sbr.rel (%p1241) target = $region168
        $region167: #{transunet_forward.1} parent=11 // pred_region
          _
        $region168: #{transunet_forward.1} parent=11 // pred_fallthru
          _
        // Predicated region
        $region169: #{transunet_forward.1} parent=11 // pred_check
          %p1244 = pneg %p964
        $region170: #{transunet_forward.1} parent=11 // pred_check_branch
          %1246 = sbr.rel (%p1244) target = $region172
        $region171: #{transunet_forward.1} parent=11 // pred_region
          _
        $region172: #{transunet_forward.1} parent=11 // pred_fallthru
          _
      $region12: #{transunet_forward.1} parent=5 // pred_fallthru
        _
      %p1247 = scmp.lt.s32.totalorder %s98, 2
      // Predicated region
      $region173: #{transunet_forward.1} parent=5 // pred_check
        %p1248 = pneg %p1247
      $region174: #{transunet_forward.1} parent=5 // pred_check_branch
        %1250 = sbr.rel (%p1248) target = $region176
      $region175: #{transunet_forward.1} parent=5 // pred_region
        // Predicated region
        $region177: #{transunet_forward.1} parent=175 // pred_check
          %p1251 = pneg %p118
        $region178: #{transunet_forward.1} parent=175 // pred_check_branch
          %1253 = sbr.rel (%p1251) target = $region180
        $region179: #{transunet_forward.1} parent=175 // pred_region
          %p1254 = scmp.lt.s32.totalorder %s98, 1
          %s1255 = scalar_select %p1254, %s98, 1
          %s1256 = smul.addr %s1255, 2
          %s1257 = smul.addr %s1256, 8
          %s1258 = scalar_lea.vmem %s1, %s1257
        $region180: #{transunet_forward.1} parent=175 // pred_fallthru
          _
      $region176: #{transunet_forward.1} parent=5 // pred_fallthru
        _
      %p1259 = scmp.le.s32.totalorder 1, %s98
      %p1260 = scmp.lt.s32.totalorder %s98, 3
      %p1261 = pnand %p1259, %p1260
      %p1262 = pneg %p1261
      // Predicated region
      $region181: #{transunet_forward.1} parent=5 // pred_check
        _
      $region182: #{transunet_forward.1} parent=5 // pred_check_branch
        %1264 = sbr.rel (%p1261) target = $region184
      $region183: #{transunet_forward.1} parent=5 // pred_region
        %s1265 = ssub.s32 %s98, 1
        // Predicated region
        $region185: #{transunet_forward.1} parent=183 // pred_check
          %p1266 = pneg %p145
        $region186: #{transunet_forward.1} parent=183 // pred_check_branch
          %1268 = sbr.rel (%p1266) target = $region188
        $region187: #{transunet_forward.1} parent=183 // pred_region
          %1269 = dma.done [#allocation4], 256
        $region188: #{transunet_forward.1} parent=183 // pred_fallthru
          _
        // Predicated region
        $region189: #{transunet_forward.1} parent=183 // pred_check
          %p1270 = pneg %p208
        $region190: #{transunet_forward.1} parent=183 // pred_check_branch
          %1272 = sbr.rel (%p1270) target = $region192
        $region191: #{transunet_forward.1} parent=183 // pred_region
          %1273 = dma.done [#allocation6], 16
        $region192: #{transunet_forward.1} parent=183 // pred_fallthru
          _
        // Predicated region
        $region193: #{transunet_forward.1} parent=183 // pred_check
          %p1274 = pneg %p229
        $region194: #{transunet_forward.1} parent=183 // pred_check_branch
          %1276 = sbr.rel (%p1274) target = $region196
        $region195: #{transunet_forward.1} parent=183 // pred_region
          %1277 = dma.done [#allocation6], 32
        $region196: #{transunet_forward.1} parent=183 // pred_fallthru
          _
        // Predicated region
        $region197: #{transunet_forward.1} parent=183 // pred_check
          %p1278 = pneg %p250
        $region198: #{transunet_forward.1} parent=183 // pred_check_branch
          %1280 = sbr.rel (%p1278) target = $region200
        $region199: #{transunet_forward.1} parent=183 // pred_region
          %1281 = dma.done [#allocation9], 32
        $region200: #{transunet_forward.1} parent=183 // pred_fallthru
          _
        // Predicated region
        $region201: #{transunet_forward.1} parent=183 // pred_check
          %p1282 = pneg %p292
        $region202: #{transunet_forward.1} parent=183 // pred_check_branch
          %1284 = sbr.rel (%p1282) target = $region204
        $region203: #{transunet_forward.1} parent=183 // pred_region
          %1285 = dma.done [#allocation9], 32
        $region204: #{transunet_forward.1} parent=183 // pred_fallthru
          _
        // Predicated region
        $region205: #{transunet_forward.1} parent=183 // pred_check
          %p1286 = pneg %p334
        $region206: #{transunet_forward.1} parent=183 // pred_check_branch
          %1288 = sbr.rel (%p1286) target = $region208
        $region207: #{transunet_forward.1} parent=183 // pred_region
          %1289 = dma.done [#allocation12], 32
        $region208: #{transunet_forward.1} parent=183 // pred_fallthru
          _
        // Predicated region
        $region209: #{transunet_forward.1} parent=183 // pred_check
          %p1290 = pneg %p355
        $region210: #{transunet_forward.1} parent=183 // pred_check_branch
          %1292 = sbr.rel (%p1290) target = $region212
        $region211: #{transunet_forward.1} parent=183 // pred_region
          %1293 = dma.done [#allocation12], 32
        $region212: #{transunet_forward.1} parent=183 // pred_fallthru
          _
        // Predicated region
        $region213: #{transunet_forward.1} parent=183 // pred_check
          %p1294 = pneg %p376
        $region214: #{transunet_forward.1} parent=183 // pred_check_branch
          %1296 = sbr.rel (%p1294) target = $region216
        $region215: #{transunet_forward.1} parent=183 // pred_region
          %1297 = dma.done [#allocation15], 32
        $region216: #{transunet_forward.1} parent=183 // pred_fallthru
          _
        // Predicated region
        $region217: #{transunet_forward.1} parent=183 // pred_check
          %p1298 = pneg %p418
        $region218: #{transunet_forward.1} parent=183 // pred_check_branch
          %1300 = sbr.rel (%p1298) target = $region220
        $region219: #{transunet_forward.1} parent=183 // pred_region
          %1301 = dma.done [#allocation15], 32
        $region220: #{transunet_forward.1} parent=183 // pred_fallthru
          _
        // Predicated region
        $region221: #{transunet_forward.1} parent=183 // pred_check
          %p1302 = pneg %p460
        $region222: #{transunet_forward.1} parent=183 // pred_check_branch
          %1304 = sbr.rel (%p1302) target = $region224
        $region223: #{transunet_forward.1} parent=183 // pred_region
          %1305 = dma.done [#allocation18], 32
        $region224: #{transunet_forward.1} parent=183 // pred_fallthru
          _
        // Predicated region
        $region225: #{transunet_forward.1} parent=183 // pred_check
          %p1306 = pneg %p481
        $region226: #{transunet_forward.1} parent=183 // pred_check_branch
          %1308 = sbr.rel (%p1306) target = $region228
        $region227: #{transunet_forward.1} parent=183 // pred_region
          %1309 = dma.done [#allocation18], 16
        $region228: #{transunet_forward.1} parent=183 // pred_fallthru
          _
        // Predicated region
        $region229: #{transunet_forward.1} parent=183 // pred_check
          %p1310 = pneg %p502
        $region230: #{transunet_forward.1} parent=183 // pred_check_branch
          %1312 = sbr.rel (%p1310) target = $region232
        $region231: #{transunet_forward.1} parent=183 // pred_region
          %1313 = dma.done [#allocation21], 16
        $region232: #{transunet_forward.1} parent=183 // pred_fallthru
          _
        // Predicated region
        $region233: #{transunet_forward.1} parent=183 // pred_check
          %p1314 = pneg %p586
        $region234: #{transunet_forward.1} parent=183 // pred_check_branch
          %1316 = sbr.rel (%p1314) target = $region236
        $region235: #{transunet_forward.1} parent=183 // pred_region
          %1317 = dma.done [#allocation21], 64
        $region236: #{transunet_forward.1} parent=183 // pred_fallthru
          _
        %p1318 = scmp.lt.s32.totalorder %s103, 1
        %s1319 = scalar_select %p1318, %s103, 1
        %s1320 = smul.addr %s1319, 2
        %s1321 = smul.addr %s1320, 8
        %s1322 = scalar_lea.vmem %s1, %s1321
        %p1323 = pneg %p124
        %p1324 = pneg %p121
        %p1325 = pneg %p145
        %p1326 = pneg %p142
        %p1327 = pneg %p166
        %p1328 = pneg %p163
        %p1329 = pneg %p187
        %p1330 = pneg %p184
        %p1331 = pneg %p208
        %p1332 = pneg %p205
        %p1333 = pneg %p229
        %p1334 = pneg %p226
        %p1335 = pneg %p250
        %p1336 = pneg %p247
        %p1337 = pneg %p271
        %p1338 = pneg %p268
        %p1339 = pneg %p292
        %p1340 = pneg %p289
        %p1341 = pneg %p313
        %p1342 = pneg %p310
        %p1343 = pneg %p334
        %p1344 = pneg %p331
        %p1345 = pneg %p355
        %p1346 = pneg %p352
        %p1347 = pneg %p376
        %p1348 = pneg %p373
        %p1349 = pneg %p397
        %p1350 = pneg %p394
        %p1351 = pneg %p418
        %p1352 = pneg %p415
        %p1353 = pneg %p439
        %p1354 = pneg %p436
        %p1355 = pneg %p460
        %p1356 = pneg %p457
        %p1357 = pneg %p481
        %p1358 = pneg %p478
        %p1359 = pneg %p502
        %p1360 = pneg %p499
        %p1361 = pneg %p523
        %p1362 = pneg %p520
        %p1363 = pneg %p544
        %p1364 = pneg %p541
        %p1365 = pneg %p565
        %p1366 = pneg %p562
        %p1367 = pneg %p586
        %p1368 = pneg %p583
        %p1369 = pneg %p607
        %p1370 = pneg %p604
        %p1371 = pneg %p628
        %p1372 = pneg %p625
        %p1373 = pneg %p649
        %p1374 = pneg %p646
        %p1375 = pneg %p670
        %p1376 = pneg %p667
        %p1377 = pneg %p691
        %p1378 = pneg %p688
        %p1379 = pneg %p712
        %p1380 = pneg %p709
        %p1381 = pneg %p733
        %p1382 = pneg %p730
        %p1383 = pneg %p754
        %p1384 = pneg %p751
        %p1385 = pneg %p775
        %p1386 = pneg %p772
        %p1387 = pneg %p796
        %p1388 = pneg %p793
        %p1389 = pneg %p817
        %p1390 = pneg %p814
        %p1391 = pneg %p838
        %p1392 = pneg %p835
        %p1393 = pneg %p859
        %p1394 = pneg %p856
        %p1395 = pneg %p880
        %p1396 = pneg %p877
        %p1397 = pneg %p901
        %p1398 = pneg %p898
        %p1399 = pneg %p922
        %p1400 = pneg %p919
        %p1401 = pneg %p943
        %p1402 = pneg %p940
        %p1403 = pneg %p964
        %p1404 = pneg %p961
        %p1405 = pneg %p990
        %p1406 = pneg %p987
        %p1407 = scmp.lt.s32.totalorder %s103, 1
        %s1408 = scalar_select %p1407, %s103, 1
        %s1409 = smul.addr %s1408, 2
        %s1410 = scalar_lea.vmem %s83, %s1409
        %p1411 = scmp.lt.s32.totalorder %s103, 1
        %s1412 = scalar_select %p1411, %s103, 1
        %s1413 = smul.addr %s1412, 2
        %s1414 = smul.addr %s1413, 8
        %s1415 = scalar_lea.vmem %s1, %s1414
        %p1416 = scmp.lt.s32.totalorder %s103, 1
        %s1417 = scalar_select %p1416, %s103, 1
        %s1418 = smul.addr %s1417, 2
        %s1419 = scalar_lea.vmem %s83, %s1418
        %v1420 = vld [vmem:[%s1415] sm:$0xff]
        %v1421 = vld [vmem:[%s1415 + $0x8] sm:$0xff]
        %v1422 = vld [vmem:[%s7] sm:$0xff]
        %v1423 = vld [vmem:[%s7 + $0x8] sm:$0xff]
        %v1424 = vld [vmem:[%s7 + $0x10] sm:$0xff]
        %v1425 = vld [vmem:[%s7 + $0x18] sm:$0xff]
        %v1426 = vld [vmem:[%s7 + $0x20] sm:$0xff]
        %v1427 = vld [vmem:[%s7 + $0x28] sm:$0xff]
        %v1428 = vld [vmem:[#allocation5] sm:$0x1]
        %v1430 = vlaneseq
        %v1431 = vshrl.u32 %v1430, 7
        %v1432 = vsub.s32 0, %v1431
        %v1433 = vrot.slane %v1428, %v1432
        %vm1435 = vcmask 392192
        %v1437 = vsel %vm1435, %v1420, 0
        %v1440 = vsel %vm1435, %v1421, 0
        %1442 = vmatprep.subr.mxu0 0.0
        %1443 = vmatpush1.msra.mxu0 %v1422
        %1444 = vmatprep.subr.mxu0 0.0
        %1445 = vmatpush1.msra.mxu0 %v1423
        %1446 = vmatprep.subr.mxu0 0.0
        %1447 = vmatpush1.msra.mxu0 %v1424
        %1448 = vmatprep.subr.mxu0 0.0
        %1449 = vmatpush1.msra.mxu0 %v1425
        %1450 = vmatprep.subr.mxu0 0.0
        %1451 = vmatpush1.msra.mxu0 %v1426
        %1452 = vmatprep.subr.mxu0 0.0
        %1453 = vmatpush1.msra.mxu0 %v1427
        %1454 = vmatprep.subr.mxu0 0.0
        %1455 = vmatpush1.msra.mxu0 0.0
        %1456 = vmatprep.subr.mxu0 0.0
        %1457 = vmatpush1.msra.mxu0 0.0
        %1458 = vmatprep.subr.mxu0 0.0
        %1459 = vmatpush1.msra.mxu0 0.0
        %1460 = vmatprep.subr.mxu0 0.0
        %1461 = vmatpush1.msra.mxu0 0.0
        %1462 = vmatprep.subr.mxu0 0.0
        %1463 = vmatpush1.msra.mxu0 0.0
        %1464 = vmatprep.subr.mxu0 0.0
        %1465 = vmatpush1.msra.mxu0 0.0
        %1466 = vmatprep.subr.mxu0 0.0
        %1467 = vmatpush1.msra.mxu0 0.0
        %1468 = vmatprep.subr.mxu0 0.0
        %1469 = vmatpush1.msra.mxu0 0.0
        %1470 = vmatprep.subr.mxu0 0.0
        %1471 = vmatpush1.msra.mxu0 0.0
        %1472 = vmatprep.subr.mxu0 0.0
        %1473 = vmatpush1.msra.mxu0 0.0
        %1474 = vmatprep.subr.mxu0 0.0
        %1475 = vmatpush1.msra.mxu0 0.0
        %1476 = vmatprep.subr.mxu0 0.0
        %1477 = vmatpush1.msra.mxu0 0.0
        %1478 = vmatprep.subr.mxu0 0.0
        %1479 = vmatpush1.msra.mxu0 0.0
        %1480 = vmatprep.subr.mxu0 0.0
        %1481 = vmatpush1.msra.mxu0 0.0
        %1482 = vmatprep.subr.mxu0 0.0
        %1483 = vmatpush1.msra.mxu0 0.0
        %1484 = vmatprep.subr.mxu0 0.0
        %1485 = vmatpush1.msra.mxu0 0.0
        %1486 = vmatprep.subr.mxu0 0.0
        %1487 = vmatpush1.msra.mxu0 0.0
        %1488 = vmatprep.subr.mxu0 0.0
        %1489 = vmatpush1.msra.mxu0 0.0
        %1490 = vmatprep.subr.mxu0 0.0
        %1491 = vmatpush1.msra.mxu0 0.0
        %1492 = vmatprep.subr.mxu0 0.0
        %1493 = vmatpush1.msra.mxu0 0.0
        %1494 = vmatprep.subr.mxu0 0.0
        %1495 = vmatpush1.msra.mxu0 0.0
        %1496 = vmatprep.subr.mxu0 0.0
        %1497 = vmatpush1.msra.mxu0 0.0
        %1498 = vmatprep.subr.mxu0 0.0
        %1499 = vmatpush1.msra.mxu0 0.0
        %1500 = vmatprep.subr.mxu0 0.0
        %1501 = vmatpush1.msra.mxu0 0.0
        %1502 = vmatprep.subr.mxu0 0.0
        %1503 = vmatpush1.msra.mxu0 0.0
        %1504 = vmatprep.subr.mxu0 0.0
        %1505 = vmatpush1.msra.mxu0 0.0
        %1506 = vmatprep.mubr.f32.mxu0 0.0
        %1507 = vmatmul.mubr.f32.gmra.mrb[0].mxu0 %v1437
        %v1508 = vpop.f32.mrb[0].mxu0
        %v1509 = vadd.f32 %v1433, %v1508
        %v1510 = vpop.f32.mrb[0].mxu0
        %1511 = vmatprep.mubr.f32.mxu0 0.0
        %1512 = vmatmul.mubr.f32.gmra.mrb[0].mxu0 %v1440
        %v1513 = vpop.f32.mrb[0].mxu0
        %v1514 = vadd.f32 %v1433, %v1513
        %v1515 = vpop.f32.mrb[0].mxu0
        %1516 = vdwg.mxu0
        %v1517 = vld [vmem:[#allocation3] sm:$0xff]
        %v1518 = vld [vmem:[#allocation3 + $0x8] sm:$0xff]
        %v1519 = vadd.f32 %v1509, %v1517
        %v1520 = vadd.f32 %v1514, %v1518
        %v1521 = vld [vmem:[%s5] sm:$0xff]
        %v1522 = vld [vmem:[%s5 + $0x8] sm:$0xff]
        %v1523 = vld [vmem:[#allocation7] sm:$0x1]
        %v1524 = vld [vmem:[#allocation8] sm:$0x1]
        %vm1525 = vcmask 261120
        %v1526 = vsel %vm1525, %v1519, 0.0
        %1527 = vadd.xlane.f32.xlu0 %v1526
        %v1528 = vpop.xlane.xlu0 %1527
        %v1529 = vsel %vm1525, %v1520, 0.0
        %1530 = vadd.xlane.f32.xlu0 %v1529
        %v1531 = vpop.xlane.xlu0 %1530
        %v1532 = vrcp.pop 32.0
        %v1533 = vmul.f32 %v1528, %v1532
        %v1534 = vmul.f32 %v1531, %v1532
        %v1535 = vsub.f32 %v1519, %v1533
        %v1536 = vsub.f32 %v1520, %v1534
        %v1537 = vmul.f32 %v1535, %v1535
        %v1538 = vmul.f32 %v1536, %v1536
        %v1539 = vsel %vm1525, %v1537, 0.0
        %1540 = vadd.xlane.f32.xlu0 %v1539
        %v1541 = vpop.xlane.xlu0 %1540
        %v1542 = vsel %vm1525, %v1538, 0.0
        %1543 = vadd.xlane.f32.xlu0 %v1542
        %v1544 = vpop.xlane.xlu0 %1543
        %v1545 = vmul.f32 %v1541, %v1532
        %v1546 = vmul.f32 %v1544, %v1532
        %v1547 = vadd.f32 %v1545, 1e-06
        %v1548 = vadd.f32 %v1546, 1e-06
        %v1549 = vrsqrt.pop %v1547
        %v1550 = vrsqrt.pop %v1548
        %v1551 = vmul.f32 %v1535, %v1549
        %v1552 = vmul.f32 %v1536, %v1550
        %v1554 = vlaneseq
        %v1555 = vshrl.u32 %v1554, 7
        %v1556 = vsub.s32 0, %v1555
        %v1557 = vrot.slane %v1523, %v1556
        %v1559 = vmul.f32 %v1551, %v1557
        %v1560 = vmul.f32 %v1552, %v1557
        %v1562 = vlaneseq
        %v1563 = vshrl.u32 %v1562, 7
        %v1564 = vsub.s32 0, %v1563
        %v1565 = vrot.slane %v1524, %v1564
        %v1567 = vadd.f32 %v1559, %v1565
        %v1568 = vadd.f32 %v1560, %v1565
        %v1569 = vld [vmem:[%s15] sm:$0xff]
        %v1570 = vld [vmem:[%s15 + $0x8] sm:$0xff]
        %v1571 = vld [vmem:[%s15 + $0x10] sm:$0xff]
        %v1572 = vld [vmem:[%s15 + $0x18] sm:$0xff]
        %v1573 = vld [vmem:[#allocation10] sm:$0x1]
        %v1575 = vlaneseq
        %v1576 = vshrl.u32 %v1575, 7
        %v1577 = vsub.s32 0, %v1576
        %v1578 = vrot.slane %v1573, %v1577
        %v1581 = vsel %vm1525, %v1567, 0
        %v1584 = vsel %vm1525, %v1568, 0
        %1586 = vmatprep.subr.mxu0 0.0
        %1587 = vmatpush1.msra.mxu0 %v1569
        %1588 = vmatprep.subr.mxu0 0.0
        %1589 = vmatpush1.msra.mxu0 %v1570
        %1590 = vmatprep.subr.mxu0 0.0
        %1591 = vmatpush1.msra.mxu0 %v1571
        %1592 = vmatprep.subr.mxu0 0.0
        %1593 = vmatpush1.msra.mxu0 %v1572
        %1594 = vmatprep.subr.mxu0 0.0
        %1595 = vmatpush1.msra.mxu0 0.0
        %1596 = vmatprep.subr.mxu0 0.0
        %1597 = vmatpush1.msra.mxu0 0.0
        %1598 = vmatprep.subr.mxu0 0.0
        %1599 = vmatpush1.msra.mxu0 0.0
        %1600 = vmatprep.subr.mxu0 0.0
        %1601 = vmatpush1.msra.mxu0 0.0
        %1602 = vmatprep.subr.mxu0 0.0
        %1603 = vmatpush1.msra.mxu0 0.0
        %1604 = vmatprep.subr.mxu0 0.0
        %1605 = vmatpush1.msra.mxu0 0.0
        %1606 = vmatprep.subr.mxu0 0.0
        %1607 = vmatpush1.msra.mxu0 0.0
        %1608 = vmatprep.subr.mxu0 0.0
        %1609 = vmatpush1.msra.mxu0 0.0
        %1610 = vmatprep.subr.mxu0 0.0
        %1611 = vmatpush1.msra.mxu0 0.0
        %1612 = vmatprep.subr.mxu0 0.0
        %1613 = vmatpush1.msra.mxu0 0.0
        %1614 = vmatprep.subr.mxu0 0.0
        %1615 = vmatpush1.msra.mxu0 0.0
        %1616 = vmatprep.subr.mxu0 0.0
        %1617 = vmatpush1.msra.mxu0 0.0
        %1618 = vmatprep.subr.mxu0 0.0
        %1619 = vmatpush1.msra.mxu0 0.0
        %1620 = vmatprep.subr.mxu0 0.0
        %1621 = vmatpush1.msra.mxu0 0.0
        %1622 = vmatprep.subr.mxu0 0.0
        %1623 = vmatpush1.msra.mxu0 0.0
        %1624 = vmatprep.subr.mxu0 0.0
        %1625 = vmatpush1.msra.mxu0 0.0
        %1626 = vmatprep.subr.mxu0 0.0
        %1627 = vmatpush1.msra.mxu0 0.0
        %1628 = vmatprep.subr.mxu0 0.0
        %1629 = vmatpush1.msra.mxu0 0.0
        %1630 = vmatprep.subr.mxu0 0.0
        %1631 = vmatpush1.msra.mxu0 0.0
        %1632 = vmatprep.subr.mxu0 0.0
        %1633 = vmatpush1.msra.mxu0 0.0
        %1634 = vmatprep.subr.mxu0 0.0
        %1635 = vmatpush1.msra.mxu0 0.0
        %1636 = vmatprep.subr.mxu0 0.0
        %1637 = vmatpush1.msra.mxu0 0.0
        %1638 = vmatprep.subr.mxu0 0.0
        %1639 = vmatpush1.msra.mxu0 0.0
        %1640 = vmatprep.subr.mxu0 0.0
        %1641 = vmatpush1.msra.mxu0 0.0
        %1642 = vmatprep.subr.mxu0 0.0
        %1643 = vmatpush1.msra.mxu0 0.0
        %1644 = vmatprep.subr.mxu0 0.0
        %1645 = vmatpush1.msra.mxu0 0.0
        %1646 = vmatprep.subr.mxu0 0.0
        %1647 = vmatpush1.msra.mxu0 0.0
        %1648 = vmatprep.subr.mxu0 0.0
        %1649 = vmatpush1.msra.mxu0 0.0
        %1650 = vmatprep.mubr.f32.mxu0 0.0
        %1651 = vmatmul.mubr.f32.gmra.mrb[0].mxu0 %v1581
        %v1652 = vpop.f32.mrb[0].mxu0
        %v1653 = vadd.f32 %v1578, %v1652
        %v1654 = vpop.f32.mrb[0].mxu0
        %1655 = vmatprep.mubr.f32.mxu0 0.0
        %1656 = vmatmul.mubr.f32.gmra.mrb[0].mxu0 %v1584
        %v1657 = vpop.f32.mrb[0].mxu0
        %v1658 = vadd.f32 %v1578, %v1657
        %v1659 = vpop.f32.mrb[0].mxu0
        %1660 = vdwg.mxu0
        %1663 = vrot.lane.b32.xlu0 %v1653, 96
        %v1664 = vpop.permute.xlu0 %1663
        %1665 = vrot.lane.b32.xlu0 %v1658, 96
        %v1666 = vpop.permute.xlu0 %1665
        %vm1667 = vcmask 64512
        %v1668 = vsel %vm1667, %v1653, 0
        %v1670 = vsel %vm1667, %v1658, 0
        %v1672 = vsel %vm1667, %v1664, 0
        %v1674 = vsel %vm1667, %v1666, 0
        %1676 = vmatprep.subr.mxu0 0.0
        %1677 = vmatpush1.xpose.msra.mxu0 %v1672
        %1678 = vmatprep.subr.mxu0 0.0
        %1679 = vmatpush1.xpose.msra.mxu0 %v1674
        %1680 = vmatprep.subr.mxu0 0.0
        %1681 = vmatpush1.xpose.msra.mxu0 0.0
        %1682 = vmatprep.subr.mxu0 0.0
        %1683 = vmatpush1.xpose.msra.mxu0 0.0
        %1684 = vmatprep.subr.mxu0 0.0
        %1685 = vmatpush1.xpose.msra.mxu0 0.0
        %1686 = vmatprep.subr.mxu0 0.0
        %1687 = vmatpush1.xpose.msra.mxu0 0.0
        %1688 = vmatprep.subr.mxu0 0.0
        %1689 = vmatpush1.xpose.msra.mxu0 0.0
        %1690 = vmatprep.subr.mxu0 0.0
        %1691 = vmatpush1.xpose.msra.mxu0 0.0
        %1692 = vmatprep.subr.mxu0 0.0
        %1693 = vmatpush1.xpose.msra.mxu0 0.0
        %1694 = vmatprep.subr.mxu0 0.0
        %1695 = vmatpush1.xpose.msra.mxu0 0.0
        %1696 = vmatprep.subr.mxu0 0.0
        %1697 = vmatpush1.xpose.msra.mxu0 0.0
        %1698 = vmatprep.subr.mxu0 0.0
        %1699 = vmatpush1.xpose.msra.mxu0 0.0
        %1700 = vmatprep.subr.mxu0 0.0
        %1701 = vmatpush1.xpose.msra.mxu0 0.0
        %1702 = vmatprep.subr.mxu0 0.0
        %1703 = vmatpush1.xpose.msra.mxu0 0.0
        %1704 = vmatprep.subr.mxu0 0.0
        %1705 = vmatpush1.xpose.msra.mxu0 0.0
        %1706 = vmatprep.subr.mxu0 0.0
        %1707 = vmatpush1.xpose.msra.mxu0 0.0
        %1708 = vmatprep.subr.mxu0 0.0
        %1709 = vmatpush1.xpose.msra.mxu0 0.0
        %1710 = vmatprep.subr.mxu0 0.0
        %1711 = vmatpush1.xpose.msra.mxu0 0.0
        %1712 = vmatprep.subr.mxu0 0.0
        %1713 = vmatpush1.xpose.msra.mxu0 0.0
        %1714 = vmatprep.subr.mxu0 0.0
        %1715 = vmatpush1.xpose.msra.mxu0 0.0
        %1716 = vmatprep.subr.mxu0 0.0
        %1717 = vmatpush1.xpose.msra.mxu0 0.0
        %1718 = vmatprep.subr.mxu0 0.0
        %1719 = vmatpush1.xpose.msra.mxu0 0.0
        %1720 = vmatprep.subr.mxu0 0.0
        %1721 = vmatpush1.xpose.msra.mxu0 0.0
        %1722 = vmatprep.subr.mxu0 0.0
        %1723 = vmatpush1.xpose.msra.mxu0 0.0
        %1724 = vmatprep.subr.mxu0 0.0
        %1725 = vmatpush1.xpose.msra.mxu0 0.0
        %1726 = vmatprep.subr.mxu0 0.0
        %1727 = vmatpush1.xpose.msra.mxu0 0.0
        %1728 = vmatprep.subr.mxu0 0.0
        %1729 = vmatpush1.xpose.msra.mxu0 0.0
        %1730 = vmatprep.subr.mxu0 0.0
        %1731 = vmatpush1.xpose.msra.mxu0 0.0
        %1732 = vmatprep.subr.mxu0 0.0
        %1733 = vmatpush1.xpose.msra.mxu0 0.0
        %1734 = vmatprep.subr.mxu0 0.0
        %1735 = vmatpush1.xpose.msra.mxu0 0.0
        %1736 = vmatprep.subr.mxu0 0.0
        %1737 = vmatpush1.xpose.msra.mxu0 0.0
        %1738 = vmatprep.subr.mxu0 0.0
        %1739 = vmatpush1.xpose.msra.mxu0 0.0
        %1740 = vmatprep.mubr.f32.mxu0 0.0
        %1741 = vmatmul.mubr.f32.gmra.mrb[0].mxu0 %v1668
        %v1742 = vpop.f32.mrb[0].mxu0
        %v1743 = vadd.f32 %v1521, %v1742
        %v1744 = vpop.f32.mrb[0].mxu0
        %1745 = vmatprep.mubr.f32.mxu0 0.0
        %1746 = vmatmul.mubr.f32.gmra.mrb[0].mxu0 %v1670
        %v1747 = vpop.f32.mrb[0].mxu0
        %v1748 = vadd.f32 %v1522, %v1747
        %v1749 = vpop.f32.mrb[0].mxu0
        %1750 = vdwg.mxu0
        %vm1751 = vcmask 130048
        %v1752 = vsel %vm1751, %v1743, -inf
        %1753 = vmax.xlane.f32.xlu0 %v1752
        %v1754 = vpop.xlane.xlu0 %1753
        %v1755 = vsel %vm1751, %v1748, -inf
        %1756 = vmax.xlane.f32.xlu0 %v1755
        %v1757 = vpop.xlane.xlu0 %1756
        %v1758 = vsub.f32 %v1743, %v1754
        %v1759 = vsub.f32 %v1748, %v1757
        %v1760 = vmul.f32 %v1758, 1.442695
        %v1761 = vpow.pop %v1760
        %v1762 = vmul.f32 %v1759, 1.442695
        %v1763 = vpow.pop %v1762
        %v1764 = vsel %vm1751, %v1761, 0.0
        %1765 = vadd.xlane.f32.xlu0 %v1764
        %v1766 = vpop.xlane.xlu0 %1765
        %v1767 = vsel %vm1751, %v1763, 0.0
        %1768 = vadd.xlane.f32.xlu0 %v1767
        %v1769 = vpop.xlane.xlu0 %1768
        %v1770 = vrcp.pop %v1766
        %v1771 = vrcp.pop %v1769
        %v1772 = vmul.f32 %v1761, %v1770
        %v1773 = vmul.f32 %v1763, %v1771
        %1774 = vrot.lane.b32.xlu0 %v1653, 64
        %v1775 = vpop.permute.xlu0 %1774
        %1776 = vrot.lane.b32.xlu0 %v1658, 64
        %v1777 = vpop.permute.xlu0 %1776
        %v1781 = vsel %vm1751, %v1772, 0
        %v1784 = vsel %vm1751, %v1773, 0
        %1786 = vmatprep.subr.mxu0 0.0
        %1787 = vmatpush1.msra.mxu0 %v1775
        %1788 = vmatprep.subr.mxu0 0.0
        %1789 = vmatpush1.msra.mxu0 %v1777
        %1790 = vmatprep.subr.mxu0 0.0
        %1791 = vmatpush1.msra.mxu0 0.0
        %1792 = vmatprep.subr.mxu0 0.0
        %1793 = vmatpush1.msra.mxu0 0.0
        %1794 = vmatprep.subr.mxu0 0.0
        %1795 = vmatpush1.msra.mxu0 0.0
        %1796 = vmatprep.subr.mxu0 0.0
        %1797 = vmatpush1.msra.mxu0 0.0
        %1798 = vmatprep.subr.mxu0 0.0
        %1799 = vmatpush1.msra.mxu0 0.0
        %1800 = vmatprep.subr.mxu0 0.0
        %1801 = vmatpush1.msra.mxu0 0.0
        %1802 = vmatprep.subr.mxu0 0.0
        %1803 = vmatpush1.msra.mxu0 0.0
        %1804 = vmatprep.subr.mxu0 0.0
        %1805 = vmatpush1.msra.mxu0 0.0
        %1806 = vmatprep.subr.mxu0 0.0
        %1807 = vmatpush1.msra.mxu0 0.0
        %1808 = vmatprep.subr.mxu0 0.0
        %1809 = vmatpush1.msra.mxu0 0.0
        %1810 = vmatprep.subr.mxu0 0.0
        %1811 = vmatpush1.msra.mxu0 0.0
        %1812 = vmatprep.subr.mxu0 0.0
        %1813 = vmatpush1.msra.mxu0 0.0
        %1814 = vmatprep.subr.mxu0 0.0
        %1815 = vmatpush1.msra.mxu0 0.0
        %1816 = vmatprep.subr.mxu0 0.0
        %1817 = vmatpush1.msra.mxu0 0.0
        %1818 = vmatprep.subr.mxu0 0.0
        %1819 = vmatpush1.msra.mxu0 0.0
        %1820 = vmatprep.subr.mxu0 0.0
        %1821 = vmatpush1.msra.mxu0 0.0
        %1822 = vmatprep.subr.mxu0 0.0
        %1823 = vmatpush1.msra.mxu0 0.0
        %1824 = vmatprep.subr.mxu0 0.0
        %1825 = vmatpush1.msra.mxu0 0.0
        %1826 = vmatprep.subr.mxu0 0.0
        %1827 = vmatpush1.msra.mxu0 0.0
        %1828 = vmatprep.subr.mxu0 0.0
        %1829 = vmatpush1.msra.mxu0 0.0
        %1830 = vmatprep.subr.mxu0 0.0
        %1831 = vmatpush1.msra.mxu0 0.0
        %1832 = vmatprep.subr.mxu0 0.0
        %1833 = vmatpush1.msra.mxu0 0.0
        %1834 = vmatprep.subr.mxu0 0.0
        %1835 = vmatpush1.msra.mxu0 0.0
        %1836 = vmatprep.subr.mxu0 0.0
        %1837 = vmatpush1.msra.mxu0 0.0
        %1838 = vmatprep.subr.mxu0 0.0
        %1839 = vmatpush1.msra.mxu0 0.0
        %1840 = vmatprep.subr.mxu0 0.0
        %1841 = vmatpush1.msra.mxu0 0.0
        %1842 = vmatprep.subr.mxu0 0.0
        %1843 = vmatpush1.msra.mxu0 0.0
        %1844 = vmatprep.subr.mxu0 0.0
        %1845 = vmatpush1.msra.mxu0 0.0
        %1846 = vmatprep.subr.mxu0 0.0
        %1847 = vmatpush1.msra.mxu0 0.0
        %1848 = vmatprep.subr.mxu0 0.0
        %1849 = vmatpush1.msra.mxu0 0.0
        %1850 = vmatprep.mubr.f32.mxu0 0.0
        %1851 = vmatmul.mubr.f32.gmra.mrb[0].mxu0 %v1781
        %v1852 = vpop.f32.mrb[0].mxu0
        %v1853 = vadd.f32 0.0, %v1852
        %v1854 = vpop.f32.mrb[0].mxu0
        %1855 = vmatprep.mubr.f32.mxu0 0.0
        %1856 = vmatmul.mubr.f32.gmra.mrb[0].mxu0 %v1784
        %v1857 = vpop.f32.mrb[0].mxu0
        %v1858 = vadd.f32 0.0, %v1857
        %v1859 = vpop.f32.mrb[0].mxu0
        %1860 = vdwg.mxu0
        %1861 = vrot.lane.b32.xlu0 %v1653, 120
        %v1862 = vpop.permute.xlu0 %1861
        %1863 = vrot.lane.b32.xlu0 %v1658, 120
        %v1864 = vpop.permute.xlu0 %1863
        %1865 = vrot.lane.b32.xlu0 %v1653, 88
        %v1866 = vpop.permute.xlu0 %1865
        %1867 = vrot.lane.b32.xlu0 %v1658, 88
        %v1868 = vpop.permute.xlu0 %1867
        %v1869 = vsel %vm1667, %v1862, 0
        %v1871 = vsel %vm1667, %v1864, 0
        %v1873 = vsel %vm1667, %v1866, 0
        %v1875 = vsel %vm1667, %v1868, 0
        %1877 = vmatprep.subr.mxu0 0.0
        %1878 = vmatpush1.xpose.msra.mxu0 %v1873
        %1879 = vmatprep.subr.mxu0 0.0
        %1880 = vmatpush1.xpose.msra.mxu0 %v1875
        %1881 = vmatprep.subr.mxu0 0.0
        %1882 = vmatpush1.xpose.msra.mxu0 0.0
        %1883 = vmatprep.subr.mxu0 0.0
        %1884 = vmatpush1.xpose.msra.mxu0 0.0
        %1885 = vmatprep.subr.mxu0 0.0
        %1886 = vmatpush1.xpose.msra.mxu0 0.0
        %1887 = vmatprep.subr.mxu0 0.0
        %1888 = vmatpush1.xpose.msra.mxu0 0.0
        %1889 = vmatprep.subr.mxu0 0.0
        %1890 = vmatpush1.xpose.msra.mxu0 0.0
        %1891 = vmatprep.subr.mxu0 0.0
        %1892 = vmatpush1.xpose.msra.mxu0 0.0
        %1893 = vmatprep.subr.mxu0 0.0
        %1894 = vmatpush1.xpose.msra.mxu0 0.0
        %1895 = vmatprep.subr.mxu0 0.0
        %1896 = vmatpush1.xpose.msra.mxu0 0.0
        %1897 = vmatprep.subr.mxu0 0.0
        %1898 = vmatpush1.xpose.msra.mxu0 0.0
        %1899 = vmatprep.subr.mxu0 0.0
        %1900 = vmatpush1.xpose.msra.mxu0 0.0
        %1901 = vmatprep.subr.mxu0 0.0
        %1902 = vmatpush1.xpose.msra.mxu0 0.0
        %1903 = vmatprep.subr.mxu0 0.0
        %1904 = vmatpush1.xpose.msra.mxu0 0.0
        %1905 = vmatprep.subr.mxu0 0.0
        %1906 = vmatpush1.xpose.msra.mxu0 0.0
        %1907 = vmatprep.subr.mxu0 0.0
        %1908 = vmatpush1.xpose.msra.mxu0 0.0
        %1909 = vmatprep.subr.mxu0 0.0
        %1910 = vmatpush1.xpose.msra.mxu0 0.0
        %1911 = vmatprep.subr.mxu0 0.0
        %1912 = vmatpush1.xpose.msra.mxu0 0.0
        %1913 = vmatprep.subr.mxu0 0.0
        %1914 = vmatpush1.xpose.msra.mxu0 0.0
        %1915 = vmatprep.subr.mxu0 0.0
        %1916 = vmatpush1.xpose.msra.mxu0 0.0
        %1917 = vmatprep.subr.mxu0 0.0
        %1918 = vmatpush1.xpose.msra.mxu0 0.0
        %1919 = vmatprep.subr.mxu0 0.0
        %1920 = vmatpush1.xpose.msra.mxu0 0.0
        %1921 = vmatprep.subr.mxu0 0.0
        %1922 = vmatpush1.xpose.msra.mxu0 0.0
        %1923 = vmatprep.subr.mxu0 0.0
        %1924 = vmatpush1.xpose.msra.mxu0 0.0
        %1925 = vmatprep.subr.mxu0 0.0
        %1926 = vmatpush1.xpose.msra.mxu0 0.0
        %1927 = vmatprep.subr.mxu0 0.0
        %1928 = vmatpush1.xpose.msra.mxu0 0.0
        %1929 = vmatprep.subr.mxu0 0.0
        %1930 = vmatpush1.xpose.msra.mxu0 0.0
        %1931 = vmatprep.subr.mxu0 0.0
        %1932 = vmatpush1.xpose.msra.mxu0 0.0
        %1933 = vmatprep.subr.mxu0 0.0
        %1934 = vmatpush1.xpose.msra.mxu0 0.0
        %1935 = vmatprep.subr.mxu0 0.0
        %1936 = vmatpush1.xpose.msra.mxu0 0.0
        %1937 = vmatprep.subr.mxu0 0.0
        %1938 = vmatpush1.xpose.msra.mxu0 0.0
        %1939 = vmatprep.subr.mxu0 0.0
        %1940 = vmatpush1.xpose.msra.mxu0 0.0
        %1941 = vmatprep.mubr.f32.mxu0 0.0
        %1942 = vmatmul.mubr.f32.gmra.mrb[0].mxu0 %v1869
        %v1943 = vpop.f32.mrb[0].mxu0
        %v1944 = vadd.f32 %v1521, %v1943
        %v1945 = vpop.f32.mrb[0].mxu0
        %1946 = vmatprep.mubr.f32.mxu0 0.0
        %1947 = vmatmul.mubr.f32.gmra.mrb[0].mxu0 %v1871
        %v1948 = vpop.f32.mrb[0].mxu0
        %v1949 = vadd.f32 %v1522, %v1948
        %v1950 = vpop.f32.mrb[0].mxu0
        %1951 = vdwg.mxu0
        %v1952 = vsel %vm1751, %v1944, -inf
        %1953 = vmax.xlane.f32.xlu0 %v1952
        %v1954 = vpop.xlane.xlu0 %1953
        %v1955 = vsel %vm1751, %v1949, -inf
        %1956 = vmax.xlane.f32.xlu0 %v1955
        %v1957 = vpop.xlane.xlu0 %1956
        %v1958 = vsub.f32 %v1944, %v1954
        %v1959 = vsub.f32 %v1949, %v1957
        %v1960 = vmul.f32 %v1958, 1.442695
        %v1961 = vpow.pop %v1960
        %v1962 = vmul.f32 %v1959, 1.442695
        %v1963 = vpow.pop %v1962
        %v1964 = vsel %vm1751, %v1961, 0.0
        %1965 = vadd.xlane.f32.xlu0 %v1964
        %v1966 = vpop.xlane.xlu0 %1965
        %v1967 = vsel %vm1751, %v1963, 0.0
        %1968 = vadd.xlane.f32.xlu0 %v1967
        %v1969 = vpop.xlane.xlu0 %1968
        %v1970 = vrcp.pop %v1966
        %v1971 = vrcp.pop %v1969
        %v1972 = vmul.f32 %v1961, %v1970
        %v1973 = vmul.f32 %v1963, %v1971
        %1974 = vrot.lane.b32.xlu0 %v1653, 56
        %v1975 = vpop.permute.xlu0 %1974
        %1976 = vrot.lane.b32.xlu0 %v1658, 56
        %v1977 = vpop.permute.xlu0 %1976
        %v1981 = vsel %vm1751, %v1972, 0
        %v1984 = vsel %vm1751, %v1973, 0
        %1986 = vmatprep.subr.mxu0 0.0
        %1987 = vmatpush1.msra.mxu0 %v1975
        %1988 = vmatprep.subr.mxu0 0.0
        %1989 = vmatpush1.msra.mxu0 %v1977
        %1990 = vmatprep.subr.mxu0 0.0
        %1991 = vmatpush1.msra.mxu0 0.0
        %1992 = vmatprep.subr.mxu0 0.0
        %1993 = vmatpush1.msra.mxu0 0.0
        %1994 = vmatprep.subr.mxu0 0.0
        %1995 = vmatpush1.msra.mxu0 0.0
        %1996 = vmatprep.subr.mxu0 0.0
        %1997 = vmatpush1.msra.mxu0 0.0
        %1998 = vmatprep.subr.mxu0 0.0
        %1999 = vmatpush1.msra.mxu0 0.0
        %2000 = vmatprep.subr.mxu0 0.0
        %2001 = vmatpush1.msra.mxu0 0.0
        %2002 = vmatprep.subr.mxu0 0.0
        %2003 = vmatpush1.msra.mxu0 0.0
        %2004 = vmatprep.subr.mxu0 0.0
        %2005 = vmatpush1.msra.mxu0 0.0
        %2006 = vmatprep.subr.mxu0 0.0
        %2007 = vmatpush1.msra.mxu0 0.0
        %2008 = vmatprep.subr.mxu0 0.0
        %2009 = vmatpush1.msra.mxu0 0.0
        %2010 = vmatprep.subr.mxu0 0.0
        %2011 = vmatpush1.msra.mxu0 0.0
        %2012 = vmatprep.subr.mxu0 0.0
        %2013 = vmatpush1.msra.mxu0 0.0
        %2014 = vmatprep.subr.mxu0 0.0
        %2015 = vmatpush1.msra.mxu0 0.0
        %2016 = vmatprep.subr.mxu0 0.0
        %2017 = vmatpush1.msra.mxu0 0.0
        %2018 = vmatprep.subr.mxu0 0.0
        %2019 = vmatpush1.msra.mxu0 0.0
        %2020 = vmatprep.subr.mxu0 0.0
        %2021 = vmatpush1.msra.mxu0 0.0
        %2022 = vmatprep.subr.mxu0 0.0
        %2023 = vmatpush1.msra.mxu0 0.0
        %2024 = vmatprep.subr.mxu0 0.0
        %2025 = vmatpush1.msra.mxu0 0.0
        %2026 = vmatprep.subr.mxu0 0.0
        %2027 = vmatpush1.msra.mxu0 0.0
        %2028 = vmatprep.subr.mxu0 0.0
        %2029 = vmatpush1.msra.mxu0 0.0
        %2030 = vmatprep.subr.mxu0 0.0
        %2031 = vmatpush1.msra.mxu0 0.0
        %2032 = vmatprep.subr.mxu0 0.0
        %2033 = vmatpush1.msra.mxu0 0.0
        %2034 = vmatprep.subr.mxu0 0.0
        %2035 = vmatpush1.msra.mxu0 0.0
        %2036 = vmatprep.subr.mxu0 0.0
        %2037 = vmatpush1.msra.mxu0 0.0
        %2038 = vmatprep.subr.mxu0 0.0
        %2039 = vmatpush1.msra.mxu0 0.0
        %2040 = vmatprep.subr.mxu0 0.0
        %2041 = vmatpush1.msra.mxu0 0.0
        %2042 = vmatprep.subr.mxu0 0.0
        %2043 = vmatpush1.msra.mxu0 0.0
        %2044 = vmatprep.subr.mxu0 0.0
        %2045 = vmatpush1.msra.mxu0 0.0
        %2046 = vmatprep.subr.mxu0 0.0
        %2047 = vmatpush1.msra.mxu0 0.0
        %2048 = vmatprep.subr.mxu0 0.0
        %2049 = vmatpush1.msra.mxu0 0.0
        %2050 = vmatprep.mubr.f32.mxu0 0.0
        %2051 = vmatmul.mubr.f32.gmra.mrb[0].mxu0 %v1981
        %v2052 = vpop.f32.mrb[0].mxu0
        %v2053 = vadd.f32 0.0, %v2052
        %v2054 = vpop.f32.mrb[0].mxu0
        %2055 = vmatprep.mubr.f32.mxu0 0.0
        %2056 = vmatmul.mubr.f32.gmra.mrb[0].mxu0 %v1984
        %v2057 = vpop.f32.mrb[0].mxu0
        %v2058 = vadd.f32 0.0, %v2057
        %v2059 = vpop.f32.mrb[0].mxu0
        %2060 = vdwg.mxu0
        %2061 = vrot.lane.b32.xlu0 %v1653, 112
        %v2062 = vpop.permute.xlu0 %2061
        %2063 = vrot.lane.b32.xlu0 %v1658, 112
        %v2064 = vpop.permute.xlu0 %2063
        %2065 = vrot.lane.b32.xlu0 %v1653, 80
        %v2066 = vpop.permute.xlu0 %2065
        %2067 = vrot.lane.b32.xlu0 %v1658, 80
        %v2068 = vpop.permute.xlu0 %2067
        %v2069 = vsel %vm1667, %v2062, 0
        %v2071 = vsel %vm1667, %v2064, 0
        %v2073 = vsel %vm1667, %v2066, 0
        %v2075 = vsel %vm1667, %v2068, 0
        %2077 = vmatprep.subr.mxu0 0.0
        %2078 = vmatpush1.xpose.msra.mxu0 %v2073
        %2079 = vmatprep.subr.mxu0 0.0
        %2080 = vmatpush1.xpose.msra.mxu0 %v2075
        %2081 = vmatprep.subr.mxu0 0.0
        %2082 = vmatpush1.xpose.msra.mxu0 0.0
        %2083 = vmatprep.subr.mxu0 0.0
        %2084 = vmatpush1.xpose.msra.mxu0 0.0
        %2085 = vmatprep.subr.mxu0 0.0
        %2086 = vmatpush1.xpose.msra.mxu0 0.0
        %2087 = vmatprep.subr.mxu0 0.0
        %2088 = vmatpush1.xpose.msra.mxu0 0.0
        %2089 = vmatprep.subr.mxu0 0.0
        %2090 = vmatpush1.xpose.msra.mxu0 0.0
        %2091 = vmatprep.subr.mxu0 0.0
        %2092 = vmatpush1.xpose.msra.mxu0 0.0
        %2093 = vmatprep.subr.mxu0 0.0
        %2094 = vmatpush1.xpose.msra.mxu0 0.0
        %2095 = vmatprep.subr.mxu0 0.0
        %2096 = vmatpush1.xpose.msra.mxu0 0.0
        %2097 = vmatprep.subr.mxu0 0.0
        %2098 = vmatpush1.xpose.msra.mxu0 0.0
        %2099 = vmatprep.subr.mxu0 0.0
        %2100 = vmatpush1.xpose.msra.mxu0 0.0
        %2101 = vmatprep.subr.mxu0 0.0
        %2102 = vmatpush1.xpose.msra.mxu0 0.0
        %2103 = vmatprep.subr.mxu0 0.0
        %2104 = vmatpush1.xpose.msra.mxu0 0.0
        %2105 = vmatprep.subr.mxu0 0.0
        %2106 = vmatpush1.xpose.msra.mxu0 0.0
        %2107 = vmatprep.subr.mxu0 0.0
        %2108 = vmatpush1.xpose.msra.mxu0 0.0
        %2109 = vmatprep.subr.mxu0 0.0
        %2110 = vmatpush1.xpose.msra.mxu0 0.0
        %2111 = vmatprep.subr.mxu0 0.0
        %2112 = vmatpush1.xpose.msra.mxu0 0.0
        %2113 = vmatprep.subr.mxu0 0.0
        %2114 = vmatpush1.xpose.msra.mxu0 0.0
        %2115 = vmatprep.subr.mxu0 0.0
        %2116 = vmatpush1.xpose.msra.mxu0 0.0
        %2117 = vmatprep.subr.mxu0 0.0
        %2118 = vmatpush1.xpose.msra.mxu0 0.0
        %2119 = vmatprep.subr.mxu0 0.0
        %2120 = vmatpush1.xpose.msra.mxu0 0.0
        %2121 = vmatprep.subr.mxu0 0.0
        %2122 = vmatpush1.xpose.msra.mxu0 0.0
        %2123 = vmatprep.subr.mxu0 0.0
        %2124 = vmatpush1.xpose.msra.mxu0 0.0
        %2125 = vmatprep.subr.mxu0 0.0
        %2126 = vmatpush1.xpose.msra.mxu0 0.0
        %2127 = vmatprep.subr.mxu0 0.0
        %2128 = vmatpush1.xpose.msra.mxu0 0.0
        %2129 = vmatprep.subr.mxu0 0.0
        %2130 = vmatpush1.xpose.msra.mxu0 0.0
        %2131 = vmatprep.subr.mxu0 0.0
        %2132 = vmatpush1.xpose.msra.mxu0 0.0
        %2133 = vmatprep.subr.mxu0 0.0
        %2134 = vmatpush1.xpose.msra.mxu0 0.0
        %2135 = vmatprep.subr.mxu0 0.0
        %2136 = vmatpush1.xpose.msra.mxu0 0.0
        %2137 = vmatprep.subr.mxu0 0.0
        %2138 = vmatpush1.xpose.msra.mxu0 0.0
        %2139 = vmatprep.subr.mxu0 0.0
        %2140 = vmatpush1.xpose.msra.mxu0 0.0
        %2141 = vmatprep.mubr.f32.mxu0 0.0
        %2142 = vmatmul.mubr.f32.gmra.mrb[0].mxu0 %v2069
        %v2143 = vpop.f32.mrb[0].mxu0
        %v2144 = vadd.f32 %v1521, %v2143
        %v2145 = vpop.f32.mrb[0].mxu0
        %2146 = vmatprep.mubr.f32.mxu0 0.0
        %2147 = vmatmul.mubr.f32.gmra.mrb[0].mxu0 %v2071
        %v2148 = vpop.f32.mrb[0].mxu0
        %v2149 = vadd.f32 %v1522, %v2148
        %v2150 = vpop.f32.mrb[0].mxu0
        %2151 = vdwg.mxu0
        %v2152 = vsel %vm1751, %v2144, -inf
        %2153 = vmax.xlane.f32.xlu0 %v2152
        %v2154 = vpop.xlane.xlu0 %2153
        %v2155 = vsel %vm1751, %v2149, -inf
        %2156 = vmax.xlane.f32.xlu0 %v2155
        %v2157 = vpop.xlane.xlu0 %2156
        %v2158 = vsub.f32 %v2144, %v2154
        %v2159 = vsub.f32 %v2149, %v2157
        %v2160 = vmul.f32 %v2158, 1.442695
        %v2161 = vpow.pop %v2160
        %v2162 = vmul.f32 %v2159, 1.442695
        %v2163 = vpow.pop %v2162
        %v2164 = vsel %vm1751, %v2161, 0.0
        %2165 = vadd.xlane.f32.xlu0 %v2164
        %v2166 = vpop.xlane.xlu0 %2165
        %v2167 = vsel %vm1751, %v2163, 0.0
        %2168 = vadd.xlane.f32.xlu0 %v2167
        %v2169 = vpop.xlane.xlu0 %2168
        %v2170 = vrcp.pop %v2166
        %v2171 = vrcp.pop %v2169
        %v2172 = vmul.f32 %v2161, %v2170
        %v2173 = vmul.f32 %v2163, %v2171
        %2174 = vrot.lane.b32.xlu0 %v1653, 48
        %v2175 = vpop.permute.xlu0 %2174
        %2176 = vrot.lane.b32.xlu0 %v1658, 48
        %v2177 = vpop.permute.xlu0 %2176
        %v2181 = vsel %vm1751, %v2172, 0
        %v2184 = vsel %vm1751, %v2173, 0
        %2186 = vmatprep.subr.mxu0 0.0
        %2187 = vmatpush1.msra.mxu0 %v2175
        %2188 = vmatprep.subr.mxu0 0.0
        %2189 = vmatpush1.msra.mxu0 %v2177
        %2190 = vmatprep.subr.mxu0 0.0
        %2191 = vmatpush1.msra.mxu0 0.0
        %2192 = vmatprep.subr.mxu0 0.0
        %2193 = vmatpush1.msra.mxu0 0.0
        %2194 = vmatprep.subr.mxu0 0.0
        %2195 = vmatpush1.msra.mxu0 0.0
        %2196 = vmatprep.subr.mxu0 0.0
        %2197 = vmatpush1.msra.mxu0 0.0
        %2198 = vmatprep.subr.mxu0 0.0
        %2199 = vmatpush1.msra.mxu0 0.0
        %2200 = vmatprep.subr.mxu0 0.0
        %2201 = vmatpush1.msra.mxu0 0.0
        %2202 = vmatprep.subr.mxu0 0.0
        %2203 = vmatpush1.msra.mxu0 0.0
        %2204 = vmatprep.subr.mxu0 0.0
        %2205 = vmatpush1.msra.mxu0 0.0
        %2206 = vmatprep.subr.mxu0 0.0
        %2207 = vmatpush1.msra.mxu0 0.0
        %2208 = vmatprep.subr.mxu0 0.0
        %2209 = vmatpush1.msra.mxu0 0.0
        %2210 = vmatprep.subr.mxu0 0.0
        %2211 = vmatpush1.msra.mxu0 0.0
        %2212 = vmatprep.subr.mxu0 0.0
        %2213 = vmatpush1.msra.mxu0 0.0
        %2214 = vmatprep.subr.mxu0 0.0
        %2215 = vmatpush1.msra.mxu0 0.0
        %2216 = vmatprep.subr.mxu0 0.0
        %2217 = vmatpush1.msra.mxu0 0.0
        %2218 = vmatprep.subr.mxu0 0.0
        %2219 = vmatpush1.msra.mxu0 0.0
        %2220 = vmatprep.subr.mxu0 0.0
        %2221 = vmatpush1.msra.mxu0 0.0
        %2222 = vmatprep.subr.mxu0 0.0
        %2223 = vmatpush1.msra.mxu0 0.0
        %2224 = vmatprep.subr.mxu0 0.0
        %2225 = vmatpush1.msra.mxu0 0.0
        %2226 = vmatprep.subr.mxu0 0.0
        %2227 = vmatpush1.msra.mxu0 0.0
        %2228 = vmatprep.subr.mxu0 0.0
        %2229 = vmatpush1.msra.mxu0 0.0
        %2230 = vmatprep.subr.mxu0 0.0
        %2231 = vmatpush1.msra.mxu0 0.0
        %2232 = vmatprep.subr.mxu0 0.0
        %2233 = vmatpush1.msra.mxu0 0.0
        %2234 = vmatprep.subr.mxu0 0.0
        %2235 = vmatpush1.msra.mxu0 0.0
        %2236 = vmatprep.subr.mxu0 0.0
        %2237 = vmatpush1.msra.mxu0 0.0
        %2238 = vmatprep.subr.mxu0 0.0
        %2239 = vmatpush1.msra.mxu0 0.0
        %2240 = vmatprep.subr.mxu0 0.0
        %2241 = vmatpush1.msra.mxu0 0.0
        %2242 = vmatprep.subr.mxu0 0.0
        %2243 = vmatpush1.msra.mxu0 0.0
        %2244 = vmatprep.subr.mxu0 0.0
        %2245 = vmatpush1.msra.mxu0 0.0
        %2246 = vmatprep.subr.mxu0 0.0
        %2247 = vmatpush1.msra.mxu0 0.0
        %2248 = vmatprep.subr.mxu0 0.0
        %2249 = vmatpush1.msra.mxu0 0.0
        %2250 = vmatprep.mubr.f32.mxu0 0.0
        %2251 = vmatmul.mubr.f32.gmra.mrb[0].mxu0 %v2181
        %v2252 = vpop.f32.mrb[0].mxu0
        %v2253 = vadd.f32 0.0, %v2252
        %v2254 = vpop.f32.mrb[0].mxu0
        %2255 = vmatprep.mubr.f32.mxu0 0.0
        %2256 = vmatmul.mubr.f32.gmra.mrb[0].mxu0 %v2184
        %v2257 = vpop.f32.mrb[0].mxu0
        %v2258 = vadd.f32 0.0, %v2257
        %v2259 = vpop.f32.mrb[0].mxu0
        %2260 = vdwg.mxu0
        %2261 = vrot.lane.b32.xlu0 %v1653, 104
        %v2262 = vpop.permute.xlu0 %2261
        %2263 = vrot.lane.b32.xlu0 %v1658, 104
        %v2264 = vpop.permute.xlu0 %2263
        %2265 = vrot.lane.b32.xlu0 %v1653, 72
        %v2266 = vpop.permute.xlu0 %2265
        %2267 = vrot.lane.b32.xlu0 %v1658, 72
        %v2268 = vpop.permute.xlu0 %2267
        %v2269 = vsel %vm1667, %v2262, 0
        %v2271 = vsel %vm1667, %v2264, 0
        %v2273 = vsel %vm1667, %v2266, 0
        %v2275 = vsel %vm1667, %v2268, 0
        %2277 = vmatprep.subr.mxu0 0.0
        %2278 = vmatpush1.xpose.msra.mxu0 %v2273
        %2279 = vmatprep.subr.mxu0 0.0
        %2280 = vmatpush1.xpose.msra.mxu0 %v2275
        %2281 = vmatprep.subr.mxu0 0.0
        %2282 = vmatpush1.xpose.msra.mxu0 0.0
        %2283 = vmatprep.subr.mxu0 0.0
        %2284 = vmatpush1.xpose.msra.mxu0 0.0
        %2285 = vmatprep.subr.mxu0 0.0
        %2286 = vmatpush1.xpose.msra.mxu0 0.0
        %2287 = vmatprep.subr.mxu0 0.0
        %2288 = vmatpush1.xpose.msra.mxu0 0.0
        %2289 = vmatprep.subr.mxu0 0.0
        %2290 = vmatpush1.xpose.msra.mxu0 0.0
        %2291 = vmatprep.subr.mxu0 0.0
        %2292 = vmatpush1.xpose.msra.mxu0 0.0
        %2293 = vmatprep.subr.mxu0 0.0
        %2294 = vmatpush1.xpose.msra.mxu0 0.0
        %2295 = vmatprep.subr.mxu0 0.0
        %2296 = vmatpush1.xpose.msra.mxu0 0.0
        %2297 = vmatprep.subr.mxu0 0.0
        %2298 = vmatpush1.xpose.msra.mxu0 0.0
        %2299 = vmatprep.subr.mxu0 0.0
        %2300 = vmatpush1.xpose.msra.mxu0 0.0
        %2301 = vmatprep.subr.mxu0 0.0
        %2302 = vmatpush1.xpose.msra.mxu0 0.0
        %2303 = vmatprep.subr.mxu0 0.0
        %2304 = vmatpush1.xpose.msra.mxu0 0.0
        %2305 = vmatprep.subr.mxu0 0.0
        %2306 = vmatpush1.xpose.msra.mxu0 0.0
        %2307 = vmatprep.subr.mxu0 0.0
        %2308 = vmatpush1.xpose.msra.mxu0 0.0
        %2309 = vmatprep.subr.mxu0 0.0
        %2310 = vmatpush1.xpose.msra.mxu0 0.0
        %2311 = vmatprep.subr.mxu0 0.0
        %2312 = vmatpush1.xpose.msra.mxu0 0.0
        %2313 = vmatprep.subr.mxu0 0.0
        %2314 = vmatpush1.xpose.msra.mxu0 0.0
        %2315 = vmatprep.subr.mxu0 0.0
        %2316 = vmatpush1.xpose.msra.mxu0 0.0
        %2317 = vmatprep.subr.mxu0 0.0
        %2318 = vmatpush1.xpose.msra.mxu0 0.0
        %2319 = vmatprep.subr.mxu0 0.0
        %2320 = vmatpush1.xpose.msra.mxu0 0.0
        %2321 = vmatprep.subr.mxu0 0.0
        %2322 = vmatpush1.xpose.msra.mxu0 0.0
        %2323 = vmatprep.subr.mxu0 0.0
        %2324 = vmatpush1.xpose.msra.mxu0 0.0
        %2325 = vmatprep.subr.mxu0 0.0
        %2326 = vmatpush1.xpose.msra.mxu0 0.0
        %2327 = vmatprep.subr.mxu0 0.0
        %2328 = vmatpush1.xpose.msra.mxu0 0.0
        %2329 = vmatprep.subr.mxu0 0.0
        %2330 = vmatpush1.xpose.msra.mxu0 0.0
        %2331 = vmatprep.subr.mxu0 0.0
        %2332 = vmatpush1.xpose.msra.mxu0 0.0
        %2333 = vmatprep.subr.mxu0 0.0
        %2334 = vmatpush1.xpose.msra.mxu0 0.0
        %2335 = vmatprep.subr.mxu0 0.0
        %2336 = vmatpush1.xpose.msra.mxu0 0.0
        %2337 = vmatprep.subr.mxu0 0.0
        %2338 = vmatpush1.xpose.msra.mxu0 0.0
        %2339 = vmatprep.subr.mxu0 0.0
        %2340 = vmatpush1.xpose.msra.mxu0 0.0
        %2341 = vmatprep.mubr.f32.mxu0 0.0
        %2342 = vmatmul.mubr.f32.gmra.mrb[0].mxu0 %v2269
        %v2343 = vpop.f32.mrb[0].mxu0
        %v2344 = vadd.f32 %v1521, %v2343
        %v2345 = vpop.f32.mrb[0].mxu0
        %2346 = vmatprep.mubr.f32.mxu0 0.0
        %2347 = vmatmul.mubr.f32.gmra.mrb[0].mxu0 %v2271
        %v2348 = vpop.f32.mrb[0].mxu0
        %v2349 = vadd.f32 %v1522, %v2348
        %v2350 = vpop.f32.mrb[0].mxu0
        %2351 = vdwg.mxu0
        %v2352 = vsel %vm1751, %v2344, -inf
        %2353 = vmax.xlane.f32.xlu0 %v2352
        %v2354 = vpop.xlane.xlu0 %2353
        %v2355 = vsel %vm1751, %v2349, -inf
        %2356 = vmax.xlane.f32.xlu0 %v2355
        %v2357 = vpop.xlane.xlu0 %2356
        %v2358 = vsub.f32 %v2344, %v2354
        %v2359 = vsub.f32 %v2349, %v2357
        %v2360 = vmul.f32 %v2358, 1.442695
        %v2361 = vpow.pop %v2360
        %v2362 = vmul.f32 %v2359, 1.442695
        %v2363 = vpow.pop %v2362
        %v2364 = vsel %vm1751, %v2361, 0.0
        %2365 = vadd.xlane.f32.xlu0 %v2364
        %v2366 = vpop.xlane.xlu0 %2365
        %v2367 = vsel %vm1751, %v2363, 0.0
        %2368 = vadd.xlane.f32.xlu0 %v2367
        %v2369 = vpop.xlane.xlu0 %2368
        %v2370 = vrcp.pop %v2366
        %v2371 = vrcp.pop %v2369
        %v2372 = vmul.f32 %v2361, %v2370
        %v2373 = vmul.f32 %v2363, %v2371
        %2374 = vrot.lane.b32.xlu0 %v1653, 40
        %v2375 = vpop.permute.xlu0 %2374
        %2376 = vrot.lane.b32.xlu0 %v1658, 40
        %v2377 = vpop.permute.xlu0 %2376
        %v2381 = vsel %vm1751, %v2372, 0
        %v2384 = vsel %vm1751, %v2373, 0
        %2386 = vmatprep.subr.mxu0 0.0
        %2387 = vmatpush1.msra.mxu0 %v2375
        %2388 = vmatprep.subr.mxu0 0.0
        %2389 = vmatpush1.msra.mxu0 %v2377
        %2390 = vmatprep.subr.mxu0 0.0
        %2391 = vmatpush1.msra.mxu0 0.0
        %2392 = vmatprep.subr.mxu0 0.0
        %2393 = vmatpush1.msra.mxu0 0.0
        %2394 = vmatprep.subr.mxu0 0.0
        %2395 = vmatpush1.msra.mxu0 0.0
        %2396 = vmatprep.subr.mxu0 0.0
        %2397 = vmatpush1.msra.mxu0 0.0
        %2398 = vmatprep.subr.mxu0 0.0
        %2399 = vmatpush1.msra.mxu0 0.0
        %2400 = vmatprep.subr.mxu0 0.0
        %2401 = vmatpush1.msra.mxu0 0.0
        %2402 = vmatprep.subr.mxu0 0.0
        %2403 = vmatpush1.msra.mxu0 0.0
        %2404 = vmatprep.subr.mxu0 0.0
        %2405 = vmatpush1.msra.mxu0 0.0
        %2406 = vmatprep.subr.mxu0 0.0
        %2407 = vmatpush1.msra.mxu0 0.0
        %2408 = vmatprep.subr.mxu0 0.0
        %2409 = vmatpush1.msra.mxu0 0.0
        %2410 = vmatprep.subr.mxu0 0.0
        %2411 = vmatpush1.msra.mxu0 0.0
        %2412 = vmatprep.subr.mxu0 0.0
        %2413 = vmatpush1.msra.mxu0 0.0
        %2414 = vmatprep.subr.mxu0 0.0
        %2415 = vmatpush1.msra.mxu0 0.0
        %2416 = vmatprep.subr.mxu0 0.0
        %2417 = vmatpush1.msra.mxu0 0.0
        %2418 = vmatprep.subr.mxu0 0.0
        %2419 = vmatpush1.msra.mxu0 0.0
        %2420 = vmatprep.subr.mxu0 0.0
        %2421 = vmatpush1.msra.mxu0 0.0
        %2422 = vmatprep.subr.mxu0 0.0
        %2423 = vmatpush1.msra.mxu0 0.0
        %2424 = vmatprep.subr.mxu0 0.0
        %2425 = vmatpush1.msra.mxu0 0.0
        %2426 = vmatprep.subr.mxu0 0.0
        %2427 = vmatpush1.msra.mxu0 0.0
        %2428 = vmatprep.subr.mxu0 0.0
        %2429 = vmatpush1.msra.mxu0 0.0
        %2430 = vmatprep.subr.mxu0 0.0
        %2431 = vmatpush1.msra.mxu0 0.0
        %2432 = vmatprep.subr.mxu0 0.0
        %2433 = vmatpush1.msra.mxu0 0.0
        %2434 = vmatprep.subr.mxu0 0.0
        %2435 = vmatpush1.msra.mxu0 0.0
        %2436 = vmatprep.subr.mxu0 0.0
        %2437 = vmatpush1.msra.mxu0 0.0
        %2438 = vmatprep.subr.mxu0 0.0
        %2439 = vmatpush1.msra.mxu0 0.0
        %2440 = vmatprep.subr.mxu0 0.0
        %2441 = vmatpush1.msra.mxu0 0.0
        %2442 = vmatprep.subr.mxu0 0.0
        %2443 = vmatpush1.msra.mxu0 0.0
        %2444 = vmatprep.subr.mxu0 0.0
        %2445 = vmatpush1.msra.mxu0 0.0
        %2446 = vmatprep.subr.mxu0 0.0
        %2447 = vmatpush1.msra.mxu0 0.0
        %2448 = vmatprep.subr.mxu0 0.0
        %2449 = vmatpush1.msra.mxu0 0.0
        %2450 = vmatprep.mubr.f32.mxu0 0.0
        %2451 = vmatmul.mubr.f32.gmra.mrb[0].mxu0 %v2381
        %v2452 = vpop.f32.mrb[0].mxu0
        %v2453 = vadd.f32 0.0, %v2452
        %v2454 = vpop.f32.mrb[0].mxu0
        %2455 = vmatprep.mubr.f32.mxu0 0.0
        %2456 = vmatmul.mubr.f32.gmra.mrb[0].mxu0 %v2384
        %v2457 = vpop.f32.mrb[0].mxu0
        %v2458 = vadd.f32 0.0, %v2457
        %v2459 = vpop.f32.mrb[0].mxu0
        %2460 = vdwg.mxu0
        %2463 = vrot.lane.b32.xlu0 %v2053, 8
        %v2464 = vpop.permute.xlu0 %2463
        %2465 = vrot.lane.b32.xlu0 %v2058, 8
        %v2466 = vpop.permute.xlu0 %2465
        %2471 = vrot.lane.b32.xlu0 %v2253, 16
        %v2472 = vpop.permute.xlu0 %2471
        %2473 = vrot.lane.b32.xlu0 %v2258, 16
        %v2474 = vpop.permute.xlu0 %2473
        %2479 = vrot.lane.b32.xlu0 %v2453, 24
        %v2480 = vpop.permute.xlu0 %2479
        %2481 = vrot.lane.b32.xlu0 %v2458, 24
        %v2482 = vpop.permute.xlu0 %2481
        %v2485 = vsel %vm1667, %v1853, %v2464
        %v2486 = vsel %vm1667, %v1858, %v2466
        %v2487 = vsel %vm1751, %v2485, %v2472
        %v2488 = vsel %vm1751, %v2486, %v2474
        %vm2489 = vcmask 195584
        %v2490 = vsel %vm2489, %v2487, %v2480
        %v2491 = vsel %vm2489, %v2488, %v2482
        %v2492 = vld [vmem:[%s19] sm:$0xff]
        %v2493 = vld [vmem:[%s19 + $0x8] sm:$0xff]
        %v2494 = vld [vmem:[%s19 + $0x10] sm:$0xff]
        %v2495 = vld [vmem:[%s19 + $0x18] sm:$0xff]
        %v2497 = vsel %vm1525, %v2490, 0
        %v2500 = vsel %vm1525, %v2491, 0
        %2502 = vmatprep.subr.mxu0 0.0
        %2503 = vmatpush1.msra.mxu0 %v2492
        %2504 = vmatprep.subr.mxu0 0.0
        %2505 = vmatpush1.msra.mxu0 %v2493
        %2506 = vmatprep.subr.mxu0 0.0
        %2507 = vmatpush1.msra.mxu0 %v2494
        %2508 = vmatprep.subr.mxu0 0.0
        %2509 = vmatpush1.msra.mxu0 %v2495
        %2510 = vmatprep.subr.mxu0 0.0
        %2511 = vmatpush1.msra.mxu0 0.0
        %2512 = vmatprep.subr.mxu0 0.0
        %2513 = vmatpush1.msra.mxu0 0.0
        %2514 = vmatprep.subr.mxu0 0.0
        %2515 = vmatpush1.msra.mxu0 0.0
        %2516 = vmatprep.subr.mxu0 0.0
        %2517 = vmatpush1.msra.mxu0 0.0
        %2518 = vmatprep.subr.mxu0 0.0
        %2519 = vmatpush1.msra.mxu0 0.0
        %2520 = vmatprep.subr.mxu0 0.0
        %2521 = vmatpush1.msra.mxu0 0.0
        %2522 = vmatprep.subr.mxu0 0.0
        %2523 = vmatpush1.msra.mxu0 0.0
        %2524 = vmatprep.subr.mxu0 0.0
        %2525 = vmatpush1.msra.mxu0 0.0
        %2526 = vmatprep.subr.mxu0 0.0
        %2527 = vmatpush1.msra.mxu0 0.0
        %2528 = vmatprep.subr.mxu0 0.0
        %2529 = vmatpush1.msra.mxu0 0.0
        %2530 = vmatprep.subr.mxu0 0.0
        %2531 = vmatpush1.msra.mxu0 0.0
        %2532 = vmatprep.subr.mxu0 0.0
        %2533 = vmatpush1.msra.mxu0 0.0
        %2534 = vmatprep.subr.mxu0 0.0
        %2535 = vmatpush1.msra.mxu0 0.0
        %2536 = vmatprep.subr.mxu0 0.0
        %2537 = vmatpush1.msra.mxu0 0.0
        %2538 = vmatprep.subr.mxu0 0.0
        %2539 = vmatpush1.msra.mxu0 0.0
        %2540 = vmatprep.subr.mxu0 0.0
        %2541 = vmatpush1.msra.mxu0 0.0
        %2542 = vmatprep.subr.mxu0 0.0
        %2543 = vmatpush1.msra.mxu0 0.0
        %2544 = vmatprep.subr.mxu0 0.0
        %2545 = vmatpush1.msra.mxu0 0.0
        %2546 = vmatprep.subr.mxu0 0.0
        %2547 = vmatpush1.msra.mxu0 0.0
        %2548 = vmatprep.subr.mxu0 0.0
        %2549 = vmatpush1.msra.mxu0 0.0
        %2550 = vmatprep.subr.mxu0 0.0
        %2551 = vmatpush1.msra.mxu0 0.0
        %2552 = vmatprep.subr.mxu0 0.0
        %2553 = vmatpush1.msra.mxu0 0.0
        %2554 = vmatprep.subr.mxu0 0.0
        %2555 = vmatpush1.msra.mxu0 0.0
        %2556 = vmatprep.subr.mxu0 0.0
        %2557 = vmatpush1.msra.mxu0 0.0
        %2558 = vmatprep.subr.mxu0 0.0
        %2559 = vmatpush1.msra.mxu0 0.0
        %2560 = vmatprep.subr.mxu0 0.0
        %2561 = vmatpush1.msra.mxu0 0.0
        %2562 = vmatprep.subr.mxu0 0.0
        %2563 = vmatpush1.msra.mxu0 0.0
        %2564 = vmatprep.subr.mxu0 0.0
        %2565 = vmatpush1.msra.mxu0 0.0
        %2566 = vmatprep.mubr.f32.mxu0 0.0
        %2567 = vmatmul.mubr.f32.gmra.mrb[0].mxu0 %v2497
        %v2568 = vpop.f32.mrb[0].mxu0
        %v2569 = vadd.f32 0.0, %v2568
        %v2570 = vpop.f32.mrb[0].mxu0
        %2571 = vmatprep.mubr.f32.mxu0 0.0
        %2572 = vmatmul.mubr.f32.gmra.mrb[0].mxu0 %v2500
        %v2573 = vpop.f32.mrb[0].mxu0
        %v2574 = vadd.f32 0.0, %v2573
        %v2575 = vpop.f32.mrb[0].mxu0
        %2576 = vdwg.mxu0
        %v2577 = vadd.f32 %v1519, %v2569
        %v2578 = vadd.f32 %v1520, %v2574
        %v2579 = vld [vmem:[#allocation11] sm:$0x1]
        %v2581 = vlaneseq
        %v2582 = vshrl.u32 %v2581, 7
        %v2583 = vsub.s32 0, %v2582
        %v2584 = vrot.slane %v2579, %v2583
        %v2586 = vadd.f32 %v2577, %v2584
        %v2587 = vadd.f32 %v2578, %v2584
        %v2588 = vld [vmem:[#allocation13] sm:$0x1]
        %v2589 = vld [vmem:[#allocation14] sm:$0x1]
        %v2590 = vsel %vm1525, %v2586, 0.0
        %2591 = vadd.xlane.f32.xlu0 %v2590
        %v2592 = vpop.xlane.xlu0 %2591
        %v2593 = vsel %vm1525, %v2587, 0.0
        %2594 = vadd.xlane.f32.xlu0 %v2593
        %v2595 = vpop.xlane.xlu0 %2594
        %v2596 = vmul.f32 %v2592, %v1532
        %v2597 = vmul.f32 %v2595, %v1532
        %v2598 = vsub.f32 %v2586, %v2596
        %v2599 = vsub.f32 %v2587, %v2597
        %v2600 = vmul.f32 %v2598, %v2598
        %v2601 = vmul.f32 %v2599, %v2599
        %v2602 = vsel %vm1525, %v2600, 0.0
        %2603 = vadd.xlane.f32.xlu0 %v2602
        %v2604 = vpop.xlane.xlu0 %2603
        %v2605 = vsel %vm1525, %v2601, 0.0
        %2606 = vadd.xlane.f32.xlu0 %v2605
        %v2607 = vpop.xlane.xlu0 %2606
        %v2608 = vmul.f32 %v2604, %v1532
        %v2609 = vmul.f32 %v2607, %v1532
        %v2610 = vadd.f32 %v2608, 1e-06
        %v2611 = vadd.f32 %v2609, 1e-06
        %v2612 = vrsqrt.pop %v2610
        %v2613 = vrsqrt.pop %v2611
        %v2614 = vmul.f32 %v2598, %v2612
        %v2615 = vmul.f32 %v2599, %v2613
        %v2617 = vlaneseq
        %v2618 = vshrl.u32 %v2617, 7
        %v2619 = vsub.s32 0, %v2618
        %v2620 = vrot.slane %v2588, %v2619
        %v2622 = vmul.f32 %v2614, %v2620
        %v2623 = vmul.f32 %v2615, %v2620
        %v2625 = vlaneseq
        %v2626 = vshrl.u32 %v2625, 7
        %v2627 = vsub.s32 0, %v2626
        %v2628 = vrot.slane %v2589, %v2627
        %v2630 = vadd.f32 %v2622, %v2628
        %v2631 = vadd.f32 %v2623, %v2628
        %v2632 = vld [vmem:[%s27] sm:$0xff]
        %v2633 = vld [vmem:[%s27 + $0x8] sm:$0xff]
        %v2634 = vld [vmem:[%s27 + $0x10] sm:$0xff]
        %v2635 = vld [vmem:[%s27 + $0x18] sm:$0xff]
        %v2636 = vld [vmem:[#allocation16] sm:$0x1]
        %v2638 = vlaneseq
        %v2639 = vshrl.u32 %v2638, 7
        %v2640 = vsub.s32 0, %v2639
        %v2641 = vrot.slane %v2636, %v2640
        %v2644 = vsel %vm1525, %v2630, 0
        %v2647 = vsel %vm1525, %v2631, 0
        %2649 = vmatprep.subr.mxu0 0.0
        %2650 = vmatpush1.msra.mxu0 %v2632
        %2651 = vmatprep.subr.mxu0 0.0
        %2652 = vmatpush1.msra.mxu0 %v2633
        %2653 = vmatprep.subr.mxu0 0.0
        %2654 = vmatpush1.msra.mxu0 %v2634
        %2655 = vmatprep.subr.mxu0 0.0
        %2656 = vmatpush1.msra.mxu0 %v2635
        %2657 = vmatprep.subr.mxu0 0.0
        %2658 = vmatpush1.msra.mxu0 0.0
        %2659 = vmatprep.subr.mxu0 0.0
        %2660 = vmatpush1.msra.mxu0 0.0
        %2661 = vmatprep.subr.mxu0 0.0
        %2662 = vmatpush1.msra.mxu0 0.0
        %2663 = vmatprep.subr.mxu0 0.0
        %2664 = vmatpush1.msra.mxu0 0.0
        %2665 = vmatprep.subr.mxu0 0.0
        %2666 = vmatpush1.msra.mxu0 0.0
        %2667 = vmatprep.subr.mxu0 0.0
        %2668 = vmatpush1.msra.mxu0 0.0
        %2669 = vmatprep.subr.mxu0 0.0
        %2670 = vmatpush1.msra.mxu0 0.0
        %2671 = vmatprep.subr.mxu0 0.0
        %2672 = vmatpush1.msra.mxu0 0.0
        %2673 = vmatprep.subr.mxu0 0.0
        %2674 = vmatpush1.msra.mxu0 0.0
        %2675 = vmatprep.subr.mxu0 0.0
        %2676 = vmatpush1.msra.mxu0 0.0
        %2677 = vmatprep.subr.mxu0 0.0
        %2678 = vmatpush1.msra.mxu0 0.0
        %2679 = vmatprep.subr.mxu0 0.0
        %2680 = vmatpush1.msra.mxu0 0.0
        %2681 = vmatprep.subr.mxu0 0.0
        %2682 = vmatpush1.msra.mxu0 0.0
        %2683 = vmatprep.subr.mxu0 0.0
        %2684 = vmatpush1.msra.mxu0 0.0
        %2685 = vmatprep.subr.mxu0 0.0
        %2686 = vmatpush1.msra.mxu0 0.0
        %2687 = vmatprep.subr.mxu0 0.0
        %2688 = vmatpush1.msra.mxu0 0.0
        %2689 = vmatprep.subr.mxu0 0.0
        %2690 = vmatpush1.msra.mxu0 0.0
        %2691 = vmatprep.subr.mxu0 0.0
        %2692 = vmatpush1.msra.mxu0 0.0
        %2693 = vmatprep.subr.mxu0 0.0
        %2694 = vmatpush1.msra.mxu0 0.0
        %2695 = vmatprep.subr.mxu0 0.0
        %2696 = vmatpush1.msra.mxu0 0.0
        %2697 = vmatprep.subr.mxu0 0.0
        %2698 = vmatpush1.msra.mxu0 0.0
        %2699 = vmatprep.subr.mxu0 0.0
        %2700 = vmatpush1.msra.mxu0 0.0
        %2701 = vmatprep.subr.mxu0 0.0
        %2702 = vmatpush1.msra.mxu0 0.0
        %2703 = vmatprep.subr.mxu0 0.0
        %2704 = vmatpush1.msra.mxu0 0.0
        %2705 = vmatprep.subr.mxu0 0.0
        %2706 = vmatpush1.msra.mxu0 0.0
        %2707 = vmatprep.subr.mxu0 0.0
        %2708 = vmatpush1.msra.mxu0 0.0
        %2709 = vmatprep.subr.mxu0 0.0
        %2710 = vmatpush1.msra.mxu0 0.0
        %2711 = vmatprep.subr.mxu0 0.0
        %2712 = vmatpush1.msra.mxu0 0.0
        %2713 = vmatprep.mubr.f32.mxu0 0.0
        %2714 = vmatmul.mubr.f32.gmra.mrb[0].mxu0 %v2644
        %v2715 = vpop.f32.mrb[0].mxu0
        %v2716 = vadd.f32 %v2641, %v2715
        %v2717 = vpop.f32.mrb[0].mxu0
        %2718 = vmatprep.mubr.f32.mxu0 0.0
        %2719 = vmatmul.mubr.f32.gmra.mrb[0].mxu0 %v2647
        %v2720 = vpop.f32.mrb[0].mxu0
        %v2721 = vadd.f32 %v2641, %v2720
        %v2722 = vpop.f32.mrb[0].mxu0
        %2723 = vdwg.mxu0
        %v2724 = vmul.f32 %v2716, 0.5
        %v2725 = vmul.f32 %v2721, 0.5
        %v2726 = vmul.f32 %v2716, 0.044715
        %v2727 = vmul.f32 %v2721, 0.044715
        %v2728 = vmul.f32 %v2726, %v2716
        %v2729 = vmul.f32 %v2727, %v2721
        %v2730 = vmul.f32 %v2728, %v2716
        %v2731 = vmul.f32 %v2729, %v2721
        %v2732 = vadd.f32 %v2716, %v2730
        %v2733 = vadd.f32 %v2721, %v2731
        %v2734 = vmul.f32 %v2732, 0.7978846
        %v2735 = vmul.f32 %v2733, 0.7978846
        %v2736 = vtanh.pop %v2734
        %v2737 = vtanh.pop %v2735
        %v2738 = vadd.f32 %v2736, 1.0
        %v2739 = vadd.f32 %v2737, 1.0
        %v2740 = vmul.f32 %v2724, %v2738
        %v2741 = vmul.f32 %v2725, %v2739
        %v2742 = vld [vmem:[%s31] sm:$0xff]
        %v2743 = vld [vmem:[%s31 + $0x8] sm:$0xff]
        %v2744 = vld [vmem:[%s31 + $0x10] sm:$0xff]
        %v2745 = vld [vmem:[%s31 + $0x18] sm:$0xff]
        %v2746 = vld [vmem:[%s31 + $0x20] sm:$0xff]
        %v2747 = vld [vmem:[%s31 + $0x28] sm:$0xff]
        %v2748 = vld [vmem:[%s31 + $0x30] sm:$0xff]
        %v2749 = vld [vmem:[%s31 + $0x38] sm:$0xff]
        %vm2750 = vcmask 523264
        %v2752 = vsel %vm2750, %v2740, 0
        %v2755 = vsel %vm2750, %v2741, 0
        %2757 = vmatprep.subr.mxu0 0.0
        %2758 = vmatpush1.msra.mxu0 %v2742
        %2759 = vmatprep.subr.mxu0 0.0
        %2760 = vmatpush1.msra.mxu0 %v2743
        %2761 = vmatprep.subr.mxu0 0.0
        %2762 = vmatpush1.msra.mxu0 %v2744
        %2763 = vmatprep.subr.mxu0 0.0
        %2764 = vmatpush1.msra.mxu0 %v2745
        %2765 = vmatprep.subr.mxu0 0.0
        %2766 = vmatpush1.msra.mxu0 %v2746
        %2767 = vmatprep.subr.mxu0 0.0
        %2768 = vmatpush1.msra.mxu0 %v2747
        %2769 = vmatprep.subr.mxu0 0.0
        %2770 = vmatpush1.msra.mxu0 %v2748
        %2771 = vmatprep.subr.mxu0 0.0
        %2772 = vmatpush1.msra.mxu0 %v2749
        %2773 = vmatprep.subr.mxu0 0.0
        %2774 = vmatpush1.msra.mxu0 0.0
        %2775 = vmatprep.subr.mxu0 0.0
        %2776 = vmatpush1.msra.mxu0 0.0
        %2777 = vmatprep.subr.mxu0 0.0
        %2778 = vmatpush1.msra.mxu0 0.0
        %2779 = vmatprep.subr.mxu0 0.0
        %2780 = vmatpush1.msra.mxu0 0.0
        %2781 = vmatprep.subr.mxu0 0.0
        %2782 = vmatpush1.msra.mxu0 0.0
        %2783 = vmatprep.subr.mxu0 0.0
        %2784 = vmatpush1.msra.mxu0 0.0
        %2785 = vmatprep.subr.mxu0 0.0
        %2786 = vmatpush1.msra.mxu0 0.0
        %2787 = vmatprep.subr.mxu0 0.0
        %2788 = vmatpush1.msra.mxu0 0.0
        %2789 = vmatprep.subr.mxu0 0.0
        %2790 = vmatpush1.msra.mxu0 0.0
        %2791 = vmatprep.subr.mxu0 0.0
        %2792 = vmatpush1.msra.mxu0 0.0
        %2793 = vmatprep.subr.mxu0 0.0
        %2794 = vmatpush1.msra.mxu0 0.0
        %2795 = vmatprep.subr.mxu0 0.0
        %2796 = vmatpush1.msra.mxu0 0.0
        %2797 = vmatprep.subr.mxu0 0.0
        %2798 = vmatpush1.msra.mxu0 0.0
        %2799 = vmatprep.subr.mxu0 0.0
        %2800 = vmatpush1.msra.mxu0 0.0
        %2801 = vmatprep.subr.mxu0 0.0
        %2802 = vmatpush1.msra.mxu0 0.0
        %2803 = vmatprep.subr.mxu0 0.0
        %2804 = vmatpush1.msra.mxu0 0.0
        %2805 = vmatprep.subr.mxu0 0.0
        %2806 = vmatpush1.msra.mxu0 0.0
        %2807 = vmatprep.subr.mxu0 0.0
        %2808 = vmatpush1.msra.mxu0 0.0
        %2809 = vmatprep.subr.mxu0 0.0
        %2810 = vmatpush1.msra.mxu0 0.0
        %2811 = vmatprep.subr.mxu0 0.0
        %2812 = vmatpush1.msra.mxu0 0.0
        %2813 = vmatprep.subr.mxu0 0.0
        %2814 = vmatpush1.msra.mxu0 0.0
        %2815 = vmatprep.subr.mxu0 0.0
        %2816 = vmatpush1.msra.mxu0 0.0
        %2817 = vmatprep.subr.mxu0 0.0
        %2818 = vmatpush1.msra.mxu0 0.0
        %2819 = vmatprep.subr.mxu0 0.0
        %2820 = vmatpush1.msra.mxu0 0.0
        %2821 = vmatprep.mubr.f32.mxu0 0.0
        %2822 = vmatmul.mubr.f32.gmra.mrb[0].mxu0 %v2752
        %v2823 = vpop.f32.mrb[0].mxu0
        %v2824 = vadd.f32 0.0, %v2823
        %v2825 = vpop.f32.mrb[0].mxu0
        %2826 = vmatprep.mubr.f32.mxu0 0.0
        %2827 = vmatmul.mubr.f32.gmra.mrb[0].mxu0 %v2755
        %v2828 = vpop.f32.mrb[0].mxu0
        %v2829 = vadd.f32 0.0, %v2828
        %v2830 = vpop.f32.mrb[0].mxu0
        %2831 = vdwg.mxu0
        %v2832 = vadd.f32 %v2586, %v2824
        %v2833 = vadd.f32 %v2587, %v2829
        %v2834 = vld [vmem:[#allocation17] sm:$0x1]
        %v2836 = vlaneseq
        %v2837 = vshrl.u32 %v2836, 7
        %v2838 = vsub.s32 0, %v2837
        %v2839 = vrot.slane %v2834, %v2838
        %v2841 = vadd.f32 %v2832, %v2839
        %v2842 = vadd.f32 %v2833, %v2839
        %s2843 = scalar_lea.vmem [#allocation7], 1
        %v2844 = vld [vmem:[%s2843] sm:$0x1]
        %s2845 = scalar_lea.vmem [#allocation8], 1
        %v2846 = vld [vmem:[%s2845] sm:$0x1]
        %v2847 = vsel %vm1525, %v2841, 0.0
        %2848 = vadd.xlane.f32.xlu0 %v2847
        %v2849 = vpop.xlane.xlu0 %2848
        %v2850 = vsel %vm1525, %v2842, 0.0
        %2851 = vadd.xlane.f32.xlu0 %v2850
        %v2852 = vpop.xlane.xlu0 %2851
        %v2853 = vmul.f32 %v2849, %v1532
        %v2854 = vmul.f32 %v2852, %v1532
        %v2855 = vsub.f32 %v2841, %v2853
        %v2856 = vsub.f32 %v2842, %v2854
        %v2857 = vmul.f32 %v2855, %v2855
        %v2858 = vmul.f32 %v2856, %v2856
        %v2859 = vsel %vm1525, %v2857, 0.0
        %2860 = vadd.xlane.f32.xlu0 %v2859
        %v2861 = vpop.xlane.xlu0 %2860
        %v2862 = vsel %vm1525, %v2858, 0.0
        %2863 = vadd.xlane.f32.xlu0 %v2862
        %v2864 = vpop.xlane.xlu0 %2863
        %v2865 = vmul.f32 %v2861, %v1532
        %v2866 = vmul.f32 %v2864, %v1532
        %v2867 = vadd.f32 %v2865, 1e-06
        %v2868 = vadd.f32 %v2866, 1e-06
        %v2869 = vrsqrt.pop %v2867
        %v2870 = vrsqrt.pop %v2868
        %v2871 = vmul.f32 %v2855, %v2869
        %v2872 = vmul.f32 %v2856, %v2870
        %v2874 = vlaneseq
        %v2875 = vshrl.u32 %v2874, 7
        %v2876 = vsub.s32 0, %v2875
        %v2877 = vrot.slane %v2844, %v2876
        %v2879 = vmul.f32 %v2871, %v2877
        %v2880 = vmul.f32 %v2872, %v2877
        %v2882 = vlaneseq
        %v2883 = vshrl.u32 %v2882, 7
        %v2884 = vsub.s32 0, %v2883
        %v2885 = vrot.slane %v2846, %v2884
        %v2887 = vadd.f32 %v2879, %v2885
        %v2888 = vadd.f32 %v2880, %v2885
        %s2889 = scalar_lea.vmem %s15, 32
        %v2890 = vld [vmem:[%s2889] sm:$0xff]
        %v2891 = vld [vmem:[%s2889 + $0x8] sm:$0xff]
        %v2892 = vld [vmem:[%s2889 + $0x10] sm:$0xff]
        %v2893 = vld [vmem:[%s2889 + $0x18] sm:$0xff]
        %s2894 = scalar_lea.vmem [#allocation10], 1
        %v2895 = vld [vmem:[%s2894] sm:$0x1]
        %v2897 = vlaneseq
        %v2898 = vshrl.u32 %v2897, 7
        %v2899 = vsub.s32 0, %v2898
        %v2900 = vrot.slane %v2895, %v2899
        %v2903 = vsel %vm1525, %v2887, 0
        %v2906 = vsel %vm1525, %v2888, 0
        %2908 = vmatprep.subr.mxu0 0.0
        %2909 = vmatpush1.msra.mxu0 %v2890
        %2910 = vmatprep.subr.mxu0 0.0
        %2911 = vmatpush1.msra.mxu0 %v2891
        %2912 = vmatprep.subr.mxu0 0.0
        %2913 = vmatpush1.msra.mxu0 %v2892
        %2914 = vmatprep.subr.mxu0 0.0
        %2915 = vmatpush1.msra.mxu0 %v2893
        %2916 = vmatprep.subr.mxu0 0.0
        %2917 = vmatpush1.msra.mxu0 0.0
        %2918 = vmatprep.subr.mxu0 0.0
        %2919 = vmatpush1.msra.mxu0 0.0
        %2920 = vmatprep.subr.mxu0 0.0
        %2921 = vmatpush1.msra.mxu0 0.0
        %2922 = vmatprep.subr.mxu0 0.0
        %2923 = vmatpush1.msra.mxu0 0.0
        %2924 = vmatprep.subr.mxu0 0.0
        %2925 = vmatpush1.msra.mxu0 0.0
        %2926 = vmatprep.subr.mxu0 0.0
        %2927 = vmatpush1.msra.mxu0 0.0
        %2928 = vmatprep.subr.mxu0 0.0
        %2929 = vmatpush1.msra.mxu0 0.0
        %2930 = vmatprep.subr.mxu0 0.0
        %2931 = vmatpush1.msra.mxu0 0.0
        %2932 = vmatprep.subr.mxu0 0.0
        %2933 = vmatpush1.msra.mxu0 0.0
        %2934 = vmatprep.subr.mxu0 0.0
        %2935 = vmatpush1.msra.mxu0 0.0
        %2936 = vmatprep.subr.mxu0 0.0
        %2937 = vmatpush1.msra.mxu0 0.0
        %2938 = vmatprep.subr.mxu0 0.0
        %2939 = vmatpush1.msra.mxu0 0.0
        %2940 = vmatprep.subr.mxu0 0.0
        %2941 = vmatpush1.msra.mxu0 0.0
        %2942 = vmatprep.subr.mxu0 0.0
        %2943 = vmatpush1.msra.mxu0 0.0
        %2944 = vmatprep.subr.mxu0 0.0
        %2945 = vmatpush1.msra.mxu0 0.0
        %2946 = vmatprep.subr.mxu0 0.0
        %2947 = vmatpush1.msra.mxu0 0.0
        %2948 = vmatprep.subr.mxu0 0.0
        %2949 = vmatpush1.msra.mxu0 0.0
        %2950 = vmatprep.subr.mxu0 0.0
        %2951 = vmatpush1.msra.mxu0 0.0
        %2952 = vmatprep.subr.mxu0 0.0
        %2953 = vmatpush1.msra.mxu0 0.0
        %2954 = vmatprep.subr.mxu0 0.0
        %2955 = vmatpush1.msra.mxu0 0.0
        %2956 = vmatprep.subr.mxu0 0.0
        %2957 = vmatpush1.msra.mxu0 0.0
        %2958 = vmatprep.subr.mxu0 0.0
        %2959 = vmatpush1.msra.mxu0 0.0
        %2960 = vmatprep.subr.mxu0 0.0
        %2961 = vmatpush1.msra.mxu0 0.0
        %2962 = vmatprep.subr.mxu0 0.0
        %2963 = vmatpush1.msra.mxu0 0.0
        %2964 = vmatprep.subr.mxu0 0.0
        %2965 = vmatpush1.msra.mxu0 0.0
        %2966 = vmatprep.subr.mxu0 0.0
        %2967 = vmatpush1.msra.mxu0 0.0
        %2968 = vmatprep.subr.mxu0 0.0
        %2969 = vmatpush1.msra.mxu0 0.0
        %2970 = vmatprep.subr.mxu0 0.0
        %2971 = vmatpush1.msra.mxu0 0.0
        %2972 = vmatprep.mubr.f32.mxu0 0.0
        %2973 = vmatmul.mubr.f32.gmra.mrb[0].mxu0 %v2903
        %v2974 = vpop.f32.mrb[0].mxu0
        %v2975 = vadd.f32 %v2900, %v2974
        %v2976 = vpop.f32.mrb[0].mxu0
        %2977 = vmatprep.mubr.f32.mxu0 0.0
        %2978 = vmatmul.mubr.f32.gmra.mrb[0].mxu0 %v2906
        %v2979 = vpop.f32.mrb[0].mxu0
        %v2980 = vadd.f32 %v2900, %v2979
        %v2981 = vpop.f32.mrb[0].mxu0
        %2982 = vdwg.mxu0
        %2985 = vrot.lane.b32.xlu0 %v2975, 96
        %v2986 = vpop.permute.xlu0 %2985
        %2987 = vrot.lane.b32.xlu0 %v2980, 96
        %v2988 = vpop.permute.xlu0 %2987
        %v2989 = vsel %vm1667, %v2975, 0
        %v2991 = vsel %vm1667, %v2980, 0
        %v2993 = vsel %vm1667, %v2986, 0
        %v2995 = vsel %vm1667, %v2988, 0
        %2997 = vmatprep.subr.mxu0 0.0
        %2998 = vmatpush1.xpose.msra.mxu0 %v2993
        %2999 = vmatprep.subr.mxu0 0.0
        %3000 = vmatpush1.xpose.msra.mxu0 %v2995
        %3001 = vmatprep.subr.mxu0 0.0
        %3002 = vmatpush1.xpose.msra.mxu0 0.0
        %3003 = vmatprep.subr.mxu0 0.0
        %3004 = vmatpush1.xpose.msra.mxu0 0.0
        %3005 = vmatprep.subr.mxu0 0.0
        %3006 = vmatpush1.xpose.msra.mxu0 0.0
        %3007 = vmatprep.subr.mxu0 0.0
        %3008 = vmatpush1.xpose.msra.mxu0 0.0
        %3009 = vmatprep.subr.mxu0 0.0
        %3010 = vmatpush1.xpose.msra.mxu0 0.0
        %3011 = vmatprep.subr.mxu0 0.0
        %3012 = vmatpush1.xpose.msra.mxu0 0.0
        %3013 = vmatprep.subr.mxu0 0.0
        %3014 = vmatpush1.xpose.msra.mxu0 0.0
        %3015 = vmatprep.subr.mxu0 0.0
        %3016 = vmatpush1.xpose.msra.mxu0 0.0
        %3017 = vmatprep.subr.mxu0 0.0
        %3018 = vmatpush1.xpose.msra.mxu0 0.0
        %3019 = vmatprep.subr.mxu0 0.0
        %3020 = vmatpush1.xpose.msra.mxu0 0.0
        %3021 = vmatprep.subr.mxu0 0.0
        %3022 = vmatpush1.xpose.msra.mxu0 0.0
        %3023 = vmatprep.subr.mxu0 0.0
        %3024 = vmatpush1.xpose.msra.mxu0 0.0
        %3025 = vmatprep.subr.mxu0 0.0
        %3026 = vmatpush1.xpose.msra.mxu0 0.0
        %3027 = vmatprep.subr.mxu0 0.0
        %3028 = vmatpush1.xpose.msra.mxu0 0.0
        %3029 = vmatprep.subr.mxu0 0.0
        %3030 = vmatpush1.xpose.msra.mxu0 0.0
        %3031 = vmatprep.subr.mxu0 0.0
        %3032 = vmatpush1.xpose.msra.mxu0 0.0
        %3033 = vmatprep.subr.mxu0 0.0
        %3034 = vmatpush1.xpose.msra.mxu0 0.0
        %3035 = vmatprep.subr.mxu0 0.0
        %3036 = vmatpush1.xpose.msra.mxu0 0.0
        %3037 = vmatprep.subr.mxu0 0.0
        %3038 = vmatpush1.xpose.msra.mxu0 0.0
        %3039 = vmatprep.subr.mxu0 0.0
        %3040 = vmatpush1.xpose.msra.mxu0 0.0
        %3041 = vmatprep.subr.mxu0 0.0
        %3042 = vmatpush1.xpose.msra.mxu0 0.0
        %3043 = vmatprep.subr.mxu0 0.0
        %3044 = vmatpush1.xpose.msra.mxu0 0.0
        %3045 = vmatprep.subr.mxu0 0.0
        %3046 = vmatpush1.xpose.msra.mxu0 0.0
        %3047 = vmatprep.subr.mxu0 0.0
        %3048 = vmatpush1.xpose.msra.mxu0 0.0
        %3049 = vmatprep.subr.mxu0 0.0
        %3050 = vmatpush1.xpose.msra.mxu0 0.0
        %3051 = vmatprep.subr.mxu0 0.0
        %3052 = vmatpush1.xpose.msra.mxu0 0.0
        %3053 = vmatprep.subr.mxu0 0.0
        %3054 = vmatpush1.xpose.msra.mxu0 0.0
        %3055 = vmatprep.subr.mxu0 0.0
        %3056 = vmatpush1.xpose.msra.mxu0 0.0
        %3057 = vmatprep.subr.mxu0 0.0
        %3058 = vmatpush1.xpose.msra.mxu0 0.0
        %3059 = vmatprep.subr.mxu0 0.0
        %3060 = vmatpush1.xpose.msra.mxu0 0.0
        %3061 = vmatprep.mubr.f32.mxu0 0.0
        %3062 = vmatmul.mubr.f32.gmra.mrb[0].mxu0 %v2989
        %v3063 = vpop.f32.mrb[0].mxu0
        %v3064 = vadd.f32 %v1521, %v3063
        %v3065 = vpop.f32.mrb[0].mxu0
        %3066 = vmatprep.mubr.f32.mxu0 0.0
        %3067 = vmatmul.mubr.f32.gmra.mrb[0].mxu0 %v2991
        %v3068 = vpop.f32.mrb[0].mxu0
        %v3069 = vadd.f32 %v1522, %v3068
        %v3070 = vpop.f32.mrb[0].mxu0
        %3071 = vdwg.mxu0
        %v3072 = vsel %vm1751, %v3064, -inf
        %3073 = vmax.xlane.f32.xlu0 %v3072
        %v3074 = vpop.xlane.xlu0 %3073
        %v3075 = vsel %vm1751, %v3069, -inf
        %3076 = vmax.xlane.f32.xlu0 %v3075
        %v3077 = vpop.xlane.xlu0 %3076
        %v3078 = vsub.f32 %v3064, %v3074
        %v3079 = vsub.f32 %v3069, %v3077
        %v3080 = vmul.f32 %v3078, 1.442695
        %v3081 = vpow.pop %v3080
        %v3082 = vmul.f32 %v3079, 1.442695
        %v3083 = vpow.pop %v3082
        %v3084 = vsel %vm1751, %v3081, 0.0
        %3085 = vadd.xlane.f32.xlu0 %v3084
        %v3086 = vpop.xlane.xlu0 %3085
        %v3087 = vsel %vm1751, %v3083, 0.0
        %3088 = vadd.xlane.f32.xlu0 %v3087
        %v3089 = vpop.xlane.xlu0 %3088
        %v3090 = vrcp.pop %v3086
        %v3091 = vrcp.pop %v3089
        %v3092 = vmul.f32 %v3081, %v3090
        %v3093 = vmul.f32 %v3083, %v3091
        %3094 = vrot.lane.b32.xlu0 %v2975, 64
        %v3095 = vpop.permute.xlu0 %3094
        %3096 = vrot.lane.b32.xlu0 %v2980, 64
        %v3097 = vpop.permute.xlu0 %3096
        %v3101 = vsel %vm1751, %v3092, 0
        %v3104 = vsel %vm1751, %v3093, 0
        %3106 = vmatprep.subr.mxu0 0.0
        %3107 = vmatpush1.msra.mxu0 %v3095
        %3108 = vmatprep.subr.mxu0 0.0
        %3109 = vmatpush1.msra.mxu0 %v3097
        %3110 = vmatprep.subr.mxu0 0.0
        %3111 = vmatpush1.msra.mxu0 0.0
        %3112 = vmatprep.subr.mxu0 0.0
        %3113 = vmatpush1.msra.mxu0 0.0
        %3114 = vmatprep.subr.mxu0 0.0
        %3115 = vmatpush1.msra.mxu0 0.0
        %3116 = vmatprep.subr.mxu0 0.0
        %3117 = vmatpush1.msra.mxu0 0.0
        %3118 = vmatprep.subr.mxu0 0.0
        %3119 = vmatpush1.msra.mxu0 0.0
        %3120 = vmatprep.subr.mxu0 0.0
        %3121 = vmatpush1.msra.mxu0 0.0
        %3122 = vmatprep.subr.mxu0 0.0
        %3123 = vmatpush1.msra.mxu0 0.0
        %3124 = vmatprep.subr.mxu0 0.0
        %3125 = vmatpush1.msra.mxu0 0.0
        %3126 = vmatprep.subr.mxu0 0.0
        %3127 = vmatpush1.msra.mxu0 0.0
        %3128 = vmatprep.subr.mxu0 0.0
        %3129 = vmatpush1.msra.mxu0 0.0
        %3130 = vmatprep.subr.mxu0 0.0
        %3131 = vmatpush1.msra.mxu0 0.0
        %3132 = vmatprep.subr.mxu0 0.0
        %3133 = vmatpush1.msra.mxu0 0.0
        %3134 = vmatprep.subr.mxu0 0.0
        %3135 = vmatpush1.msra.mxu0 0.0
        %3136 = vmatprep.subr.mxu0 0.0
        %3137 = vmatpush1.msra.mxu0 0.0
        %3138 = vmatprep.subr.mxu0 0.0
        %3139 = vmatpush1.msra.mxu0 0.0
        %3140 = vmatprep.subr.mxu0 0.0
        %3141 = vmatpush1.msra.mxu0 0.0
        %3142 = vmatprep.subr.mxu0 0.0
        %3143 = vmatpush1.msra.mxu0 0.0
        %3144 = vmatprep.subr.mxu0 0.0
        %3145 = vmatpush1.msra.mxu0 0.0
        %3146 = vmatprep.subr.mxu0 0.0
        %3147 = vmatpush1.msra.mxu0 0.0
        %3148 = vmatprep.subr.mxu0 0.0
        %3149 = vmatpush1.msra.mxu0 0.0
        %3150 = vmatprep.subr.mxu0 0.0
        %3151 = vmatpush1.msra.mxu0 0.0
        %3152 = vmatprep.subr.mxu0 0.0
        %3153 = vmatpush1.msra.mxu0 0.0
        %3154 = vmatprep.subr.mxu0 0.0
        %3155 = vmatpush1.msra.mxu0 0.0
        %3156 = vmatprep.subr.mxu0 0.0
        %3157 = vmatpush1.msra.mxu0 0.0
        %3158 = vmatprep.subr.mxu0 0.0
        %3159 = vmatpush1.msra.mxu0 0.0
        %3160 = vmatprep.subr.mxu0 0.0
        %3161 = vmatpush1.msra.mxu0 0.0
        %3162 = vmatprep.subr.mxu0 0.0
        %3163 = vmatpush1.msra.mxu0 0.0
        %3164 = vmatprep.subr.mxu0 0.0
        %3165 = vmatpush1.msra.mxu0 0.0
        %3166 = vmatprep.subr.mxu0 0.0
        %3167 = vmatpush1.msra.mxu0 0.0
        %3168 = vmatprep.subr.mxu0 0.0
        %3169 = vmatpush1.msra.mxu0 0.0
        %3170 = vmatprep.mubr.f32.mxu0 0.0
        %3171 = vmatmul.mubr.f32.gmra.mrb[0].mxu0 %v3101
        %v3172 = vpop.f32.mrb[0].mxu0
        %v3173 = vadd.f32 0.0, %v3172
        %v3174 = vpop.f32.mrb[0].mxu0
        %3175 = vmatprep.mubr.f32.mxu0 0.0
        %3176 = vmatmul.mubr.f32.gmra.mrb[0].mxu0 %v3104
        %v3177 = vpop.f32.mrb[0].mxu0
        %v3178 = vadd.f32 0.0, %v3177
        %v3179 = vpop.f32.mrb[0].mxu0
        %3180 = vdwg.mxu0
        %3181 = vrot.lane.b32.xlu0 %v2975, 120
        %v3182 = vpop.permute.xlu0 %3181
        %3183 = vrot.lane.b32.xlu0 %v2980, 120
        %v3184 = vpop.permute.xlu0 %3183
        %3185 = vrot.lane.b32.xlu0 %v2975, 88
        %v3186 = vpop.permute.xlu0 %3185
        %3187 = vrot.lane.b32.xlu0 %v2980, 88
        %v3188 = vpop.permute.xlu0 %3187
        %v3189 = vsel %vm1667, %v3182, 0
        %v3191 = vsel %vm1667, %v3184, 0
        %v3193 = vsel %vm1667, %v3186, 0
        %v3195 = vsel %vm1667, %v3188, 0
        %3197 = vmatprep.subr.mxu0 0.0
        %3198 = vmatpush1.xpose.msra.mxu0 %v3193
        %3199 = vmatprep.subr.mxu0 0.0
        %3200 = vmatpush1.xpose.msra.mxu0 %v3195
        %3201 = vmatprep.subr.mxu0 0.0
        %3202 = vmatpush1.xpose.msra.mxu0 0.0
        %3203 = vmatprep.subr.mxu0 0.0
        %3204 = vmatpush1.xpose.msra.mxu0 0.0
        %3205 = vmatprep.subr.mxu0 0.0
        %3206 = vmatpush1.xpose.msra.mxu0 0.0
        %3207 = vmatprep.subr.mxu0 0.0
        %3208 = vmatpush1.xpose.msra.mxu0 0.0
        %3209 = vmatprep.subr.mxu0 0.0
        %3210 = vmatpush1.xpose.msra.mxu0 0.0
        %3211 = vmatprep.subr.mxu0 0.0
        %3212 = vmatpush1.xpose.msra.mxu0 0.0
        %3213 = vmatprep.subr.mxu0 0.0
        %3214 = vmatpush1.xpose.msra.mxu0 0.0
        %3215 = vmatprep.subr.mxu0 0.0
        %3216 = vmatpush1.xpose.msra.mxu0 0.0
        %3217 = vmatprep.subr.mxu0 0.0
        %3218 = vmatpush1.xpose.msra.mxu0 0.0
        %3219 = vmatprep.subr.mxu0 0.0
        %3220 = vmatpush1.xpose.msra.mxu0 0.0
        %3221 = vmatprep.subr.mxu0 0.0
        %3222 = vmatpush1.xpose.msra.mxu0 0.0
        %3223 = vmatprep.subr.mxu0 0.0
        %3224 = vmatpush1.xpose.msra.mxu0 0.0
        %3225 = vmatprep.subr.mxu0 0.0
        %3226 = vmatpush1.xpose.msra.mxu0 0.0
        %3227 = vmatprep.subr.mxu0 0.0
        %3228 = vmatpush1.xpose.msra.mxu0 0.0
        %3229 = vmatprep.subr.mxu0 0.0
        %3230 = vmatpush1.xpose.msra.mxu0 0.0
        %3231 = vmatprep.subr.mxu0 0.0
        %3232 = vmatpush1.xpose.msra.mxu0 0.0
        %3233 = vmatprep.subr.mxu0 0.0
        %3234 = vmatpush1.xpose.msra.mxu0 0.0
        %3235 = vmatprep.subr.mxu0 0.0
        %3236 = vmatpush1.xpose.msra.mxu0 0.0
        %3237 = vmatprep.subr.mxu0 0.0
        %3238 = vmatpush1.xpose.msra.mxu0 0.0
        %3239 = vmatprep.subr.mxu0 0.0
        %3240 = vmatpush1.xpose.msra.mxu0 0.0
        %3241 = vmatprep.subr.mxu0 0.0
        %3242 = vmatpush1.xpose.msra.mxu0 0.0
        %3243 = vmatprep.subr.mxu0 0.0
        %3244 = vmatpush1.xpose.msra.mxu0 0.0
        %3245 = vmatprep.subr.mxu0 0.0
        %3246 = vmatpush1.xpose.msra.mxu0 0.0
        %3247 = vmatprep.subr.mxu0 0.0
        %3248 = vmatpush1.xpose.msra.mxu0 0.0
        %3249 = vmatprep.subr.mxu0 0.0
        %3250 = vmatpush1.xpose.msra.mxu0 0.0
        %3251 = vmatprep.subr.mxu0 0.0
        %3252 = vmatpush1.xpose.msra.mxu0 0.0
        %3253 = vmatprep.subr.mxu0 0.0
        %3254 = vmatpush1.xpose.msra.mxu0 0.0
        %3255 = vmatprep.subr.mxu0 0.0
        %3256 = vmatpush1.xpose.msra.mxu0 0.0
        %3257 = vmatprep.subr.mxu0 0.0
        %3258 = vmatpush1.xpose.msra.mxu0 0.0
        %3259 = vmatprep.subr.mxu0 0.0
        %3260 = vmatpush1.xpose.msra.mxu0 0.0
        %3261 = vmatprep.mubr.f32.mxu0 0.0
        %3262 = vmatmul.mubr.f32.gmra.mrb[0].mxu0 %v3189
        %v3263 = vpop.f32.mrb[0].mxu0
        %v3264 = vadd.f32 %v1521, %v3263
        %v3265 = vpop.f32.mrb[0].mxu0
        %3266 = vmatprep.mubr.f32.mxu0 0.0
        %3267 = vmatmul.mubr.f32.gmra.mrb[0].mxu0 %v3191
        %v3268 = vpop.f32.mrb[0].mxu0
        %v3269 = vadd.f32 %v1522, %v3268
        %v3270 = vpop.f32.mrb[0].mxu0
        %3271 = vdwg.mxu0
        %v3272 = vsel %vm1751, %v3264, -inf
        %3273 = vmax.xlane.f32.xlu0 %v3272
        %v3274 = vpop.xlane.xlu0 %3273
        %v3275 = vsel %vm1751, %v3269, -inf
        %3276 = vmax.xlane.f32.xlu0 %v3275
        %v3277 = vpop.xlane.xlu0 %3276
        %v3278 = vsub.f32 %v3264, %v3274
        %v3279 = vsub.f32 %v3269, %v3277
        %v3280 = vmul.f32 %v3278, 1.442695
        %v3281 = vpow.pop %v3280
        %v3282 = vmul.f32 %v3279, 1.442695
        %v3283 = vpow.pop %v3282
        %v3284 = vsel %vm1751, %v3281, 0.0
        %3285 = vadd.xlane.f32.xlu0 %v3284
        %v3286 = vpop.xlane.xlu0 %3285
        %v3287 = vsel %vm1751, %v3283, 0.0
        %3288 = vadd.xlane.f32.xlu0 %v3287
        %v3289 = vpop.xlane.xlu0 %3288
        %v3290 = vrcp.pop %v3286
        %v3291 = vrcp.pop %v3289
        %v3292 = vmul.f32 %v3281, %v3290
        %v3293 = vmul.f32 %v3283, %v3291
        %3294 = vrot.lane.b32.xlu0 %v2975, 56
        %v3295 = vpop.permute.xlu0 %3294
        %3296 = vrot.lane.b32.xlu0 %v2980, 56
        %v3297 = vpop.permute.xlu0 %3296
        %v3301 = vsel %vm1751, %v3292, 0
        %v3304 = vsel %vm1751, %v3293, 0
        %3306 = vmatprep.subr.mxu0 0.0
        %3307 = vmatpush1.msra.mxu0 %v3295
        %3308 = vmatprep.subr.mxu0 0.0
        %3309 = vmatpush1.msra.mxu0 %v3297
        %3310 = vmatprep.subr.mxu0 0.0
        %3311 = vmatpush1.msra.mxu0 0.0
        %3312 = vmatprep.subr.mxu0 0.0
        %3313 = vmatpush1.msra.mxu0 0.0
        %3314 = vmatprep.subr.mxu0 0.0
        %3315 = vmatpush1.msra.mxu0 0.0
        %3316 = vmatprep.subr.mxu0 0.0
        %3317 = vmatpush1.msra.mxu0 0.0
        %3318 = vmatprep.subr.mxu0 0.0
        %3319 = vmatpush1.msra.mxu0 0.0
        %3320 = vmatprep.subr.mxu0 0.0
        %3321 = vmatpush1.msra.mxu0 0.0
        %3322 = vmatprep.subr.mxu0 0.0
        %3323 = vmatpush1.msra.mxu0 0.0
        %3324 = vmatprep.subr.mxu0 0.0
        %3325 = vmatpush1.msra.mxu0 0.0
        %3326 = vmatprep.subr.mxu0 0.0
        %3327 = vmatpush1.msra.mxu0 0.0
        %3328 = vmatprep.subr.mxu0 0.0
        %3329 = vmatpush1.msra.mxu0 0.0
        %3330 = vmatprep.subr.mxu0 0.0
        %3331 = vmatpush1.msra.mxu0 0.0
        %3332 = vmatprep.subr.mxu0 0.0
        %3333 = vmatpush1.msra.mxu0 0.0
        %3334 = vmatprep.subr.mxu0 0.0
        %3335 = vmatpush1.msra.mxu0 0.0
        %3336 = vmatprep.subr.mxu0 0.0
        %3337 = vmatpush1.msra.mxu0 0.0
        %3338 = vmatprep.subr.mxu0 0.0
        %3339 = vmatpush1.msra.mxu0 0.0
        %3340 = vmatprep.subr.mxu0 0.0
        %3341 = vmatpush1.msra.mxu0 0.0
        %3342 = vmatprep.subr.mxu0 0.0
        %3343 = vmatpush1.msra.mxu0 0.0
        %3344 = vmatprep.subr.mxu0 0.0
        %3345 = vmatpush1.msra.mxu0 0.0
        %3346 = vmatprep.subr.mxu0 0.0
        %3347 = vmatpush1.msra.mxu0 0.0
        %3348 = vmatprep.subr.mxu0 0.0
        %3349 = vmatpush1.msra.mxu0 0.0
        %3350 = vmatprep.subr.mxu0 0.0
        %3351 = vmatpush1.msra.mxu0 0.0
        %3352 = vmatprep.subr.mxu0 0.0
        %3353 = vmatpush1.msra.mxu0 0.0
        %3354 = vmatprep.subr.mxu0 0.0
        %3355 = vmatpush1.msra.mxu0 0.0
        %3356 = vmatprep.subr.mxu0 0.0
        %3357 = vmatpush1.msra.mxu0 0.0
        %3358 = vmatprep.subr.mxu0 0.0
        %3359 = vmatpush1.msra.mxu0 0.0
        %3360 = vmatprep.subr.mxu0 0.0
        %3361 = vmatpush1.msra.mxu0 0.0
        %3362 = vmatprep.subr.mxu0 0.0
        %3363 = vmatpush1.msra.mxu0 0.0
        %3364 = vmatprep.subr.mxu0 0.0
        %3365 = vmatpush1.msra.mxu0 0.0
        %3366 = vmatprep.subr.mxu0 0.0
        %3367 = vmatpush1.msra.mxu0 0.0
        %3368 = vmatprep.subr.mxu0 0.0
        %3369 = vmatpush1.msra.mxu0 0.0
        %3370 = vmatprep.mubr.f32.mxu0 0.0
        %3371 = vmatmul.mubr.f32.gmra.mrb[0].mxu0 %v3301
        %v3372 = vpop.f32.mrb[0].mxu0
        %v3373 = vadd.f32 0.0, %v3372
        %v3374 = vpop.f32.mrb[0].mxu0
        %3375 = vmatprep.mubr.f32.mxu0 0.0
        %3376 = vmatmul.mubr.f32.gmra.mrb[0].mxu0 %v3304
        %v3377 = vpop.f32.mrb[0].mxu0
        %v3378 = vadd.f32 0.0, %v3377
        %v3379 = vpop.f32.mrb[0].mxu0
        %3380 = vdwg.mxu0
        %3381 = vrot.lane.b32.xlu0 %v2975, 112
        %v3382 = vpop.permute.xlu0 %3381
        %3383 = vrot.lane.b32.xlu0 %v2980, 112
        %v3384 = vpop.permute.xlu0 %3383
        %3385 = vrot.lane.b32.xlu0 %v2975, 80
        %v3386 = vpop.permute.xlu0 %3385
        %3387 = vrot.lane.b32.xlu0 %v2980, 80
        %v3388 = vpop.permute.xlu0 %3387
        %v3389 = vsel %vm1667, %v3382, 0
        %v3391 = vsel %vm1667, %v3384, 0
        %v3393 = vsel %vm1667, %v3386, 0
        %v3395 = vsel %vm1667, %v3388, 0
        %3397 = vmatprep.subr.mxu0 0.0
        %3398 = vmatpush1.xpose.msra.mxu0 %v3393
        %3399 = vmatprep.subr.mxu0 0.0
        %3400 = vmatpush1.xpose.msra.mxu0 %v3395
        %3401 = vmatprep.subr.mxu0 0.0
        %3402 = vmatpush1.xpose.msra.mxu0 0.0
        %3403 = vmatprep.subr.mxu0 0.0
        %3404 = vmatpush1.xpose.msra.mxu0 0.0
        %3405 = vmatprep.subr.mxu0 0.0
        %3406 = vmatpush1.xpose.msra.mxu0 0.0
        %3407 = vmatprep.subr.mxu0 0.0
        %3408 = vmatpush1.xpose.msra.mxu0 0.0
        %3409 = vmatprep.subr.mxu0 0.0
        %3410 = vmatpush1.xpose.msra.mxu0 0.0
        %3411 = vmatprep.subr.mxu0 0.0
        %3412 = vmatpush1.xpose.msra.mxu0 0.0
        %3413 = vmatprep.subr.mxu0 0.0
        %3414 = vmatpush1.xpose.msra.mxu0 0.0
        %3415 = vmatprep.subr.mxu0 0.0
        %3416 = vmatpush1.xpose.msra.mxu0 0.0
        %3417 = vmatprep.subr.mxu0 0.0
        %3418 = vmatpush1.xpose.msra.mxu0 0.0
        %3419 = vmatprep.subr.mxu0 0.0
        %3420 = vmatpush1.xpose.msra.mxu0 0.0
        %3421 = vmatprep.subr.mxu0 0.0
        %3422 = vmatpush1.xpose.msra.mxu0 0.0
        %3423 = vmatprep.subr.mxu0 0.0
        %3424 = vmatpush1.xpose.msra.mxu0 0.0
        %3425 = vmatprep.subr.mxu0 0.0
        %3426 = vmatpush1.xpose.msra.mxu0 0.0
        %3427 = vmatprep.subr.mxu0 0.0
        %3428 = vmatpush1.xpose.msra.mxu0 0.0
        %3429 = vmatprep.subr.mxu0 0.0
        %3430 = vmatpush1.xpose.msra.mxu0 0.0
        %3431 = vmatprep.subr.mxu0 0.0
        %3432 = vmatpush1.xpose.msra.mxu0 0.0
        %3433 = vmatprep.subr.mxu0 0.0
        %3434 = vmatpush1.xpose.msra.mxu0 0.0
        %3435 = vmatprep.subr.mxu0 0.0
        %3436 = vmatpush1.xpose.msra.mxu0 0.0
        %3437 = vmatprep.subr.mxu0 0.0
        %3438 = vmatpush1.xpose.msra.mxu0 0.0
        %3439 = vmatprep.subr.mxu0 0.0
        %3440 = vmatpush1.xpose.msra.mxu0 0.0
        %3441 = vmatprep.subr.mxu0 0.0
        %3442 = vmatpush1.xpose.msra.mxu0 0.0
        %3443 = vmatprep.subr.mxu0 0.0
        %3444 = vmatpush1.xpose.msra.mxu0 0.0
        %3445 = vmatprep.subr.mxu0 0.0
        %3446 = vmatpush1.xpose.msra.mxu0 0.0
        %3447 = vmatprep.subr.mxu0 0.0
        %3448 = vmatpush1.xpose.msra.mxu0 0.0
        %3449 = vmatprep.subr.mxu0 0.0
        %3450 = vmatpush1.xpose.msra.mxu0 0.0
        %3451 = vmatprep.subr.mxu0 0.0
        %3452 = vmatpush1.xpose.msra.mxu0 0.0
        %3453 = vmatprep.subr.mxu0 0.0
        %3454 = vmatpush1.xpose.msra.mxu0 0.0
        %3455 = vmatprep.subr.mxu0 0.0
        %3456 = vmatpush1.xpose.msra.mxu0 0.0
        %3457 = vmatprep.subr.mxu0 0.0
        %3458 = vmatpush1.xpose.msra.mxu0 0.0
        %3459 = vmatprep.subr.mxu0 0.0
        %3460 = vmatpush1.xpose.msra.mxu0 0.0
        %3461 = vmatprep.mubr.f32.mxu0 0.0
        %3462 = vmatmul.mubr.f32.gmra.mrb[0].mxu0 %v3389
        %v3463 = vpop.f32.mrb[0].mxu0
        %v3464 = vadd.f32 %v1521, %v3463
        %v3465 = vpop.f32.mrb[0].mxu0
        %3466 = vmatprep.mubr.f32.mxu0 0.0
        %3467 = vmatmul.mubr.f32.gmra.mrb[0].mxu0 %v3391
        %v3468 = vpop.f32.mrb[0].mxu0
        %v3469 = vadd.f32 %v1522, %v3468
        %v3470 = vpop.f32.mrb[0].mxu0
        %3471 = vdwg.mxu0
        %v3472 = vsel %vm1751, %v3464, -inf
        %3473 = vmax.xlane.f32.xlu0 %v3472
        %v3474 = vpop.xlane.xlu0 %3473
        %v3475 = vsel %vm1751, %v3469, -inf
        %3476 = vmax.xlane.f32.xlu0 %v3475
        %v3477 = vpop.xlane.xlu0 %3476
        %v3478 = vsub.f32 %v3464, %v3474
        %v3479 = vsub.f32 %v3469, %v3477
        %v3480 = vmul.f32 %v3478, 1.442695
        %v3481 = vpow.pop %v3480
        %v3482 = vmul.f32 %v3479, 1.442695
        %v3483 = vpow.pop %v3482
        %v3484 = vsel %vm1751, %v3481, 0.0
        %3485 = vadd.xlane.f32.xlu0 %v3484
        %v3486 = vpop.xlane.xlu0 %3485
        %v3487 = vsel %vm1751, %v3483, 0.0
        %3488 = vadd.xlane.f32.xlu0 %v3487
        %v3489 = vpop.xlane.xlu0 %3488
        %v3490 = vrcp.pop %v3486
        %v3491 = vrcp.pop %v3489
        %v3492 = vmul.f32 %v3481, %v3490
        %v3493 = vmul.f32 %v3483, %v3491
        %3494 = vrot.lane.b32.xlu0 %v2975, 48
        %v3495 = vpop.permute.xlu0 %3494
        %3496 = vrot.lane.b32.xlu0 %v2980, 48
        %v3497 = vpop.permute.xlu0 %3496
        %v3501 = vsel %vm1751, %v3492, 0
        %v3504 = vsel %vm1751, %v3493, 0
        %3506 = vmatprep.subr.mxu0 0.0
        %3507 = vmatpush1.msra.mxu0 %v3495
        %3508 = vmatprep.subr.mxu0 0.0
        %3509 = vmatpush1.msra.mxu0 %v3497
        %3510 = vmatprep.subr.mxu0 0.0
        %3511 = vmatpush1.msra.mxu0 0.0
        %3512 = vmatprep.subr.mxu0 0.0
        %3513 = vmatpush1.msra.mxu0 0.0
        %3514 = vmatprep.subr.mxu0 0.0
        %3515 = vmatpush1.msra.mxu0 0.0
        %3516 = vmatprep.subr.mxu0 0.0
        %3517 = vmatpush1.msra.mxu0 0.0
        %3518 = vmatprep.subr.mxu0 0.0
        %3519 = vmatpush1.msra.mxu0 0.0
        %3520 = vmatprep.subr.mxu0 0.0
        %3521 = vmatpush1.msra.mxu0 0.0
        %3522 = vmatprep.subr.mxu0 0.0
        %3523 = vmatpush1.msra.mxu0 0.0
        %3524 = vmatprep.subr.mxu0 0.0
        %3525 = vmatpush1.msra.mxu0 0.0
        %3526 = vmatprep.subr.mxu0 0.0
        %3527 = vmatpush1.msra.mxu0 0.0
        %3528 = vmatprep.subr.mxu0 0.0
        %3529 = vmatpush1.msra.mxu0 0.0
        %3530 = vmatprep.subr.mxu0 0.0
        %3531 = vmatpush1.msra.mxu0 0.0
        %3532 = vmatprep.subr.mxu0 0.0
        %3533 = vmatpush1.msra.mxu0 0.0
        %3534 = vmatprep.subr.mxu0 0.0
        %3535 = vmatpush1.msra.mxu0 0.0
        %3536 = vmatprep.subr.mxu0 0.0
        %3537 = vmatpush1.msra.mxu0 0.0
        %3538 = vmatprep.subr.mxu0 0.0
        %3539 = vmatpush1.msra.mxu0 0.0
        %3540 = vmatprep.subr.mxu0 0.0
        %3541 = vmatpush1.msra.mxu0 0.0
        %3542 = vmatprep.subr.mxu0 0.0
        %3543 = vmatpush1.msra.mxu0 0.0
        %3544 = vmatprep.subr.mxu0 0.0
        %3545 = vmatpush1.msra.mxu0 0.0
        %3546 = vmatprep.subr.mxu0 0.0
        %3547 = vmatpush1.msra.mxu0 0.0
        %3548 = vmatprep.subr.mxu0 0.0
        %3549 = vmatpush1.msra.mxu0 0.0
        %3550 = vmatprep.subr.mxu0 0.0
        %3551 = vmatpush1.msra.mxu0 0.0
        %3552 = vmatprep.subr.mxu0 0.0
        %3553 = vmatpush1.msra.mxu0 0.0
        %3554 = vmatprep.subr.mxu0 0.0
        %3555 = vmatpush1.msra.mxu0 0.0
        %3556 = vmatprep.subr.mxu0 0.0
        %3557 = vmatpush1.msra.mxu0 0.0
        %3558 = vmatprep.subr.mxu0 0.0
        %3559 = vmatpush1.msra.mxu0 0.0
        %3560 = vmatprep.subr.mxu0 0.0
        %3561 = vmatpush1.msra.mxu0 0.0
        %3562 = vmatprep.subr.mxu0 0.0
        %3563 = vmatpush1.msra.mxu0 0.0
        %3564 = vmatprep.subr.mxu0 0.0
        %3565 = vmatpush1.msra.mxu0 0.0
        %3566 = vmatprep.subr.mxu0 0.0
        %3567 = vmatpush1.msra.mxu0 0.0
        %3568 = vmatprep.subr.mxu0 0.0
        %3569 = vmatpush1.msra.mxu0 0.0
        %3570 = vmatprep.mubr.f32.mxu0 0.0
        %3571 = vmatmul.mubr.f32.gmra.mrb[0].mxu0 %v3501
        %v3572 = vpop.f32.mrb[0].mxu0
        %v3573 = vadd.f32 0.0, %v3572
        %v3574 = vpop.f32.mrb[0].mxu0
        %3575 = vmatprep.mubr.f32.mxu0 0.0
        %3576 = vmatmul.mubr.f32.gmra.mrb[0].mxu0 %v3504
        %v3577 = vpop.f32.mrb[0].mxu0
        %v3578 = vadd.f32 0.0, %v3577
        %v3579 = vpop.f32.mrb[0].mxu0
        %3580 = vdwg.mxu0
        %3581 = vrot.lane.b32.xlu0 %v2975, 104
        %v3582 = vpop.permute.xlu0 %3581
        %3583 = vrot.lane.b32.xlu0 %v2980, 104
        %v3584 = vpop.permute.xlu0 %3583
        %3585 = vrot.lane.b32.xlu0 %v2975, 72
        %v3586 = vpop.permute.xlu0 %3585
        %3587 = vrot.lane.b32.xlu0 %v2980, 72
        %v3588 = vpop.permute.xlu0 %3587
        %v3589 = vsel %vm1667, %v3582, 0
        %v3591 = vsel %vm1667, %v3584, 0
        %v3593 = vsel %vm1667, %v3586, 0
        %v3595 = vsel %vm1667, %v3588, 0
        %3597 = vmatprep.subr.mxu0 0.0
        %3598 = vmatpush1.xpose.msra.mxu0 %v3593
        %3599 = vmatprep.subr.mxu0 0.0
        %3600 = vmatpush1.xpose.msra.mxu0 %v3595
        %3601 = vmatprep.subr.mxu0 0.0
        %3602 = vmatpush1.xpose.msra.mxu0 0.0
        %3603 = vmatprep.subr.mxu0 0.0
        %3604 = vmatpush1.xpose.msra.mxu0 0.0
        %3605 = vmatprep.subr.mxu0 0.0
        %3606 = vmatpush1.xpose.msra.mxu0 0.0
        %3607 = vmatprep.subr.mxu0 0.0
        %3608 = vmatpush1.xpose.msra.mxu0 0.0
        %3609 = vmatprep.subr.mxu0 0.0
        %3610 = vmatpush1.xpose.msra.mxu0 0.0
        %3611 = vmatprep.subr.mxu0 0.0
        %3612 = vmatpush1.xpose.msra.mxu0 0.0
        %3613 = vmatprep.subr.mxu0 0.0
        %3614 = vmatpush1.xpose.msra.mxu0 0.0
        %3615 = vmatprep.subr.mxu0 0.0
        %3616 = vmatpush1.xpose.msra.mxu0 0.0
        %3617 = vmatprep.subr.mxu0 0.0
        %3618 = vmatpush1.xpose.msra.mxu0 0.0
        %3619 = vmatprep.subr.mxu0 0.0
        %3620 = vmatpush1.xpose.msra.mxu0 0.0
        %3621 = vmatprep.subr.mxu0 0.0
        %3622 = vmatpush1.xpose.msra.mxu0 0.0
        %3623 = vmatprep.subr.mxu0 0.0
        %3624 = vmatpush1.xpose.msra.mxu0 0.0
        %3625 = vmatprep.subr.mxu0 0.0
        %3626 = vmatpush1.xpose.msra.mxu0 0.0
        %3627 = vmatprep.subr.mxu0 0.0
        %3628 = vmatpush1.xpose.msra.mxu0 0.0
        %3629 = vmatprep.subr.mxu0 0.0
        %3630 = vmatpush1.xpose.msra.mxu0 0.0
        %3631 = vmatprep.subr.mxu0 0.0
        %3632 = vmatpush1.xpose.msra.mxu0 0.0
        %3633 = vmatprep.subr.mxu0 0.0
        %3634 = vmatpush1.xpose.msra.mxu0 0.0
        %3635 = vmatprep.subr.mxu0 0.0
        %3636 = vmatpush1.xpose.msra.mxu0 0.0
        %3637 = vmatprep.subr.mxu0 0.0
        %3638 = vmatpush1.xpose.msra.mxu0 0.0
        %3639 = vmatprep.subr.mxu0 0.0
        %3640 = vmatpush1.xpose.msra.mxu0 0.0
        %3641 = vmatprep.subr.mxu0 0.0
        %3642 = vmatpush1.xpose.msra.mxu0 0.0
        %3643 = vmatprep.subr.mxu0 0.0
        %3644 = vmatpush1.xpose.msra.mxu0 0.0
        %3645 = vmatprep.subr.mxu0 0.0
        %3646 = vmatpush1.xpose.msra.mxu0 0.0
        %3647 = vmatprep.subr.mxu0 0.0
        %3648 = vmatpush1.xpose.msra.mxu0 0.0
        %3649 = vmatprep.subr.mxu0 0.0
        %3650 = vmatpush1.xpose.msra.mxu0 0.0
        %3651 = vmatprep.subr.mxu0 0.0
        %3652 = vmatpush1.xpose.msra.mxu0 0.0
        %3653 = vmatprep.subr.mxu0 0.0
        %3654 = vmatpush1.xpose.msra.mxu0 0.0
        %3655 = vmatprep.subr.mxu0 0.0
        %3656 = vmatpush1.xpose.msra.mxu0 0.0
        %3657 = vmatprep.subr.mxu0 0.0
        %3658 = vmatpush1.xpose.msra.mxu0 0.0
        %3659 = vmatprep.subr.mxu0 0.0
        %3660 = vmatpush1.xpose.msra.mxu0 0.0
        %3661 = vmatprep.mubr.f32.mxu0 0.0
        %3662 = vmatmul.mubr.f32.gmra.mrb[0].mxu0 %v3589
        %v3663 = vpop.f32.mrb[0].mxu0
        %v3664 = vadd.f32 %v1521, %v3663
        %v3665 = vpop.f32.mrb[0].mxu0
        %3666 = vmatprep.mubr.f32.mxu0 0.0
        %3667 = vmatmul.mubr.f32.gmra.mrb[0].mxu0 %v3591
        %v3668 = vpop.f32.mrb[0].mxu0
        %v3669 = vadd.f32 %v1522, %v3668
        %v3670 = vpop.f32.mrb[0].mxu0
        %3671 = vdwg.mxu0
        %v3672 = vsel %vm1751, %v3664, -inf
        %3673 = vmax.xlane.f32.xlu0 %v3672
        %v3674 = vpop.xlane.xlu0 %3673
        %v3675 = vsel %vm1751, %v3669, -inf
        %3676 = vmax.xlane.f32.xlu0 %v3675
        %v3677 = vpop.xlane.xlu0 %3676
        %v3678 = vsub.f32 %v3664, %v3674
        %v3679 = vsub.f32 %v3669, %v3677
        %v3680 = vmul.f32 %v3678, 1.442695
        %v3681 = vpow.pop %v3680
        %v3682 = vmul.f32 %v3679, 1.442695
        %v3683 = vpow.pop %v3682
        %v3684 = vsel %vm1751, %v3681, 0.0
        %3685 = vadd.xlane.f32.xlu0 %v3684
        %v3686 = vpop.xlane.xlu0 %3685
        %v3687 = vsel %vm1751, %v3683, 0.0
        %3688 = vadd.xlane.f32.xlu0 %v3687
        %v3689 = vpop.xlane.xlu0 %3688
        %v3690 = vrcp.pop %v3686
        %v3691 = vrcp.pop %v3689
        %v3692 = vmul.f32 %v3681, %v3690
        %v3693 = vmul.f32 %v3683, %v3691
        %3694 = vrot.lane.b32.xlu0 %v2975, 40
        %v3695 = vpop.permute.xlu0 %3694
        %3696 = vrot.lane.b32.xlu0 %v2980, 40
        %v3697 = vpop.permute.xlu0 %3696
        %v3701 = vsel %vm1751, %v3692, 0
        %v3704 = vsel %vm1751, %v3693, 0
        %3706 = vmatprep.subr.mxu0 0.0
        %3707 = vmatpush1.msra.mxu0 %v3695
        %3708 = vmatprep.subr.mxu0 0.0
        %3709 = vmatpush1.msra.mxu0 %v3697
        %3710 = vmatprep.subr.mxu0 0.0
        %3711 = vmatpush1.msra.mxu0 0.0
        %3712 = vmatprep.subr.mxu0 0.0
        %3713 = vmatpush1.msra.mxu0 0.0
        %3714 = vmatprep.subr.mxu0 0.0
        %3715 = vmatpush1.msra.mxu0 0.0
        %3716 = vmatprep.subr.mxu0 0.0
        %3717 = vmatpush1.msra.mxu0 0.0
        %3718 = vmatprep.subr.mxu0 0.0
        %3719 = vmatpush1.msra.mxu0 0.0
        %3720 = vmatprep.subr.mxu0 0.0
        %3721 = vmatpush1.msra.mxu0 0.0
        %3722 = vmatprep.subr.mxu0 0.0
        %3723 = vmatpush1.msra.mxu0 0.0
        %3724 = vmatprep.subr.mxu0 0.0
        %3725 = vmatpush1.msra.mxu0 0.0
        %3726 = vmatprep.subr.mxu0 0.0
        %3727 = vmatpush1.msra.mxu0 0.0
        %3728 = vmatprep.subr.mxu0 0.0
        %3729 = vmatpush1.msra.mxu0 0.0
        %3730 = vmatprep.subr.mxu0 0.0
        %3731 = vmatpush1.msra.mxu0 0.0
        %3732 = vmatprep.subr.mxu0 0.0
        %3733 = vmatpush1.msra.mxu0 0.0
        %3734 = vmatprep.subr.mxu0 0.0
        %3735 = vmatpush1.msra.mxu0 0.0
        %3736 = vmatprep.subr.mxu0 0.0
        %3737 = vmatpush1.msra.mxu0 0.0
        %3738 = vmatprep.subr.mxu0 0.0
        %3739 = vmatpush1.msra.mxu0 0.0
        %3740 = vmatprep.subr.mxu0 0.0
        %3741 = vmatpush1.msra.mxu0 0.0
        %3742 = vmatprep.subr.mxu0 0.0
        %3743 = vmatpush1.msra.mxu0 0.0
        %3744 = vmatprep.subr.mxu0 0.0
        %3745 = vmatpush1.msra.mxu0 0.0
        %3746 = vmatprep.subr.mxu0 0.0
        %3747 = vmatpush1.msra.mxu0 0.0
        %3748 = vmatprep.subr.mxu0 0.0
        %3749 = vmatpush1.msra.mxu0 0.0
        %3750 = vmatprep.subr.mxu0 0.0
        %3751 = vmatpush1.msra.mxu0 0.0
        %3752 = vmatprep.subr.mxu0 0.0
        %3753 = vmatpush1.msra.mxu0 0.0
        %3754 = vmatprep.subr.mxu0 0.0
        %3755 = vmatpush1.msra.mxu0 0.0
        %3756 = vmatprep.subr.mxu0 0.0
        %3757 = vmatpush1.msra.mxu0 0.0
        %3758 = vmatprep.subr.mxu0 0.0
        %3759 = vmatpush1.msra.mxu0 0.0
        %3760 = vmatprep.subr.mxu0 0.0
        %3761 = vmatpush1.msra.mxu0 0.0
        %3762 = vmatprep.subr.mxu0 0.0
        %3763 = vmatpush1.msra.mxu0 0.0
        %3764 = vmatprep.subr.mxu0 0.0
        %3765 = vmatpush1.msra.mxu0 0.0
        %3766 = vmatprep.subr.mxu0 0.0
        %3767 = vmatpush1.msra.mxu0 0.0
        %3768 = vmatprep.subr.mxu0 0.0
        %3769 = vmatpush1.msra.mxu0 0.0
        %3770 = vmatprep.mubr.f32.mxu0 0.0
        %3771 = vmatmul.mubr.f32.gmra.mrb[0].mxu0 %v3701
        %v3772 = vpop.f32.mrb[0].mxu0
        %v3773 = vadd.f32 0.0, %v3772
        %v3774 = vpop.f32.mrb[0].mxu0
        %3775 = vmatprep.mubr.f32.mxu0 0.0
        %3776 = vmatmul.mubr.f32.gmra.mrb[0].mxu0 %v3704
        %v3777 = vpop.f32.mrb[0].mxu0
        %v3778 = vadd.f32 0.0, %v3777
        %v3779 = vpop.f32.mrb[0].mxu0
        %3780 = vdwg.mxu0
        %3783 = vrot.lane.b32.xlu0 %v3373, 8
        %v3784 = vpop.permute.xlu0 %3783
        %3785 = vrot.lane.b32.xlu0 %v3378, 8
        %v3786 = vpop.permute.xlu0 %3785
        %3791 = vrot.lane.b32.xlu0 %v3573, 16
        %v3792 = vpop.permute.xlu0 %3791
        %3793 = vrot.lane.b32.xlu0 %v3578, 16
        %v3794 = vpop.permute.xlu0 %3793
        %3799 = vrot.lane.b32.xlu0 %v3773, 24
        %v3800 = vpop.permute.xlu0 %3799
        %3801 = vrot.lane.b32.xlu0 %v3778, 24
        %v3802 = vpop.permute.xlu0 %3801
        %v3805 = vsel %vm1667, %v3173, %v3784
        %v3806 = vsel %vm1667, %v3178, %v3786
        %v3807 = vsel %vm1751, %v3805, %v3792
        %v3808 = vsel %vm1751, %v3806, %v3794
        %v3809 = vsel %vm2489, %v3807, %v3800
        %v3810 = vsel %vm2489, %v3808, %v3802
        %s3811 = scalar_lea.vmem %s19, 32
        %v3812 = vld [vmem:[%s3811] sm:$0xff]
        %v3813 = vld [vmem:[%s3811 + $0x8] sm:$0xff]
        %v3814 = vld [vmem:[%s3811 + $0x10] sm:$0xff]
        %v3815 = vld [vmem:[%s3811 + $0x18] sm:$0xff]
        %v3817 = vsel %vm1525, %v3809, 0
        %v3820 = vsel %vm1525, %v3810, 0
        %3822 = vmatprep.subr.mxu0 0.0
        %3823 = vmatpush1.msra.mxu0 %v3812
        %3824 = vmatprep.subr.mxu0 0.0
        %3825 = vmatpush1.msra.mxu0 %v3813
        %3826 = vmatprep.subr.mxu0 0.0
        %3827 = vmatpush1.msra.mxu0 %v3814
        %3828 = vmatprep.subr.mxu0 0.0
        %3829 = vmatpush1.msra.mxu0 %v3815
        %3830 = vmatprep.subr.mxu0 0.0
        %3831 = vmatpush1.msra.mxu0 0.0
        %3832 = vmatprep.subr.mxu0 0.0
        %3833 = vmatpush1.msra.mxu0 0.0
        %3834 = vmatprep.subr.mxu0 0.0
        %3835 = vmatpush1.msra.mxu0 0.0
        %3836 = vmatprep.subr.mxu0 0.0
        %3837 = vmatpush1.msra.mxu0 0.0
        %3838 = vmatprep.subr.mxu0 0.0
        %3839 = vmatpush1.msra.mxu0 0.0
        %3840 = vmatprep.subr.mxu0 0.0
        %3841 = vmatpush1.msra.mxu0 0.0
        %3842 = vmatprep.subr.mxu0 0.0
        %3843 = vmatpush1.msra.mxu0 0.0
        %3844 = vmatprep.subr.mxu0 0.0
        %3845 = vmatpush1.msra.mxu0 0.0
        %3846 = vmatprep.subr.mxu0 0.0
        %3847 = vmatpush1.msra.mxu0 0.0
        %3848 = vmatprep.subr.mxu0 0.0
        %3849 = vmatpush1.msra.mxu0 0.0
        %3850 = vmatprep.subr.mxu0 0.0
        %3851 = vmatpush1.msra.mxu0 0.0
        %3852 = vmatprep.subr.mxu0 0.0
        %3853 = vmatpush1.msra.mxu0 0.0
        %3854 = vmatprep.subr.mxu0 0.0
        %3855 = vmatpush1.msra.mxu0 0.0
        %3856 = vmatprep.subr.mxu0 0.0
        %3857 = vmatpush1.msra.mxu0 0.0
        %3858 = vmatprep.subr.mxu0 0.0
        %3859 = vmatpush1.msra.mxu0 0.0
        %3860 = vmatprep.subr.mxu0 0.0
        %3861 = vmatpush1.msra.mxu0 0.0
        %3862 = vmatprep.subr.mxu0 0.0
        %3863 = vmatpush1.msra.mxu0 0.0
        %3864 = vmatprep.subr.mxu0 0.0
        %3865 = vmatpush1.msra.mxu0 0.0
        %3866 = vmatprep.subr.mxu0 0.0
        %3867 = vmatpush1.msra.mxu0 0.0
        %3868 = vmatprep.subr.mxu0 0.0
        %3869 = vmatpush1.msra.mxu0 0.0
        %3870 = vmatprep.subr.mxu0 0.0
        %3871 = vmatpush1.msra.mxu0 0.0
        %3872 = vmatprep.subr.mxu0 0.0
        %3873 = vmatpush1.msra.mxu0 0.0
        %3874 = vmatprep.subr.mxu0 0.0
        %3875 = vmatpush1.msra.mxu0 0.0
        %3876 = vmatprep.subr.mxu0 0.0
        %3877 = vmatpush1.msra.mxu0 0.0
        %3878 = vmatprep.subr.mxu0 0.0
        %3879 = vmatpush1.msra.mxu0 0.0
        %3880 = vmatprep.subr.mxu0 0.0
        %3881 = vmatpush1.msra.mxu0 0.0
        %3882 = vmatprep.subr.mxu0 0.0
        %3883 = vmatpush1.msra.mxu0 0.0
        %3884 = vmatprep.subr.mxu0 0.0
        %3885 = vmatpush1.msra.mxu0 0.0
        %3886 = vmatprep.mubr.f32.mxu0 0.0
        %3887 = vmatmul.mubr.f32.gmra.mrb[0].mxu0 %v3817
        %v3888 = vpop.f32.mrb[0].mxu0
        %v3889 = vadd.f32 0.0, %v3888
        %v3890 = vpop.f32.mrb[0].mxu0
        %3891 = vmatprep.mubr.f32.mxu0 0.0
        %3892 = vmatmul.mubr.f32.gmra.mrb[0].mxu0 %v3820
        %v3893 = vpop.f32.mrb[0].mxu0
        %v3894 = vadd.f32 0.0, %v3893
        %v3895 = vpop.f32.mrb[0].mxu0
        %3896 = vdwg.mxu0
        %v3897 = vadd.f32 %v2841, %v3889
        %v3898 = vadd.f32 %v2842, %v3894
        %s3899 = scalar_lea.vmem [#allocation11], 1
        %v3900 = vld [vmem:[%s3899] sm:$0x1]
        %v3902 = vlaneseq
        %v3903 = vshrl.u32 %v3902, 7
        %v3904 = vsub.s32 0, %v3903
        %v3905 = vrot.slane %v3900, %v3904
        %v3907 = vadd.f32 %v3897, %v3905
        %v3908 = vadd.f32 %v3898, %v3905
        %s3909 = scalar_lea.vmem [#allocation13], 1
        %v3910 = vld [vmem:[%s3909] sm:$0x1]
        %s3911 = scalar_lea.vmem [#allocation14], 1
        %v3912 = vld [vmem:[%s3911] sm:$0x1]
        %v3913 = vsel %vm1525, %v3907, 0.0
        %3914 = vadd.xlane.f32.xlu0 %v3913
        %v3915 = vpop.xlane.xlu0 %3914
        %v3916 = vsel %vm1525, %v3908, 0.0
        %3917 = vadd.xlane.f32.xlu0 %v3916
        %v3918 = vpop.xlane.xlu0 %3917
        %v3919 = vmul.f32 %v3915, %v1532
        %v3920 = vmul.f32 %v3918, %v1532
        %v3921 = vsub.f32 %v3907, %v3919
        %v3922 = vsub.f32 %v3908, %v3920
        %v3923 = vmul.f32 %v3921, %v3921
        %v3924 = vmul.f32 %v3922, %v3922
        %v3925 = vsel %vm1525, %v3923, 0.0
        %3926 = vadd.xlane.f32.xlu0 %v3925
        %v3927 = vpop.xlane.xlu0 %3926
        %v3928 = vsel %vm1525, %v3924, 0.0
        %3929 = vadd.xlane.f32.xlu0 %v3928
        %v3930 = vpop.xlane.xlu0 %3929
        %v3931 = vmul.f32 %v3927, %v1532
        %v3932 = vmul.f32 %v3930, %v1532
        %v3933 = vadd.f32 %v3931, 1e-06
        %v3934 = vadd.f32 %v3932, 1e-06
        %v3935 = vrsqrt.pop %v3933
        %v3936 = vrsqrt.pop %v3934
        %v3937 = vmul.f32 %v3921, %v3935
        %v3938 = vmul.f32 %v3922, %v3936
        %v3940 = vlaneseq
        %v3941 = vshrl.u32 %v3940, 7
        %v3942 = vsub.s32 0, %v3941
        %v3943 = vrot.slane %v3910, %v3942
        %v3945 = vmul.f32 %v3937, %v3943
        %v3946 = vmul.f32 %v3938, %v3943
        %v3948 = vlaneseq
        %v3949 = vshrl.u32 %v3948, 7
        %v3950 = vsub.s32 0, %v3949
        %v3951 = vrot.slane %v3912, %v3950
        %v3953 = vadd.f32 %v3945, %v3951
        %v3954 = vadd.f32 %v3946, %v3951
        %s3955 = scalar_lea.vmem %s27, 32
        %v3956 = vld [vmem:[%s3955] sm:$0xff]
        %v3957 = vld [vmem:[%s3955 + $0x8] sm:$0xff]
        %v3958 = vld [vmem:[%s3955 + $0x10] sm:$0xff]
        %v3959 = vld [vmem:[%s3955 + $0x18] sm:$0xff]
        %s3960 = scalar_lea.vmem [#allocation16], 1
        %v3961 = vld [vmem:[%s3960] sm:$0x1]
        %v3963 = vlaneseq
        %v3964 = vshrl.u32 %v3963, 7
        %v3965 = vsub.s32 0, %v3964
        %v3966 = vrot.slane %v3961, %v3965
        %v3969 = vsel %vm1525, %v3953, 0
        %v3972 = vsel %vm1525, %v3954, 0
        %3974 = vmatprep.subr.mxu0 0.0
        %3975 = vmatpush1.msra.mxu0 %v3956
        %3976 = vmatprep.subr.mxu0 0.0
        %3977 = vmatpush1.msra.mxu0 %v3957
        %3978 = vmatprep.subr.mxu0 0.0
        %3979 = vmatpush1.msra.mxu0 %v3958
        %3980 = vmatprep.subr.mxu0 0.0
        %3981 = vmatpush1.msra.mxu0 %v3959
        %3982 = vmatprep.subr.mxu0 0.0
        %3983 = vmatpush1.msra.mxu0 0.0
        %3984 = vmatprep.subr.mxu0 0.0
        %3985 = vmatpush1.msra.mxu0 0.0
        %3986 = vmatprep.subr.mxu0 0.0
        %3987 = vmatpush1.msra.mxu0 0.0
        %3988 = vmatprep.subr.mxu0 0.0
        %3989 = vmatpush1.msra.mxu0 0.0
        %3990 = vmatprep.subr.mxu0 0.0
        %3991 = vmatpush1.msra.mxu0 0.0
        %3992 = vmatprep.subr.mxu0 0.0
        %3993 = vmatpush1.msra.mxu0 0.0
        %3994 = vmatprep.subr.mxu0 0.0
        %3995 = vmatpush1.msra.mxu0 0.0
        %3996 = vmatprep.subr.mxu0 0.0
        %3997 = vmatpush1.msra.mxu0 0.0
        %3998 = vmatprep.subr.mxu0 0.0
        %3999 = vmatpush1.msra.mxu0 0.0
        %4000 = vmatprep.subr.mxu0 0.0
        %4001 = vmatpush1.msra.mxu0 0.0
        %4002 = vmatprep.subr.mxu0 0.0
        %4003 = vmatpush1.msra.mxu0 0.0
        %4004 = vmatprep.subr.mxu0 0.0
        %4005 = vmatpush1.msra.mxu0 0.0
        %4006 = vmatprep.subr.mxu0 0.0
        %4007 = vmatpush1.msra.mxu0 0.0
        %4008 = vmatprep.subr.mxu0 0.0
        %4009 = vmatpush1.msra.mxu0 0.0
        %4010 = vmatprep.subr.mxu0 0.0
        %4011 = vmatpush1.msra.mxu0 0.0
        %4012 = vmatprep.subr.mxu0 0.0
        %4013 = vmatpush1.msra.mxu0 0.0
        %4014 = vmatprep.subr.mxu0 0.0
        %4015 = vmatpush1.msra.mxu0 0.0
        %4016 = vmatprep.subr.mxu0 0.0
        %4017 = vmatpush1.msra.mxu0 0.0
        %4018 = vmatprep.subr.mxu0 0.0
        %4019 = vmatpush1.msra.mxu0 0.0
        %4020 = vmatprep.subr.mxu0 0.0
        %4021 = vmatpush1.msra.mxu0 0.0
        %4022 = vmatprep.subr.mxu0 0.0
        %4023 = vmatpush1.msra.mxu0 0.0
        %4024 = vmatprep.subr.mxu0 0.0
        %4025 = vmatpush1.msra.mxu0 0.0
        %4026 = vmatprep.subr.mxu0 0.0
        %4027 = vmatpush1.msra.mxu0 0.0
        %4028 = vmatprep.subr.mxu0 0.0
        %4029 = vmatpush1.msra.mxu0 0.0
        %4030 = vmatprep.subr.mxu0 0.0
        %4031 = vmatpush1.msra.mxu0 0.0
        %4032 = vmatprep.subr.mxu0 0.0
        %4033 = vmatpush1.msra.mxu0 0.0
        %4034 = vmatprep.subr.mxu0 0.0
        %4035 = vmatpush1.msra.mxu0 0.0
        %4036 = vmatprep.subr.mxu0 0.0
        %4037 = vmatpush1.msra.mxu0 0.0
        %4038 = vmatprep.mubr.f32.mxu0 0.0
        %4039 = vmatmul.mubr.f32.gmra.mrb[0].mxu0 %v3969
        %v4040 = vpop.f32.mrb[0].mxu0
        %v4041 = vadd.f32 %v3966, %v4040
        %v4042 = vpop.f32.mrb[0].mxu0
        %4043 = vmatprep.mubr.f32.mxu0 0.0
        %4044 = vmatmul.mubr.f32.gmra.mrb[0].mxu0 %v3972
        %v4045 = vpop.f32.mrb[0].mxu0
        %v4046 = vadd.f32 %v3966, %v4045
        %v4047 = vpop.f32.mrb[0].mxu0
        %4048 = vdwg.mxu0
        %v4049 = vmul.f32 %v4041, 0.5
        %v4050 = vmul.f32 %v4046, 0.5
        %v4051 = vmul.f32 %v4041, 0.044715
        %v4052 = vmul.f32 %v4046, 0.044715
        %v4053 = vmul.f32 %v4051, %v4041
        %v4054 = vmul.f32 %v4052, %v4046
        %v4055 = vmul.f32 %v4053, %v4041
        %v4056 = vmul.f32 %v4054, %v4046
        %v4057 = vadd.f32 %v4041, %v4055
        %v4058 = vadd.f32 %v4046, %v4056
        %v4059 = vmul.f32 %v4057, 0.7978846
        %v4060 = vmul.f32 %v4058, 0.7978846
        %v4061 = vtanh.pop %v4059
        %v4062 = vtanh.pop %v4060
        %v4063 = vadd.f32 %v4061, 1.0
        %v4064 = vadd.f32 %v4062, 1.0
        %v4065 = vmul.f32 %v4049, %v4063
        %v4066 = vmul.f32 %v4050, %v4064
        %s4067 = scalar_lea.vmem %s31, 64
        %v4068 = vld [vmem:[%s4067] sm:$0xff]
        %v4069 = vld [vmem:[%s4067 + $0x8] sm:$0xff]
        %v4070 = vld [vmem:[%s4067 + $0x10] sm:$0xff]
        %v4071 = vld [vmem:[%s4067 + $0x18] sm:$0xff]
        %v4072 = vld [vmem:[%s4067 + $0x20] sm:$0xff]
        %v4073 = vld [vmem:[%s4067 + $0x28] sm:$0xff]
        %v4074 = vld [vmem:[%s4067 + $0x30] sm:$0xff]
        %v4075 = vld [vmem:[%s4067 + $0x38] sm:$0xff]
        %v4077 = vsel %vm2750, %v4065, 0
        %v4080 = vsel %vm2750, %v4066, 0
        %4082 = vmatprep.subr.mxu0 0.0
        %4083 = vmatpush1.msra.mxu0 %v4068
        %4084 = vmatprep.subr.mxu0 0.0
        %4085 = vmatpush1.msra.mxu0 %v4069
        %4086 = vmatprep.subr.mxu0 0.0
        %4087 = vmatpush1.msra.mxu0 %v4070
        %4088 = vmatprep.subr.mxu0 0.0
        %4089 = vmatpush1.msra.mxu0 %v4071
        %4090 = vmatprep.subr.mxu0 0.0
        %4091 = vmatpush1.msra.mxu0 %v4072
        %4092 = vmatprep.subr.mxu0 0.0
        %4093 = vmatpush1.msra.mxu0 %v4073
        %4094 = vmatprep.subr.mxu0 0.0
        %4095 = vmatpush1.msra.mxu0 %v4074
        %4096 = vmatprep.subr.mxu0 0.0
        %4097 = vmatpush1.msra.mxu0 %v4075
        %4098 = vmatprep.subr.mxu0 0.0
        %4099 = vmatpush1.msra.mxu0 0.0
        %4100 = vmatprep.subr.mxu0 0.0
        %4101 = vmatpush1.msra.mxu0 0.0
        %4102 = vmatprep.subr.mxu0 0.0
        %4103 = vmatpush1.msra.mxu0 0.0
        %4104 = vmatprep.subr.mxu0 0.0
        %4105 = vmatpush1.msra.mxu0 0.0
        %4106 = vmatprep.subr.mxu0 0.0
        %4107 = vmatpush1.msra.mxu0 0.0
        %4108 = vmatprep.subr.mxu0 0.0
        %4109 = vmatpush1.msra.mxu0 0.0
        %4110 = vmatprep.subr.mxu0 0.0
        %4111 = vmatpush1.msra.mxu0 0.0
        %4112 = vmatprep.subr.mxu0 0.0
        %4113 = vmatpush1.msra.mxu0 0.0
        %4114 = vmatprep.subr.mxu0 0.0
        %4115 = vmatpush1.msra.mxu0 0.0
        %4116 = vmatprep.subr.mxu0 0.0
        %4117 = vmatpush1.msra.mxu0 0.0
        %4118 = vmatprep.subr.mxu0 0.0
        %4119 = vmatpush1.msra.mxu0 0.0
        %4120 = vmatprep.subr.mxu0 0.0
        %4121 = vmatpush1.msra.mxu0 0.0
        %4122 = vmatprep.subr.mxu0 0.0
        %4123 = vmatpush1.msra.mxu0 0.0
        %4124 = vmatprep.subr.mxu0 0.0
        %4125 = vmatpush1.msra.mxu0 0.0
        %4126 = vmatprep.subr.mxu0 0.0
        %4127 = vmatpush1.msra.mxu0 0.0
        %4128 = vmatprep.subr.mxu0 0.0
        %4129 = vmatpush1.msra.mxu0 0.0
        %4130 = vmatprep.subr.mxu0 0.0
        %4131 = vmatpush1.msra.mxu0 0.0
        %4132 = vmatprep.subr.mxu0 0.0
        %4133 = vmatpush1.msra.mxu0 0.0
        %4134 = vmatprep.subr.mxu0 0.0
        %4135 = vmatpush1.msra.mxu0 0.0
        %4136 = vmatprep.subr.mxu0 0.0
        %4137 = vmatpush1.msra.mxu0 0.0
        %4138 = vmatprep.subr.mxu0 0.0
        %4139 = vmatpush1.msra.mxu0 0.0
        %4140 = vmatprep.subr.mxu0 0.0
        %4141 = vmatpush1.msra.mxu0 0.0
        %4142 = vmatprep.subr.mxu0 0.0
        %4143 = vmatpush1.msra.mxu0 0.0
        %4144 = vmatprep.subr.mxu0 0.0
        %4145 = vmatpush1.msra.mxu0 0.0
        %4146 = vmatprep.mubr.f32.mxu0 0.0
        %4147 = vmatmul.mubr.f32.gmra.mrb[0].mxu0 %v4077
        %v4148 = vpop.f32.mrb[0].mxu0
        %v4149 = vadd.f32 0.0, %v4148
        %v4150 = vpop.f32.mrb[0].mxu0
        %4151 = vmatprep.mubr.f32.mxu0 0.0
        %4152 = vmatmul.mubr.f32.gmra.mrb[0].mxu0 %v4080
        %v4153 = vpop.f32.mrb[0].mxu0
        %v4154 = vadd.f32 0.0, %v4153
        %v4155 = vpop.f32.mrb[0].mxu0
        %4156 = vdwg.mxu0
        %v4157 = vadd.f32 %v3907, %v4149
        %v4158 = vadd.f32 %v3908, %v4154
        %s4159 = scalar_lea.vmem [#allocation17], 1
        %v4160 = vld [vmem:[%s4159] sm:$0x1]
        %v4162 = vlaneseq
        %v4163 = vshrl.u32 %v4162, 7
        %v4164 = vsub.s32 0, %v4163
        %v4165 = vrot.slane %v4160, %v4164
        %v4167 = vadd.f32 %v4157, %v4165
        %v4168 = vadd.f32 %v4158, %v4165
        %v4169 = vld [vmem:[#allocation19] sm:$0x1]
        %v4170 = vld [vmem:[#allocation20] sm:$0x1]
        %v4171 = vsel %vm1525, %v4167, 0.0
        %4172 = vadd.xlane.f32.xlu0 %v4171
        %v4173 = vpop.xlane.xlu0 %4172
        %v4174 = vsel %vm1525, %v4168, 0.0
        %4175 = vadd.xlane.f32.xlu0 %v4174
        %v4176 = vpop.xlane.xlu0 %4175
        %v4177 = vmul.f32 %v4173, %v1532
        %v4178 = vmul.f32 %v4176, %v1532
        %v4179 = vsub.f32 %v4167, %v4177
        %v4180 = vsub.f32 %v4168, %v4178
        %v4181 = vmul.f32 %v4179, %v4179
        %v4182 = vmul.f32 %v4180, %v4180
        %v4183 = vsel %vm1525, %v4181, 0.0
        %4184 = vadd.xlane.f32.xlu0 %v4183
        %v4185 = vpop.xlane.xlu0 %4184
        %v4186 = vsel %vm1525, %v4182, 0.0
        %4187 = vadd.xlane.f32.xlu0 %v4186
        %v4188 = vpop.xlane.xlu0 %4187
        %v4189 = vmul.f32 %v4185, %v1532
        %v4190 = vmul.f32 %v4188, %v1532
        %v4191 = vadd.f32 %v4189, 1e-06
        %v4192 = vadd.f32 %v4190, 1e-06
        %v4193 = vrsqrt.pop %v4191
        %v4194 = vrsqrt.pop %v4192
        %v4195 = vmul.f32 %v4179, %v4193
        %v4196 = vmul.f32 %v4180, %v4194
        %v4198 = vlaneseq
        %v4199 = vshrl.u32 %v4198, 7
        %v4200 = vsub.s32 0, %v4199
        %v4201 = vrot.slane %v4169, %v4200
        %v4203 = vmul.f32 %v4195, %v4201
        %v4204 = vmul.f32 %v4196, %v4201
        %v4206 = vlaneseq
        %v4207 = vshrl.u32 %v4206, 7
        %v4208 = vsub.s32 0, %v4207
        %v4209 = vrot.slane %v4170, %v4208
        %v4211 = vadd.f32 %v4203, %v4209
        %v4212 = vadd.f32 %v4204, %v4209
        %v4213 = vld [vmem:[%s43] sm:$0xf]
        %v4214 = vld [vmem:[#allocation22] sm:$0xf]
        %v4216 = vrot.slane %v4212, 3
        %vm4219 = vcmask 1044480
        %v4220 = vrot.slane %v4211, 3
        %v4221 = vsel %vm4219, %v4220, %v4216
        %v4224 = vsel %vm4219, %v4216, %v4220
        %v4225 = vld [vmem:[%s39] sm:$0xff]
        %v4226 = vld [vmem:[%s39 + $0x8] sm:$0xff]
        %4228 = vset.pattern.permute.xlu0 0
        %4229 = vperm.xlu0 %4228, %v4225
        %v4230 = vpop.permute.xlu0 %4229
        %4233 = vset.pattern.permute.xlu0 0
        %4234 = vperm.xlu0 %4233, %v4226
        %v4235 = vpop.permute.xlu0 %4234
        %v4237 = vmul.f32 %v4224, %v4230
        %v4238 = vmul.f32 %v4221, %v4235
        %v4239 = vld [vmem:[%s41] sm:$0xff]
        %v4240 = vld [vmem:[%s41 + $0x8] sm:$0xff]
        %v4241 = vld [vmem:[%s41 + $0x10] sm:$0xff]
        %v4242 = vld [vmem:[%s41 + $0x18] sm:$0xff]
        %v4243 = vld [vmem:[%s41 + $0x20] sm:$0xff]
        %v4244 = vld [vmem:[%s41 + $0x28] sm:$0xff]
        %v4245 = vld [vmem:[%s41 + $0x30] sm:$0xff]
        %v4246 = vld [vmem:[%s41 + $0x38] sm:$0xff]
        %v4247 = vld [vmem:[%s41 + $0x40] sm:$0xff]
        %v4248 = vld [vmem:[%s41 + $0x48] sm:$0xff]
        %v4249 = vld [vmem:[%s41 + $0x50] sm:$0xff]
        %v4250 = vld [vmem:[%s41 + $0x58] sm:$0xff]
        %v4251 = vld [vmem:[%s41 + $0x60] sm:$0xff]
        %v4252 = vld [vmem:[%s41 + $0x68] sm:$0xff]
        %v4253 = vld [vmem:[%s41 + $0x70] sm:$0xff]
        %v4254 = vld [vmem:[%s41 + $0x78] sm:$0xff]
        %v4255 = vrot.slane %v4212, 4
        %vm4257 = vcmask 1043456
        %v4258 = vrot.slane %v4211, 4
        %v4259 = vsel %vm4257, %v4258, %v4255
        %v4262 = vsel %vm4257, %v4255, %v4258
        %s4263 = scalar_lea.vmem %s39, 16
        %v4264 = vld [vmem:[%s4263] sm:$0xff]
        %v4265 = vld [vmem:[%s4263 + $0x8] sm:$0xff]
        %4267 = vset.pattern.permute.xlu0 0
        %4268 = vperm.xlu0 %4267, %v4264
        %v4269 = vpop.permute.xlu0 %4268
        %4272 = vset.pattern.permute.xlu0 0
        %4273 = vperm.xlu0 %4272, %v4265
        %v4274 = vpop.permute.xlu0 %4273
        %v4276 = vmul.f32 %v4262, %v4269
        %v4277 = vmul.f32 %v4259, %v4274
        %s4278 = scalar_lea.vmem %s41, 128
        %v4279 = vld [vmem:[%s4278] sm:$0xff]
        %v4280 = vld [vmem:[%s4278 + $0x8] sm:$0xff]
        %v4281 = vld [vmem:[%s4278 + $0x10] sm:$0xff]
        %v4282 = vld [vmem:[%s4278 + $0x18] sm:$0xff]
        %v4283 = vld [vmem:[%s4278 + $0x20] sm:$0xff]
        %v4284 = vld [vmem:[%s4278 + $0x28] sm:$0xff]
        %v4285 = vld [vmem:[%s4278 + $0x30] sm:$0xff]
        %v4286 = vld [vmem:[%s4278 + $0x38] sm:$0xff]
        %v4287 = vld [vmem:[%s4278 + $0x40] sm:$0xff]
        %v4288 = vld [vmem:[%s4278 + $0x48] sm:$0xff]
        %v4289 = vld [vmem:[%s4278 + $0x50] sm:$0xff]
        %v4290 = vld [vmem:[%s4278 + $0x58] sm:$0xff]
        %v4291 = vld [vmem:[%s4278 + $0x60] sm:$0xff]
        %v4292 = vld [vmem:[%s4278 + $0x68] sm:$0xff]
        %v4293 = vld [vmem:[%s4278 + $0x70] sm:$0xff]
        %v4294 = vld [vmem:[%s4278 + $0x78] sm:$0xff]
        %v4296 = vsel %vm1525, %v4276, 0
        %v4299 = vsel %vm1525, %v4277, 0
        %4301 = vmatprep.subr.mxu0 %v4280
        %4302 = vmatpush1.msra.mxu0 %v4279
        %4303 = vmatprep.subr.mxu0 %v4284
        %4304 = vmatpush1.msra.mxu0 %v4283
        %4305 = vmatprep.subr.mxu0 %v4288
        %4306 = vmatpush1.msra.mxu0 %v4287
        %4307 = vmatprep.subr.mxu0 %v4292
        %4308 = vmatpush1.msra.mxu0 %v4291
        %4309 = vmatprep.subr.mxu0 0.0
        %4310 = vmatpush1.msra.mxu0 0.0
        %4311 = vmatprep.subr.mxu0 0.0
        %4312 = vmatpush1.msra.mxu0 0.0
        %4313 = vmatprep.subr.mxu0 0.0
        %4314 = vmatpush1.msra.mxu0 0.0
        %4315 = vmatprep.subr.mxu0 0.0
        %4316 = vmatpush1.msra.mxu0 0.0
        %4317 = vmatprep.subr.mxu0 0.0
        %4318 = vmatpush1.msra.mxu0 0.0
        %4319 = vmatprep.subr.mxu0 0.0
        %4320 = vmatpush1.msra.mxu0 0.0
        %4321 = vmatprep.subr.mxu0 0.0
        %4322 = vmatpush1.msra.mxu0 0.0
        %4323 = vmatprep.subr.mxu0 0.0
        %4324 = vmatpush1.msra.mxu0 0.0
        %4325 = vmatprep.subr.mxu0 0.0
        %4326 = vmatpush1.msra.mxu0 0.0
        %4327 = vmatprep.subr.mxu0 0.0
        %4328 = vmatpush1.msra.mxu0 0.0
        %4329 = vmatprep.subr.mxu0 0.0
        %4330 = vmatpush1.msra.mxu0 0.0
        %4331 = vmatprep.subr.mxu0 0.0
        %4332 = vmatpush1.msra.mxu0 0.0
        %4333 = vmatprep.subr.mxu0 0.0
        %4334 = vmatpush1.msra.mxu0 0.0
        %4335 = vmatprep.subr.mxu0 0.0
        %4336 = vmatpush1.msra.mxu0 0.0
        %4337 = vmatprep.subr.mxu0 0.0
        %4338 = vmatpush1.msra.mxu0 0.0
        %4339 = vmatprep.subr.mxu0 0.0
        %4340 = vmatpush1.msra.mxu0 0.0
        %4341 = vmatprep.subr.mxu0 0.0
        %4342 = vmatpush1.msra.mxu0 0.0
        %4343 = vmatprep.subr.mxu0 0.0
        %4344 = vmatpush1.msra.mxu0 0.0
        %4345 = vmatprep.subr.mxu0 0.0
        %4346 = vmatpush1.msra.mxu0 0.0
        %4347 = vmatprep.subr.mxu0 0.0
        %4348 = vmatpush1.msra.mxu0 0.0
        %4349 = vmatprep.subr.mxu0 0.0
        %4350 = vmatpush1.msra.mxu0 0.0
        %4351 = vmatprep.subr.mxu0 0.0
        %4352 = vmatpush1.msra.mxu0 0.0
        %4353 = vmatprep.subr.mxu0 0.0
        %4354 = vmatpush1.msra.mxu0 0.0
        %4355 = vmatprep.subr.mxu0 0.0
        %4356 = vmatpush1.msra.mxu0 0.0
        %4357 = vmatprep.subr.mxu0 0.0
        %4358 = vmatpush1.msra.mxu0 0.0
        %4359 = vmatprep.subr.mxu0 0.0
        %4360 = vmatpush1.msra.mxu0 0.0
        %4361 = vmatprep.subr.mxu0 0.0
        %4362 = vmatpush1.msra.mxu0 0.0
        %4363 = vmatprep.subr.mxu0 0.0
        %4364 = vmatpush1.msra.mxu0 0.0
        %4365 = vmatprep.mubr.f32.mxu0 0.0
        %4366 = vmatmul.mubr.f32.gmra.mrb[0].mxu0 %v4296
        %v4367 = vpop.f32.mrb[0].mxu0
        %v4368 = vadd.f32 0.0, %v4367
        %v4369 = vpop.f32.mrb[0].mxu0
        %v4370 = vadd.f32 0.0, %v4369
        %4371 = vmatprep.mubr.f32.mxu0 0.0
        %4372 = vmatmul.mubr.f32.gmra.mrb[0].mxu0 %v4299
        %v4373 = vpop.f32.mrb[0].mxu0
        %v4374 = vadd.f32 0.0, %v4373
        %v4375 = vpop.f32.mrb[0].mxu0
        %v4376 = vadd.f32 0.0, %v4375
        %4377 = vdwg.mxu0
        %4378 = vmatprep.subr.mxu0 %v4282
        %4379 = vmatpush1.msra.mxu0 %v4281
        %4380 = vmatprep.subr.mxu0 %v4286
        %4381 = vmatpush1.msra.mxu0 %v4285
        %4382 = vmatprep.subr.mxu0 %v4290
        %4383 = vmatpush1.msra.mxu0 %v4289
        %4384 = vmatprep.subr.mxu0 %v4294
        %4385 = vmatpush1.msra.mxu0 %v4293
        %4386 = vmatprep.subr.mxu0 0.0
        %4387 = vmatpush1.msra.mxu0 0.0
        %4388 = vmatprep.subr.mxu0 0.0
        %4389 = vmatpush1.msra.mxu0 0.0
        %4390 = vmatprep.subr.mxu0 0.0
        %4391 = vmatpush1.msra.mxu0 0.0
        %4392 = vmatprep.subr.mxu0 0.0
        %4393 = vmatpush1.msra.mxu0 0.0
        %4394 = vmatprep.subr.mxu0 0.0
        %4395 = vmatpush1.msra.mxu0 0.0
        %4396 = vmatprep.subr.mxu0 0.0
        %4397 = vmatpush1.msra.mxu0 0.0
        %4398 = vmatprep.subr.mxu0 0.0
        %4399 = vmatpush1.msra.mxu0 0.0
        %4400 = vmatprep.subr.mxu0 0.0
        %4401 = vmatpush1.msra.mxu0 0.0
        %4402 = vmatprep.subr.mxu0 0.0
        %4403 = vmatpush1.msra.mxu0 0.0
        %4404 = vmatprep.subr.mxu0 0.0
        %4405 = vmatpush1.msra.mxu0 0.0
        %4406 = vmatprep.subr.mxu0 0.0
        %4407 = vmatpush1.msra.mxu0 0.0
        %4408 = vmatprep.subr.mxu0 0.0
        %4409 = vmatpush1.msra.mxu0 0.0
        %4410 = vmatprep.subr.mxu0 0.0
        %4411 = vmatpush1.msra.mxu0 0.0
        %4412 = vmatprep.subr.mxu0 0.0
        %4413 = vmatpush1.msra.mxu0 0.0
        %4414 = vmatprep.subr.mxu0 0.0
        %4415 = vmatpush1.msra.mxu0 0.0
        %4416 = vmatprep.subr.mxu0 0.0
        %4417 = vmatpush1.msra.mxu0 0.0
        %4418 = vmatprep.subr.mxu0 0.0
        %4419 = vmatpush1.msra.mxu0 0.0
        %4420 = vmatprep.subr.mxu0 0.0
        %4421 = vmatpush1.msra.mxu0 0.0
        %4422 = vmatprep.subr.mxu0 0.0
        %4423 = vmatpush1.msra.mxu0 0.0
        %4424 = vmatprep.subr.mxu0 0.0
        %4425 = vmatpush1.msra.mxu0 0.0
        %4426 = vmatprep.subr.mxu0 0.0
        %4427 = vmatpush1.msra.mxu0 0.0
        %4428 = vmatprep.subr.mxu0 0.0
        %4429 = vmatpush1.msra.mxu0 0.0
        %4430 = vmatprep.subr.mxu0 0.0
        %4431 = vmatpush1.msra.mxu0 0.0
        %4432 = vmatprep.subr.mxu0 0.0
        %4433 = vmatpush1.msra.mxu0 0.0
        %4434 = vmatprep.subr.mxu0 0.0
        %4435 = vmatpush1.msra.mxu0 0.0
        %4436 = vmatprep.subr.mxu0 0.0
        %4437 = vmatpush1.msra.mxu0 0.0
        %4438 = vmatprep.subr.mxu0 0.0
        %4439 = vmatpush1.msra.mxu0 0.0
        %4440 = vmatprep.subr.mxu0 0.0
        %4441 = vmatpush1.msra.mxu0 0.0
        %4442 = vmatprep.mubr.f32.mxu0 0.0
        %4443 = vmatmul.mubr.f32.gmra.mrb[0].mxu0 %v4296
        %v4444 = vpop.f32.mrb[0].mxu0
        %v4445 = vadd.f32 0.0, %v4444
        %v4446 = vpop.f32.mrb[0].mxu0
        %v4447 = vadd.f32 0.0, %v4446
        %4448 = vmatprep.mubr.f32.mxu0 0.0
        %4449 = vmatmul.mubr.f32.gmra.mrb[0].mxu0 %v4299
        %v4450 = vpop.f32.mrb[0].mxu0
        %v4451 = vadd.f32 0.0, %v4450
        %v4452 = vpop.f32.mrb[0].mxu0
        %v4453 = vadd.f32 0.0, %v4452
        %4454 = vdwg.mxu0
        %v4456 = vsel %vm1525, %v4237, 0
        %v4459 = vsel %vm1525, %v4238, 0
        %4461 = vmatprep.subr.mxu0 %v4240
        %4462 = vmatpush1.msra.mxu0 %v4239
        %4463 = vmatprep.subr.mxu0 %v4244
        %4464 = vmatpush1.msra.mxu0 %v4243
        %4465 = vmatprep.subr.mxu0 %v4248
        %4466 = vmatpush1.msra.mxu0 %v4247
        %4467 = vmatprep.subr.mxu0 %v4252
        %4468 = vmatpush1.msra.mxu0 %v4251
        %4469 = vmatprep.subr.mxu0 0.0
        %4470 = vmatpush1.msra.mxu0 0.0
        %4471 = vmatprep.subr.mxu0 0.0
        %4472 = vmatpush1.msra.mxu0 0.0
        %4473 = vmatprep.subr.mxu0 0.0
        %4474 = vmatpush1.msra.mxu0 0.0
        %4475 = vmatprep.subr.mxu0 0.0
        %4476 = vmatpush1.msra.mxu0 0.0
        %4477 = vmatprep.subr.mxu0 0.0
        %4478 = vmatpush1.msra.mxu0 0.0
        %4479 = vmatprep.subr.mxu0 0.0
        %4480 = vmatpush1.msra.mxu0 0.0
        %4481 = vmatprep.subr.mxu0 0.0
        %4482 = vmatpush1.msra.mxu0 0.0
        %4483 = vmatprep.subr.mxu0 0.0
        %4484 = vmatpush1.msra.mxu0 0.0
        %4485 = vmatprep.subr.mxu0 0.0
        %4486 = vmatpush1.msra.mxu0 0.0
        %4487 = vmatprep.subr.mxu0 0.0
        %4488 = vmatpush1.msra.mxu0 0.0
        %4489 = vmatprep.subr.mxu0 0.0
        %4490 = vmatpush1.msra.mxu0 0.0
        %4491 = vmatprep.subr.mxu0 0.0
        %4492 = vmatpush1.msra.mxu0 0.0
        %4493 = vmatprep.subr.mxu0 0.0
        %4494 = vmatpush1.msra.mxu0 0.0
        %4495 = vmatprep.subr.mxu0 0.0
        %4496 = vmatpush1.msra.mxu0 0.0
        %4497 = vmatprep.subr.mxu0 0.0
        %4498 = vmatpush1.msra.mxu0 0.0
        %4499 = vmatprep.subr.mxu0 0.0
        %4500 = vmatpush1.msra.mxu0 0.0
        %4501 = vmatprep.subr.mxu0 0.0
        %4502 = vmatpush1.msra.mxu0 0.0
        %4503 = vmatprep.subr.mxu0 0.0
        %4504 = vmatpush1.msra.mxu0 0.0
        %4505 = vmatprep.subr.mxu0 0.0
        %4506 = vmatpush1.msra.mxu0 0.0
        %4507 = vmatprep.subr.mxu0 0.0
        %4508 = vmatpush1.msra.mxu0 0.0
        %4509 = vmatprep.subr.mxu0 0.0
        %4510 = vmatpush1.msra.mxu0 0.0
        %4511 = vmatprep.subr.mxu0 0.0
        %4512 = vmatpush1.msra.mxu0 0.0
        %4513 = vmatprep.subr.mxu0 0.0
        %4514 = vmatpush1.msra.mxu0 0.0
        %4515 = vmatprep.subr.mxu0 0.0
        %4516 = vmatpush1.msra.mxu0 0.0
        %4517 = vmatprep.subr.mxu0 0.0
        %4518 = vmatpush1.msra.mxu0 0.0
        %4519 = vmatprep.subr.mxu0 0.0
        %4520 = vmatpush1.msra.mxu0 0.0
        %4521 = vmatprep.subr.mxu0 0.0
        %4522 = vmatpush1.msra.mxu0 0.0
        %4523 = vmatprep.subr.mxu0 0.0
        %4524 = vmatpush1.msra.mxu0 0.0
        %4525 = vmatprep.mubr.f32.mxu0 0.0
        %4526 = vmatmul.mubr.f32.gmra.mrb[0].mxu0 %v4456
        %v4527 = vpop.f32.mrb[0].mxu0
        %v4528 = vadd.f32 %v4368, %v4527
        %v4529 = vpop.f32.mrb[0].mxu0
        %v4530 = vadd.f32 %v4370, %v4529
        %4531 = vmatprep.mubr.f32.mxu0 0.0
        %4532 = vmatmul.mubr.f32.gmra.mrb[0].mxu0 %v4459
        %v4533 = vpop.f32.mrb[0].mxu0
        %v4534 = vadd.f32 %v4374, %v4533
        %v4535 = vpop.f32.mrb[0].mxu0
        %v4536 = vadd.f32 %v4376, %v4535
        %4537 = vdwg.mxu0
        %4538 = vmatprep.subr.mxu0 %v4242
        %4539 = vmatpush1.msra.mxu0 %v4241
        %4540 = vmatprep.subr.mxu0 %v4246
        %4541 = vmatpush1.msra.mxu0 %v4245
        %4542 = vmatprep.subr.mxu0 %v4250
        %4543 = vmatpush1.msra.mxu0 %v4249
        %4544 = vmatprep.subr.mxu0 %v4254
        %4545 = vmatpush1.msra.mxu0 %v4253
        %4546 = vmatprep.subr.mxu0 0.0
        %4547 = vmatpush1.msra.mxu0 0.0
        %4548 = vmatprep.subr.mxu0 0.0
        %4549 = vmatpush1.msra.mxu0 0.0
        %4550 = vmatprep.subr.mxu0 0.0
        %4551 = vmatpush1.msra.mxu0 0.0
        %4552 = vmatprep.subr.mxu0 0.0
        %4553 = vmatpush1.msra.mxu0 0.0
        %4554 = vmatprep.subr.mxu0 0.0
        %4555 = vmatpush1.msra.mxu0 0.0
        %4556 = vmatprep.subr.mxu0 0.0
        %4557 = vmatpush1.msra.mxu0 0.0
        %4558 = vmatprep.subr.mxu0 0.0
        %4559 = vmatpush1.msra.mxu0 0.0
        %4560 = vmatprep.subr.mxu0 0.0
        %4561 = vmatpush1.msra.mxu0 0.0
        %4562 = vmatprep.subr.mxu0 0.0
        %4563 = vmatpush1.msra.mxu0 0.0
        %4564 = vmatprep.subr.mxu0 0.0
        %4565 = vmatpush1.msra.mxu0 0.0
        %4566 = vmatprep.subr.mxu0 0.0
        %4567 = vmatpush1.msra.mxu0 0.0
        %4568 = vmatprep.subr.mxu0 0.0
        %4569 = vmatpush1.msra.mxu0 0.0
        %4570 = vmatprep.subr.mxu0 0.0
        %4571 = vmatpush1.msra.mxu0 0.0
        %4572 = vmatprep.subr.mxu0 0.0
        %4573 = vmatpush1.msra.mxu0 0.0
        %4574 = vmatprep.subr.mxu0 0.0
        %4575 = vmatpush1.msra.mxu0 0.0
        %4576 = vmatprep.subr.mxu0 0.0
        %4577 = vmatpush1.msra.mxu0 0.0
        %4578 = vmatprep.subr.mxu0 0.0
        %4579 = vmatpush1.msra.mxu0 0.0
        %4580 = vmatprep.subr.mxu0 0.0
        %4581 = vmatpush1.msra.mxu0 0.0
        %4582 = vmatprep.subr.mxu0 0.0
        %4583 = vmatpush1.msra.mxu0 0.0
        %4584 = vmatprep.subr.mxu0 0.0
        %4585 = vmatpush1.msra.mxu0 0.0
        %4586 = vmatprep.subr.mxu0 0.0
        %4587 = vmatpush1.msra.mxu0 0.0
        %4588 = vmatprep.subr.mxu0 0.0
        %4589 = vmatpush1.msra.mxu0 0.0
        %4590 = vmatprep.subr.mxu0 0.0
        %4591 = vmatpush1.msra.mxu0 0.0
        %4592 = vmatprep.subr.mxu0 0.0
        %4593 = vmatpush1.msra.mxu0 0.0
        %4594 = vmatprep.subr.mxu0 0.0
        %4595 = vmatpush1.msra.mxu0 0.0
        %4596 = vmatprep.subr.mxu0 0.0
        %4597 = vmatpush1.msra.mxu0 0.0
        %4598 = vmatprep.subr.mxu0 0.0
        %4599 = vmatpush1.msra.mxu0 0.0
        %4600 = vmatprep.subr.mxu0 0.0
        %4601 = vmatpush1.msra.mxu0 0.0
        %4602 = vmatprep.mubr.f32.mxu0 0.0
        %4603 = vmatmul.mubr.f32.gmra.mrb[0].mxu0 %v4456
        %v4604 = vpop.f32.mrb[0].mxu0
        %v4605 = vadd.f32 %v4445, %v4604
        %v4606 = vpop.f32.mrb[0].mxu0
        %v4607 = vadd.f32 %v4447, %v4606
        %4608 = vmatprep.mubr.f32.mxu0 0.0
        %4609 = vmatmul.mubr.f32.gmra.mrb[0].mxu0 %v4459
        %v4610 = vpop.f32.mrb[0].mxu0
        %v4611 = vadd.f32 %v4451, %v4610
        %v4612 = vpop.f32.mrb[0].mxu0
        %v4613 = vadd.f32 %v4453, %v4612
        %4614 = vdwg.mxu0
        %v4615 = vrot.slane %v4212, 5
        %vm4617 = vcmask 1042432
        %v4618 = vrot.slane %v4211, 5
        %v4619 = vsel %vm4617, %v4618, %v4615
        %v4622 = vsel %vm4617, %v4615, %v4618
        %s4623 = scalar_lea.vmem %s39, 32
        %v4624 = vld [vmem:[%s4623] sm:$0xff]
        %v4625 = vld [vmem:[%s4623 + $0x8] sm:$0xff]
        %4627 = vset.pattern.permute.xlu0 0
        %4628 = vperm.xlu0 %4627, %v4624
        %v4629 = vpop.permute.xlu0 %4628
        %4632 = vset.pattern.permute.xlu0 0
        %4633 = vperm.xlu0 %4632, %v4625
        %v4634 = vpop.permute.xlu0 %4633
        %v4636 = vmul.f32 %v4622, %v4629
        %v4637 = vmul.f32 %v4619, %v4634
        %s4638 = scalar_lea.vmem %s41, 256
        %v4639 = vld [vmem:[%s4638] sm:$0xff]
        %v4640 = vld [vmem:[%s4638 + $0x8] sm:$0xff]
        %v4641 = vld [vmem:[%s4638 + $0x10] sm:$0xff]
        %v4642 = vld [vmem:[%s4638 + $0x18] sm:$0xff]
        %v4643 = vld [vmem:[%s4638 + $0x20] sm:$0xff]
        %v4644 = vld [vmem:[%s4638 + $0x28] sm:$0xff]
        %v4645 = vld [vmem:[%s4638 + $0x30] sm:$0xff]
        %v4646 = vld [vmem:[%s4638 + $0x38] sm:$0xff]
        %v4647 = vld [vmem:[%s4638 + $0x40] sm:$0xff]
        %v4648 = vld [vmem:[%s4638 + $0x48] sm:$0xff]
        %v4649 = vld [vmem:[%s4638 + $0x50] sm:$0xff]
        %v4650 = vld [vmem:[%s4638 + $0x58] sm:$0xff]
        %v4651 = vld [vmem:[%s4638 + $0x60] sm:$0xff]
        %v4652 = vld [vmem:[%s4638 + $0x68] sm:$0xff]
        %v4653 = vld [vmem:[%s4638 + $0x70] sm:$0xff]
        %v4654 = vld [vmem:[%s4638 + $0x78] sm:$0xff]
        %v4656 = vsel %vm1525, %v4636, 0
        %v4659 = vsel %vm1525, %v4637, 0
        %4661 = vmatprep.subr.mxu0 %v4640
        %4662 = vmatpush1.msra.mxu0 %v4639
        %4663 = vmatprep.subr.mxu0 %v4644
        %4664 = vmatpush1.msra.mxu0 %v4643
        %4665 = vmatprep.subr.mxu0 %v4648
        %4666 = vmatpush1.msra.mxu0 %v4647
        %4667 = vmatprep.subr.mxu0 %v4652
        %4668 = vmatpush1.msra.mxu0 %v4651
        %4669 = vmatprep.subr.mxu0 0.0
        %4670 = vmatpush1.msra.mxu0 0.0
        %4671 = vmatprep.subr.mxu0 0.0
        %4672 = vmatpush1.msra.mxu0 0.0
        %4673 = vmatprep.subr.mxu0 0.0
        %4674 = vmatpush1.msra.mxu0 0.0
        %4675 = vmatprep.subr.mxu0 0.0
        %4676 = vmatpush1.msra.mxu0 0.0
        %4677 = vmatprep.subr.mxu0 0.0
        %4678 = vmatpush1.msra.mxu0 0.0
        %4679 = vmatprep.subr.mxu0 0.0
        %4680 = vmatpush1.msra.mxu0 0.0
        %4681 = vmatprep.subr.mxu0 0.0
        %4682 = vmatpush1.msra.mxu0 0.0
        %4683 = vmatprep.subr.mxu0 0.0
        %4684 = vmatpush1.msra.mxu0 0.0
        %4685 = vmatprep.subr.mxu0 0.0
        %4686 = vmatpush1.msra.mxu0 0.0
        %4687 = vmatprep.subr.mxu0 0.0
        %4688 = vmatpush1.msra.mxu0 0.0
        %4689 = vmatprep.subr.mxu0 0.0
        %4690 = vmatpush1.msra.mxu0 0.0
        %4691 = vmatprep.subr.mxu0 0.0
        %4692 = vmatpush1.msra.mxu0 0.0
        %4693 = vmatprep.subr.mxu0 0.0
        %4694 = vmatpush1.msra.mxu0 0.0
        %4695 = vmatprep.subr.mxu0 0.0
        %4696 = vmatpush1.msra.mxu0 0.0
        %4697 = vmatprep.subr.mxu0 0.0
        %4698 = vmatpush1.msra.mxu0 0.0
        %4699 = vmatprep.subr.mxu0 0.0
        %4700 = vmatpush1.msra.mxu0 0.0
        %4701 = vmatprep.subr.mxu0 0.0
        %4702 = vmatpush1.msra.mxu0 0.0
        %4703 = vmatprep.subr.mxu0 0.0
        %4704 = vmatpush1.msra.mxu0 0.0
        %4705 = vmatprep.subr.mxu0 0.0
        %4706 = vmatpush1.msra.mxu0 0.0
        %4707 = vmatprep.subr.mxu0 0.0
        %4708 = vmatpush1.msra.mxu0 0.0
        %4709 = vmatprep.subr.mxu0 0.0
        %4710 = vmatpush1.msra.mxu0 0.0
        %4711 = vmatprep.subr.mxu0 0.0
        %4712 = vmatpush1.msra.mxu0 0.0
        %4713 = vmatprep.subr.mxu0 0.0
        %4714 = vmatpush1.msra.mxu0 0.0
        %4715 = vmatprep.subr.mxu0 0.0
        %4716 = vmatpush1.msra.mxu0 0.0
        %4717 = vmatprep.subr.mxu0 0.0
        %4718 = vmatpush1.msra.mxu0 0.0
        %4719 = vmatprep.subr.mxu0 0.0
        %4720 = vmatpush1.msra.mxu0 0.0
        %4721 = vmatprep.subr.mxu0 0.0
        %4722 = vmatpush1.msra.mxu0 0.0
        %4723 = vmatprep.subr.mxu0 0.0
        %4724 = vmatpush1.msra.mxu0 0.0
        %4725 = vmatprep.mubr.f32.mxu0 0.0
        %4726 = vmatmul.mubr.f32.gmra.mrb[0].mxu0 %v4656
        %v4727 = vpop.f32.mrb[0].mxu0
        %v4728 = vadd.f32 0.0, %v4727
        %v4729 = vpop.f32.mrb[0].mxu0
        %v4730 = vadd.f32 0.0, %v4729
        %4731 = vmatprep.mubr.f32.mxu0 0.0
        %4732 = vmatmul.mubr.f32.gmra.mrb[0].mxu0 %v4659
        %v4733 = vpop.f32.mrb[0].mxu0
        %v4734 = vadd.f32 0.0, %v4733
        %v4735 = vpop.f32.mrb[0].mxu0
        %v4736 = vadd.f32 0.0, %v4735
        %4737 = vdwg.mxu0
        %4738 = vmatprep.subr.mxu0 %v4642
        %4739 = vmatpush1.msra.mxu0 %v4641
        %4740 = vmatprep.subr.mxu0 %v4646
        %4741 = vmatpush1.msra.mxu0 %v4645
        %4742 = vmatprep.subr.mxu0 %v4650
        %4743 = vmatpush1.msra.mxu0 %v4649
        %4744 = vmatprep.subr.mxu0 %v4654
        %4745 = vmatpush1.msra.mxu0 %v4653
        %4746 = vmatprep.subr.mxu0 0.0
        %4747 = vmatpush1.msra.mxu0 0.0
        %4748 = vmatprep.subr.mxu0 0.0
        %4749 = vmatpush1.msra.mxu0 0.0
        %4750 = vmatprep.subr.mxu0 0.0
        %4751 = vmatpush1.msra.mxu0 0.0
        %4752 = vmatprep.subr.mxu0 0.0
        %4753 = vmatpush1.msra.mxu0 0.0
        %4754 = vmatprep.subr.mxu0 0.0
        %4755 = vmatpush1.msra.mxu0 0.0
        %4756 = vmatprep.subr.mxu0 0.0
        %4757 = vmatpush1.msra.mxu0 0.0
        %4758 = vmatprep.subr.mxu0 0.0
        %4759 = vmatpush1.msra.mxu0 0.0
        %4760 = vmatprep.subr.mxu0 0.0
        %4761 = vmatpush1.msra.mxu0 0.0
        %4762 = vmatprep.subr.mxu0 0.0
        %4763 = vmatpush1.msra.mxu0 0.0
        %4764 = vmatprep.subr.mxu0 0.0
        %4765 = vmatpush1.msra.mxu0 0.0
        %4766 = vmatprep.subr.mxu0 0.0
        %4767 = vmatpush1.msra.mxu0 0.0
        %4768 = vmatprep.subr.mxu0 0.0
        %4769 = vmatpush1.msra.mxu0 0.0
        %4770 = vmatprep.subr.mxu0 0.0
        %4771 = vmatpush1.msra.mxu0 0.0
        %4772 = vmatprep.subr.mxu0 0.0
        %4773 = vmatpush1.msra.mxu0 0.0
        %4774 = vmatprep.subr.mxu0 0.0
        %4775 = vmatpush1.msra.mxu0 0.0
        %4776 = vmatprep.subr.mxu0 0.0
        %4777 = vmatpush1.msra.mxu0 0.0
        %4778 = vmatprep.subr.mxu0 0.0
        %4779 = vmatpush1.msra.mxu0 0.0
        %4780 = vmatprep.subr.mxu0 0.0
        %4781 = vmatpush1.msra.mxu0 0.0
        %4782 = vmatprep.subr.mxu0 0.0
        %4783 = vmatpush1.msra.mxu0 0.0
        %4784 = vmatprep.subr.mxu0 0.0
        %4785 = vmatpush1.msra.mxu0 0.0
        %4786 = vmatprep.subr.mxu0 0.0
        %4787 = vmatpush1.msra.mxu0 0.0
        %4788 = vmatprep.subr.mxu0 0.0
        %4789 = vmatpush1.msra.mxu0 0.0
        %4790 = vmatprep.subr.mxu0 0.0
        %4791 = vmatpush1.msra.mxu0 0.0
        %4792 = vmatprep.subr.mxu0 0.0
        %4793 = vmatpush1.msra.mxu0 0.0
        %4794 = vmatprep.subr.mxu0 0.0
        %4795 = vmatpush1.msra.mxu0 0.0
        %4796 = vmatprep.subr.mxu0 0.0
        %4797 = vmatpush1.msra.mxu0 0.0
        %4798 = vmatprep.subr.mxu0 0.0
        %4799 = vmatpush1.msra.mxu0 0.0
        %4800 = vmatprep.subr.mxu0 0.0
        %4801 = vmatpush1.msra.mxu0 0.0
        %4802 = vmatprep.mubr.f32.mxu0 0.0
        %4803 = vmatmul.mubr.f32.gmra.mrb[0].mxu0 %v4656
        %v4804 = vpop.f32.mrb[0].mxu0
        %v4805 = vadd.f32 0.0, %v4804
        %v4806 = vpop.f32.mrb[0].mxu0
        %v4807 = vadd.f32 0.0, %v4806
        %4808 = vmatprep.mubr.f32.mxu0 0.0
        %4809 = vmatmul.mubr.f32.gmra.mrb[0].mxu0 %v4659
        %v4810 = vpop.f32.mrb[0].mxu0
        %v4811 = vadd.f32 0.0, %v4810
        %v4812 = vpop.f32.mrb[0].mxu0
        %v4813 = vadd.f32 0.0, %v4812
        %4814 = vdwg.mxu0
        %v4815 = vadd.f32 %v4528, %v4728
        %v4816 = vadd.f32 %v4530, %v4730
        %v4817 = vadd.f32 %v4605, %v4805
        %v4818 = vadd.f32 %v4607, %v4807
        %v4819 = vadd.f32 %v4534, %v4734
        %v4820 = vadd.f32 %v4536, %v4736
        %v4821 = vadd.f32 %v4611, %v4811
        %v4822 = vadd.f32 %v4613, %v4813
        %v4823 = vrot.slane %v4212, 7
        %vm4825 = vcmask 1040384
        %v4826 = vrot.slane %v4211, 7
        %v4827 = vsel %vm4825, %v4826, %v4823
        %v4830 = vsel %vm4825, %v4823, %v4826
        %s4831 = scalar_lea.vmem %s39, 48
        %v4832 = vld [vmem:[%s4831] sm:$0xff]
        %v4833 = vld [vmem:[%s4831 + $0x8] sm:$0xff]
        %4835 = vset.pattern.permute.xlu0 0
        %4836 = vperm.xlu0 %4835, %v4832
        %v4837 = vpop.permute.xlu0 %4836
        %4840 = vset.pattern.permute.xlu0 0
        %4841 = vperm.xlu0 %4840, %v4833
        %v4842 = vpop.permute.xlu0 %4841
        %v4844 = vmul.f32 %v4830, %v4837
        %v4845 = vmul.f32 %v4827, %v4842
        %s4846 = scalar_lea.vmem %s41, 384
        %v4847 = vld [vmem:[%s4846] sm:$0xff]
        %v4848 = vld [vmem:[%s4846 + $0x8] sm:$0xff]
        %v4849 = vld [vmem:[%s4846 + $0x10] sm:$0xff]
        %v4850 = vld [vmem:[%s4846 + $0x18] sm:$0xff]
        %v4851 = vld [vmem:[%s4846 + $0x20] sm:$0xff]
        %v4852 = vld [vmem:[%s4846 + $0x28] sm:$0xff]
        %v4853 = vld [vmem:[%s4846 + $0x30] sm:$0xff]
        %v4854 = vld [vmem:[%s4846 + $0x38] sm:$0xff]
        %v4855 = vld [vmem:[%s4846 + $0x40] sm:$0xff]
        %v4856 = vld [vmem:[%s4846 + $0x48] sm:$0xff]
        %v4857 = vld [vmem:[%s4846 + $0x50] sm:$0xff]
        %v4858 = vld [vmem:[%s4846 + $0x58] sm:$0xff]
        %v4859 = vld [vmem:[%s4846 + $0x60] sm:$0xff]
        %v4860 = vld [vmem:[%s4846 + $0x68] sm:$0xff]
        %v4861 = vld [vmem:[%s4846 + $0x70] sm:$0xff]
        %v4862 = vld [vmem:[%s4846 + $0x78] sm:$0xff]
        %v4864 = vsel %vm1525, %v4844, 0
        %v4867 = vsel %vm1525, %v4845, 0
        %4869 = vmatprep.subr.mxu0 %v4848
        %4870 = vmatpush1.msra.mxu0 %v4847
        %4871 = vmatprep.subr.mxu0 %v4852
        %4872 = vmatpush1.msra.mxu0 %v4851
        %4873 = vmatprep.subr.mxu0 %v4856
        %4874 = vmatpush1.msra.mxu0 %v4855
        %4875 = vmatprep.subr.mxu0 %v4860
        %4876 = vmatpush1.msra.mxu0 %v4859
        %4877 = vmatprep.subr.mxu0 0.0
        %4878 = vmatpush1.msra.mxu0 0.0
        %4879 = vmatprep.subr.mxu0 0.0
        %4880 = vmatpush1.msra.mxu0 0.0
        %4881 = vmatprep.subr.mxu0 0.0
        %4882 = vmatpush1.msra.mxu0 0.0
        %4883 = vmatprep.subr.mxu0 0.0
        %4884 = vmatpush1.msra.mxu0 0.0
        %4885 = vmatprep.subr.mxu0 0.0
        %4886 = vmatpush1.msra.mxu0 0.0
        %4887 = vmatprep.subr.mxu0 0.0
        %4888 = vmatpush1.msra.mxu0 0.0
        %4889 = vmatprep.subr.mxu0 0.0
        %4890 = vmatpush1.msra.mxu0 0.0
        %4891 = vmatprep.subr.mxu0 0.0
        %4892 = vmatpush1.msra.mxu0 0.0
        %4893 = vmatprep.subr.mxu0 0.0
        %4894 = vmatpush1.msra.mxu0 0.0
        %4895 = vmatprep.subr.mxu0 0.0
        %4896 = vmatpush1.msra.mxu0 0.0
        %4897 = vmatprep.subr.mxu0 0.0
        %4898 = vmatpush1.msra.mxu0 0.0
        %4899 = vmatprep.subr.mxu0 0.0
        %4900 = vmatpush1.msra.mxu0 0.0
        %4901 = vmatprep.subr.mxu0 0.0
        %4902 = vmatpush1.msra.mxu0 0.0
        %4903 = vmatprep.subr.mxu0 0.0
        %4904 = vmatpush1.msra.mxu0 0.0
        %4905 = vmatprep.subr.mxu0 0.0
        %4906 = vmatpush1.msra.mxu0 0.0
        %4907 = vmatprep.subr.mxu0 0.0
        %4908 = vmatpush1.msra.mxu0 0.0
        %4909 = vmatprep.subr.mxu0 0.0
        %4910 = vmatpush1.msra.mxu0 0.0
        %4911 = vmatprep.subr.mxu0 0.0
        %4912 = vmatpush1.msra.mxu0 0.0
        %4913 = vmatprep.subr.mxu0 0.0
        %4914 = vmatpush1.msra.mxu0 0.0
        %4915 = vmatprep.subr.mxu0 0.0
        %4916 = vmatpush1.msra.mxu0 0.0
        %4917 = vmatprep.subr.mxu0 0.0
        %4918 = vmatpush1.msra.mxu0 0.0
        %4919 = vmatprep.subr.mxu0 0.0
        %4920 = vmatpush1.msra.mxu0 0.0
        %4921 = vmatprep.subr.mxu0 0.0
        %4922 = vmatpush1.msra.mxu0 0.0
        %4923 = vmatprep.subr.mxu0 0.0
        %4924 = vmatpush1.msra.mxu0 0.0
        %4925 = vmatprep.subr.mxu0 0.0
        %4926 = vmatpush1.msra.mxu0 0.0
        %4927 = vmatprep.subr.mxu0 0.0
        %4928 = vmatpush1.msra.mxu0 0.0
        %4929 = vmatprep.subr.mxu0 0.0
        %4930 = vmatpush1.msra.mxu0 0.0
        %4931 = vmatprep.subr.mxu0 0.0
        %4932 = vmatpush1.msra.mxu0 0.0
        %4933 = vmatprep.mubr.f32.mxu0 0.0
        %4934 = vmatmul.mubr.f32.gmra.mrb[0].mxu0 %v4864
        %v4935 = vpop.f32.mrb[0].mxu0
        %v4936 = vadd.f32 0.0, %v4935
        %v4937 = vpop.f32.mrb[0].mxu0
        %v4938 = vadd.f32 0.0, %v4937
        %4939 = vmatprep.mubr.f32.mxu0 0.0
        %4940 = vmatmul.mubr.f32.gmra.mrb[0].mxu0 %v4867
        %v4941 = vpop.f32.mrb[0].mxu0
        %v4942 = vadd.f32 0.0, %v4941
        %v4943 = vpop.f32.mrb[0].mxu0
        %v4944 = vadd.f32 0.0, %v4943
        %4945 = vdwg.mxu0
        %4946 = vmatprep.subr.mxu0 %v4850
        %4947 = vmatpush1.msra.mxu0 %v4849
        %4948 = vmatprep.subr.mxu0 %v4854
        %4949 = vmatpush1.msra.mxu0 %v4853
        %4950 = vmatprep.subr.mxu0 %v4858
        %4951 = vmatpush1.msra.mxu0 %v4857
        %4952 = vmatprep.subr.mxu0 %v4862
        %4953 = vmatpush1.msra.mxu0 %v4861
        %4954 = vmatprep.subr.mxu0 0.0
        %4955 = vmatpush1.msra.mxu0 0.0
        %4956 = vmatprep.subr.mxu0 0.0
        %4957 = vmatpush1.msra.mxu0 0.0
        %4958 = vmatprep.subr.mxu0 0.0
        %4959 = vmatpush1.msra.mxu0 0.0
        %4960 = vmatprep.subr.mxu0 0.0
        %4961 = vmatpush1.msra.mxu0 0.0
        %4962 = vmatprep.subr.mxu0 0.0
        %4963 = vmatpush1.msra.mxu0 0.0
        %4964 = vmatprep.subr.mxu0 0.0
        %4965 = vmatpush1.msra.mxu0 0.0
        %4966 = vmatprep.subr.mxu0 0.0
        %4967 = vmatpush1.msra.mxu0 0.0
        %4968 = vmatprep.subr.mxu0 0.0
        %4969 = vmatpush1.msra.mxu0 0.0
        %4970 = vmatprep.subr.mxu0 0.0
        %4971 = vmatpush1.msra.mxu0 0.0
        %4972 = vmatprep.subr.mxu0 0.0
        %4973 = vmatpush1.msra.mxu0 0.0
        %4974 = vmatprep.subr.mxu0 0.0
        %4975 = vmatpush1.msra.mxu0 0.0
        %4976 = vmatprep.subr.mxu0 0.0
        %4977 = vmatpush1.msra.mxu0 0.0
        %4978 = vmatprep.subr.mxu0 0.0
        %4979 = vmatpush1.msra.mxu0 0.0
        %4980 = vmatprep.subr.mxu0 0.0
        %4981 = vmatpush1.msra.mxu0 0.0
        %4982 = vmatprep.subr.mxu0 0.0
        %4983 = vmatpush1.msra.mxu0 0.0
        %4984 = vmatprep.subr.mxu0 0.0
        %4985 = vmatpush1.msra.mxu0 0.0
        %4986 = vmatprep.subr.mxu0 0.0
        %4987 = vmatpush1.msra.mxu0 0.0
        %4988 = vmatprep.subr.mxu0 0.0
        %4989 = vmatpush1.msra.mxu0 0.0
        %4990 = vmatprep.subr.mxu0 0.0
        %4991 = vmatpush1.msra.mxu0 0.0
        %4992 = vmatprep.subr.mxu0 0.0
        %4993 = vmatpush1.msra.mxu0 0.0
        %4994 = vmatprep.subr.mxu0 0.0
        %4995 = vmatpush1.msra.mxu0 0.0
        %4996 = vmatprep.subr.mxu0 0.0
        %4997 = vmatpush1.msra.mxu0 0.0
        %4998 = vmatprep.subr.mxu0 0.0
        %4999 = vmatpush1.msra.mxu0 0.0
        %5000 = vmatprep.subr.mxu0 0.0
        %5001 = vmatpush1.msra.mxu0 0.0
        %5002 = vmatprep.subr.mxu0 0.0
        %5003 = vmatpush1.msra.mxu0 0.0
        %5004 = vmatprep.subr.mxu0 0.0
        %5005 = vmatpush1.msra.mxu0 0.0
        %5006 = vmatprep.subr.mxu0 0.0
        %5007 = vmatpush1.msra.mxu0 0.0
        %5008 = vmatprep.subr.mxu0 0.0
        %5009 = vmatpush1.msra.mxu0 0.0
        %5010 = vmatprep.mubr.f32.mxu0 0.0
        %5011 = vmatmul.mubr.f32.gmra.mrb[0].mxu0 %v4864
        %v5012 = vpop.f32.mrb[0].mxu0
        %v5013 = vadd.f32 0.0, %v5012
        %v5014 = vpop.f32.mrb[0].mxu0
        %v5015 = vadd.f32 0.0, %v5014
        %5016 = vmatprep.mubr.f32.mxu0 0.0
        %5017 = vmatmul.mubr.f32.gmra.mrb[0].mxu0 %v4867
        %v5018 = vpop.f32.mrb[0].mxu0
        %v5019 = vadd.f32 0.0, %v5018
        %v5020 = vpop.f32.mrb[0].mxu0
        %v5021 = vadd.f32 0.0, %v5020
        %5022 = vdwg.mxu0
        %v5023 = vadd.f32 %v4815, %v4936
        %v5024 = vadd.f32 %v4816, %v4938
        %v5025 = vadd.f32 %v4817, %v5013
        %v5026 = vadd.f32 %v4818, %v5015
        %v5027 = vadd.f32 %v4819, %v4942
        %v5028 = vadd.f32 %v4820, %v4944
        %v5029 = vadd.f32 %v4821, %v5019
        %v5030 = vadd.f32 %v4822, %v5021
        %s5031 = scalar_lea.vmem %s41, 512
        %v5032 = vld [vmem:[%s5031] sm:$0xff]
        %v5033 = vld [vmem:[%s5031 + $0x8] sm:$0xff]
        %v5034 = vld [vmem:[%s5031 + $0x10] sm:$0xff]
        %v5035 = vld [vmem:[%s5031 + $0x18] sm:$0xff]
        %v5036 = vld [vmem:[%s5031 + $0x20] sm:$0xff]
        %v5037 = vld [vmem:[%s5031 + $0x28] sm:$0xff]
        %v5038 = vld [vmem:[%s5031 + $0x30] sm:$0xff]
        %v5039 = vld [vmem:[%s5031 + $0x38] sm:$0xff]
        %v5040 = vld [vmem:[%s5031 + $0x40] sm:$0xff]
        %v5041 = vld [vmem:[%s5031 + $0x48] sm:$0xff]
        %v5042 = vld [vmem:[%s5031 + $0x50] sm:$0xff]
        %v5043 = vld [vmem:[%s5031 + $0x58] sm:$0xff]
        %v5044 = vld [vmem:[%s5031 + $0x60] sm:$0xff]
        %v5045 = vld [vmem:[%s5031 + $0x68] sm:$0xff]
        %v5046 = vld [vmem:[%s5031 + $0x70] sm:$0xff]
        %v5047 = vld [vmem:[%s5031 + $0x78] sm:$0xff]
        %v5048 = vsel %vm1525, %v4211, 0
        %v5050 = vsel %vm1525, %v4212, 0
        %5052 = vmatprep.subr.mxu0 %v5033
        %5053 = vmatpush1.msra.mxu0 %v5032
        %5054 = vmatprep.subr.mxu0 %v5037
        %5055 = vmatpush1.msra.mxu0 %v5036
        %5056 = vmatprep.subr.mxu0 %v5041
        %5057 = vmatpush1.msra.mxu0 %v5040
        %5058 = vmatprep.subr.mxu0 %v5045
        %5059 = vmatpush1.msra.mxu0 %v5044
        %5060 = vmatprep.subr.mxu0 0.0
        %5061 = vmatpush1.msra.mxu0 0.0
        %5062 = vmatprep.subr.mxu0 0.0
        %5063 = vmatpush1.msra.mxu0 0.0
        %5064 = vmatprep.subr.mxu0 0.0
        %5065 = vmatpush1.msra.mxu0 0.0
        %5066 = vmatprep.subr.mxu0 0.0
        %5067 = vmatpush1.msra.mxu0 0.0
        %5068 = vmatprep.subr.mxu0 0.0
        %5069 = vmatpush1.msra.mxu0 0.0
        %5070 = vmatprep.subr.mxu0 0.0
        %5071 = vmatpush1.msra.mxu0 0.0
        %5072 = vmatprep.subr.mxu0 0.0
        %5073 = vmatpush1.msra.mxu0 0.0
        %5074 = vmatprep.subr.mxu0 0.0
        %5075 = vmatpush1.msra.mxu0 0.0
        %5076 = vmatprep.subr.mxu0 0.0
        %5077 = vmatpush1.msra.mxu0 0.0
        %5078 = vmatprep.subr.mxu0 0.0
        %5079 = vmatpush1.msra.mxu0 0.0
        %5080 = vmatprep.subr.mxu0 0.0
        %5081 = vmatpush1.msra.mxu0 0.0
        %5082 = vmatprep.subr.mxu0 0.0
        %5083 = vmatpush1.msra.mxu0 0.0
        %5084 = vmatprep.subr.mxu0 0.0
        %5085 = vmatpush1.msra.mxu0 0.0
        %5086 = vmatprep.subr.mxu0 0.0
        %5087 = vmatpush1.msra.mxu0 0.0
        %5088 = vmatprep.subr.mxu0 0.0
        %5089 = vmatpush1.msra.mxu0 0.0
        %5090 = vmatprep.subr.mxu0 0.0
        %5091 = vmatpush1.msra.mxu0 0.0
        %5092 = vmatprep.subr.mxu0 0.0
        %5093 = vmatpush1.msra.mxu0 0.0
        %5094 = vmatprep.subr.mxu0 0.0
        %5095 = vmatpush1.msra.mxu0 0.0
        %5096 = vmatprep.subr.mxu0 0.0
        %5097 = vmatpush1.msra.mxu0 0.0
        %5098 = vmatprep.subr.mxu0 0.0
        %5099 = vmatpush1.msra.mxu0 0.0
        %5100 = vmatprep.subr.mxu0 0.0
        %5101 = vmatpush1.msra.mxu0 0.0
        %5102 = vmatprep.subr.mxu0 0.0
        %5103 = vmatpush1.msra.mxu0 0.0
        %5104 = vmatprep.subr.mxu0 0.0
        %5105 = vmatpush1.msra.mxu0 0.0
        %5106 = vmatprep.subr.mxu0 0.0
        %5107 = vmatpush1.msra.mxu0 0.0
        %5108 = vmatprep.subr.mxu0 0.0
        %5109 = vmatpush1.msra.mxu0 0.0
        %5110 = vmatprep.subr.mxu0 0.0
        %5111 = vmatpush1.msra.mxu0 0.0
        %5112 = vmatprep.subr.mxu0 0.0
        %5113 = vmatpush1.msra.mxu0 0.0
        %5114 = vmatprep.subr.mxu0 0.0
        %5115 = vmatpush1.msra.mxu0 0.0
        %5116 = vmatprep.mubr.f32.mxu0 0.0
        %5117 = vmatmul.mubr.f32.gmra.mrb[0].mxu0 %v5048
        %v5118 = vpop.f32.mrb[0].mxu0
        %v5119 = vadd.f32 0.0, %v5118
        %v5120 = vpop.f32.mrb[0].mxu0
        %v5121 = vadd.f32 0.0, %v5120
        %5122 = vmatprep.mubr.f32.mxu0 0.0
        %5123 = vmatmul.mubr.f32.gmra.mrb[0].mxu0 %v5050
        %v5124 = vpop.f32.mrb[0].mxu0
        %v5125 = vadd.f32 0.0, %v5124
        %v5126 = vpop.f32.mrb[0].mxu0
        %v5127 = vadd.f32 0.0, %v5126
        %5128 = vdwg.mxu0
        %5129 = vmatprep.subr.mxu0 %v5035
        %5130 = vmatpush1.msra.mxu0 %v5034
        %5131 = vmatprep.subr.mxu0 %v5039
        %5132 = vmatpush1.msra.mxu0 %v5038
        %5133 = vmatprep.subr.mxu0 %v5043
        %5134 = vmatpush1.msra.mxu0 %v5042
        %5135 = vmatprep.subr.mxu0 %v5047
        %5136 = vmatpush1.msra.mxu0 %v5046
        %5137 = vmatprep.subr.mxu0 0.0
        %5138 = vmatpush1.msra.mxu0 0.0
        %5139 = vmatprep.subr.mxu0 0.0
        %5140 = vmatpush1.msra.mxu0 0.0
        %5141 = vmatprep.subr.mxu0 0.0
        %5142 = vmatpush1.msra.mxu0 0.0
        %5143 = vmatprep.subr.mxu0 0.0
        %5144 = vmatpush1.msra.mxu0 0.0
        %5145 = vmatprep.subr.mxu0 0.0
        %5146 = vmatpush1.msra.mxu0 0.0
        %5147 = vmatprep.subr.mxu0 0.0
        %5148 = vmatpush1.msra.mxu0 0.0
        %5149 = vmatprep.subr.mxu0 0.0
        %5150 = vmatpush1.msra.mxu0 0.0
        %5151 = vmatprep.subr.mxu0 0.0
        %5152 = vmatpush1.msra.mxu0 0.0
        %5153 = vmatprep.subr.mxu0 0.0
        %5154 = vmatpush1.msra.mxu0 0.0
        %5155 = vmatprep.subr.mxu0 0.0
        %5156 = vmatpush1.msra.mxu0 0.0
        %5157 = vmatprep.subr.mxu0 0.0
        %5158 = vmatpush1.msra.mxu0 0.0
        %5159 = vmatprep.subr.mxu0 0.0
        %5160 = vmatpush1.msra.mxu0 0.0
        %5161 = vmatprep.subr.mxu0 0.0
        %5162 = vmatpush1.msra.mxu0 0.0
        %5163 = vmatprep.subr.mxu0 0.0
        %5164 = vmatpush1.msra.mxu0 0.0
        %5165 = vmatprep.subr.mxu0 0.0
        %5166 = vmatpush1.msra.mxu0 0.0
        %5167 = vmatprep.subr.mxu0 0.0
        %5168 = vmatpush1.msra.mxu0 0.0
        %5169 = vmatprep.subr.mxu0 0.0
        %5170 = vmatpush1.msra.mxu0 0.0
        %5171 = vmatprep.subr.mxu0 0.0
        %5172 = vmatpush1.msra.mxu0 0.0
        %5173 = vmatprep.subr.mxu0 0.0
        %5174 = vmatpush1.msra.mxu0 0.0
        %5175 = vmatprep.subr.mxu0 0.0
        %5176 = vmatpush1.msra.mxu0 0.0
        %5177 = vmatprep.subr.mxu0 0.0
        %5178 = vmatpush1.msra.mxu0 0.0
        %5179 = vmatprep.subr.mxu0 0.0
        %5180 = vmatpush1.msra.mxu0 0.0
        %5181 = vmatprep.subr.mxu0 0.0
        %5182 = vmatpush1.msra.mxu0 0.0
        %5183 = vmatprep.subr.mxu0 0.0
        %5184 = vmatpush1.msra.mxu0 0.0
        %5185 = vmatprep.subr.mxu0 0.0
        %5186 = vmatpush1.msra.mxu0 0.0
        %5187 = vmatprep.subr.mxu0 0.0
        %5188 = vmatpush1.msra.mxu0 0.0
        %5189 = vmatprep.subr.mxu0 0.0
        %5190 = vmatpush1.msra.mxu0 0.0
        %5191 = vmatprep.subr.mxu0 0.0
        %5192 = vmatpush1.msra.mxu0 0.0
        %5193 = vmatprep.mubr.f32.mxu0 0.0
        %5194 = vmatmul.mubr.f32.gmra.mrb[0].mxu0 %v5048
        %v5195 = vpop.f32.mrb[0].mxu0
        %v5196 = vadd.f32 0.0, %v5195
        %v5197 = vpop.f32.mrb[0].mxu0
        %v5198 = vadd.f32 0.0, %v5197
        %5199 = vmatprep.mubr.f32.mxu0 0.0
        %5200 = vmatmul.mubr.f32.gmra.mrb[0].mxu0 %v5050
        %v5201 = vpop.f32.mrb[0].mxu0
        %v5202 = vadd.f32 0.0, %v5201
        %v5203 = vpop.f32.mrb[0].mxu0
        %v5204 = vadd.f32 0.0, %v5203
        %5205 = vdwg.mxu0
        %v5206 = vadd.f32 %v5023, %v5119
        %v5207 = vadd.f32 %v5024, %v5121
        %v5208 = vadd.f32 %v5025, %v5196
        %v5209 = vadd.f32 %v5026, %v5198
        %v5210 = vadd.f32 %v5027, %v5125
        %v5211 = vadd.f32 %v5028, %v5127
        %v5212 = vadd.f32 %v5029, %v5202
        %v5213 = vadd.f32 %v5030, %v5204
        %vm5214 = vcmask 1046528
        %v5215 = vrot.slane %v4211, 1
        %v5216 = vrot.slane %v4212, 1
        %v5217 = vsel %vm5214, %v5215, %v5216
        %v5221 = vsel %vm5214, %v5216, %v5215
        %s5222 = scalar_lea.vmem %s39, 80
        %v5223 = vld [vmem:[%s5222] sm:$0xff]
        %v5224 = vld [vmem:[%s5222 + $0x8] sm:$0xff]
        %5226 = vset.pattern.permute.xlu0 0
        %5227 = vperm.xlu0 %5226, %v5223
        %v5228 = vpop.permute.xlu0 %5227
        %5231 = vset.pattern.permute.xlu0 0
        %5232 = vperm.xlu0 %5231, %v5224
        %v5233 = vpop.permute.xlu0 %5232
        %v5235 = vmul.f32 %v5217, %v5228
        %v5236 = vmul.f32 %v5221, %v5233
        %s5237 = scalar_lea.vmem %s41, 640
        %v5238 = vld [vmem:[%s5237] sm:$0xff]
        %v5239 = vld [vmem:[%s5237 + $0x8] sm:$0xff]
        %v5240 = vld [vmem:[%s5237 + $0x10] sm:$0xff]
        %v5241 = vld [vmem:[%s5237 + $0x18] sm:$0xff]
        %v5242 = vld [vmem:[%s5237 + $0x20] sm:$0xff]
        %v5243 = vld [vmem:[%s5237 + $0x28] sm:$0xff]
        %v5244 = vld [vmem:[%s5237 + $0x30] sm:$0xff]
        %v5245 = vld [vmem:[%s5237 + $0x38] sm:$0xff]
        %v5246 = vld [vmem:[%s5237 + $0x40] sm:$0xff]
        %v5247 = vld [vmem:[%s5237 + $0x48] sm:$0xff]
        %v5248 = vld [vmem:[%s5237 + $0x50] sm:$0xff]
        %v5249 = vld [vmem:[%s5237 + $0x58] sm:$0xff]
        %v5250 = vld [vmem:[%s5237 + $0x60] sm:$0xff]
        %v5251 = vld [vmem:[%s5237 + $0x68] sm:$0xff]
        %v5252 = vld [vmem:[%s5237 + $0x70] sm:$0xff]
        %v5253 = vld [vmem:[%s5237 + $0x78] sm:$0xff]
        %v5255 = vsel %vm1525, %v5235, 0
        %v5258 = vsel %vm1525, %v5236, 0
        %5260 = vmatprep.subr.mxu0 %v5239
        %5261 = vmatpush1.msra.mxu0 %v5238
        %5262 = vmatprep.subr.mxu0 %v5243
        %5263 = vmatpush1.msra.mxu0 %v5242
        %5264 = vmatprep.subr.mxu0 %v5247
        %5265 = vmatpush1.msra.mxu0 %v5246
        %5266 = vmatprep.subr.mxu0 %v5251
        %5267 = vmatpush1.msra.mxu0 %v5250
        %5268 = vmatprep.subr.mxu0 0.0
        %5269 = vmatpush1.msra.mxu0 0.0
        %5270 = vmatprep.subr.mxu0 0.0
        %5271 = vmatpush1.msra.mxu0 0.0
        %5272 = vmatprep.subr.mxu0 0.0
        %5273 = vmatpush1.msra.mxu0 0.0
        %5274 = vmatprep.subr.mxu0 0.0
        %5275 = vmatpush1.msra.mxu0 0.0
        %5276 = vmatprep.subr.mxu0 0.0
        %5277 = vmatpush1.msra.mxu0 0.0
        %5278 = vmatprep.subr.mxu0 0.0
        %5279 = vmatpush1.msra.mxu0 0.0
        %5280 = vmatprep.subr.mxu0 0.0
        %5281 = vmatpush1.msra.mxu0 0.0
        %5282 = vmatprep.subr.mxu0 0.0
        %5283 = vmatpush1.msra.mxu0 0.0
        %5284 = vmatprep.subr.mxu0 0.0
        %5285 = vmatpush1.msra.mxu0 0.0
        %5286 = vmatprep.subr.mxu0 0.0
        %5287 = vmatpush1.msra.mxu0 0.0
        %5288 = vmatprep.subr.mxu0 0.0
        %5289 = vmatpush1.msra.mxu0 0.0
        %5290 = vmatprep.subr.mxu0 0.0
        %5291 = vmatpush1.msra.mxu0 0.0
        %5292 = vmatprep.subr.mxu0 0.0
        %5293 = vmatpush1.msra.mxu0 0.0
        %5294 = vmatprep.subr.mxu0 0.0
        %5295 = vmatpush1.msra.mxu0 0.0
        %5296 = vmatprep.subr.mxu0 0.0
        %5297 = vmatpush1.msra.mxu0 0.0
        %5298 = vmatprep.subr.mxu0 0.0
        %5299 = vmatpush1.msra.mxu0 0.0
        %5300 = vmatprep.subr.mxu0 0.0
        %5301 = vmatpush1.msra.mxu0 0.0
        %5302 = vmatprep.subr.mxu0 0.0
        %5303 = vmatpush1.msra.mxu0 0.0
        %5304 = vmatprep.subr.mxu0 0.0
        %5305 = vmatpush1.msra.mxu0 0.0
        %5306 = vmatprep.subr.mxu0 0.0
        %5307 = vmatpush1.msra.mxu0 0.0
        %5308 = vmatprep.subr.mxu0 0.0
        %5309 = vmatpush1.msra.mxu0 0.0
        %5310 = vmatprep.subr.mxu0 0.0
        %5311 = vmatpush1.msra.mxu0 0.0
        %5312 = vmatprep.subr.mxu0 0.0
        %5313 = vmatpush1.msra.mxu0 0.0
        %5314 = vmatprep.subr.mxu0 0.0
        %5315 = vmatpush1.msra.mxu0 0.0
        %5316 = vmatprep.subr.mxu0 0.0
        %5317 = vmatpush1.msra.mxu0 0.0
        %5318 = vmatprep.subr.mxu0 0.0
        %5319 = vmatpush1.msra.mxu0 0.0
        %5320 = vmatprep.subr.mxu0 0.0
        %5321 = vmatpush1.msra.mxu0 0.0
        %5322 = vmatprep.subr.mxu0 0.0
        %5323 = vmatpush1.msra.mxu0 0.0
        %5324 = vmatprep.mubr.f32.mxu0 0.0
        %5325 = vmatmul.mubr.f32.gmra.mrb[0].mxu0 %v5255
        %v5326 = vpop.f32.mrb[0].mxu0
        %v5327 = vadd.f32 0.0, %v5326
        %v5328 = vpop.f32.mrb[0].mxu0
        %v5329 = vadd.f32 0.0, %v5328
        %5330 = vmatprep.mubr.f32.mxu0 0.0
        %5331 = vmatmul.mubr.f32.gmra.mrb[0].mxu0 %v5258
        %v5332 = vpop.f32.mrb[0].mxu0
        %v5333 = vadd.f32 0.0, %v5332
        %v5334 = vpop.f32.mrb[0].mxu0
        %v5335 = vadd.f32 0.0, %v5334
        %5336 = vdwg.mxu0
        %5337 = vmatprep.subr.mxu0 %v5241
        %5338 = vmatpush1.msra.mxu0 %v5240
        %5339 = vmatprep.subr.mxu0 %v5245
        %5340 = vmatpush1.msra.mxu0 %v5244
        %5341 = vmatprep.subr.mxu0 %v5249
        %5342 = vmatpush1.msra.mxu0 %v5248
        %5343 = vmatprep.subr.mxu0 %v5253
        %5344 = vmatpush1.msra.mxu0 %v5252
        %5345 = vmatprep.subr.mxu0 0.0
        %5346 = vmatpush1.msra.mxu0 0.0
        %5347 = vmatprep.subr.mxu0 0.0
        %5348 = vmatpush1.msra.mxu0 0.0
        %5349 = vmatprep.subr.mxu0 0.0
        %5350 = vmatpush1.msra.mxu0 0.0
        %5351 = vmatprep.subr.mxu0 0.0
        %5352 = vmatpush1.msra.mxu0 0.0
        %5353 = vmatprep.subr.mxu0 0.0
        %5354 = vmatpush1.msra.mxu0 0.0
        %5355 = vmatprep.subr.mxu0 0.0
        %5356 = vmatpush1.msra.mxu0 0.0
        %5357 = vmatprep.subr.mxu0 0.0
        %5358 = vmatpush1.msra.mxu0 0.0
        %5359 = vmatprep.subr.mxu0 0.0
        %5360 = vmatpush1.msra.mxu0 0.0
        %5361 = vmatprep.subr.mxu0 0.0
        %5362 = vmatpush1.msra.mxu0 0.0
        %5363 = vmatprep.subr.mxu0 0.0
        %5364 = vmatpush1.msra.mxu0 0.0
        %5365 = vmatprep.subr.mxu0 0.0
        %5366 = vmatpush1.msra.mxu0 0.0
        %5367 = vmatprep.subr.mxu0 0.0
        %5368 = vmatpush1.msra.mxu0 0.0
        %5369 = vmatprep.subr.mxu0 0.0
        %5370 = vmatpush1.msra.mxu0 0.0
        %5371 = vmatprep.subr.mxu0 0.0
        %5372 = vmatpush1.msra.mxu0 0.0
        %5373 = vmatprep.subr.mxu0 0.0
        %5374 = vmatpush1.msra.mxu0 0.0
        %5375 = vmatprep.subr.mxu0 0.0
        %5376 = vmatpush1.msra.mxu0 0.0
        %5377 = vmatprep.subr.mxu0 0.0
        %5378 = vmatpush1.msra.mxu0 0.0
        %5379 = vmatprep.subr.mxu0 0.0
        %5380 = vmatpush1.msra.mxu0 0.0
        %5381 = vmatprep.subr.mxu0 0.0
        %5382 = vmatpush1.msra.mxu0 0.0
        %5383 = vmatprep.subr.mxu0 0.0
        %5384 = vmatpush1.msra.mxu0 0.0
        %5385 = vmatprep.subr.mxu0 0.0
        %5386 = vmatpush1.msra.mxu0 0.0
        %5387 = vmatprep.subr.mxu0 0.0
        %5388 = vmatpush1.msra.mxu0 0.0
        %5389 = vmatprep.subr.mxu0 0.0
        %5390 = vmatpush1.msra.mxu0 0.0
        %5391 = vmatprep.subr.mxu0 0.0
        %5392 = vmatpush1.msra.mxu0 0.0
        %5393 = vmatprep.subr.mxu0 0.0
        %5394 = vmatpush1.msra.mxu0 0.0
        %5395 = vmatprep.subr.mxu0 0.0
        %5396 = vmatpush1.msra.mxu0 0.0
        %5397 = vmatprep.subr.mxu0 0.0
        %5398 = vmatpush1.msra.mxu0 0.0
        %5399 = vmatprep.subr.mxu0 0.0
        %5400 = vmatpush1.msra.mxu0 0.0
        %5401 = vmatprep.mubr.f32.mxu0 0.0
        %5402 = vmatmul.mubr.f32.gmra.mrb[0].mxu0 %v5255
        %v5403 = vpop.f32.mrb[0].mxu0
        %v5404 = vadd.f32 0.0, %v5403
        %v5405 = vpop.f32.mrb[0].mxu0
        %v5406 = vadd.f32 0.0, %v5405
        %5407 = vmatprep.mubr.f32.mxu0 0.0
        %5408 = vmatmul.mubr.f32.gmra.mrb[0].mxu0 %v5258
        %v5409 = vpop.f32.mrb[0].mxu0
        %v5410 = vadd.f32 0.0, %v5409
        %v5411 = vpop.f32.mrb[0].mxu0
        %v5412 = vadd.f32 0.0, %v5411
        %5413 = vdwg.mxu0
        %v5414 = vadd.f32 %v5206, %v5327
        %v5415 = vadd.f32 %v5207, %v5329
        %v5416 = vadd.f32 %v5208, %v5404
        %v5417 = vadd.f32 %v5209, %v5406
        %v5418 = vadd.f32 %v5210, %v5333
        %v5419 = vadd.f32 %v5211, %v5335
        %v5420 = vadd.f32 %v5212, %v5410
        %v5421 = vadd.f32 %v5213, %v5412
        %s5422 = scalar_lea.vmem %s39, 96
        %v5423 = vld [vmem:[%s5422] sm:$0xff]
        %v5424 = vld [vmem:[%s5422 + $0x8] sm:$0xff]
        %5426 = vset.pattern.permute.xlu0 0
        %5427 = vperm.xlu0 %5426, %v5423
        %v5428 = vpop.permute.xlu0 %5427
        %5431 = vset.pattern.permute.xlu0 0
        %5432 = vperm.xlu0 %5431, %v5424
        %v5433 = vpop.permute.xlu0 %5432
        %v5435 = vmul.f32 %v4221, %v5428
        %v5436 = vmul.f32 %v4224, %v5433
        %s5437 = scalar_lea.vmem %s41, 768
        %v5438 = vld [vmem:[%s5437] sm:$0xff]
        %v5439 = vld [vmem:[%s5437 + $0x8] sm:$0xff]
        %v5440 = vld [vmem:[%s5437 + $0x10] sm:$0xff]
        %v5441 = vld [vmem:[%s5437 + $0x18] sm:$0xff]
        %v5442 = vld [vmem:[%s5437 + $0x20] sm:$0xff]
        %v5443 = vld [vmem:[%s5437 + $0x28] sm:$0xff]
        %v5444 = vld [vmem:[%s5437 + $0x30] sm:$0xff]
        %v5445 = vld [vmem:[%s5437 + $0x38] sm:$0xff]
        %v5446 = vld [vmem:[%s5437 + $0x40] sm:$0xff]
        %v5447 = vld [vmem:[%s5437 + $0x48] sm:$0xff]
        %v5448 = vld [vmem:[%s5437 + $0x50] sm:$0xff]
        %v5449 = vld [vmem:[%s5437 + $0x58] sm:$0xff]
        %v5450 = vld [vmem:[%s5437 + $0x60] sm:$0xff]
        %v5451 = vld [vmem:[%s5437 + $0x68] sm:$0xff]
        %v5452 = vld [vmem:[%s5437 + $0x70] sm:$0xff]
        %v5453 = vld [vmem:[%s5437 + $0x78] sm:$0xff]
        %v5455 = vsel %vm1525, %v5435, 0
        %v5458 = vsel %vm1525, %v5436, 0
        %5460 = vmatprep.subr.mxu0 %v5439
        %5461 = vmatpush1.msra.mxu0 %v5438
        %5462 = vmatprep.subr.mxu0 %v5443
        %5463 = vmatpush1.msra.mxu0 %v5442
        %5464 = vmatprep.subr.mxu0 %v5447
        %5465 = vmatpush1.msra.mxu0 %v5446
        %5466 = vmatprep.subr.mxu0 %v5451
        %5467 = vmatpush1.msra.mxu0 %v5450
        %5468 = vmatprep.subr.mxu0 0.0
        %5469 = vmatpush1.msra.mxu0 0.0
        %5470 = vmatprep.subr.mxu0 0.0
        %5471 = vmatpush1.msra.mxu0 0.0
        %5472 = vmatprep.subr.mxu0 0.0
        %5473 = vmatpush1.msra.mxu0 0.0
        %5474 = vmatprep.subr.mxu0 0.0
        %5475 = vmatpush1.msra.mxu0 0.0
        %5476 = vmatprep.subr.mxu0 0.0
        %5477 = vmatpush1.msra.mxu0 0.0
        %5478 = vmatprep.subr.mxu0 0.0
        %5479 = vmatpush1.msra.mxu0 0.0
        %5480 = vmatprep.subr.mxu0 0.0
        %5481 = vmatpush1.msra.mxu0 0.0
        %5482 = vmatprep.subr.mxu0 0.0
        %5483 = vmatpush1.msra.mxu0 0.0
        %5484 = vmatprep.subr.mxu0 0.0
        %5485 = vmatpush1.msra.mxu0 0.0
        %5486 = vmatprep.subr.mxu0 0.0
        %5487 = vmatpush1.msra.mxu0 0.0
        %5488 = vmatprep.subr.mxu0 0.0
        %5489 = vmatpush1.msra.mxu0 0.0
        %5490 = vmatprep.subr.mxu0 0.0
        %5491 = vmatpush1.msra.mxu0 0.0
        %5492 = vmatprep.subr.mxu0 0.0
        %5493 = vmatpush1.msra.mxu0 0.0
        %5494 = vmatprep.subr.mxu0 0.0
        %5495 = vmatpush1.msra.mxu0 0.0
        %5496 = vmatprep.subr.mxu0 0.0
        %5497 = vmatpush1.msra.mxu0 0.0
        %5498 = vmatprep.subr.mxu0 0.0
        %5499 = vmatpush1.msra.mxu0 0.0
        %5500 = vmatprep.subr.mxu0 0.0
        %5501 = vmatpush1.msra.mxu0 0.0
        %5502 = vmatprep.subr.mxu0 0.0
        %5503 = vmatpush1.msra.mxu0 0.0
        %5504 = vmatprep.subr.mxu0 0.0
        %5505 = vmatpush1.msra.mxu0 0.0
        %5506 = vmatprep.subr.mxu0 0.0
        %5507 = vmatpush1.msra.mxu0 0.0
        %5508 = vmatprep.subr.mxu0 0.0
        %5509 = vmatpush1.msra.mxu0 0.0
        %5510 = vmatprep.subr.mxu0 0.0
        %5511 = vmatpush1.msra.mxu0 0.0
        %5512 = vmatprep.subr.mxu0 0.0
        %5513 = vmatpush1.msra.mxu0 0.0
        %5514 = vmatprep.subr.mxu0 0.0
        %5515 = vmatpush1.msra.mxu0 0.0
        %5516 = vmatprep.subr.mxu0 0.0
        %5517 = vmatpush1.msra.mxu0 0.0
        %5518 = vmatprep.subr.mxu0 0.0
        %5519 = vmatpush1.msra.mxu0 0.0
        %5520 = vmatprep.subr.mxu0 0.0
        %5521 = vmatpush1.msra.mxu0 0.0
        %5522 = vmatprep.subr.mxu0 0.0
        %5523 = vmatpush1.msra.mxu0 0.0
        %5524 = vmatprep.mubr.f32.mxu0 0.0
        %5525 = vmatmul.mubr.f32.gmra.mrb[0].mxu0 %v5455
        %v5526 = vpop.f32.mrb[0].mxu0
        %v5527 = vadd.f32 0.0, %v5526
        %v5528 = vpop.f32.mrb[0].mxu0
        %v5529 = vadd.f32 0.0, %v5528
        %5530 = vmatprep.mubr.f32.mxu0 0.0
        %5531 = vmatmul.mubr.f32.gmra.mrb[0].mxu0 %v5458
        %v5532 = vpop.f32.mrb[0].mxu0
        %v5533 = vadd.f32 0.0, %v5532
        %v5534 = vpop.f32.mrb[0].mxu0
        %v5535 = vadd.f32 0.0, %v5534
        %5536 = vdwg.mxu0
        %5537 = vmatprep.subr.mxu0 %v5441
        %5538 = vmatpush1.msra.mxu0 %v5440
        %5539 = vmatprep.subr.mxu0 %v5445
        %5540 = vmatpush1.msra.mxu0 %v5444
        %5541 = vmatprep.subr.mxu0 %v5449
        %5542 = vmatpush1.msra.mxu0 %v5448
        %5543 = vmatprep.subr.mxu0 %v5453
        %5544 = vmatpush1.msra.mxu0 %v5452
        %5545 = vmatprep.subr.mxu0 0.0
        %5546 = vmatpush1.msra.mxu0 0.0
        %5547 = vmatprep.subr.mxu0 0.0
        %5548 = vmatpush1.msra.mxu0 0.0
        %5549 = vmatprep.subr.mxu0 0.0
        %5550 = vmatpush1.msra.mxu0 0.0
        %5551 = vmatprep.subr.mxu0 0.0
        %5552 = vmatpush1.msra.mxu0 0.0
        %5553 = vmatprep.subr.mxu0 0.0
        %5554 = vmatpush1.msra.mxu0 0.0
        %5555 = vmatprep.subr.mxu0 0.0
        %5556 = vmatpush1.msra.mxu0 0.0
        %5557 = vmatprep.subr.mxu0 0.0
        %5558 = vmatpush1.msra.mxu0 0.0
        %5559 = vmatprep.subr.mxu0 0.0
        %5560 = vmatpush1.msra.mxu0 0.0
        %5561 = vmatprep.subr.mxu0 0.0
        %5562 = vmatpush1.msra.mxu0 0.0
        %5563 = vmatprep.subr.mxu0 0.0
        %5564 = vmatpush1.msra.mxu0 0.0
        %5565 = vmatprep.subr.mxu0 0.0
        %5566 = vmatpush1.msra.mxu0 0.0
        %5567 = vmatprep.subr.mxu0 0.0
        %5568 = vmatpush1.msra.mxu0 0.0
        %5569 = vmatprep.subr.mxu0 0.0
        %5570 = vmatpush1.msra.mxu0 0.0
        %5571 = vmatprep.subr.mxu0 0.0
        %5572 = vmatpush1.msra.mxu0 0.0
        %5573 = vmatprep.subr.mxu0 0.0
        %5574 = vmatpush1.msra.mxu0 0.0
        %5575 = vmatprep.subr.mxu0 0.0
        %5576 = vmatpush1.msra.mxu0 0.0
        %5577 = vmatprep.subr.mxu0 0.0
        %5578 = vmatpush1.msra.mxu0 0.0
        %5579 = vmatprep.subr.mxu0 0.0
        %5580 = vmatpush1.msra.mxu0 0.0
        %5581 = vmatprep.subr.mxu0 0.0
        %5582 = vmatpush1.msra.mxu0 0.0
        %5583 = vmatprep.subr.mxu0 0.0
        %5584 = vmatpush1.msra.mxu0 0.0
        %5585 = vmatprep.subr.mxu0 0.0
        %5586 = vmatpush1.msra.mxu0 0.0
        %5587 = vmatprep.subr.mxu0 0.0
        %5588 = vmatpush1.msra.mxu0 0.0
        %5589 = vmatprep.subr.mxu0 0.0
        %5590 = vmatpush1.msra.mxu0 0.0
        %5591 = vmatprep.subr.mxu0 0.0
        %5592 = vmatpush1.msra.mxu0 0.0
        %5593 = vmatprep.subr.mxu0 0.0
        %5594 = vmatpush1.msra.mxu0 0.0
        %5595 = vmatprep.subr.mxu0 0.0
        %5596 = vmatpush1.msra.mxu0 0.0
        %5597 = vmatprep.subr.mxu0 0.0
        %5598 = vmatpush1.msra.mxu0 0.0
        %5599 = vmatprep.subr.mxu0 0.0
        %5600 = vmatpush1.msra.mxu0 0.0
        %5601 = vmatprep.mubr.f32.mxu0 0.0
        %5602 = vmatmul.mubr.f32.gmra.mrb[0].mxu0 %v5455
        %v5603 = vpop.f32.mrb[0].mxu0
        %v5604 = vadd.f32 0.0, %v5603
        %v5605 = vpop.f32.mrb[0].mxu0
        %v5606 = vadd.f32 0.0, %v5605
        %5607 = vmatprep.mubr.f32.mxu0 0.0
        %5608 = vmatmul.mubr.f32.gmra.mrb[0].mxu0 %v5458
        %v5609 = vpop.f32.mrb[0].mxu0
        %v5610 = vadd.f32 0.0, %v5609
        %v5611 = vpop.f32.mrb[0].mxu0
        %v5612 = vadd.f32 0.0, %v5611
        %5613 = vdwg.mxu0
        %v5614 = vadd.f32 %v5414, %v5527
        %v5615 = vadd.f32 %v5415, %v5529
        %v5616 = vadd.f32 %v5416, %v5604
        %v5617 = vadd.f32 %v5417, %v5606
        %v5618 = vadd.f32 %v5418, %v5533
        %v5619 = vadd.f32 %v5419, %v5535
        %v5620 = vadd.f32 %v5420, %v5610
        %v5621 = vadd.f32 %v5421, %v5612
        %s5622 = scalar_lea.vmem %s39, 112
        %v5623 = vld [vmem:[%s5622] sm:$0xff]
        %v5624 = vld [vmem:[%s5622 + $0x8] sm:$0xff]
        %5626 = vset.pattern.permute.xlu0 0
        %5627 = vperm.xlu0 %5626, %v5623
        %v5628 = vpop.permute.xlu0 %5627
        %5631 = vset.pattern.permute.xlu0 0
        %5632 = vperm.xlu0 %5631, %v5624
        %v5633 = vpop.permute.xlu0 %5632
        %v5635 = vmul.f32 %v4259, %v5628
        %v5636 = vmul.f32 %v4262, %v5633
        %s5637 = scalar_lea.vmem %s41, 896
        %v5638 = vld [vmem:[%s5637] sm:$0xff]
        %v5639 = vld [vmem:[%s5637 + $0x8] sm:$0xff]
        %v5640 = vld [vmem:[%s5637 + $0x10] sm:$0xff]
        %v5641 = vld [vmem:[%s5637 + $0x18] sm:$0xff]
        %v5642 = vld [vmem:[%s5637 + $0x20] sm:$0xff]
        %v5643 = vld [vmem:[%s5637 + $0x28] sm:$0xff]
        %v5644 = vld [vmem:[%s5637 + $0x30] sm:$0xff]
        %v5645 = vld [vmem:[%s5637 + $0x38] sm:$0xff]
        %v5646 = vld [vmem:[%s5637 + $0x40] sm:$0xff]
        %v5647 = vld [vmem:[%s5637 + $0x48] sm:$0xff]
        %v5648 = vld [vmem:[%s5637 + $0x50] sm:$0xff]
        %v5649 = vld [vmem:[%s5637 + $0x58] sm:$0xff]
        %v5650 = vld [vmem:[%s5637 + $0x60] sm:$0xff]
        %v5651 = vld [vmem:[%s5637 + $0x68] sm:$0xff]
        %v5652 = vld [vmem:[%s5637 + $0x70] sm:$0xff]
        %v5653 = vld [vmem:[%s5637 + $0x78] sm:$0xff]
        %v5655 = vsel %vm1525, %v5635, 0
        %v5658 = vsel %vm1525, %v5636, 0
        %5660 = vmatprep.subr.mxu0 %v5639
        %5661 = vmatpush1.msra.mxu0 %v5638
        %5662 = vmatprep.subr.mxu0 %v5643
        %5663 = vmatpush1.msra.mxu0 %v5642
        %5664 = vmatprep.subr.mxu0 %v5647
        %5665 = vmatpush1.msra.mxu0 %v5646
        %5666 = vmatprep.subr.mxu0 %v5651
        %5667 = vmatpush1.msra.mxu0 %v5650
        %5668 = vmatprep.subr.mxu0 0.0
        %5669 = vmatpush1.msra.mxu0 0.0
        %5670 = vmatprep.subr.mxu0 0.0
        %5671 = vmatpush1.msra.mxu0 0.0
        %5672 = vmatprep.subr.mxu0 0.0
        %5673 = vmatpush1.msra.mxu0 0.0
        %5674 = vmatprep.subr.mxu0 0.0
        %5675 = vmatpush1.msra.mxu0 0.0
        %5676 = vmatprep.subr.mxu0 0.0
        %5677 = vmatpush1.msra.mxu0 0.0
        %5678 = vmatprep.subr.mxu0 0.0
        %5679 = vmatpush1.msra.mxu0 0.0
        %5680 = vmatprep.subr.mxu0 0.0
        %5681 = vmatpush1.msra.mxu0 0.0
        %5682 = vmatprep.subr.mxu0 0.0
        %5683 = vmatpush1.msra.mxu0 0.0
        %5684 = vmatprep.subr.mxu0 0.0
        %5685 = vmatpush1.msra.mxu0 0.0
        %5686 = vmatprep.subr.mxu0 0.0
        %5687 = vmatpush1.msra.mxu0 0.0
        %5688 = vmatprep.subr.mxu0 0.0
        %5689 = vmatpush1.msra.mxu0 0.0
        %5690 = vmatprep.subr.mxu0 0.0
        %5691 = vmatpush1.msra.mxu0 0.0
        %5692 = vmatprep.subr.mxu0 0.0
        %5693 = vmatpush1.msra.mxu0 0.0
        %5694 = vmatprep.subr.mxu0 0.0
        %5695 = vmatpush1.msra.mxu0 0.0
        %5696 = vmatprep.subr.mxu0 0.0
        %5697 = vmatpush1.msra.mxu0 0.0
        %5698 = vmatprep.subr.mxu0 0.0
        %5699 = vmatpush1.msra.mxu0 0.0
        %5700 = vmatprep.subr.mxu0 0.0
        %5701 = vmatpush1.msra.mxu0 0.0
        %5702 = vmatprep.subr.mxu0 0.0
        %5703 = vmatpush1.msra.mxu0 0.0
        %5704 = vmatprep.subr.mxu0 0.0
        %5705 = vmatpush1.msra.mxu0 0.0
        %5706 = vmatprep.subr.mxu0 0.0
        %5707 = vmatpush1.msra.mxu0 0.0
        %5708 = vmatprep.subr.mxu0 0.0
        %5709 = vmatpush1.msra.mxu0 0.0
        %5710 = vmatprep.subr.mxu0 0.0
        %5711 = vmatpush1.msra.mxu0 0.0
        %5712 = vmatprep.subr.mxu0 0.0
        %5713 = vmatpush1.msra.mxu0 0.0
        %5714 = vmatprep.subr.mxu0 0.0
        %5715 = vmatpush1.msra.mxu0 0.0
        %5716 = vmatprep.subr.mxu0 0.0
        %5717 = vmatpush1.msra.mxu0 0.0
        %5718 = vmatprep.subr.mxu0 0.0
        %5719 = vmatpush1.msra.mxu0 0.0
        %5720 = vmatprep.subr.mxu0 0.0
        %5721 = vmatpush1.msra.mxu0 0.0
        %5722 = vmatprep.subr.mxu0 0.0
        %5723 = vmatpush1.msra.mxu0 0.0
        %5724 = vmatprep.mubr.f32.mxu0 0.0
        %5725 = vmatmul.mubr.f32.gmra.mrb[0].mxu0 %v5655
        %v5726 = vpop.f32.mrb[0].mxu0
        %v5727 = vadd.f32 0.0, %v5726
        %v5728 = vpop.f32.mrb[0].mxu0
        %v5729 = vadd.f32 0.0, %v5728
        %5730 = vmatprep.mubr.f32.mxu0 0.0
        %5731 = vmatmul.mubr.f32.gmra.mrb[0].mxu0 %v5658
        %v5732 = vpop.f32.mrb[0].mxu0
        %v5733 = vadd.f32 0.0, %v5732
        %v5734 = vpop.f32.mrb[0].mxu0
        %v5735 = vadd.f32 0.0, %v5734
        %5736 = vdwg.mxu0
        %5737 = vmatprep.subr.mxu0 %v5641
        %5738 = vmatpush1.msra.mxu0 %v5640
        %5739 = vmatprep.subr.mxu0 %v5645
        %5740 = vmatpush1.msra.mxu0 %v5644
        %5741 = vmatprep.subr.mxu0 %v5649
        %5742 = vmatpush1.msra.mxu0 %v5648
        %5743 = vmatprep.subr.mxu0 %v5653
        %5744 = vmatpush1.msra.mxu0 %v5652
        %5745 = vmatprep.subr.mxu0 0.0
        %5746 = vmatpush1.msra.mxu0 0.0
        %5747 = vmatprep.subr.mxu0 0.0
        %5748 = vmatpush1.msra.mxu0 0.0
        %5749 = vmatprep.subr.mxu0 0.0
        %5750 = vmatpush1.msra.mxu0 0.0
        %5751 = vmatprep.subr.mxu0 0.0
        %5752 = vmatpush1.msra.mxu0 0.0
        %5753 = vmatprep.subr.mxu0 0.0
        %5754 = vmatpush1.msra.mxu0 0.0
        %5755 = vmatprep.subr.mxu0 0.0
        %5756 = vmatpush1.msra.mxu0 0.0
        %5757 = vmatprep.subr.mxu0 0.0
        %5758 = vmatpush1.msra.mxu0 0.0
        %5759 = vmatprep.subr.mxu0 0.0
        %5760 = vmatpush1.msra.mxu0 0.0
        %5761 = vmatprep.subr.mxu0 0.0
        %5762 = vmatpush1.msra.mxu0 0.0
        %5763 = vmatprep.subr.mxu0 0.0
        %5764 = vmatpush1.msra.mxu0 0.0
        %5765 = vmatprep.subr.mxu0 0.0
        %5766 = vmatpush1.msra.mxu0 0.0
        %5767 = vmatprep.subr.mxu0 0.0
        %5768 = vmatpush1.msra.mxu0 0.0
        %5769 = vmatprep.subr.mxu0 0.0
        %5770 = vmatpush1.msra.mxu0 0.0
        %5771 = vmatprep.subr.mxu0 0.0
        %5772 = vmatpush1.msra.mxu0 0.0
        %5773 = vmatprep.subr.mxu0 0.0
        %5774 = vmatpush1.msra.mxu0 0.0
        %5775 = vmatprep.subr.mxu0 0.0
        %5776 = vmatpush1.msra.mxu0 0.0
        %5777 = vmatprep.subr.mxu0 0.0
        %5778 = vmatpush1.msra.mxu0 0.0
        %5779 = vmatprep.subr.mxu0 0.0
        %5780 = vmatpush1.msra.mxu0 0.0
        %5781 = vmatprep.subr.mxu0 0.0
        %5782 = vmatpush1.msra.mxu0 0.0
        %5783 = vmatprep.subr.mxu0 0.0
        %5784 = vmatpush1.msra.mxu0 0.0
        %5785 = vmatprep.subr.mxu0 0.0
        %5786 = vmatpush1.msra.mxu0 0.0
        %5787 = vmatprep.subr.mxu0 0.0
        %5788 = vmatpush1.msra.mxu0 0.0
        %5789 = vmatprep.subr.mxu0 0.0
        %5790 = vmatpush1.msra.mxu0 0.0
        %5791 = vmatprep.subr.mxu0 0.0
        %5792 = vmatpush1.msra.mxu0 0.0
        %5793 = vmatprep.subr.mxu0 0.0
        %5794 = vmatpush1.msra.mxu0 0.0
        %5795 = vmatprep.subr.mxu0 0.0
        %5796 = vmatpush1.msra.mxu0 0.0
        %5797 = vmatprep.subr.mxu0 0.0
        %5798 = vmatpush1.msra.mxu0 0.0
        %5799 = vmatprep.subr.mxu0 0.0
        %5800 = vmatpush1.msra.mxu0 0.0
        %5801 = vmatprep.mubr.f32.mxu0 0.0
        %5802 = vmatmul.mubr.f32.gmra.mrb[0].mxu0 %v5655
        %v5803 = vpop.f32.mrb[0].mxu0
        %v5804 = vadd.f32 0.0, %v5803
        %v5805 = vpop.f32.mrb[0].mxu0
        %v5806 = vadd.f32 0.0, %v5805
        %5807 = vmatprep.mubr.f32.mxu0 0.0
        %5808 = vmatmul.mubr.f32.gmra.mrb[0].mxu0 %v5658
        %v5809 = vpop.f32.mrb[0].mxu0
        %v5810 = vadd.f32 0.0, %v5809
        %v5811 = vpop.f32.mrb[0].mxu0
        %v5812 = vadd.f32 0.0, %v5811
        %5813 = vdwg.mxu0
        %v5814 = vadd.f32 %v5614, %v5727
        %v5815 = vadd.f32 %v5615, %v5729
        %v5816 = vadd.f32 %v5616, %v5804
        %v5817 = vadd.f32 %v5617, %v5806
        %v5818 = vadd.f32 %v5618, %v5733
        %v5819 = vadd.f32 %v5619, %v5735
        %v5820 = vadd.f32 %v5620, %v5810
        %v5821 = vadd.f32 %v5621, %v5812
        %s5822 = scalar_lea.vmem %s39, 128
        %v5823 = vld [vmem:[%s5822] sm:$0xff]
        %v5824 = vld [vmem:[%s5822 + $0x8] sm:$0xff]
        %5826 = vset.pattern.permute.xlu0 0
        %5827 = vperm.xlu0 %5826, %v5823
        %v5828 = vpop.permute.xlu0 %5827
        %5831 = vset.pattern.permute.xlu0 0
        %5832 = vperm.xlu0 %5831, %v5824
        %v5833 = vpop.permute.xlu0 %5832
        %v5835 = vmul.f32 %v4619, %v5828
        %v5836 = vmul.f32 %v4622, %v5833
        %s5837 = scalar_lea.vmem %s41, 1024
        %v5838 = vld [vmem:[%s5837] sm:$0xff]
        %v5839 = vld [vmem:[%s5837 + $0x8] sm:$0xff]
        %v5840 = vld [vmem:[%s5837 + $0x10] sm:$0xff]
        %v5841 = vld [vmem:[%s5837 + $0x18] sm:$0xff]
        %v5842 = vld [vmem:[%s5837 + $0x20] sm:$0xff]
        %v5843 = vld [vmem:[%s5837 + $0x28] sm:$0xff]
        %v5844 = vld [vmem:[%s5837 + $0x30] sm:$0xff]
        %v5845 = vld [vmem:[%s5837 + $0x38] sm:$0xff]
        %v5846 = vld [vmem:[%s5837 + $0x40] sm:$0xff]
        %v5847 = vld [vmem:[%s5837 + $0x48] sm:$0xff]
        %v5848 = vld [vmem:[%s5837 + $0x50] sm:$0xff]
        %v5849 = vld [vmem:[%s5837 + $0x58] sm:$0xff]
        %v5850 = vld [vmem:[%s5837 + $0x60] sm:$0xff]
        %v5851 = vld [vmem:[%s5837 + $0x68] sm:$0xff]
        %v5852 = vld [vmem:[%s5837 + $0x70] sm:$0xff]
        %v5853 = vld [vmem:[%s5837 + $0x78] sm:$0xff]
        %v5855 = vsel %vm1525, %v5835, 0
        %v5858 = vsel %vm1525, %v5836, 0
        %5860 = vmatprep.subr.mxu0 %v5839
        %5861 = vmatpush1.msra.mxu0 %v5838
        %5862 = vmatprep.subr.mxu0 %v5843
        %5863 = vmatpush1.msra.mxu0 %v5842
        %5864 = vmatprep.subr.mxu0 %v5847
        %5865 = vmatpush1.msra.mxu0 %v5846
        %5866 = vmatprep.subr.mxu0 %v5851
        %5867 = vmatpush1.msra.mxu0 %v5850
        %5868 = vmatprep.subr.mxu0 0.0
        %5869 = vmatpush1.msra.mxu0 0.0
        %5870 = vmatprep.subr.mxu0 0.0
        %5871 = vmatpush1.msra.mxu0 0.0
        %5872 = vmatprep.subr.mxu0 0.0
        %5873 = vmatpush1.msra.mxu0 0.0
        %5874 = vmatprep.subr.mxu0 0.0
        %5875 = vmatpush1.msra.mxu0 0.0
        %5876 = vmatprep.subr.mxu0 0.0
        %5877 = vmatpush1.msra.mxu0 0.0
        %5878 = vmatprep.subr.mxu0 0.0
        %5879 = vmatpush1.msra.mxu0 0.0
        %5880 = vmatprep.subr.mxu0 0.0
        %5881 = vmatpush1.msra.mxu0 0.0
        %5882 = vmatprep.subr.mxu0 0.0
        %5883 = vmatpush1.msra.mxu0 0.0
        %5884 = vmatprep.subr.mxu0 0.0
        %5885 = vmatpush1.msra.mxu0 0.0
        %5886 = vmatprep.subr.mxu0 0.0
        %5887 = vmatpush1.msra.mxu0 0.0
        %5888 = vmatprep.subr.mxu0 0.0
        %5889 = vmatpush1.msra.mxu0 0.0
        %5890 = vmatprep.subr.mxu0 0.0
        %5891 = vmatpush1.msra.mxu0 0.0
        %5892 = vmatprep.subr.mxu0 0.0
        %5893 = vmatpush1.msra.mxu0 0.0
        %5894 = vmatprep.subr.mxu0 0.0
        %5895 = vmatpush1.msra.mxu0 0.0
        %5896 = vmatprep.subr.mxu0 0.0
        %5897 = vmatpush1.msra.mxu0 0.0
        %5898 = vmatprep.subr.mxu0 0.0
        %5899 = vmatpush1.msra.mxu0 0.0
        %5900 = vmatprep.subr.mxu0 0.0
        %5901 = vmatpush1.msra.mxu0 0.0
        %5902 = vmatprep.subr.mxu0 0.0
        %5903 = vmatpush1.msra.mxu0 0.0
        %5904 = vmatprep.subr.mxu0 0.0
        %5905 = vmatpush1.msra.mxu0 0.0
        %5906 = vmatprep.subr.mxu0 0.0
        %5907 = vmatpush1.msra.mxu0 0.0
        %5908 = vmatprep.subr.mxu0 0.0
        %5909 = vmatpush1.msra.mxu0 0.0
        %5910 = vmatprep.subr.mxu0 0.0
        %5911 = vmatpush1.msra.mxu0 0.0
        %5912 = vmatprep.subr.mxu0 0.0
        %5913 = vmatpush1.msra.mxu0 0.0
        %5914 = vmatprep.subr.mxu0 0.0
        %5915 = vmatpush1.msra.mxu0 0.0
        %5916 = vmatprep.subr.mxu0 0.0
        %5917 = vmatpush1.msra.mxu0 0.0
        %5918 = vmatprep.subr.mxu0 0.0
        %5919 = vmatpush1.msra.mxu0 0.0
        %5920 = vmatprep.subr.mxu0 0.0
        %5921 = vmatpush1.msra.mxu0 0.0
        %5922 = vmatprep.subr.mxu0 0.0
        %5923 = vmatpush1.msra.mxu0 0.0
        %5924 = vmatprep.mubr.f32.mxu0 0.0
        %5925 = vmatmul.mubr.f32.gmra.mrb[0].mxu0 %v5855
        %v5926 = vpop.f32.mrb[0].mxu0
        %v5927 = vadd.f32 0.0, %v5926
        %v5928 = vpop.f32.mrb[0].mxu0
        %v5929 = vadd.f32 0.0, %v5928
        %5930 = vmatprep.mubr.f32.mxu0 0.0
        %5931 = vmatmul.mubr.f32.gmra.mrb[0].mxu0 %v5858
        %v5932 = vpop.f32.mrb[0].mxu0
        %v5933 = vadd.f32 0.0, %v5932
        %v5934 = vpop.f32.mrb[0].mxu0
        %v5935 = vadd.f32 0.0, %v5934
        %5936 = vdwg.mxu0
        %5937 = vmatprep.subr.mxu0 %v5841
        %5938 = vmatpush1.msra.mxu0 %v5840
        %5939 = vmatprep.subr.mxu0 %v5845
        %5940 = vmatpush1.msra.mxu0 %v5844
        %5941 = vmatprep.subr.mxu0 %v5849
        %5942 = vmatpush1.msra.mxu0 %v5848
        %5943 = vmatprep.subr.mxu0 %v5853
        %5944 = vmatpush1.msra.mxu0 %v5852
        %5945 = vmatprep.subr.mxu0 0.0
        %5946 = vmatpush1.msra.mxu0 0.0
        %5947 = vmatprep.subr.mxu0 0.0
        %5948 = vmatpush1.msra.mxu0 0.0
        %5949 = vmatprep.subr.mxu0 0.0
        %5950 = vmatpush1.msra.mxu0 0.0
        %5951 = vmatprep.subr.mxu0 0.0
        %5952 = vmatpush1.msra.mxu0 0.0
        %5953 = vmatprep.subr.mxu0 0.0
        %5954 = vmatpush1.msra.mxu0 0.0
        %5955 = vmatprep.subr.mxu0 0.0
        %5956 = vmatpush1.msra.mxu0 0.0
        %5957 = vmatprep.subr.mxu0 0.0
        %5958 = vmatpush1.msra.mxu0 0.0
        %5959 = vmatprep.subr.mxu0 0.0
        %5960 = vmatpush1.msra.mxu0 0.0
        %5961 = vmatprep.subr.mxu0 0.0
        %5962 = vmatpush1.msra.mxu0 0.0
        %5963 = vmatprep.subr.mxu0 0.0
        %5964 = vmatpush1.msra.mxu0 0.0
        %5965 = vmatprep.subr.mxu0 0.0
        %5966 = vmatpush1.msra.mxu0 0.0
        %5967 = vmatprep.subr.mxu0 0.0
        %5968 = vmatpush1.msra.mxu0 0.0
        %5969 = vmatprep.subr.mxu0 0.0
        %5970 = vmatpush1.msra.mxu0 0.0
        %5971 = vmatprep.subr.mxu0 0.0
        %5972 = vmatpush1.msra.mxu0 0.0
        %5973 = vmatprep.subr.mxu0 0.0
        %5974 = vmatpush1.msra.mxu0 0.0
        %5975 = vmatprep.subr.mxu0 0.0
        %5976 = vmatpush1.msra.mxu0 0.0
        %5977 = vmatprep.subr.mxu0 0.0
        %5978 = vmatpush1.msra.mxu0 0.0
        %5979 = vmatprep.subr.mxu0 0.0
        %5980 = vmatpush1.msra.mxu0 0.0
        %5981 = vmatprep.subr.mxu0 0.0
        %5982 = vmatpush1.msra.mxu0 0.0
        %5983 = vmatprep.subr.mxu0 0.0
        %5984 = vmatpush1.msra.mxu0 0.0
        %5985 = vmatprep.subr.mxu0 0.0
        %5986 = vmatpush1.msra.mxu0 0.0
        %5987 = vmatprep.subr.mxu0 0.0
        %5988 = vmatpush1.msra.mxu0 0.0
        %5989 = vmatprep.subr.mxu0 0.0
        %5990 = vmatpush1.msra.mxu0 0.0
        %5991 = vmatprep.subr.mxu0 0.0
        %5992 = vmatpush1.msra.mxu0 0.0
        %5993 = vmatprep.subr.mxu0 0.0
        %5994 = vmatpush1.msra.mxu0 0.0
        %5995 = vmatprep.subr.mxu0 0.0
        %5996 = vmatpush1.msra.mxu0 0.0
        %5997 = vmatprep.subr.mxu0 0.0
        %5998 = vmatpush1.msra.mxu0 0.0
        %5999 = vmatprep.subr.mxu0 0.0
        %6000 = vmatpush1.msra.mxu0 0.0
        %6001 = vmatprep.mubr.f32.mxu0 0.0
        %6002 = vmatmul.mubr.f32.gmra.mrb[0].mxu0 %v5855
        %v6003 = vpop.f32.mrb[0].mxu0
        %v6004 = vadd.f32 0.0, %v6003
        %v6005 = vpop.f32.mrb[0].mxu0
        %v6006 = vadd.f32 0.0, %v6005
        %6007 = vmatprep.mubr.f32.mxu0 0.0
        %6008 = vmatmul.mubr.f32.gmra.mrb[0].mxu0 %v5858
        %v6009 = vpop.f32.mrb[0].mxu0
        %v6010 = vadd.f32 0.0, %v6009
        %v6011 = vpop.f32.mrb[0].mxu0
        %v6012 = vadd.f32 0.0, %v6011
        %6013 = vdwg.mxu0
        %v6014 = vadd.f32 %v5814, %v5927
        %v6015 = vadd.f32 %v5815, %v5929
        %v6016 = vadd.f32 %v5816, %v6004
        %v6017 = vadd.f32 %v5817, %v6006
        %v6018 = vadd.f32 %v5818, %v5933
        %v6019 = vadd.f32 %v5819, %v5935
        %v6020 = vadd.f32 %v5820, %v6010
        %v6021 = vadd.f32 %v5821, %v6012
        %v6023 = vlaneseq
        %v6024 = vshrl.u32 %v6023, 7
        %v6025 = vsub.s32 0, %v6024
        %v6026 = vrot.slane %v4213, %v6025
        %v6027 = vlaneseq
        %v6028 = vshrl.u32 %v6027, 7
        %v6029 = vsub.s32 1, %v6028
        %v6030 = vrot.slane %v4213, %v6029
        %v6031 = vlaneseq
        %v6032 = vshrl.u32 %v6031, 7
        %v6033 = vsub.s32 2, %v6032
        %v6034 = vrot.slane %v4213, %v6033
        %v6035 = vlaneseq
        %v6036 = vshrl.u32 %v6035, 7
        %v6037 = vsub.s32 3, %v6036
        %v6038 = vrot.slane %v4213, %v6037
        %v6043 = vmul.f32 %v6014, %v6026
        %v6044 = vmul.f32 %v6015, %v6030
        %v6045 = vmul.f32 %v6016, %v6034
        %v6046 = vmul.f32 %v6017, %v6038
        %v6047 = vmul.f32 %v6018, %v6026
        %v6048 = vmul.f32 %v6019, %v6030
        %v6049 = vmul.f32 %v6020, %v6034
        %v6050 = vmul.f32 %v6021, %v6038
        %v6052 = vlaneseq
        %v6053 = vshrl.u32 %v6052, 7
        %v6054 = vsub.s32 0, %v6053
        %v6055 = vrot.slane %v4214, %v6054
        %v6056 = vlaneseq
        %v6057 = vshrl.u32 %v6056, 7
        %v6058 = vsub.s32 1, %v6057
        %v6059 = vrot.slane %v4214, %v6058
        %v6060 = vlaneseq
        %v6061 = vshrl.u32 %v6060, 7
        %v6062 = vsub.s32 2, %v6061
        %v6063 = vrot.slane %v4214, %v6062
        %v6064 = vlaneseq
        %v6065 = vshrl.u32 %v6064, 7
        %v6066 = vsub.s32 3, %v6065
        %v6067 = vrot.slane %v4214, %v6066
        %v6072 = vadd.f32 %v6043, %v6055
        %v6073 = vadd.f32 %v6044, %v6059
        %v6074 = vadd.f32 %v6045, %v6063
        %v6075 = vadd.f32 %v6046, %v6067
        %v6076 = vadd.f32 %v6047, %v6055
        %v6077 = vadd.f32 %v6048, %v6059
        %v6078 = vadd.f32 %v6049, %v6063
        %v6079 = vadd.f32 %v6050, %v6067
        %v6080 = vmax.f32 %v6072, 0.0
        %v6081 = vmax.f32 %v6073, 0.0
        %v6082 = vmax.f32 %v6074, 0.0
        %v6083 = vmax.f32 %v6075, 0.0
        %v6084 = vmax.f32 %v6076, 0.0
        %v6085 = vmax.f32 %v6077, 0.0
        %v6086 = vmax.f32 %v6078, 0.0
        %v6087 = vmax.f32 %v6079, 0.0
        %v6088 = vld [vmem:[%s47] sm:$0xff]
        %v6089 = vld [vmem:[%s47 + $0x8] sm:$0xff]
        %v6090 = vld [vmem:[%s47 + $0x10] sm:$0xff]
        %v6091 = vld [vmem:[%s47 + $0x18] sm:$0xff]
        %v6092 = vld [vmem:[%s47 + $0x20] sm:$0xff]
        %v6093 = vld [vmem:[%s47 + $0x28] sm:$0xff]
        %v6094 = vld [vmem:[%s47 + $0x30] sm:$0xff]
        %v6095 = vld [vmem:[%s47 + $0x38] sm:$0xff]
        %v6097 = vsel %vm1751, %v6088, 0
        %v6100 = vsel %vm1751, %v6089, 0
        %v6103 = vsel %vm1751, %v6090, 0
        %v6106 = vsel %vm1751, %v6091, 0
        %v6109 = vsel %vm1751, %v6092, 0
        %v6112 = vsel %vm1751, %v6093, 0
        %v6115 = vsel %vm1751, %v6094, 0
        %v6118 = vsel %vm1751, %v6095, 0
        %6120 = vmatprep.subr.mxu0 %v6081
        %6121 = vmatpush1.msra.mxu0 %v6080
        %6122 = vmatprep.subr.mxu0 %v6085
        %6123 = vmatpush1.msra.mxu0 %v6084
        %6124 = vmatprep.subr.mxu0 0.0
        %6125 = vmatpush1.msra.mxu0 0.0
        %6126 = vmatprep.subr.mxu0 0.0
        %6127 = vmatpush1.msra.mxu0 0.0
        %6128 = vmatprep.subr.mxu0 0.0
        %6129 = vmatpush1.msra.mxu0 0.0
        %6130 = vmatprep.subr.mxu0 0.0
        %6131 = vmatpush1.msra.mxu0 0.0
        %6132 = vmatprep.subr.mxu0 0.0
        %6133 = vmatpush1.msra.mxu0 0.0
        %6134 = vmatprep.subr.mxu0 0.0
        %6135 = vmatpush1.msra.mxu0 0.0
        %6136 = vmatprep.subr.mxu0 0.0
        %6137 = vmatpush1.msra.mxu0 0.0
        %6138 = vmatprep.subr.mxu0 0.0
        %6139 = vmatpush1.msra.mxu0 0.0
        %6140 = vmatprep.subr.mxu0 0.0
        %6141 = vmatpush1.msra.mxu0 0.0
        %6142 = vmatprep.subr.mxu0 0.0
        %6143 = vmatpush1.msra.mxu0 0.0
        %6144 = vmatprep.subr.mxu0 0.0
        %6145 = vmatpush1.msra.mxu0 0.0
        %6146 = vmatprep.subr.mxu0 0.0
        %6147 = vmatpush1.msra.mxu0 0.0
        %6148 = vmatprep.subr.mxu0 0.0
        %6149 = vmatpush1.msra.mxu0 0.0
        %6150 = vmatprep.subr.mxu0 0.0
        %6151 = vmatpush1.msra.mxu0 0.0
        %6152 = vmatprep.subr.mxu0 0.0
        %6153 = vmatpush1.msra.mxu0 0.0
        %6154 = vmatprep.subr.mxu0 0.0
        %6155 = vmatpush1.msra.mxu0 0.0
        %6156 = vmatprep.subr.mxu0 0.0
        %6157 = vmatpush1.msra.mxu0 0.0
        %6158 = vmatprep.subr.mxu0 0.0
        %6159 = vmatpush1.msra.mxu0 0.0
        %6160 = vmatprep.subr.mxu0 0.0
        %6161 = vmatpush1.msra.mxu0 0.0
        %6162 = vmatprep.subr.mxu0 0.0
        %6163 = vmatpush1.msra.mxu0 0.0
        %6164 = vmatprep.subr.mxu0 0.0
        %6165 = vmatpush1.msra.mxu0 0.0
        %6166 = vmatprep.subr.mxu0 0.0
        %6167 = vmatpush1.msra.mxu0 0.0
        %6168 = vmatprep.subr.mxu0 0.0
        %6169 = vmatpush1.msra.mxu0 0.0
        %6170 = vmatprep.subr.mxu0 0.0
        %6171 = vmatpush1.msra.mxu0 0.0
        %6172 = vmatprep.subr.mxu0 0.0
        %6173 = vmatpush1.msra.mxu0 0.0
        %6174 = vmatprep.subr.mxu0 0.0
        %6175 = vmatpush1.msra.mxu0 0.0
        %6176 = vmatprep.subr.mxu0 0.0
        %6177 = vmatpush1.msra.mxu0 0.0
        %6178 = vmatprep.subr.mxu0 0.0
        %6179 = vmatpush1.msra.mxu0 0.0
        %6180 = vmatprep.subr.mxu0 0.0
        %6181 = vmatpush1.msra.mxu0 0.0
        %6182 = vmatprep.subr.mxu0 0.0
        %6183 = vmatpush1.msra.mxu0 0.0
        %6184 = vmatprep.mubr.f32.mxu0 0.0
        %6185 = vmatmul.mubr.f32.gmra.mrb[0].mxu0 %v6097
        %v6186 = vpop.f32.mrb[0].mxu0
        %v6187 = vadd.f32 0.0, %v6186
        %v6188 = vpop.f32.mrb[0].mxu0
        %v6189 = vadd.f32 0.0, %v6188
        %6190 = vmatprep.mubr.f32.mxu0 0.0
        %6191 = vmatmul.mubr.f32.gmra.mrb[0].mxu0 %v6100
        %v6192 = vpop.f32.mrb[0].mxu0
        %v6193 = vadd.f32 0.0, %v6192
        %v6194 = vpop.f32.mrb[0].mxu0
        %v6195 = vadd.f32 0.0, %v6194
        %6196 = vmatprep.mubr.f32.mxu0 0.0
        %6197 = vmatmul.mubr.f32.gmra.mrb[0].mxu0 %v6103
        %v6198 = vpop.f32.mrb[0].mxu0
        %v6199 = vadd.f32 0.0, %v6198
        %v6200 = vpop.f32.mrb[0].mxu0
        %v6201 = vadd.f32 0.0, %v6200
        %6202 = vmatprep.mubr.f32.mxu0 0.0
        %6203 = vmatmul.mubr.f32.gmra.mrb[0].mxu0 %v6106
        %v6204 = vpop.f32.mrb[0].mxu0
        %v6205 = vadd.f32 0.0, %v6204
        %v6206 = vpop.f32.mrb[0].mxu0
        %v6207 = vadd.f32 0.0, %v6206
        %6208 = vmatprep.mubr.f32.mxu0 0.0
        %6209 = vmatmul.mubr.f32.gmra.mrb[0].mxu0 %v6109
        %v6210 = vpop.f32.mrb[0].mxu0
        %v6211 = vadd.f32 0.0, %v6210
        %v6212 = vpop.f32.mrb[0].mxu0
        %v6213 = vadd.f32 0.0, %v6212
        %6214 = vmatprep.mubr.f32.mxu0 0.0
        %6215 = vmatmul.mubr.f32.gmra.mrb[0].mxu0 %v6112
        %v6216 = vpop.f32.mrb[0].mxu0
        %v6217 = vadd.f32 0.0, %v6216
        %v6218 = vpop.f32.mrb[0].mxu0
        %v6219 = vadd.f32 0.0, %v6218
        %6220 = vmatprep.mubr.f32.mxu0 0.0
        %6221 = vmatmul.mubr.f32.gmra.mrb[0].mxu0 %v6115
        %v6222 = vpop.f32.mrb[0].mxu0
        %v6223 = vadd.f32 0.0, %v6222
        %v6224 = vpop.f32.mrb[0].mxu0
        %v6225 = vadd.f32 0.0, %v6224
        %6226 = vmatprep.mubr.f32.mxu0 0.0
        %6227 = vmatmul.mubr.f32.gmra.mrb[0].mxu0 %v6118
        %v6228 = vpop.f32.mrb[0].mxu0
        %v6229 = vadd.f32 0.0, %v6228
        %v6230 = vpop.f32.mrb[0].mxu0
        %v6231 = vadd.f32 0.0, %v6230
        %6232 = vdwg.mxu0
        %6233 = vmatprep.subr.mxu0 %v6083
        %6234 = vmatpush1.msra.mxu0 %v6082
        %6235 = vmatprep.subr.mxu0 %v6087
        %6236 = vmatpush1.msra.mxu0 %v6086
        %6237 = vmatprep.subr.mxu0 0.0
        %6238 = vmatpush1.msra.mxu0 0.0
        %6239 = vmatprep.subr.mxu0 0.0
        %6240 = vmatpush1.msra.mxu0 0.0
        %6241 = vmatprep.subr.mxu0 0.0
        %6242 = vmatpush1.msra.mxu0 0.0
        %6243 = vmatprep.subr.mxu0 0.0
        %6244 = vmatpush1.msra.mxu0 0.0
        %6245 = vmatprep.subr.mxu0 0.0
        %6246 = vmatpush1.msra.mxu0 0.0
        %6247 = vmatprep.subr.mxu0 0.0
        %6248 = vmatpush1.msra.mxu0 0.0
        %6249 = vmatprep.subr.mxu0 0.0
        %6250 = vmatpush1.msra.mxu0 0.0
        %6251 = vmatprep.subr.mxu0 0.0
        %6252 = vmatpush1.msra.mxu0 0.0
        %6253 = vmatprep.subr.mxu0 0.0
        %6254 = vmatpush1.msra.mxu0 0.0
        %6255 = vmatprep.subr.mxu0 0.0
        %6256 = vmatpush1.msra.mxu0 0.0
        %6257 = vmatprep.subr.mxu0 0.0
        %6258 = vmatpush1.msra.mxu0 0.0
        %6259 = vmatprep.subr.mxu0 0.0
        %6260 = vmatpush1.msra.mxu0 0.0
        %6261 = vmatprep.subr.mxu0 0.0
        %6262 = vmatpush1.msra.mxu0 0.0
        %6263 = vmatprep.subr.mxu0 0.0
        %6264 = vmatpush1.msra.mxu0 0.0
        %6265 = vmatprep.subr.mxu0 0.0
        %6266 = vmatpush1.msra.mxu0 0.0
        %6267 = vmatprep.subr.mxu0 0.0
        %6268 = vmatpush1.msra.mxu0 0.0
        %6269 = vmatprep.subr.mxu0 0.0
        %6270 = vmatpush1.msra.mxu0 0.0
        %6271 = vmatprep.subr.mxu0 0.0
        %6272 = vmatpush1.msra.mxu0 0.0
        %6273 = vmatprep.subr.mxu0 0.0
        %6274 = vmatpush1.msra.mxu0 0.0
        %6275 = vmatprep.subr.mxu0 0.0
        %6276 = vmatpush1.msra.mxu0 0.0
        %6277 = vmatprep.subr.mxu0 0.0
        %6278 = vmatpush1.msra.mxu0 0.0
        %6279 = vmatprep.subr.mxu0 0.0
        %6280 = vmatpush1.msra.mxu0 0.0
        %6281 = vmatprep.subr.mxu0 0.0
        %6282 = vmatpush1.msra.mxu0 0.0
        %6283 = vmatprep.subr.mxu0 0.0
        %6284 = vmatpush1.msra.mxu0 0.0
        %6285 = vmatprep.subr.mxu0 0.0
        %6286 = vmatpush1.msra.mxu0 0.0
        %6287 = vmatprep.subr.mxu0 0.0
        %6288 = vmatpush1.msra.mxu0 0.0
        %6289 = vmatprep.subr.mxu0 0.0
        %6290 = vmatpush1.msra.mxu0 0.0
        %6291 = vmatprep.subr.mxu0 0.0
        %6292 = vmatpush1.msra.mxu0 0.0
        %6293 = vmatprep.subr.mxu0 0.0
        %6294 = vmatpush1.msra.mxu0 0.0
        %6295 = vmatprep.subr.mxu0 0.0
        %6296 = vmatpush1.msra.mxu0 0.0
        %6297 = vmatprep.mubr.f32.mxu0 0.0
        %6298 = vmatmul.mubr.f32.gmra.mrb[0].mxu0 %v6097
        %v6299 = vpop.f32.mrb[0].mxu0
        %v6300 = vadd.f32 0.0, %v6299
        %v6301 = vpop.f32.mrb[0].mxu0
        %v6302 = vadd.f32 0.0, %v6301
        %6303 = vmatprep.mubr.f32.mxu0 0.0
        %6304 = vmatmul.mubr.f32.gmra.mrb[0].mxu0 %v6100
        %v6305 = vpop.f32.mrb[0].mxu0
        %v6306 = vadd.f32 0.0, %v6305
        %v6307 = vpop.f32.mrb[0].mxu0
        %v6308 = vadd.f32 0.0, %v6307
        %6309 = vmatprep.mubr.f32.mxu0 0.0
        %6310 = vmatmul.mubr.f32.gmra.mrb[0].mxu0 %v6103
        %v6311 = vpop.f32.mrb[0].mxu0
        %v6312 = vadd.f32 0.0, %v6311
        %v6313 = vpop.f32.mrb[0].mxu0
        %v6314 = vadd.f32 0.0, %v6313
        %6315 = vmatprep.mubr.f32.mxu0 0.0
        %6316 = vmatmul.mubr.f32.gmra.mrb[0].mxu0 %v6106
        %v6317 = vpop.f32.mrb[0].mxu0
        %v6318 = vadd.f32 0.0, %v6317
        %v6319 = vpop.f32.mrb[0].mxu0
        %v6320 = vadd.f32 0.0, %v6319
        %6321 = vmatprep.mubr.f32.mxu0 0.0
        %6322 = vmatmul.mubr.f32.gmra.mrb[0].mxu0 %v6109
        %v6323 = vpop.f32.mrb[0].mxu0
        %v6324 = vadd.f32 0.0, %v6323
        %v6325 = vpop.f32.mrb[0].mxu0
        %v6326 = vadd.f32 0.0, %v6325
        %6327 = vmatprep.mubr.f32.mxu0 0.0
        %6328 = vmatmul.mubr.f32.gmra.mrb[0].mxu0 %v6112
        %v6329 = vpop.f32.mrb[0].mxu0
        %v6330 = vadd.f32 0.0, %v6329
        %v6331 = vpop.f32.mrb[0].mxu0
        %v6332 = vadd.f32 0.0, %v6331
        %6333 = vmatprep.mubr.f32.mxu0 0.0
        %6334 = vmatmul.mubr.f32.gmra.mrb[0].mxu0 %v6115
        %v6335 = vpop.f32.mrb[0].mxu0
        %v6336 = vadd.f32 0.0, %v6335
        %v6337 = vpop.f32.mrb[0].mxu0
        %v6338 = vadd.f32 0.0, %v6337
        %6339 = vmatprep.mubr.f32.mxu0 0.0
        %6340 = vmatmul.mubr.f32.gmra.mrb[0].mxu0 %v6118
        %v6341 = vpop.f32.mrb[0].mxu0
        %v6342 = vadd.f32 0.0, %v6341
        %v6343 = vpop.f32.mrb[0].mxu0
        %v6344 = vadd.f32 0.0, %v6343
        %6345 = vdwg.mxu0
        %v6346 = vld [vmem:[%s51] sm:$0xff]
        %v6347 = vld [vmem:[%s51 + $0x8] sm:$0xff]
        %v6348 = vld [vmem:[%s51 + $0x10] sm:$0xff]
        %v6349 = vld [vmem:[%s51 + $0x18] sm:$0xff]
        %v6350 = vld [vmem:[%s51 + $0x20] sm:$0xff]
        %v6351 = vld [vmem:[%s51 + $0x28] sm:$0xff]
        %v6352 = vld [vmem:[%s51 + $0x30] sm:$0xff]
        %v6353 = vld [vmem:[%s51 + $0x38] sm:$0xff]
        %v6354 = vld [vmem:[%s51 + $0x40] sm:$0xff]
        %v6355 = vld [vmem:[%s51 + $0x48] sm:$0xff]
        %v6356 = vld [vmem:[%s51 + $0x50] sm:$0xff]
        %v6357 = vld [vmem:[%s51 + $0x58] sm:$0xff]
        %v6358 = vld [vmem:[%s51 + $0x60] sm:$0xff]
        %v6359 = vld [vmem:[%s51 + $0x68] sm:$0xff]
        %v6360 = vld [vmem:[%s51 + $0x70] sm:$0xff]
        %v6361 = vld [vmem:[%s51 + $0x78] sm:$0xff]
        %v6362 = vld [vmem:[%s51 + $0x80] sm:$0xff]
        %v6363 = vld [vmem:[%s51 + $0x88] sm:$0xff]
        %v6364 = vld [vmem:[%s51 + $0x90] sm:$0xff]
        %v6365 = vld [vmem:[%s51 + $0x98] sm:$0xff]
        %v6366 = vld [vmem:[%s51 + $0xa0] sm:$0xff]
        %v6367 = vld [vmem:[%s51 + $0xa8] sm:$0xff]
        %v6368 = vld [vmem:[%s51 + $0xb0] sm:$0xff]
        %v6369 = vld [vmem:[%s51 + $0xb8] sm:$0xff]
        %v6370 = vld [vmem:[%s51 + $0xc0] sm:$0xff]
        %v6371 = vld [vmem:[%s51 + $0xc8] sm:$0xff]
        %v6372 = vld [vmem:[%s51 + $0xd0] sm:$0xff]
        %v6373 = vld [vmem:[%s51 + $0xd8] sm:$0xff]
        %v6374 = vld [vmem:[%s51 + $0xe0] sm:$0xff]
        %v6375 = vld [vmem:[%s51 + $0xe8] sm:$0xff]
        %v6376 = vld [vmem:[%s51 + $0xf0] sm:$0xff]
        %v6377 = vld [vmem:[%s51 + $0xf8] sm:$0xff]
        %v6378 = vld [vmem:[%s51 + $0x100] sm:$0xff]
        %v6379 = vld [vmem:[%s51 + $0x108] sm:$0xff]
        %v6380 = vld [vmem:[%s51 + $0x110] sm:$0xff]
        %v6381 = vld [vmem:[%s51 + $0x118] sm:$0xff]
        %v6382 = vld [vmem:[%s51 + $0x120] sm:$0xff]
        %v6383 = vld [vmem:[%s51 + $0x128] sm:$0xff]
        %v6384 = vld [vmem:[%s51 + $0x130] sm:$0xff]
        %v6385 = vld [vmem:[%s51 + $0x138] sm:$0xff]
        %v6386 = vld [vmem:[%s51 + $0x140] sm:$0xff]
        %v6387 = vld [vmem:[%s51 + $0x148] sm:$0xff]
        %v6388 = vld [vmem:[%s51 + $0x150] sm:$0xff]
        %v6389 = vld [vmem:[%s51 + $0x158] sm:$0xff]
        %v6390 = vld [vmem:[%s51 + $0x160] sm:$0xff]
        %v6391 = vld [vmem:[%s51 + $0x168] sm:$0xff]
        %v6392 = vld [vmem:[%s51 + $0x170] sm:$0xff]
        %v6393 = vld [vmem:[%s51 + $0x178] sm:$0xff]
        %v6394 = vld [vmem:[%s51 + $0x180] sm:$0xff]
        %v6395 = vld [vmem:[%s51 + $0x188] sm:$0xff]
        %v6396 = vld [vmem:[%s51 + $0x190] sm:$0xff]
        %v6397 = vld [vmem:[%s51 + $0x198] sm:$0xff]
        %v6398 = vld [vmem:[%s51 + $0x1a0] sm:$0xff]
        %v6399 = vld [vmem:[%s51 + $0x1a8] sm:$0xff]
        %v6400 = vld [vmem:[%s51 + $0x1b0] sm:$0xff]
        %v6401 = vld [vmem:[%s51 + $0x1b8] sm:$0xff]
        %v6402 = vld [vmem:[%s51 + $0x1c0] sm:$0xff]
        %v6403 = vld [vmem:[%s51 + $0x1c8] sm:$0xff]
        %v6404 = vld [vmem:[%s51 + $0x1d0] sm:$0xff]
        %v6405 = vld [vmem:[%s51 + $0x1d8] sm:$0xff]
        %v6406 = vld [vmem:[%s51 + $0x1e0] sm:$0xff]
        %v6407 = vld [vmem:[%s51 + $0x1e8] sm:$0xff]
        %v6408 = vld [vmem:[%s51 + $0x1f0] sm:$0xff]
        %v6409 = vld [vmem:[%s51 + $0x1f8] sm:$0xff]
        %v6410 = vld [vmem:[%s51 + $0x200] sm:$0xff]
        %v6411 = vld [vmem:[%s51 + $0x208] sm:$0xff]
        %v6412 = vld [vmem:[%s51 + $0x210] sm:$0xff]
        %v6413 = vld [vmem:[%s51 + $0x218] sm:$0xff]
        %v6414 = vld [vmem:[%s51 + $0x220] sm:$0xff]
        %v6415 = vld [vmem:[%s51 + $0x228] sm:$0xff]
        %v6416 = vld [vmem:[%s51 + $0x230] sm:$0xff]
        %v6417 = vld [vmem:[%s51 + $0x238] sm:$0xff]
        %6418 = vmatprep.subr.mxu0 %v6189
        %6419 = vmatpush1.xpose.msra.mxu0 %v6187
        %6420 = vmatprep.subr.mxu0 %v6195
        %6421 = vmatpush1.xpose.msra.mxu0 %v6193
        %6422 = vmatprep.subr.mxu0 %v6201
        %6423 = vmatpush1.xpose.msra.mxu0 %v6199
        %6424 = vmatprep.subr.mxu0 %v6207
        %6425 = vmatpush1.xpose.msra.mxu0 %v6205
        %6426 = vmatprep.subr.mxu0 %v6213
        %6427 = vmatpush1.xpose.msra.mxu0 %v6211
        %6428 = vmatprep.subr.mxu0 %v6219
        %6429 = vmatpush1.xpose.msra.mxu0 %v6217
        %6430 = vmatprep.subr.mxu0 %v6225
        %6431 = vmatpush1.xpose.msra.mxu0 %v6223
        %6432 = vmatprep.subr.mxu0 %v6231
        %6433 = vmatpush1.xpose.msra.mxu0 %v6229
        %6434 = vmatprep.subr.mxu0 0.0
        %6435 = vmatpush1.xpose.msra.mxu0 0.0
        %6436 = vmatprep.subr.mxu0 0.0
        %6437 = vmatpush1.xpose.msra.mxu0 0.0
        %6438 = vmatprep.subr.mxu0 0.0
        %6439 = vmatpush1.xpose.msra.mxu0 0.0
        %6440 = vmatprep.subr.mxu0 0.0
        %6441 = vmatpush1.xpose.msra.mxu0 0.0
        %6442 = vmatprep.subr.mxu0 0.0
        %6443 = vmatpush1.xpose.msra.mxu0 0.0
        %6444 = vmatprep.subr.mxu0 0.0
        %6445 = vmatpush1.xpose.msra.mxu0 0.0
        %6446 = vmatprep.subr.mxu0 0.0
        %6447 = vmatpush1.xpose.msra.mxu0 0.0
        %6448 = vmatprep.subr.mxu0 0.0
        %6449 = vmatpush1.xpose.msra.mxu0 0.0
        %6450 = vmatprep.subr.mxu0 0.0
        %6451 = vmatpush1.xpose.msra.mxu0 0.0
        %6452 = vmatprep.subr.mxu0 0.0
        %6453 = vmatpush1.xpose.msra.mxu0 0.0
        %6454 = vmatprep.subr.mxu0 0.0
        %6455 = vmatpush1.xpose.msra.mxu0 0.0
        %6456 = vmatprep.subr.mxu0 0.0
        %6457 = vmatpush1.xpose.msra.mxu0 0.0
        %6458 = vmatprep.subr.mxu0 0.0
        %6459 = vmatpush1.xpose.msra.mxu0 0.0
        %6460 = vmatprep.subr.mxu0 0.0
        %6461 = vmatpush1.xpose.msra.mxu0 0.0
        %6462 = vmatprep.subr.mxu0 0.0
        %6463 = vmatpush1.xpose.msra.mxu0 0.0
        %6464 = vmatprep.subr.mxu0 0.0
        %6465 = vmatpush1.xpose.msra.mxu0 0.0
        %6466 = vmatprep.subr.mxu0 0.0
        %6467 = vmatpush1.xpose.msra.mxu0 0.0
        %6468 = vmatprep.subr.mxu0 0.0
        %6469 = vmatpush1.xpose.msra.mxu0 0.0
        %6470 = vmatprep.subr.mxu0 0.0
        %6471 = vmatpush1.xpose.msra.mxu0 0.0
        %6472 = vmatprep.subr.mxu0 0.0
        %6473 = vmatpush1.xpose.msra.mxu0 0.0
        %6474 = vmatprep.subr.mxu0 0.0
        %6475 = vmatpush1.xpose.msra.mxu0 0.0
        %6476 = vmatprep.subr.mxu0 0.0
        %6477 = vmatpush1.xpose.msra.mxu0 0.0
        %6478 = vmatprep.subr.mxu0 0.0
        %6479 = vmatpush1.xpose.msra.mxu0 0.0
        %6480 = vmatprep.subr.mxu0 0.0
        %6481 = vmatpush1.xpose.msra.mxu0 0.0
        %6482 = vmatprep.mubr.f32.mxu0 %v6347
        %6483 = vmatmul.mubr.f32.gmra.mrb[0].mxu0 %v6346
        %v6484 = vpop.f32.mrb[0].mxu0
        %v6485 = vadd.f32 0.0, %v6484
        %v6486 = vpop.f32.mrb[0].mxu0
        %6487 = vmatprep.mubr.f32.mxu0 %v6351
        %6488 = vmatmul.mubr.f32.gmra.mrb[0].mxu0 %v6350
        %v6489 = vpop.f32.mrb[0].mxu0
        %v6490 = vadd.f32 0.0, %v6489
        %v6491 = vpop.f32.mrb[0].mxu0
        %6492 = vmatprep.mubr.f32.mxu0 %v6355
        %6493 = vmatmul.mubr.f32.gmra.mrb[0].mxu0 %v6354
        %v6494 = vpop.f32.mrb[0].mxu0
        %v6495 = vadd.f32 0.0, %v6494
        %v6496 = vpop.f32.mrb[0].mxu0
        %6497 = vmatprep.mubr.f32.mxu0 %v6359
        %6498 = vmatmul.mubr.f32.gmra.mrb[0].mxu0 %v6358
        %v6499 = vpop.f32.mrb[0].mxu0
        %v6500 = vadd.f32 0.0, %v6499
        %v6501 = vpop.f32.mrb[0].mxu0
        %6502 = vmatprep.mubr.f32.mxu0 %v6363
        %6503 = vmatmul.mubr.f32.gmra.mrb[0].mxu0 %v6362
        %v6504 = vpop.f32.mrb[0].mxu0
        %v6505 = vadd.f32 0.0, %v6504
        %v6506 = vpop.f32.mrb[0].mxu0
        %6507 = vmatprep.mubr.f32.mxu0 %v6367
        %6508 = vmatmul.mubr.f32.gmra.mrb[0].mxu0 %v6366
        %v6509 = vpop.f32.mrb[0].mxu0
        %v6510 = vadd.f32 0.0, %v6509
        %v6511 = vpop.f32.mrb[0].mxu0
        %6512 = vmatprep.mubr.f32.mxu0 %v6371
        %6513 = vmatmul.mubr.f32.gmra.mrb[0].mxu0 %v6370
        %v6514 = vpop.f32.mrb[0].mxu0
        %v6515 = vadd.f32 0.0, %v6514
        %v6516 = vpop.f32.mrb[0].mxu0
        %6517 = vmatprep.mubr.f32.mxu0 %v6375
        %6518 = vmatmul.mubr.f32.gmra.mrb[0].mxu0 %v6374
        %v6519 = vpop.f32.mrb[0].mxu0
        %v6520 = vadd.f32 0.0, %v6519
        %v6521 = vpop.f32.mrb[0].mxu0
        %6522 = vmatprep.mubr.f32.mxu0 %v6379
        %6523 = vmatmul.mubr.f32.gmra.mrb[0].mxu0 %v6378
        %v6524 = vpop.f32.mrb[0].mxu0
        %v6525 = vadd.f32 0.0, %v6524
        %v6526 = vpop.f32.mrb[0].mxu0
        %6527 = vmatprep.mubr.f32.mxu0 %v6383
        %6528 = vmatmul.mubr.f32.gmra.mrb[0].mxu0 %v6382
        %v6529 = vpop.f32.mrb[0].mxu0
        %v6530 = vadd.f32 0.0, %v6529
        %v6531 = vpop.f32.mrb[0].mxu0
        %6532 = vmatprep.mubr.f32.mxu0 %v6387
        %6533 = vmatmul.mubr.f32.gmra.mrb[0].mxu0 %v6386
        %v6534 = vpop.f32.mrb[0].mxu0
        %v6535 = vadd.f32 0.0, %v6534
        %v6536 = vpop.f32.mrb[0].mxu0
        %6537 = vmatprep.mubr.f32.mxu0 %v6391
        %6538 = vmatmul.mubr.f32.gmra.mrb[0].mxu0 %v6390
        %v6539 = vpop.f32.mrb[0].mxu0
        %v6540 = vadd.f32 0.0, %v6539
        %v6541 = vpop.f32.mrb[0].mxu0
        %6542 = vmatprep.mubr.f32.mxu0 %v6395
        %6543 = vmatmul.mubr.f32.gmra.mrb[0].mxu0 %v6394
        %v6544 = vpop.f32.mrb[0].mxu0
        %v6545 = vadd.f32 0.0, %v6544
        %v6546 = vpop.f32.mrb[0].mxu0
        %6547 = vmatprep.mubr.f32.mxu0 %v6399
        %6548 = vmatmul.mubr.f32.gmra.mrb[0].mxu0 %v6398
        %v6549 = vpop.f32.mrb[0].mxu0
        %v6550 = vadd.f32 0.0, %v6549
        %v6551 = vpop.f32.mrb[0].mxu0
        %6552 = vmatprep.mubr.f32.mxu0 %v6403
        %6553 = vmatmul.mubr.f32.gmra.mrb[0].mxu0 %v6402
        %v6554 = vpop.f32.mrb[0].mxu0
        %v6555 = vadd.f32 0.0, %v6554
        %v6556 = vpop.f32.mrb[0].mxu0
        %6557 = vmatprep.mubr.f32.mxu0 %v6407
        %6558 = vmatmul.mubr.f32.gmra.mrb[0].mxu0 %v6406
        %v6559 = vpop.f32.mrb[0].mxu0
        %v6560 = vadd.f32 0.0, %v6559
        %v6561 = vpop.f32.mrb[0].mxu0
        %6562 = vmatprep.mubr.f32.mxu0 %v6411
        %6563 = vmatmul.mubr.f32.gmra.mrb[0].mxu0 %v6410
        %v6564 = vpop.f32.mrb[0].mxu0
        %v6565 = vadd.f32 0.0, %v6564
        %v6566 = vpop.f32.mrb[0].mxu0
        %6567 = vmatprep.mubr.f32.mxu0 %v6415
        %6568 = vmatmul.mubr.f32.gmra.mrb[0].mxu0 %v6414
        %v6569 = vpop.f32.mrb[0].mxu0
        %v6570 = vadd.f32 0.0, %v6569
        %v6571 = vpop.f32.mrb[0].mxu0
        %6572 = vdwg.mxu0
        %6573 = vmatprep.subr.mxu0 %v6302
        %6574 = vmatpush1.xpose.msra.mxu0 %v6300
        %6575 = vmatprep.subr.mxu0 %v6308
        %6576 = vmatpush1.xpose.msra.mxu0 %v6306
        %6577 = vmatprep.subr.mxu0 %v6314
        %6578 = vmatpush1.xpose.msra.mxu0 %v6312
        %6579 = vmatprep.subr.mxu0 %v6320
        %6580 = vmatpush1.xpose.msra.mxu0 %v6318
        %6581 = vmatprep.subr.mxu0 %v6326
        %6582 = vmatpush1.xpose.msra.mxu0 %v6324
        %6583 = vmatprep.subr.mxu0 %v6332
        %6584 = vmatpush1.xpose.msra.mxu0 %v6330
        %6585 = vmatprep.subr.mxu0 %v6338
        %6586 = vmatpush1.xpose.msra.mxu0 %v6336
        %6587 = vmatprep.subr.mxu0 %v6344
        %6588 = vmatpush1.xpose.msra.mxu0 %v6342
        %6589 = vmatprep.subr.mxu0 0.0
        %6590 = vmatpush1.xpose.msra.mxu0 0.0
        %6591 = vmatprep.subr.mxu0 0.0
        %6592 = vmatpush1.xpose.msra.mxu0 0.0
        %6593 = vmatprep.subr.mxu0 0.0
        %6594 = vmatpush1.xpose.msra.mxu0 0.0
        %6595 = vmatprep.subr.mxu0 0.0
        %6596 = vmatpush1.xpose.msra.mxu0 0.0
        %6597 = vmatprep.subr.mxu0 0.0
        %6598 = vmatpush1.xpose.msra.mxu0 0.0
        %6599 = vmatprep.subr.mxu0 0.0
        %6600 = vmatpush1.xpose.msra.mxu0 0.0
        %6601 = vmatprep.subr.mxu0 0.0
        %6602 = vmatpush1.xpose.msra.mxu0 0.0
        %6603 = vmatprep.subr.mxu0 0.0
        %6604 = vmatpush1.xpose.msra.mxu0 0.0
        %6605 = vmatprep.subr.mxu0 0.0
        %6606 = vmatpush1.xpose.msra.mxu0 0.0
        %6607 = vmatprep.subr.mxu0 0.0
        %6608 = vmatpush1.xpose.msra.mxu0 0.0
        %6609 = vmatprep.subr.mxu0 0.0
        %6610 = vmatpush1.xpose.msra.mxu0 0.0
        %6611 = vmatprep.subr.mxu0 0.0
        %6612 = vmatpush1.xpose.msra.mxu0 0.0
        %6613 = vmatprep.subr.mxu0 0.0
        %6614 = vmatpush1.xpose.msra.mxu0 0.0
        %6615 = vmatprep.subr.mxu0 0.0
        %6616 = vmatpush1.xpose.msra.mxu0 0.0
        %6617 = vmatprep.subr.mxu0 0.0
        %6618 = vmatpush1.xpose.msra.mxu0 0.0
        %6619 = vmatprep.subr.mxu0 0.0
        %6620 = vmatpush1.xpose.msra.mxu0 0.0
        %6621 = vmatprep.subr.mxu0 0.0
        %6622 = vmatpush1.xpose.msra.mxu0 0.0
        %6623 = vmatprep.subr.mxu0 0.0
        %6624 = vmatpush1.xpose.msra.mxu0 0.0
        %6625 = vmatprep.subr.mxu0 0.0
        %6626 = vmatpush1.xpose.msra.mxu0 0.0
        %6627 = vmatprep.subr.mxu0 0.0
        %6628 = vmatpush1.xpose.msra.mxu0 0.0
        %6629 = vmatprep.subr.mxu0 0.0
        %6630 = vmatpush1.xpose.msra.mxu0 0.0
        %6631 = vmatprep.subr.mxu0 0.0
        %6632 = vmatpush1.xpose.msra.mxu0 0.0
        %6633 = vmatprep.subr.mxu0 0.0
        %6634 = vmatpush1.xpose.msra.mxu0 0.0
        %6635 = vmatprep.subr.mxu0 0.0
        %6636 = vmatpush1.xpose.msra.mxu0 0.0
        %6637 = vmatprep.mubr.f32.mxu0 %v6349
        %6638 = vmatmul.mubr.f32.gmra.mrb[0].mxu0 %v6348
        %v6639 = vpop.f32.mrb[0].mxu0
        %v6640 = vadd.f32 %v6485, %v6639
        %v6641 = vpop.f32.mrb[0].mxu0
        %6642 = vmatprep.mubr.f32.mxu0 %v6353
        %6643 = vmatmul.mubr.f32.gmra.mrb[0].mxu0 %v6352
        %v6644 = vpop.f32.mrb[0].mxu0
        %v6645 = vadd.f32 %v6490, %v6644
        %v6646 = vpop.f32.mrb[0].mxu0
        %6647 = vmatprep.mubr.f32.mxu0 %v6357
        %6648 = vmatmul.mubr.f32.gmra.mrb[0].mxu0 %v6356
        %v6649 = vpop.f32.mrb[0].mxu0
        %v6650 = vadd.f32 %v6495, %v6649
        %v6651 = vpop.f32.mrb[0].mxu0
        %6652 = vmatprep.mubr.f32.mxu0 %v6361
        %6653 = vmatmul.mubr.f32.gmra.mrb[0].mxu0 %v6360
        %v6654 = vpop.f32.mrb[0].mxu0
        %v6655 = vadd.f32 %v6500, %v6654
        %v6656 = vpop.f32.mrb[0].mxu0
        %6657 = vmatprep.mubr.f32.mxu0 %v6365
        %6658 = vmatmul.mubr.f32.gmra.mrb[0].mxu0 %v6364
        %v6659 = vpop.f32.mrb[0].mxu0
        %v6660 = vadd.f32 %v6505, %v6659
        %v6661 = vpop.f32.mrb[0].mxu0
        %6662 = vmatprep.mubr.f32.mxu0 %v6369
        %6663 = vmatmul.mubr.f32.gmra.mrb[0].mxu0 %v6368
        %v6664 = vpop.f32.mrb[0].mxu0
        %v6665 = vadd.f32 %v6510, %v6664
        %v6666 = vpop.f32.mrb[0].mxu0
        %6667 = vmatprep.mubr.f32.mxu0 %v6373
        %6668 = vmatmul.mubr.f32.gmra.mrb[0].mxu0 %v6372
        %v6669 = vpop.f32.mrb[0].mxu0
        %v6670 = vadd.f32 %v6515, %v6669
        %v6671 = vpop.f32.mrb[0].mxu0
        %6672 = vmatprep.mubr.f32.mxu0 %v6377
        %6673 = vmatmul.mubr.f32.gmra.mrb[0].mxu0 %v6376
        %v6674 = vpop.f32.mrb[0].mxu0
        %v6675 = vadd.f32 %v6520, %v6674
        %v6676 = vpop.f32.mrb[0].mxu0
        %6677 = vmatprep.mubr.f32.mxu0 %v6381
        %6678 = vmatmul.mubr.f32.gmra.mrb[0].mxu0 %v6380
        %v6679 = vpop.f32.mrb[0].mxu0
        %v6680 = vadd.f32 %v6525, %v6679
        %v6681 = vpop.f32.mrb[0].mxu0
        %6682 = vmatprep.mubr.f32.mxu0 %v6385
        %6683 = vmatmul.mubr.f32.gmra.mrb[0].mxu0 %v6384
        %v6684 = vpop.f32.mrb[0].mxu0
        %v6685 = vadd.f32 %v6530, %v6684
        %v6686 = vpop.f32.mrb[0].mxu0
        %6687 = vmatprep.mubr.f32.mxu0 %v6389
        %6688 = vmatmul.mubr.f32.gmra.mrb[0].mxu0 %v6388
        %v6689 = vpop.f32.mrb[0].mxu0
        %v6690 = vadd.f32 %v6535, %v6689
        %v6691 = vpop.f32.mrb[0].mxu0
        %6692 = vmatprep.mubr.f32.mxu0 %v6393
        %6693 = vmatmul.mubr.f32.gmra.mrb[0].mxu0 %v6392
        %v6694 = vpop.f32.mrb[0].mxu0
        %v6695 = vadd.f32 %v6540, %v6694
        %v6696 = vpop.f32.mrb[0].mxu0
        %6697 = vmatprep.mubr.f32.mxu0 %v6397
        %6698 = vmatmul.mubr.f32.gmra.mrb[0].mxu0 %v6396
        %v6699 = vpop.f32.mrb[0].mxu0
        %v6700 = vadd.f32 %v6545, %v6699
        %v6701 = vpop.f32.mrb[0].mxu0
        %6702 = vmatprep.mubr.f32.mxu0 %v6401
        %6703 = vmatmul.mubr.f32.gmra.mrb[0].mxu0 %v6400
        %v6704 = vpop.f32.mrb[0].mxu0
        %v6705 = vadd.f32 %v6550, %v6704
        %v6706 = vpop.f32.mrb[0].mxu0
        %6707 = vmatprep.mubr.f32.mxu0 %v6405
        %6708 = vmatmul.mubr.f32.gmra.mrb[0].mxu0 %v6404
        %v6709 = vpop.f32.mrb[0].mxu0
        %v6710 = vadd.f32 %v6555, %v6709
        %v6711 = vpop.f32.mrb[0].mxu0
        %6712 = vmatprep.mubr.f32.mxu0 %v6409
        %6713 = vmatmul.mubr.f32.gmra.mrb[0].mxu0 %v6408
        %v6714 = vpop.f32.mrb[0].mxu0
        %v6715 = vadd.f32 %v6560, %v6714
        %v6716 = vpop.f32.mrb[0].mxu0
        %6717 = vmatprep.mubr.f32.mxu0 %v6413
        %6718 = vmatmul.mubr.f32.gmra.mrb[0].mxu0 %v6412
        %v6719 = vpop.f32.mrb[0].mxu0
        %v6720 = vadd.f32 %v6565, %v6719
        %v6721 = vpop.f32.mrb[0].mxu0
        %6722 = vmatprep.mubr.f32.mxu0 %v6417
        %6723 = vmatmul.mubr.f32.gmra.mrb[0].mxu0 %v6416
        %v6724 = vpop.f32.mrb[0].mxu0
        %v6725 = vadd.f32 %v6570, %v6724
        %v6726 = vpop.f32.mrb[0].mxu0
        %6727 = vdwg.mxu0
        %v6728 = vld [vmem:[%s53] sm:$0xff]
        %v6729 = vld [vmem:[%s53 + $0x8] sm:$0xff]
        %v6730 = vld [vmem:[%s55] sm:$0xff]
        %v6731 = vld [vmem:[%s55 + $0x8] sm:$0xff]
        %6734 = vrot.lane.b32.xlu0 %v6640, 73
        %v6735 = vpop.permute.xlu0 %6734
        %6736 = vrot.lane.b32.xlu0 %v6645, 73
        %v6737 = vpop.permute.xlu0 %6736
        %6740 = vrot.lane.b32.xlu0 %v6640, 9
        %v6741 = vpop.permute.xlu0 %6740
        %6742 = vrot.lane.b32.xlu0 %v6645, 9
        %v6743 = vpop.permute.xlu0 %6742
        %vm6746 = vcmask 72704
        %v6747 = vsel %vm6746, %v6735, %v6741
        %v6748 = vsel %vm6746, %v6737, %v6743
        %v6749 = vld [vmem:[%s49] sm:$0x1]
        %v6751 = vlaneseq
        %v6752 = vshrl.u32 %v6751, 7
        %v6753 = vsub.s32 0, %v6752
        %v6754 = vrot.slane %v6749, %v6753
        %v6756 = vmul.f32 %v6747, %v6754
        %v6757 = vmul.f32 %v6748, %v6754
        %6760 = vrot.lane.b32.xlu0 %v6650, 72
        %v6761 = vpop.permute.xlu0 %6760
        %6762 = vrot.lane.b32.xlu0 %v6655, 72
        %v6763 = vpop.permute.xlu0 %6762
        %6766 = vrot.lane.b32.xlu0 %v6650, 8
        %v6767 = vpop.permute.xlu0 %6766
        %6768 = vrot.lane.b32.xlu0 %v6655, 8
        %v6769 = vpop.permute.xlu0 %6768
        %v6772 = vsel %vm1667, %v6761, %v6767
        %v6773 = vsel %vm1667, %v6763, %v6769
        %s6774 = scalar_lea.vmem %s49, 1
        %v6775 = vld [vmem:[%s6774] sm:$0x1]
        %v6777 = vlaneseq
        %v6778 = vshrl.u32 %v6777, 7
        %v6779 = vsub.s32 0, %v6778
        %v6780 = vrot.slane %v6775, %v6779
        %v6782 = vmul.f32 %v6772, %v6780
        %v6783 = vmul.f32 %v6773, %v6780
        %v6784 = vadd.f32 %v6756, %v6782
        %v6785 = vadd.f32 %v6757, %v6783
        %6788 = vrot.lane.b32.xlu0 %v6660, 71
        %v6789 = vpop.permute.xlu0 %6788
        %6790 = vrot.lane.b32.xlu0 %v6665, 71
        %v6791 = vpop.permute.xlu0 %6790
        %6794 = vrot.lane.b32.xlu0 %v6660, 7
        %v6795 = vpop.permute.xlu0 %6794
        %6796 = vrot.lane.b32.xlu0 %v6665, 7
        %v6797 = vpop.permute.xlu0 %6796
        %vm6800 = vcmask 56320
        %v6801 = vsel %vm6800, %v6789, %v6795
        %v6802 = vsel %vm6800, %v6791, %v6797
        %s6803 = scalar_lea.vmem %s49, 2
        %v6804 = vld [vmem:[%s6803] sm:$0x1]
        %v6806 = vlaneseq
        %v6807 = vshrl.u32 %v6806, 7
        %v6808 = vsub.s32 0, %v6807
        %v6809 = vrot.slane %v6804, %v6808
        %v6811 = vmul.f32 %v6801, %v6809
        %v6812 = vmul.f32 %v6802, %v6809
        %v6813 = vadd.f32 %v6784, %v6811
        %v6814 = vadd.f32 %v6785, %v6812
        %6817 = vrot.lane.b32.xlu0 %v6670, 65
        %v6818 = vpop.permute.xlu0 %6817
        %6819 = vrot.lane.b32.xlu0 %v6675, 65
        %v6820 = vpop.permute.xlu0 %6819
        %6823 = vrot.lane.b32.xlu0 %v6670, 1
        %v6824 = vpop.permute.xlu0 %6823
        %6825 = vrot.lane.b32.xlu0 %v6675, 1
        %v6826 = vpop.permute.xlu0 %6825
        %vm6829 = vcmask 7168
        %v6830 = vsel %vm6829, %v6818, %v6824
        %v6831 = vsel %vm6829, %v6820, %v6826
        %s6832 = scalar_lea.vmem %s49, 3
        %v6833 = vld [vmem:[%s6832] sm:$0x1]
        %v6835 = vlaneseq
        %v6836 = vshrl.u32 %v6835, 7
        %v6837 = vsub.s32 0, %v6836
        %v6838 = vrot.slane %v6833, %v6837
        %v6840 = vmul.f32 %v6830, %v6838
        %v6841 = vmul.f32 %v6831, %v6838
        %v6842 = vadd.f32 %v6813, %v6840
        %v6843 = vadd.f32 %v6814, %v6841
        %v6844 = vadd.f32 %v6842, %v6680
        %v6845 = vadd.f32 %v6843, %v6685
        %6848 = vrot.lane.b32.xlu0 %v6690, 127
        %v6849 = vpop.permute.xlu0 %6848
        %6850 = vrot.lane.b32.xlu0 %v6695, 127
        %v6851 = vpop.permute.xlu0 %6850
        %6854 = vrot.lane.b32.xlu0 %v6690, 63
        %v6855 = vpop.permute.xlu0 %6854
        %6856 = vrot.lane.b32.xlu0 %v6695, 63
        %v6857 = vpop.permute.xlu0 %6856
        %vm6860 = vcmask 515072
        %v6861 = vsel %vm6860, %v6849, %v6855
        %v6862 = vsel %vm6860, %v6851, %v6857
        %s6863 = scalar_lea.vmem %s49, 5
        %v6864 = vld [vmem:[%s6863] sm:$0x1]
        %v6866 = vlaneseq
        %v6867 = vshrl.u32 %v6866, 7
        %v6868 = vsub.s32 0, %v6867
        %v6869 = vrot.slane %v6864, %v6868
        %v6871 = vmul.f32 %v6861, %v6869
        %v6872 = vmul.f32 %v6862, %v6869
        %v6873 = vadd.f32 %v6844, %v6871
        %v6874 = vadd.f32 %v6845, %v6872
        %6877 = vrot.lane.b32.xlu0 %v6700, 121
        %v6878 = vpop.permute.xlu0 %6877
        %6879 = vrot.lane.b32.xlu0 %v6705, 121
        %v6880 = vpop.permute.xlu0 %6879
        %6883 = vrot.lane.b32.xlu0 %v6700, 57
        %v6884 = vpop.permute.xlu0 %6883
        %6885 = vrot.lane.b32.xlu0 %v6705, 57
        %v6886 = vpop.permute.xlu0 %6885
        %vm6889 = vcmask 465920
        %v6890 = vsel %vm6889, %v6878, %v6884
        %v6891 = vsel %vm6889, %v6880, %v6886
        %s6892 = scalar_lea.vmem %s49, 6
        %v6893 = vld [vmem:[%s6892] sm:$0x1]
        %v6895 = vlaneseq
        %v6896 = vshrl.u32 %v6895, 7
        %v6897 = vsub.s32 0, %v6896
        %v6898 = vrot.slane %v6893, %v6897
        %v6900 = vmul.f32 %v6890, %v6898
        %v6901 = vmul.f32 %v6891, %v6898
        %v6902 = vadd.f32 %v6873, %v6900
        %v6903 = vadd.f32 %v6874, %v6901
        %6906 = vrot.lane.b32.xlu0 %v6710, 120
        %v6907 = vpop.permute.xlu0 %6906
        %6908 = vrot.lane.b32.xlu0 %v6715, 120
        %v6909 = vpop.permute.xlu0 %6908
        %6912 = vrot.lane.b32.xlu0 %v6710, 56
        %v6913 = vpop.permute.xlu0 %6912
        %6914 = vrot.lane.b32.xlu0 %v6715, 56
        %v6915 = vpop.permute.xlu0 %6914
        %vm6918 = vcmask 457728
        %v6919 = vsel %vm6918, %v6907, %v6913
        %v6920 = vsel %vm6918, %v6909, %v6915
        %s6921 = scalar_lea.vmem %s49, 7
        %v6922 = vld [vmem:[%s6921] sm:$0x1]
        %v6924 = vlaneseq
        %v6925 = vshrl.u32 %v6924, 7
        %v6926 = vsub.s32 0, %v6925
        %v6927 = vrot.slane %v6922, %v6926
        %v6929 = vmul.f32 %v6919, %v6927
        %v6930 = vmul.f32 %v6920, %v6927
        %v6931 = vadd.f32 %v6902, %v6929
        %v6932 = vadd.f32 %v6903, %v6930
        %6935 = vrot.lane.b32.xlu0 %v6720, 119
        %v6936 = vpop.permute.xlu0 %6935
        %6937 = vrot.lane.b32.xlu0 %v6725, 119
        %v6938 = vpop.permute.xlu0 %6937
        %6941 = vrot.lane.b32.xlu0 %v6720, 55
        %v6942 = vpop.permute.xlu0 %6941
        %6943 = vrot.lane.b32.xlu0 %v6725, 55
        %v6944 = vpop.permute.xlu0 %6943
        %vm6947 = vcmask 449536
        %v6948 = vsel %vm6947, %v6936, %v6942
        %v6949 = vsel %vm6947, %v6938, %v6944
        %s6950 = scalar_lea.vmem %s49, 8
        %v6951 = vld [vmem:[%s6950] sm:$0x1]
        %v6953 = vlaneseq
        %v6954 = vshrl.u32 %v6953, 7
        %v6955 = vsub.s32 0, %v6954
        %v6956 = vrot.slane %v6951, %v6955
        %v6958 = vmul.f32 %v6948, %v6956
        %v6959 = vmul.f32 %v6949, %v6956
        %v6960 = vadd.f32 %v6931, %v6958
        %v6961 = vadd.f32 %v6932, %v6959
        %6963 = vset.pattern.permute.xlu0 0
        %6964 = vperm.xlu0 %6963, %v6728
        %v6965 = vpop.permute.xlu0 %6964
        %6968 = vset.pattern.permute.xlu0 0
        %6969 = vperm.xlu0 %6968, %v6729
        %v6970 = vpop.permute.xlu0 %6969
        %v6972 = vmul.f32 %v6960, %v6965
        %v6973 = vmul.f32 %v6961, %v6970
        %6975 = vset.pattern.permute.xlu0 0
        %6976 = vperm.xlu0 %6975, %v6730
        %v6977 = vpop.permute.xlu0 %6976
        %6980 = vset.pattern.permute.xlu0 0
        %6981 = vperm.xlu0 %6980, %v6731
        %v6982 = vpop.permute.xlu0 %6981
        %v6984 = vadd.f32 %v6972, %v6977
        %v6985 = vadd.f32 %v6973, %v6982
        %v6986 = vmax.f32 %v6984, 0.0
        %v6987 = vmax.f32 %v6985, 0.0
        %v6988 = vld [vmem:[%s57] sm:$0xff]
        %v6989 = vld [vmem:[%s57 + $0x8] sm:$0xff]
        %v6990 = vld [vmem:[%s57 + $0x10] sm:$0xff]
        %v6991 = vld [vmem:[%s57 + $0x18] sm:$0xff]
        %v6992 = vld [vmem:[%s57 + $0x20] sm:$0xff]
        %v6993 = vld [vmem:[%s57 + $0x28] sm:$0xff]
        %v6994 = vld [vmem:[%s57 + $0x30] sm:$0xff]
        %v6995 = vld [vmem:[%s57 + $0x38] sm:$0xff]
        %v6996 = vld [vmem:[%s57 + $0x40] sm:$0xff]
        %v6997 = vld [vmem:[%s57 + $0x48] sm:$0xff]
        %v6998 = vld [vmem:[%s57 + $0x50] sm:$0xff]
        %v6999 = vld [vmem:[%s57 + $0x58] sm:$0xff]
        %v7000 = vld [vmem:[%s57 + $0x60] sm:$0xff]
        %v7001 = vld [vmem:[%s57 + $0x68] sm:$0xff]
        %v7002 = vld [vmem:[%s57 + $0x70] sm:$0xff]
        %v7003 = vld [vmem:[%s57 + $0x78] sm:$0xff]
        %v7004 = vld [vmem:[%s57 + $0x80] sm:$0xff]
        %v7005 = vld [vmem:[%s57 + $0x88] sm:$0xff]
        %v7007 = vsel %vm1751, %v6988, 0
        %v7010 = vsel %vm1751, %v6989, 0
        %v7013 = vsel %vm1751, %v6990, 0
        %v7016 = vsel %vm1751, %v6991, 0
        %v7019 = vsel %vm1751, %v6992, 0
        %v7022 = vsel %vm1751, %v6993, 0
        %v7025 = vsel %vm1751, %v6994, 0
        %v7028 = vsel %vm1751, %v6995, 0
        %v7031 = vsel %vm1751, %v6996, 0
        %v7034 = vsel %vm1751, %v6997, 0
        %v7037 = vsel %vm1751, %v6998, 0
        %v7040 = vsel %vm1751, %v6999, 0
        %v7043 = vsel %vm1751, %v7000, 0
        %v7046 = vsel %vm1751, %v7001, 0
        %v7049 = vsel %vm1751, %v7002, 0
        %v7052 = vsel %vm1751, %v7003, 0
        %v7055 = vsel %vm1751, %v7004, 0
        %v7058 = vsel %vm1751, %v7005, 0
        %7060 = vmatprep.subr.mxu0 0.0
        %7061 = vmatpush1.msra.mxu0 %v6986
        %7062 = vmatprep.subr.mxu0 0.0
        %7063 = vmatpush1.msra.mxu0 %v6987
        %7064 = vmatprep.subr.mxu0 0.0
        %7065 = vmatpush1.msra.mxu0 0.0
        %7066 = vmatprep.subr.mxu0 0.0
        %7067 = vmatpush1.msra.mxu0 0.0
        %7068 = vmatprep.subr.mxu0 0.0
        %7069 = vmatpush1.msra.mxu0 0.0
        %7070 = vmatprep.subr.mxu0 0.0
        %7071 = vmatpush1.msra.mxu0 0.0
        %7072 = vmatprep.subr.mxu0 0.0
        %7073 = vmatpush1.msra.mxu0 0.0
        %7074 = vmatprep.subr.mxu0 0.0
        %7075 = vmatpush1.msra.mxu0 0.0
        %7076 = vmatprep.subr.mxu0 0.0
        %7077 = vmatpush1.msra.mxu0 0.0
        %7078 = vmatprep.subr.mxu0 0.0
        %7079 = vmatpush1.msra.mxu0 0.0
        %7080 = vmatprep.subr.mxu0 0.0
        %7081 = vmatpush1.msra.mxu0 0.0
        %7082 = vmatprep.subr.mxu0 0.0
        %7083 = vmatpush1.msra.mxu0 0.0
        %7084 = vmatprep.subr.mxu0 0.0
        %7085 = vmatpush1.msra.mxu0 0.0
        %7086 = vmatprep.subr.mxu0 0.0
        %7087 = vmatpush1.msra.mxu0 0.0
        %7088 = vmatprep.subr.mxu0 0.0
        %7089 = vmatpush1.msra.mxu0 0.0
        %7090 = vmatprep.subr.mxu0 0.0
        %7091 = vmatpush1.msra.mxu0 0.0
        %7092 = vmatprep.subr.mxu0 0.0
        %7093 = vmatpush1.msra.mxu0 0.0
        %7094 = vmatprep.subr.mxu0 0.0
        %7095 = vmatpush1.msra.mxu0 0.0
        %7096 = vmatprep.subr.mxu0 0.0
        %7097 = vmatpush1.msra.mxu0 0.0
        %7098 = vmatprep.subr.mxu0 0.0
        %7099 = vmatpush1.msra.mxu0 0.0
        %7100 = vmatprep.subr.mxu0 0.0
        %7101 = vmatpush1.msra.mxu0 0.0
        %7102 = vmatprep.subr.mxu0 0.0
        %7103 = vmatpush1.msra.mxu0 0.0
        %7104 = vmatprep.subr.mxu0 0.0
        %7105 = vmatpush1.msra.mxu0 0.0
        %7106 = vmatprep.subr.mxu0 0.0
        %7107 = vmatpush1.msra.mxu0 0.0
        %7108 = vmatprep.subr.mxu0 0.0
        %7109 = vmatpush1.msra.mxu0 0.0
        %7110 = vmatprep.subr.mxu0 0.0
        %7111 = vmatpush1.msra.mxu0 0.0
        %7112 = vmatprep.subr.mxu0 0.0
        %7113 = vmatpush1.msra.mxu0 0.0
        %7114 = vmatprep.subr.mxu0 0.0
        %7115 = vmatpush1.msra.mxu0 0.0
        %7116 = vmatprep.subr.mxu0 0.0
        %7117 = vmatpush1.msra.mxu0 0.0
        %7118 = vmatprep.subr.mxu0 0.0
        %7119 = vmatpush1.msra.mxu0 0.0
        %7120 = vmatprep.subr.mxu0 0.0
        %7121 = vmatpush1.msra.mxu0 0.0
        %7122 = vmatprep.subr.mxu0 0.0
        %7123 = vmatpush1.msra.mxu0 0.0
        %7124 = vmatprep.mubr.f32.mxu0 0.0
        %7125 = vmatmul.mubr.f32.gmra.mrb[0].mxu0 %v7007
        %v7126 = vpop.f32.mrb[0].mxu0
        %v7127 = vadd.f32 0.0, %v7126
        %v7128 = vpop.f32.mrb[0].mxu0
        %7129 = vmatprep.mubr.f32.mxu0 0.0
        %7130 = vmatmul.mubr.f32.gmra.mrb[0].mxu0 %v7010
        %v7131 = vpop.f32.mrb[0].mxu0
        %v7132 = vadd.f32 0.0, %v7131
        %v7133 = vpop.f32.mrb[0].mxu0
        %7134 = vmatprep.mubr.f32.mxu0 0.0
        %7135 = vmatmul.mubr.f32.gmra.mrb[0].mxu0 %v7013
        %v7136 = vpop.f32.mrb[0].mxu0
        %v7137 = vadd.f32 0.0, %v7136
        %v7138 = vpop.f32.mrb[0].mxu0
        %7139 = vmatprep.mubr.f32.mxu0 0.0
        %7140 = vmatmul.mubr.f32.gmra.mrb[0].mxu0 %v7016
        %v7141 = vpop.f32.mrb[0].mxu0
        %v7142 = vadd.f32 0.0, %v7141
        %v7143 = vpop.f32.mrb[0].mxu0
        %7144 = vmatprep.mubr.f32.mxu0 0.0
        %7145 = vmatmul.mubr.f32.gmra.mrb[0].mxu0 %v7019
        %v7146 = vpop.f32.mrb[0].mxu0
        %v7147 = vadd.f32 0.0, %v7146
        %v7148 = vpop.f32.mrb[0].mxu0
        %7149 = vmatprep.mubr.f32.mxu0 0.0
        %7150 = vmatmul.mubr.f32.gmra.mrb[0].mxu0 %v7022
        %v7151 = vpop.f32.mrb[0].mxu0
        %v7152 = vadd.f32 0.0, %v7151
        %v7153 = vpop.f32.mrb[0].mxu0
        %7154 = vmatprep.mubr.f32.mxu0 0.0
        %7155 = vmatmul.mubr.f32.gmra.mrb[0].mxu0 %v7025
        %v7156 = vpop.f32.mrb[0].mxu0
        %v7157 = vadd.f32 0.0, %v7156
        %v7158 = vpop.f32.mrb[0].mxu0
        %7159 = vmatprep.mubr.f32.mxu0 0.0
        %7160 = vmatmul.mubr.f32.gmra.mrb[0].mxu0 %v7028
        %v7161 = vpop.f32.mrb[0].mxu0
        %v7162 = vadd.f32 0.0, %v7161
        %v7163 = vpop.f32.mrb[0].mxu0
        %7164 = vmatprep.mubr.f32.mxu0 0.0
        %7165 = vmatmul.mubr.f32.gmra.mrb[0].mxu0 %v7031
        %v7166 = vpop.f32.mrb[0].mxu0
        %v7167 = vadd.f32 0.0, %v7166
        %v7168 = vpop.f32.mrb[0].mxu0
        %7169 = vmatprep.mubr.f32.mxu0 0.0
        %7170 = vmatmul.mubr.f32.gmra.mrb[0].mxu0 %v7034
        %v7171 = vpop.f32.mrb[0].mxu0
        %v7172 = vadd.f32 0.0, %v7171
        %v7173 = vpop.f32.mrb[0].mxu0
        %7174 = vmatprep.mubr.f32.mxu0 0.0
        %7175 = vmatmul.mubr.f32.gmra.mrb[0].mxu0 %v7037
        %v7176 = vpop.f32.mrb[0].mxu0
        %v7177 = vadd.f32 0.0, %v7176
        %v7178 = vpop.f32.mrb[0].mxu0
        %7179 = vmatprep.mubr.f32.mxu0 0.0
        %7180 = vmatmul.mubr.f32.gmra.mrb[0].mxu0 %v7040
        %v7181 = vpop.f32.mrb[0].mxu0
        %v7182 = vadd.f32 0.0, %v7181
        %v7183 = vpop.f32.mrb[0].mxu0
        %7184 = vmatprep.mubr.f32.mxu0 0.0
        %7185 = vmatmul.mubr.f32.gmra.mrb[0].mxu0 %v7043
        %v7186 = vpop.f32.mrb[0].mxu0
        %v7187 = vadd.f32 0.0, %v7186
        %v7188 = vpop.f32.mrb[0].mxu0
        %7189 = vmatprep.mubr.f32.mxu0 0.0
        %7190 = vmatmul.mubr.f32.gmra.mrb[0].mxu0 %v7046
        %v7191 = vpop.f32.mrb[0].mxu0
        %v7192 = vadd.f32 0.0, %v7191
        %v7193 = vpop.f32.mrb[0].mxu0
        %7194 = vmatprep.mubr.f32.mxu0 0.0
        %7195 = vmatmul.mubr.f32.gmra.mrb[0].mxu0 %v7049
        %v7196 = vpop.f32.mrb[0].mxu0
        %v7197 = vadd.f32 0.0, %v7196
        %v7198 = vpop.f32.mrb[0].mxu0
        %7199 = vmatprep.mubr.f32.mxu0 0.0
        %7200 = vmatmul.mubr.f32.gmra.mrb[0].mxu0 %v7052
        %v7201 = vpop.f32.mrb[0].mxu0
        %v7202 = vadd.f32 0.0, %v7201
        %v7203 = vpop.f32.mrb[0].mxu0
        %7204 = vmatprep.mubr.f32.mxu0 0.0
        %7205 = vmatmul.mubr.f32.gmra.mrb[0].mxu0 %v7055
        %v7206 = vpop.f32.mrb[0].mxu0
        %v7207 = vadd.f32 0.0, %v7206
        %v7208 = vpop.f32.mrb[0].mxu0
        %7209 = vmatprep.mubr.f32.mxu0 0.0
        %7210 = vmatmul.mubr.f32.gmra.mrb[0].mxu0 %v7058
        %v7211 = vpop.f32.mrb[0].mxu0
        %v7212 = vadd.f32 0.0, %v7211
        %v7213 = vpop.f32.mrb[0].mxu0
        %7214 = vdwg.mxu0
        %v7215 = vld [vmem:[%s59] sm:$0xff]
        %v7216 = vld [vmem:[%s59 + $0x8] sm:$0xff]
        %v7217 = vld [vmem:[%s61] sm:$0xff]
        %v7218 = vld [vmem:[%s61 + $0x8] sm:$0xff]
        %7221 = vrot.lane.b32.xlu0 %v7127, 73
        %v7222 = vpop.permute.xlu0 %7221
        %7223 = vrot.lane.b32.xlu0 %v7132, 73
        %v7224 = vpop.permute.xlu0 %7223
        %7227 = vrot.lane.b32.xlu0 %v7127, 9
        %v7228 = vpop.permute.xlu0 %7227
        %7229 = vrot.lane.b32.xlu0 %v7132, 9
        %v7230 = vpop.permute.xlu0 %7229
        %v7233 = vsel %vm6746, %v7222, %v7228
        %v7234 = vsel %vm6746, %v7224, %v7230
        %v7235 = vmul.f32 %v7233, %v6754
        %v7236 = vmul.f32 %v7234, %v6754
        %7239 = vrot.lane.b32.xlu0 %v7137, 72
        %v7240 = vpop.permute.xlu0 %7239
        %7241 = vrot.lane.b32.xlu0 %v7142, 72
        %v7242 = vpop.permute.xlu0 %7241
        %7245 = vrot.lane.b32.xlu0 %v7137, 8
        %v7246 = vpop.permute.xlu0 %7245
        %7247 = vrot.lane.b32.xlu0 %v7142, 8
        %v7248 = vpop.permute.xlu0 %7247
        %v7251 = vsel %vm1667, %v7240, %v7246
        %v7252 = vsel %vm1667, %v7242, %v7248
        %v7253 = vmul.f32 %v7251, %v6780
        %v7254 = vmul.f32 %v7252, %v6780
        %v7255 = vadd.f32 %v7235, %v7253
        %v7256 = vadd.f32 %v7236, %v7254
        %7259 = vrot.lane.b32.xlu0 %v7147, 71
        %v7260 = vpop.permute.xlu0 %7259
        %7261 = vrot.lane.b32.xlu0 %v7152, 71
        %v7262 = vpop.permute.xlu0 %7261
        %7265 = vrot.lane.b32.xlu0 %v7147, 7
        %v7266 = vpop.permute.xlu0 %7265
        %7267 = vrot.lane.b32.xlu0 %v7152, 7
        %v7268 = vpop.permute.xlu0 %7267
        %v7271 = vsel %vm6800, %v7260, %v7266
        %v7272 = vsel %vm6800, %v7262, %v7268
        %v7273 = vmul.f32 %v7271, %v6809
        %v7274 = vmul.f32 %v7272, %v6809
        %v7275 = vadd.f32 %v7255, %v7273
        %v7276 = vadd.f32 %v7256, %v7274
        %7279 = vrot.lane.b32.xlu0 %v7157, 65
        %v7280 = vpop.permute.xlu0 %7279
        %7281 = vrot.lane.b32.xlu0 %v7162, 65
        %v7282 = vpop.permute.xlu0 %7281
        %7285 = vrot.lane.b32.xlu0 %v7157, 1
        %v7286 = vpop.permute.xlu0 %7285
        %7287 = vrot.lane.b32.xlu0 %v7162, 1
        %v7288 = vpop.permute.xlu0 %7287
        %v7291 = vsel %vm6829, %v7280, %v7286
        %v7292 = vsel %vm6829, %v7282, %v7288
        %v7293 = vmul.f32 %v7291, %v6838
        %v7294 = vmul.f32 %v7292, %v6838
        %v7295 = vadd.f32 %v7275, %v7293
        %v7296 = vadd.f32 %v7276, %v7294
        %v7297 = vadd.f32 %v7295, %v7167
        %v7298 = vadd.f32 %v7296, %v7172
        %7301 = vrot.lane.b32.xlu0 %v7177, 127
        %v7302 = vpop.permute.xlu0 %7301
        %7303 = vrot.lane.b32.xlu0 %v7182, 127
        %v7304 = vpop.permute.xlu0 %7303
        %7307 = vrot.lane.b32.xlu0 %v7177, 63
        %v7308 = vpop.permute.xlu0 %7307
        %7309 = vrot.lane.b32.xlu0 %v7182, 63
        %v7310 = vpop.permute.xlu0 %7309
        %v7313 = vsel %vm6860, %v7302, %v7308
        %v7314 = vsel %vm6860, %v7304, %v7310
        %v7315 = vmul.f32 %v7313, %v6869
        %v7316 = vmul.f32 %v7314, %v6869
        %v7317 = vadd.f32 %v7297, %v7315
        %v7318 = vadd.f32 %v7298, %v7316
        %7321 = vrot.lane.b32.xlu0 %v7187, 121
        %v7322 = vpop.permute.xlu0 %7321
        %7323 = vrot.lane.b32.xlu0 %v7192, 121
        %v7324 = vpop.permute.xlu0 %7323
        %7327 = vrot.lane.b32.xlu0 %v7187, 57
        %v7328 = vpop.permute.xlu0 %7327
        %7329 = vrot.lane.b32.xlu0 %v7192, 57
        %v7330 = vpop.permute.xlu0 %7329
        %v7333 = vsel %vm6889, %v7322, %v7328
        %v7334 = vsel %vm6889, %v7324, %v7330
        %v7335 = vmul.f32 %v7333, %v6898
        %v7336 = vmul.f32 %v7334, %v6898
        %v7337 = vadd.f32 %v7317, %v7335
        %v7338 = vadd.f32 %v7318, %v7336
        %7341 = vrot.lane.b32.xlu0 %v7197, 120
        %v7342 = vpop.permute.xlu0 %7341
        %7343 = vrot.lane.b32.xlu0 %v7202, 120
        %v7344 = vpop.permute.xlu0 %7343
        %7347 = vrot.lane.b32.xlu0 %v7197, 56
        %v7348 = vpop.permute.xlu0 %7347
        %7349 = vrot.lane.b32.xlu0 %v7202, 56
        %v7350 = vpop.permute.xlu0 %7349
        %v7353 = vsel %vm6918, %v7342, %v7348
        %v7354 = vsel %vm6918, %v7344, %v7350
        %v7355 = vmul.f32 %v7353, %v6927
        %v7356 = vmul.f32 %v7354, %v6927
        %v7357 = vadd.f32 %v7337, %v7355
        %v7358 = vadd.f32 %v7338, %v7356
        %7361 = vrot.lane.b32.xlu0 %v7207, 119
        %v7362 = vpop.permute.xlu0 %7361
        %7363 = vrot.lane.b32.xlu0 %v7212, 119
        %v7364 = vpop.permute.xlu0 %7363
        %7367 = vrot.lane.b32.xlu0 %v7207, 55
        %v7368 = vpop.permute.xlu0 %7367
        %7369 = vrot.lane.b32.xlu0 %v7212, 55
        %v7370 = vpop.permute.xlu0 %7369
        %v7373 = vsel %vm6947, %v7362, %v7368
        %v7374 = vsel %vm6947, %v7364, %v7370
        %v7375 = vmul.f32 %v7373, %v6956
        %v7376 = vmul.f32 %v7374, %v6956
        %v7377 = vadd.f32 %v7357, %v7375
        %v7378 = vadd.f32 %v7358, %v7376
        %7380 = vset.pattern.permute.xlu0 0
        %7381 = vperm.xlu0 %7380, %v7215
        %v7382 = vpop.permute.xlu0 %7381
        %7385 = vset.pattern.permute.xlu0 0
        %7386 = vperm.xlu0 %7385, %v7216
        %v7387 = vpop.permute.xlu0 %7386
        %v7389 = vmul.f32 %v7377, %v7382
        %v7390 = vmul.f32 %v7378, %v7387
        %7392 = vset.pattern.permute.xlu0 0
        %7393 = vperm.xlu0 %7392, %v7217
        %v7394 = vpop.permute.xlu0 %7393
        %7397 = vset.pattern.permute.xlu0 0
        %7398 = vperm.xlu0 %7397, %v7218
        %v7399 = vpop.permute.xlu0 %7398
        %v7401 = vadd.f32 %v7389, %v7394
        %v7402 = vadd.f32 %v7390, %v7399
        %v7403 = vmax.f32 %v7401, 0.0
        %v7404 = vmax.f32 %v7402, 0.0
        %v7405 = vld [vmem:[%s63] sm:$0xff]
        %v7406 = vld [vmem:[%s63 + $0x8] sm:$0xff]
        %v7407 = vld [vmem:[%s63 + $0x10] sm:$0xff]
        %v7408 = vld [vmem:[%s63 + $0x18] sm:$0xff]
        %v7409 = vld [vmem:[%s63 + $0x20] sm:$0xff]
        %v7410 = vld [vmem:[%s63 + $0x28] sm:$0xff]
        %v7411 = vld [vmem:[%s63 + $0x30] sm:$0xff]
        %v7412 = vld [vmem:[%s63 + $0x38] sm:$0xff]
        %v7413 = vld [vmem:[%s63 + $0x40] sm:$0xff]
        %v7414 = vld [vmem:[%s63 + $0x48] sm:$0xff]
        %v7415 = vld [vmem:[%s63 + $0x50] sm:$0xff]
        %v7416 = vld [vmem:[%s63 + $0x58] sm:$0xff]
        %v7417 = vld [vmem:[%s63 + $0x60] sm:$0xff]
        %v7418 = vld [vmem:[%s63 + $0x68] sm:$0xff]
        %v7419 = vld [vmem:[%s63 + $0x70] sm:$0xff]
        %v7420 = vld [vmem:[%s63 + $0x78] sm:$0xff]
        %v7422 = vsel %vm2750, %v7403, 0
        %v7425 = vsel %vm2750, %v7404, 0
        %7427 = vmatprep.subr.mxu0 %v7406
        %7428 = vmatpush1.msra.mxu0 %v7405
        %7429 = vmatprep.subr.mxu0 %v7408
        %7430 = vmatpush1.msra.mxu0 %v7407
        %7431 = vmatprep.subr.mxu0 %v7410
        %7432 = vmatpush1.msra.mxu0 %v7409
        %7433 = vmatprep.subr.mxu0 %v7412
        %7434 = vmatpush1.msra.mxu0 %v7411
        %7435 = vmatprep.subr.mxu0 %v7414
        %7436 = vmatpush1.msra.mxu0 %v7413
        %7437 = vmatprep.subr.mxu0 %v7416
        %7438 = vmatpush1.msra.mxu0 %v7415
        %7439 = vmatprep.subr.mxu0 %v7418
        %7440 = vmatpush1.msra.mxu0 %v7417
        %7441 = vmatprep.subr.mxu0 %v7420
        %7442 = vmatpush1.msra.mxu0 %v7419
        %7443 = vmatprep.subr.mxu0 0.0
        %7444 = vmatpush1.msra.mxu0 0.0
        %7445 = vmatprep.subr.mxu0 0.0
        %7446 = vmatpush1.msra.mxu0 0.0
        %7447 = vmatprep.subr.mxu0 0.0
        %7448 = vmatpush1.msra.mxu0 0.0
        %7449 = vmatprep.subr.mxu0 0.0
        %7450 = vmatpush1.msra.mxu0 0.0
        %7451 = vmatprep.subr.mxu0 0.0
        %7452 = vmatpush1.msra.mxu0 0.0
        %7453 = vmatprep.subr.mxu0 0.0
        %7454 = vmatpush1.msra.mxu0 0.0
        %7455 = vmatprep.subr.mxu0 0.0
        %7456 = vmatpush1.msra.mxu0 0.0
        %7457 = vmatprep.subr.mxu0 0.0
        %7458 = vmatpush1.msra.mxu0 0.0
        %7459 = vmatprep.subr.mxu0 0.0
        %7460 = vmatpush1.msra.mxu0 0.0
        %7461 = vmatprep.subr.mxu0 0.0
        %7462 = vmatpush1.msra.mxu0 0.0
        %7463 = vmatprep.subr.mxu0 0.0
        %7464 = vmatpush1.msra.mxu0 0.0
        %7465 = vmatprep.subr.mxu0 0.0
        %7466 = vmatpush1.msra.mxu0 0.0
        %7467 = vmatprep.subr.mxu0 0.0
        %7468 = vmatpush1.msra.mxu0 0.0
        %7469 = vmatprep.subr.mxu0 0.0
        %7470 = vmatpush1.msra.mxu0 0.0
        %7471 = vmatprep.subr.mxu0 0.0
        %7472 = vmatpush1.msra.mxu0 0.0
        %7473 = vmatprep.subr.mxu0 0.0
        %7474 = vmatpush1.msra.mxu0 0.0
        %7475 = vmatprep.subr.mxu0 0.0
        %7476 = vmatpush1.msra.mxu0 0.0
        %7477 = vmatprep.subr.mxu0 0.0
        %7478 = vmatpush1.msra.mxu0 0.0
        %7479 = vmatprep.subr.mxu0 0.0
        %7480 = vmatpush1.msra.mxu0 0.0
        %7481 = vmatprep.subr.mxu0 0.0
        %7482 = vmatpush1.msra.mxu0 0.0
        %7483 = vmatprep.subr.mxu0 0.0
        %7484 = vmatpush1.msra.mxu0 0.0
        %7485 = vmatprep.subr.mxu0 0.0
        %7486 = vmatpush1.msra.mxu0 0.0
        %7487 = vmatprep.subr.mxu0 0.0
        %7488 = vmatpush1.msra.mxu0 0.0
        %7489 = vmatprep.subr.mxu0 0.0
        %7490 = vmatpush1.msra.mxu0 0.0
        %7491 = vmatprep.mubr.f32.mxu0 0.0
        %7492 = vmatmul.mubr.f32.gmra.mrb[0].mxu0 %v7422
        %v7493 = vpop.f32.mrb[0].mxu0
        %v7494 = vadd.f32 0.0, %v7493
        %v7495 = vpop.f32.mrb[0].mxu0
        %v7496 = vadd.f32 0.0, %v7495
        %7497 = vmatprep.mubr.f32.mxu0 0.0
        %7498 = vmatmul.mubr.f32.gmra.mrb[0].mxu0 %v7425
        %v7499 = vpop.f32.mrb[0].mxu0
        %v7500 = vadd.f32 0.0, %v7499
        %v7501 = vpop.f32.mrb[0].mxu0
        %v7502 = vadd.f32 0.0, %v7501
        %7503 = vdwg.mxu0
        %v7504 = vld [vmem:[%s67] sm:$0xff]
        %v7505 = vld [vmem:[%s67 + $0x8] sm:$0xff]
        %v7506 = vld [vmem:[%s67 + $0x10] sm:$0xff]
        %v7507 = vld [vmem:[%s67 + $0x18] sm:$0xff]
        %v7508 = vld [vmem:[%s67 + $0x20] sm:$0xff]
        %v7509 = vld [vmem:[%s67 + $0x28] sm:$0xff]
        %v7510 = vld [vmem:[%s67 + $0x30] sm:$0xff]
        %v7511 = vld [vmem:[%s67 + $0x38] sm:$0xff]
        %v7512 = vld [vmem:[%s67 + $0x40] sm:$0xff]
        %v7514 = vsel %vm1751, %v7504, 0
        %v7517 = vsel %vm1751, %v7505, 0
        %v7520 = vsel %vm1751, %v7506, 0
        %v7523 = vsel %vm1751, %v7507, 0
        %v7526 = vsel %vm1751, %v7508, 0
        %v7529 = vsel %vm1751, %v7509, 0
        %v7532 = vsel %vm1751, %v7510, 0
        %v7535 = vsel %vm1751, %v7511, 0
        %v7538 = vsel %vm1751, %v7512, 0
        %7540 = vmatprep.subr.mxu0 %v7496
        %7541 = vmatpush1.msra.mxu0 %v7494
        %7542 = vmatprep.subr.mxu0 %v7502
        %7543 = vmatpush1.msra.mxu0 %v7500
        %7544 = vmatprep.subr.mxu0 0.0
        %7545 = vmatpush1.msra.mxu0 0.0
        %7546 = vmatprep.subr.mxu0 0.0
        %7547 = vmatpush1.msra.mxu0 0.0
        %7548 = vmatprep.subr.mxu0 0.0
        %7549 = vmatpush1.msra.mxu0 0.0
        %7550 = vmatprep.subr.mxu0 0.0
        %7551 = vmatpush1.msra.mxu0 0.0
        %7552 = vmatprep.subr.mxu0 0.0
        %7553 = vmatpush1.msra.mxu0 0.0
        %7554 = vmatprep.subr.mxu0 0.0
        %7555 = vmatpush1.msra.mxu0 0.0
        %7556 = vmatprep.subr.mxu0 0.0
        %7557 = vmatpush1.msra.mxu0 0.0
        %7558 = vmatprep.subr.mxu0 0.0
        %7559 = vmatpush1.msra.mxu0 0.0
        %7560 = vmatprep.subr.mxu0 0.0
        %7561 = vmatpush1.msra.mxu0 0.0
        %7562 = vmatprep.subr.mxu0 0.0
        %7563 = vmatpush1.msra.mxu0 0.0
        %7564 = vmatprep.subr.mxu0 0.0
        %7565 = vmatpush1.msra.mxu0 0.0
        %7566 = vmatprep.subr.mxu0 0.0
        %7567 = vmatpush1.msra.mxu0 0.0
        %7568 = vmatprep.subr.mxu0 0.0
        %7569 = vmatpush1.msra.mxu0 0.0
        %7570 = vmatprep.subr.mxu0 0.0
        %7571 = vmatpush1.msra.mxu0 0.0
        %7572 = vmatprep.subr.mxu0 0.0
        %7573 = vmatpush1.msra.mxu0 0.0
        %7574 = vmatprep.subr.mxu0 0.0
        %7575 = vmatpush1.msra.mxu0 0.0
        %7576 = vmatprep.subr.mxu0 0.0
        %7577 = vmatpush1.msra.mxu0 0.0
        %7578 = vmatprep.subr.mxu0 0.0
        %7579 = vmatpush1.msra.mxu0 0.0
        %7580 = vmatprep.subr.mxu0 0.0
        %7581 = vmatpush1.msra.mxu0 0.0
        %7582 = vmatprep.subr.mxu0 0.0
        %7583 = vmatpush1.msra.mxu0 0.0
        %7584 = vmatprep.subr.mxu0 0.0
        %7585 = vmatpush1.msra.mxu0 0.0
        %7586 = vmatprep.subr.mxu0 0.0
        %7587 = vmatpush1.msra.mxu0 0.0
        %7588 = vmatprep.subr.mxu0 0.0
        %7589 = vmatpush1.msra.mxu0 0.0
        %7590 = vmatprep.subr.mxu0 0.0
        %7591 = vmatpush1.msra.mxu0 0.0
        %7592 = vmatprep.subr.mxu0 0.0
        %7593 = vmatpush1.msra.mxu0 0.0
        %7594 = vmatprep.subr.mxu0 0.0
        %7595 = vmatpush1.msra.mxu0 0.0
        %7596 = vmatprep.subr.mxu0 0.0
        %7597 = vmatpush1.msra.mxu0 0.0
        %7598 = vmatprep.subr.mxu0 0.0
        %7599 = vmatpush1.msra.mxu0 0.0
        %7600 = vmatprep.subr.mxu0 0.0
        %7601 = vmatpush1.msra.mxu0 0.0
        %7602 = vmatprep.subr.mxu0 0.0
        %7603 = vmatpush1.msra.mxu0 0.0
        %7604 = vmatprep.mubr.f32.mxu0 0.0
        %7605 = vmatmul.mubr.f32.gmra.mrb[0].mxu0 %v7514
        %v7606 = vpop.f32.mrb[0].mxu0
        %v7607 = vadd.f32 0.0, %v7606
        %v7608 = vpop.f32.mrb[0].mxu0
        %v7609 = vadd.f32 0.0, %v7608
        %7610 = vmatprep.mubr.f32.mxu0 0.0
        %7611 = vmatmul.mubr.f32.gmra.mrb[0].mxu0 %v7517
        %v7612 = vpop.f32.mrb[0].mxu0
        %v7613 = vadd.f32 0.0, %v7612
        %v7614 = vpop.f32.mrb[0].mxu0
        %v7615 = vadd.f32 0.0, %v7614
        %7616 = vmatprep.mubr.f32.mxu0 0.0
        %7617 = vmatmul.mubr.f32.gmra.mrb[0].mxu0 %v7520
        %v7618 = vpop.f32.mrb[0].mxu0
        %v7619 = vadd.f32 0.0, %v7618
        %v7620 = vpop.f32.mrb[0].mxu0
        %v7621 = vadd.f32 0.0, %v7620
        %7622 = vmatprep.mubr.f32.mxu0 0.0
        %7623 = vmatmul.mubr.f32.gmra.mrb[0].mxu0 %v7523
        %v7624 = vpop.f32.mrb[0].mxu0
        %v7625 = vadd.f32 0.0, %v7624
        %v7626 = vpop.f32.mrb[0].mxu0
        %v7627 = vadd.f32 0.0, %v7626
        %7628 = vmatprep.mubr.f32.mxu0 0.0
        %7629 = vmatmul.mubr.f32.gmra.mrb[0].mxu0 %v7526
        %v7630 = vpop.f32.mrb[0].mxu0
        %v7631 = vadd.f32 0.0, %v7630
        %v7632 = vpop.f32.mrb[0].mxu0
        %v7633 = vadd.f32 0.0, %v7632
        %7634 = vmatprep.mubr.f32.mxu0 0.0
        %7635 = vmatmul.mubr.f32.gmra.mrb[0].mxu0 %v7529
        %v7636 = vpop.f32.mrb[0].mxu0
        %v7637 = vadd.f32 0.0, %v7636
        %v7638 = vpop.f32.mrb[0].mxu0
        %v7639 = vadd.f32 0.0, %v7638
        %7640 = vmatprep.mubr.f32.mxu0 0.0
        %7641 = vmatmul.mubr.f32.gmra.mrb[0].mxu0 %v7532
        %v7642 = vpop.f32.mrb[0].mxu0
        %v7643 = vadd.f32 0.0, %v7642
        %v7644 = vpop.f32.mrb[0].mxu0
        %v7645 = vadd.f32 0.0, %v7644
        %7646 = vmatprep.mubr.f32.mxu0 0.0
        %7647 = vmatmul.mubr.f32.gmra.mrb[0].mxu0 %v7535
        %v7648 = vpop.f32.mrb[0].mxu0
        %v7649 = vadd.f32 0.0, %v7648
        %v7650 = vpop.f32.mrb[0].mxu0
        %v7651 = vadd.f32 0.0, %v7650
        %7652 = vmatprep.mubr.f32.mxu0 0.0
        %7653 = vmatmul.mubr.f32.gmra.mrb[0].mxu0 %v7538
        %v7654 = vpop.f32.mrb[0].mxu0
        %v7655 = vadd.f32 0.0, %v7654
        %v7656 = vpop.f32.mrb[0].mxu0
        %v7657 = vadd.f32 0.0, %v7656
        %7658 = vdwg.mxu0
        %v7659 = vld [vmem:[%s69] sm:$0xff]
        %v7660 = vld [vmem:[%s71] sm:$0xff]
        %7662 = vrot.lane.b32.xlu0 %v7609, 17
        %v7663 = vpop.permute.xlu0 %7662
        %7666 = vrot.lane.b32.xlu0 %v7607, 17
        %v7667 = vpop.permute.xlu0 %7666
        %vm7668 = vcmask 138240
        %v7669 = vsel %vm7668, %v7667, %v7663
        %v7672 = vsel %vm7668, %v7663, %v7667
        %v7673 = vld [vmem:[%s65] sm:$0x3]
        %v7675 = vlaneseq
        %v7676 = vshrl.u32 %v7675, 7
        %v7677 = vsub.s32 0, %v7676
        %v7678 = vrot.slane %v7673, %v7677
        %v7679 = vlaneseq
        %v7680 = vshrl.u32 %v7679, 7
        %v7681 = vsub.s32 1, %v7680
        %v7682 = vrot.slane %v7673, %v7681
        %v7685 = vmul.f32 %v7672, %v7678
        %v7686 = vmul.f32 %v7669, %v7682
        %7688 = vrot.lane.b32.xlu0 %v7615, 16
        %v7689 = vpop.permute.xlu0 %7688
        %7692 = vrot.lane.b32.xlu0 %v7613, 16
        %v7693 = vpop.permute.xlu0 %7692
        %v7694 = vsel %vm1751, %v7693, %v7689
        %v7697 = vsel %vm1751, %v7689, %v7693
        %s7698 = scalar_lea.vmem %s65, 2
        %v7699 = vld [vmem:[%s7698] sm:$0x3]
        %v7701 = vlaneseq
        %v7702 = vshrl.u32 %v7701, 7
        %v7703 = vsub.s32 0, %v7702
        %v7704 = vrot.slane %v7699, %v7703
        %v7705 = vlaneseq
        %v7706 = vshrl.u32 %v7705, 7
        %v7707 = vsub.s32 1, %v7706
        %v7708 = vrot.slane %v7699, %v7707
        %v7711 = vmul.f32 %v7697, %v7704
        %v7712 = vmul.f32 %v7694, %v7708
        %v7713 = vadd.f32 %v7685, %v7711
        %v7714 = vadd.f32 %v7686, %v7712
        %7716 = vrot.lane.b32.xlu0 %v7621, 15
        %v7717 = vpop.permute.xlu0 %7716
        %7720 = vrot.lane.b32.xlu0 %v7619, 15
        %v7721 = vpop.permute.xlu0 %7720
        %vm7722 = vcmask 121856
        %v7723 = vsel %vm7722, %v7721, %v7717
        %v7726 = vsel %vm7722, %v7717, %v7721
        %s7727 = scalar_lea.vmem %s65, 4
        %v7728 = vld [vmem:[%s7727] sm:$0x3]
        %v7730 = vlaneseq
        %v7731 = vshrl.u32 %v7730, 7
        %v7732 = vsub.s32 0, %v7731
        %v7733 = vrot.slane %v7728, %v7732
        %v7734 = vlaneseq
        %v7735 = vshrl.u32 %v7734, 7
        %v7736 = vsub.s32 1, %v7735
        %v7737 = vrot.slane %v7728, %v7736
        %v7740 = vmul.f32 %v7726, %v7733
        %v7741 = vmul.f32 %v7723, %v7737
        %v7742 = vadd.f32 %v7713, %v7740
        %v7743 = vadd.f32 %v7714, %v7741
        %7745 = vrot.lane.b32.xlu0 %v7627, 1
        %v7746 = vpop.permute.xlu0 %7745
        %7749 = vrot.lane.b32.xlu0 %v7625, 1
        %v7750 = vpop.permute.xlu0 %7749
        %v7751 = vsel %vm6829, %v7750, %v7746
        %v7754 = vsel %vm6829, %v7746, %v7750
        %s7755 = scalar_lea.vmem %s65, 6
        %v7756 = vld [vmem:[%s7755] sm:$0x3]
        %v7758 = vlaneseq
        %v7759 = vshrl.u32 %v7758, 7
        %v7760 = vsub.s32 0, %v7759
        %v7761 = vrot.slane %v7756, %v7760
        %v7762 = vlaneseq
        %v7763 = vshrl.u32 %v7762, 7
        %v7764 = vsub.s32 1, %v7763
        %v7765 = vrot.slane %v7756, %v7764
        %v7768 = vmul.f32 %v7754, %v7761
        %v7769 = vmul.f32 %v7751, %v7765
        %v7770 = vadd.f32 %v7742, %v7768
        %v7771 = vadd.f32 %v7743, %v7769
        %v7772 = vadd.f32 %v7770, %v7631
        %v7773 = vadd.f32 %v7771, %v7633
        %7776 = vrot.lane.b32.xlu0 %v7637, 127
        %v7777 = vpop.permute.xlu0 %7776
        %7778 = vrot.lane.b32.xlu0 %v7639, 127
        %v7779 = vpop.permute.xlu0 %7778
        %vm7780 = vcmask 1039360
        %v7781 = vsel %vm7780, %v7777, %v7779
        %v7785 = vsel %vm7780, %v7779, %v7777
        %s7786 = scalar_lea.vmem %s65, 10
        %v7787 = vld [vmem:[%s7786] sm:$0x3]
        %v7789 = vlaneseq
        %v7790 = vshrl.u32 %v7789, 7
        %v7791 = vsub.s32 0, %v7790
        %v7792 = vrot.slane %v7787, %v7791
        %v7793 = vlaneseq
        %v7794 = vshrl.u32 %v7793, 7
        %v7795 = vsub.s32 1, %v7794
        %v7796 = vrot.slane %v7787, %v7795
        %v7799 = vmul.f32 %v7781, %v7792
        %v7800 = vmul.f32 %v7785, %v7796
        %v7801 = vadd.f32 %v7772, %v7799
        %v7802 = vadd.f32 %v7773, %v7800
        %7805 = vrot.lane.b32.xlu0 %v7643, 113
        %v7806 = vpop.permute.xlu0 %7805
        %7807 = vrot.lane.b32.xlu0 %v7645, 113
        %v7808 = vpop.permute.xlu0 %7807
        %vm7809 = vcmask 924672
        %v7810 = vsel %vm7809, %v7806, %v7808
        %v7814 = vsel %vm7809, %v7808, %v7806
        %s7815 = scalar_lea.vmem %s65, 12
        %v7816 = vld [vmem:[%s7815] sm:$0x3]
        %v7818 = vlaneseq
        %v7819 = vshrl.u32 %v7818, 7
        %v7820 = vsub.s32 0, %v7819
        %v7821 = vrot.slane %v7816, %v7820
        %v7822 = vlaneseq
        %v7823 = vshrl.u32 %v7822, 7
        %v7824 = vsub.s32 1, %v7823
        %v7825 = vrot.slane %v7816, %v7824
        %v7828 = vmul.f32 %v7810, %v7821
        %v7829 = vmul.f32 %v7814, %v7825
        %v7830 = vadd.f32 %v7801, %v7828
        %v7831 = vadd.f32 %v7802, %v7829
        %7834 = vrot.lane.b32.xlu0 %v7649, 112
        %v7835 = vpop.permute.xlu0 %7834
        %7836 = vrot.lane.b32.xlu0 %v7651, 112
        %v7837 = vpop.permute.xlu0 %7836
        %vm7838 = vcmask 916480
        %v7839 = vsel %vm7838, %v7835, %v7837
        %v7843 = vsel %vm7838, %v7837, %v7835
        %s7844 = scalar_lea.vmem %s65, 14
        %v7845 = vld [vmem:[%s7844] sm:$0x3]
        %v7847 = vlaneseq
        %v7848 = vshrl.u32 %v7847, 7
        %v7849 = vsub.s32 0, %v7848
        %v7850 = vrot.slane %v7845, %v7849
        %v7851 = vlaneseq
        %v7852 = vshrl.u32 %v7851, 7
        %v7853 = vsub.s32 1, %v7852
        %v7854 = vrot.slane %v7845, %v7853
        %v7857 = vmul.f32 %v7839, %v7850
        %v7858 = vmul.f32 %v7843, %v7854
        %v7859 = vadd.f32 %v7830, %v7857
        %v7860 = vadd.f32 %v7831, %v7858
        %7863 = vrot.lane.b32.xlu0 %v7655, 111
        %v7864 = vpop.permute.xlu0 %7863
        %7865 = vrot.lane.b32.xlu0 %v7657, 111
        %v7866 = vpop.permute.xlu0 %7865
        %vm7867 = vcmask 908288
        %v7868 = vsel %vm7867, %v7864, %v7866
        %v7872 = vsel %vm7867, %v7866, %v7864
        %s7873 = scalar_lea.vmem %s65, 16
        %v7874 = vld [vmem:[%s7873] sm:$0x3]
        %v7876 = vlaneseq
        %v7877 = vshrl.u32 %v7876, 7
        %v7878 = vsub.s32 0, %v7877
        %v7879 = vrot.slane %v7874, %v7878
        %v7880 = vlaneseq
        %v7881 = vshrl.u32 %v7880, 7
        %v7882 = vsub.s32 1, %v7881
        %v7883 = vrot.slane %v7874, %v7882
        %v7886 = vmul.f32 %v7868, %v7879
        %v7887 = vmul.f32 %v7872, %v7883
        %v7888 = vadd.f32 %v7859, %v7886
        %v7889 = vadd.f32 %v7860, %v7887
        %7891 = vset.pattern.permute.xlu0 0
        %7892 = vperm.xlu0 %7891, %v7659
        %v7893 = vpop.permute.xlu0 %7892
        %v7895 = vmul.f32 %v7888, %v7893
        %v7896 = vmul.f32 %v7889, %v7893
        %7898 = vset.pattern.permute.xlu0 0
        %7899 = vperm.xlu0 %7898, %v7660
        %v7900 = vpop.permute.xlu0 %7899
        %v7902 = vadd.f32 %v7895, %v7900
        %v7903 = vadd.f32 %v7896, %v7900
        %v7904 = vmax.f32 %v7902, 0.0
        %v7905 = vmax.f32 %v7903, 0.0
        %v7906 = vld [vmem:[%s73] sm:$0xff]
        %v7907 = vld [vmem:[%s73 + $0x8] sm:$0xff]
        %v7908 = vld [vmem:[%s73 + $0x10] sm:$0xff]
        %v7909 = vld [vmem:[%s73 + $0x18] sm:$0xff]
        %v7910 = vld [vmem:[%s73 + $0x20] sm:$0xff]
        %v7911 = vld [vmem:[%s73 + $0x28] sm:$0xff]
        %v7912 = vld [vmem:[%s73 + $0x30] sm:$0xff]
        %v7913 = vld [vmem:[%s73 + $0x38] sm:$0xff]
        %v7914 = vld [vmem:[%s73 + $0x40] sm:$0xff]
        %v7916 = vsel %vm1667, %v7906, 0
        %v7919 = vsel %vm1667, %v7907, 0
        %v7922 = vsel %vm1667, %v7908, 0
        %v7925 = vsel %vm1667, %v7909, 0
        %v7928 = vsel %vm1667, %v7910, 0
        %v7931 = vsel %vm1667, %v7911, 0
        %v7934 = vsel %vm1667, %v7912, 0
        %v7937 = vsel %vm1667, %v7913, 0
        %v7940 = vsel %vm1667, %v7914, 0
        %7942 = vmatprep.subr.mxu0 %v7905
        %7943 = vmatpush1.msra.mxu0 %v7904
        %7944 = vmatprep.subr.mxu0 0.0
        %7945 = vmatpush1.msra.mxu0 0.0
        %7946 = vmatprep.subr.mxu0 0.0
        %7947 = vmatpush1.msra.mxu0 0.0
        %7948 = vmatprep.subr.mxu0 0.0
        %7949 = vmatpush1.msra.mxu0 0.0
        %7950 = vmatprep.subr.mxu0 0.0
        %7951 = vmatpush1.msra.mxu0 0.0
        %7952 = vmatprep.subr.mxu0 0.0
        %7953 = vmatpush1.msra.mxu0 0.0
        %7954 = vmatprep.subr.mxu0 0.0
        %7955 = vmatpush1.msra.mxu0 0.0
        %7956 = vmatprep.subr.mxu0 0.0
        %7957 = vmatpush1.msra.mxu0 0.0
        %7958 = vmatprep.subr.mxu0 0.0
        %7959 = vmatpush1.msra.mxu0 0.0
        %7960 = vmatprep.subr.mxu0 0.0
        %7961 = vmatpush1.msra.mxu0 0.0
        %7962 = vmatprep.subr.mxu0 0.0
        %7963 = vmatpush1.msra.mxu0 0.0
        %7964 = vmatprep.subr.mxu0 0.0
        %7965 = vmatpush1.msra.mxu0 0.0
        %7966 = vmatprep.subr.mxu0 0.0
        %7967 = vmatpush1.msra.mxu0 0.0
        %7968 = vmatprep.subr.mxu0 0.0
        %7969 = vmatpush1.msra.mxu0 0.0
        %7970 = vmatprep.subr.mxu0 0.0
        %7971 = vmatpush1.msra.mxu0 0.0
        %7972 = vmatprep.subr.mxu0 0.0
        %7973 = vmatpush1.msra.mxu0 0.0
        %7974 = vmatprep.subr.mxu0 0.0
        %7975 = vmatpush1.msra.mxu0 0.0
        %7976 = vmatprep.subr.mxu0 0.0
        %7977 = vmatpush1.msra.mxu0 0.0
        %7978 = vmatprep.subr.mxu0 0.0
        %7979 = vmatpush1.msra.mxu0 0.0
        %7980 = vmatprep.subr.mxu0 0.0
        %7981 = vmatpush1.msra.mxu0 0.0
        %7982 = vmatprep.subr.mxu0 0.0
        %7983 = vmatpush1.msra.mxu0 0.0
        %7984 = vmatprep.subr.mxu0 0.0
        %7985 = vmatpush1.msra.mxu0 0.0
        %7986 = vmatprep.subr.mxu0 0.0
        %7987 = vmatpush1.msra.mxu0 0.0
        %7988 = vmatprep.subr.mxu0 0.0
        %7989 = vmatpush1.msra.mxu0 0.0
        %7990 = vmatprep.subr.mxu0 0.0
        %7991 = vmatpush1.msra.mxu0 0.0
        %7992 = vmatprep.subr.mxu0 0.0
        %7993 = vmatpush1.msra.mxu0 0.0
        %7994 = vmatprep.subr.mxu0 0.0
        %7995 = vmatpush1.msra.mxu0 0.0
        %7996 = vmatprep.subr.mxu0 0.0
        %7997 = vmatpush1.msra.mxu0 0.0
        %7998 = vmatprep.subr.mxu0 0.0
        %7999 = vmatpush1.msra.mxu0 0.0
        %8000 = vmatprep.subr.mxu0 0.0
        %8001 = vmatpush1.msra.mxu0 0.0
        %8002 = vmatprep.subr.mxu0 0.0
        %8003 = vmatpush1.msra.mxu0 0.0
        %8004 = vmatprep.subr.mxu0 0.0
        %8005 = vmatpush1.msra.mxu0 0.0
        %8006 = vmatprep.mubr.f32.mxu0 0.0
        %8007 = vmatmul.mubr.f32.gmra.mrb[0].mxu0 %v7916
        %v8008 = vpop.f32.mrb[0].mxu0
        %v8009 = vadd.f32 0.0, %v8008
        %v8010 = vpop.f32.mrb[0].mxu0
        %v8011 = vadd.f32 0.0, %v8010
        %8012 = vmatprep.mubr.f32.mxu0 0.0
        %8013 = vmatmul.mubr.f32.gmra.mrb[0].mxu0 %v7919
        %v8014 = vpop.f32.mrb[0].mxu0
        %v8015 = vadd.f32 0.0, %v8014
        %v8016 = vpop.f32.mrb[0].mxu0
        %v8017 = vadd.f32 0.0, %v8016
        %8018 = vmatprep.mubr.f32.mxu0 0.0
        %8019 = vmatmul.mubr.f32.gmra.mrb[0].mxu0 %v7922
        %v8020 = vpop.f32.mrb[0].mxu0
        %v8021 = vadd.f32 0.0, %v8020
        %v8022 = vpop.f32.mrb[0].mxu0
        %v8023 = vadd.f32 0.0, %v8022
        %8024 = vmatprep.mubr.f32.mxu0 0.0
        %8025 = vmatmul.mubr.f32.gmra.mrb[0].mxu0 %v7925
        %v8026 = vpop.f32.mrb[0].mxu0
        %v8027 = vadd.f32 0.0, %v8026
        %v8028 = vpop.f32.mrb[0].mxu0
        %v8029 = vadd.f32 0.0, %v8028
        %8030 = vmatprep.mubr.f32.mxu0 0.0
        %8031 = vmatmul.mubr.f32.gmra.mrb[0].mxu0 %v7928
        %v8032 = vpop.f32.mrb[0].mxu0
        %v8033 = vadd.f32 0.0, %v8032
        %v8034 = vpop.f32.mrb[0].mxu0
        %v8035 = vadd.f32 0.0, %v8034
        %8036 = vmatprep.mubr.f32.mxu0 0.0
        %8037 = vmatmul.mubr.f32.gmra.mrb[0].mxu0 %v7931
        %v8038 = vpop.f32.mrb[0].mxu0
        %v8039 = vadd.f32 0.0, %v8038
        %v8040 = vpop.f32.mrb[0].mxu0
        %v8041 = vadd.f32 0.0, %v8040
        %8042 = vmatprep.mubr.f32.mxu0 0.0
        %8043 = vmatmul.mubr.f32.gmra.mrb[0].mxu0 %v7934
        %v8044 = vpop.f32.mrb[0].mxu0
        %v8045 = vadd.f32 0.0, %v8044
        %v8046 = vpop.f32.mrb[0].mxu0
        %v8047 = vadd.f32 0.0, %v8046
        %8048 = vmatprep.mubr.f32.mxu0 0.0
        %8049 = vmatmul.mubr.f32.gmra.mrb[0].mxu0 %v7937
        %v8050 = vpop.f32.mrb[0].mxu0
        %v8051 = vadd.f32 0.0, %v8050
        %v8052 = vpop.f32.mrb[0].mxu0
        %v8053 = vadd.f32 0.0, %v8052
        %8054 = vmatprep.mubr.f32.mxu0 0.0
        %8055 = vmatmul.mubr.f32.gmra.mrb[0].mxu0 %v7940
        %v8056 = vpop.f32.mrb[0].mxu0
        %v8057 = vadd.f32 0.0, %v8056
        %v8058 = vpop.f32.mrb[0].mxu0
        %v8059 = vadd.f32 0.0, %v8058
        %8060 = vdwg.mxu0
        %v8061 = vld [vmem:[%s75] sm:$0xff]
        %v8062 = vld [vmem:[%s77] sm:$0xff]
        %8064 = vrot.lane.b32.xlu0 %v8011, 17
        %v8065 = vpop.permute.xlu0 %8064
        %8068 = vrot.lane.b32.xlu0 %v8009, 17
        %v8069 = vpop.permute.xlu0 %8068
        %v8070 = vsel %vm7668, %v8069, %v8065
        %v8073 = vsel %vm7668, %v8065, %v8069
        %v8074 = vmul.f32 %v8073, %v7678
        %v8075 = vmul.f32 %v8070, %v7682
        %8077 = vrot.lane.b32.xlu0 %v8017, 16
        %v8078 = vpop.permute.xlu0 %8077
        %8081 = vrot.lane.b32.xlu0 %v8015, 16
        %v8082 = vpop.permute.xlu0 %8081
        %v8083 = vsel %vm1751, %v8082, %v8078
        %v8086 = vsel %vm1751, %v8078, %v8082
        %v8087 = vmul.f32 %v8086, %v7704
        %v8088 = vmul.f32 %v8083, %v7708
        %v8089 = vadd.f32 %v8074, %v8087
        %v8090 = vadd.f32 %v8075, %v8088
        %8092 = vrot.lane.b32.xlu0 %v8023, 15
        %v8093 = vpop.permute.xlu0 %8092
        %8096 = vrot.lane.b32.xlu0 %v8021, 15
        %v8097 = vpop.permute.xlu0 %8096
        %v8098 = vsel %vm7722, %v8097, %v8093
        %v8101 = vsel %vm7722, %v8093, %v8097
        %v8102 = vmul.f32 %v8101, %v7733
        %v8103 = vmul.f32 %v8098, %v7737
        %v8104 = vadd.f32 %v8089, %v8102
        %v8105 = vadd.f32 %v8090, %v8103
        %8107 = vrot.lane.b32.xlu0 %v8029, 1
        %v8108 = vpop.permute.xlu0 %8107
        %8111 = vrot.lane.b32.xlu0 %v8027, 1
        %v8112 = vpop.permute.xlu0 %8111
        %v8113 = vsel %vm6829, %v8112, %v8108
        %v8116 = vsel %vm6829, %v8108, %v8112
        %v8117 = vmul.f32 %v8116, %v7761
        %v8118 = vmul.f32 %v8113, %v7765
        %v8119 = vadd.f32 %v8104, %v8117
        %v8120 = vadd.f32 %v8105, %v8118
        %v8121 = vadd.f32 %v8119, %v8033
        %v8122 = vadd.f32 %v8120, %v8035
        %8125 = vrot.lane.b32.xlu0 %v8039, 127
        %v8126 = vpop.permute.xlu0 %8125
        %8127 = vrot.lane.b32.xlu0 %v8041, 127
        %v8128 = vpop.permute.xlu0 %8127
        %v8129 = vsel %vm7780, %v8126, %v8128
        %v8133 = vsel %vm7780, %v8128, %v8126
        %v8134 = vmul.f32 %v8129, %v7792
        %v8135 = vmul.f32 %v8133, %v7796
        %v8136 = vadd.f32 %v8121, %v8134
        %v8137 = vadd.f32 %v8122, %v8135
        %8140 = vrot.lane.b32.xlu0 %v8045, 113
        %v8141 = vpop.permute.xlu0 %8140
        %8142 = vrot.lane.b32.xlu0 %v8047, 113
        %v8143 = vpop.permute.xlu0 %8142
        %v8144 = vsel %vm7809, %v8141, %v8143
        %v8148 = vsel %vm7809, %v8143, %v8141
        %v8149 = vmul.f32 %v8144, %v7821
        %v8150 = vmul.f32 %v8148, %v7825
        %v8151 = vadd.f32 %v8136, %v8149
        %v8152 = vadd.f32 %v8137, %v8150
        %8155 = vrot.lane.b32.xlu0 %v8051, 112
        %v8156 = vpop.permute.xlu0 %8155
        %8157 = vrot.lane.b32.xlu0 %v8053, 112
        %v8158 = vpop.permute.xlu0 %8157
        %v8159 = vsel %vm7838, %v8156, %v8158
        %v8163 = vsel %vm7838, %v8158, %v8156
        %v8164 = vmul.f32 %v8159, %v7850
        %v8165 = vmul.f32 %v8163, %v7854
        %v8166 = vadd.f32 %v8151, %v8164
        %v8167 = vadd.f32 %v8152, %v8165
        %8170 = vrot.lane.b32.xlu0 %v8057, 111
        %v8171 = vpop.permute.xlu0 %8170
        %8172 = vrot.lane.b32.xlu0 %v8059, 111
        %v8173 = vpop.permute.xlu0 %8172
        %v8174 = vsel %vm7867, %v8171, %v8173
        %v8178 = vsel %vm7867, %v8173, %v8171
        %v8179 = vmul.f32 %v8174, %v7879
        %v8180 = vmul.f32 %v8178, %v7883
        %v8181 = vadd.f32 %v8166, %v8179
        %v8182 = vadd.f32 %v8167, %v8180
        %8184 = vset.pattern.permute.xlu0 0
        %8185 = vperm.xlu0 %8184, %v8061
        %v8186 = vpop.permute.xlu0 %8185
        %v8188 = vmul.f32 %v8181, %v8186
        %v8189 = vmul.f32 %v8182, %v8186
        %8191 = vset.pattern.permute.xlu0 0
        %8192 = vperm.xlu0 %8191, %v8062
        %v8193 = vpop.permute.xlu0 %8192
        %v8195 = vadd.f32 %v8188, %v8193
        %v8196 = vadd.f32 %v8189, %v8193
        %v8197 = vmax.f32 %v8195, 0.0
        %v8198 = vmax.f32 %v8196, 0.0
        %v8199 = vld [vmem:[%s79] sm:$0xff]
        %v8200 = vld [vmem:[%s79 + $0x8] sm:$0x1]
        %v8202 = vsel %vm1667, %v8199, 0
        %v8205 = vsel %vm1667, %v8200, 0
        %8207 = vmatprep.subr.mxu0 %v8198
        %8208 = vmatpush1.msra.mxu0 %v8197
        %8209 = vmatprep.subr.mxu0 0.0
        %8210 = vmatpush1.msra.mxu0 0.0
        %8211 = vmatprep.subr.mxu0 0.0
        %8212 = vmatpush1.msra.mxu0 0.0
        %8213 = vmatprep.subr.mxu0 0.0
        %8214 = vmatpush1.msra.mxu0 0.0
        %8215 = vmatprep.subr.mxu0 0.0
        %8216 = vmatpush1.msra.mxu0 0.0
        %8217 = vmatprep.subr.mxu0 0.0
        %8218 = vmatpush1.msra.mxu0 0.0
        %8219 = vmatprep.subr.mxu0 0.0
        %8220 = vmatpush1.msra.mxu0 0.0
        %8221 = vmatprep.subr.mxu0 0.0
        %8222 = vmatpush1.msra.mxu0 0.0
        %8223 = vmatprep.subr.mxu0 0.0
        %8224 = vmatpush1.msra.mxu0 0.0
        %8225 = vmatprep.subr.mxu0 0.0
        %8226 = vmatpush1.msra.mxu0 0.0
        %8227 = vmatprep.subr.mxu0 0.0
        %8228 = vmatpush1.msra.mxu0 0.0
        %8229 = vmatprep.subr.mxu0 0.0
        %8230 = vmatpush1.msra.mxu0 0.0
        %8231 = vmatprep.subr.mxu0 0.0
        %8232 = vmatpush1.msra.mxu0 0.0
        %8233 = vmatprep.subr.mxu0 0.0
        %8234 = vmatpush1.msra.mxu0 0.0
        %8235 = vmatprep.subr.mxu0 0.0
        %8236 = vmatpush1.msra.mxu0 0.0
        %8237 = vmatprep.subr.mxu0 0.0
        %8238 = vmatpush1.msra.mxu0 0.0
        %8239 = vmatprep.subr.mxu0 0.0
        %8240 = vmatpush1.msra.mxu0 0.0
        %8241 = vmatprep.subr.mxu0 0.0
        %8242 = vmatpush1.msra.mxu0 0.0
        %8243 = vmatprep.subr.mxu0 0.0
        %8244 = vmatpush1.msra.mxu0 0.0
        %8245 = vmatprep.subr.mxu0 0.0
        %8246 = vmatpush1.msra.mxu0 0.0
        %8247 = vmatprep.subr.mxu0 0.0
        %8248 = vmatpush1.msra.mxu0 0.0
        %8249 = vmatprep.subr.mxu0 0.0
        %8250 = vmatpush1.msra.mxu0 0.0
        %8251 = vmatprep.subr.mxu0 0.0
        %8252 = vmatpush1.msra.mxu0 0.0
        %8253 = vmatprep.subr.mxu0 0.0
        %8254 = vmatpush1.msra.mxu0 0.0
        %8255 = vmatprep.subr.mxu0 0.0
        %8256 = vmatpush1.msra.mxu0 0.0
        %8257 = vmatprep.subr.mxu0 0.0
        %8258 = vmatpush1.msra.mxu0 0.0
        %8259 = vmatprep.subr.mxu0 0.0
        %8260 = vmatpush1.msra.mxu0 0.0
        %8261 = vmatprep.subr.mxu0 0.0
        %8262 = vmatpush1.msra.mxu0 0.0
        %8263 = vmatprep.subr.mxu0 0.0
        %8264 = vmatpush1.msra.mxu0 0.0
        %8265 = vmatprep.subr.mxu0 0.0
        %8266 = vmatpush1.msra.mxu0 0.0
        %8267 = vmatprep.subr.mxu0 0.0
        %8268 = vmatpush1.msra.mxu0 0.0
        %8269 = vmatprep.subr.mxu0 0.0
        %8270 = vmatpush1.msra.mxu0 0.0
        %8271 = vmatprep.mubr.f32.mxu0 0.0
        %8272 = vmatmul.mubr.f32.gmra.mrb[0].mxu0 %v8202
        %v8273 = vpop.f32.mrb[0].mxu0
        %v8274 = vadd.f32 0.0, %v8273
        %v8275 = vpop.f32.mrb[0].mxu0
        %v8276 = vadd.f32 0.0, %v8275
        %8277 = vmatprep.mubr.f32.mxu0 0.0
        %8278 = vmatmul.mubr.f32.gmra.mrb[0].mxu0 %v8205
        %v8279 = vpop.f32.mrb[0].mxu0
        %v8280 = vadd.f32 0.0, %v8279
        %v8281 = vpop.f32.mrb[0].mxu0
        %v8282 = vadd.f32 0.0, %v8281
        %8283 = vdwg.mxu0
        %v8284 = vld [vmem:[#allocation2] sm:$0x1]
        %8286 = vrot.lane.b32.xlu0 %v8276, 17
        %v8287 = vpop.permute.xlu0 %8286
        %8290 = vrot.lane.b32.xlu0 %v8274, 17
        %v8291 = vpop.permute.xlu0 %8290
        %v8292 = vsel %vm7668, %v8291, %v8287
        %v8295 = vsel %vm7668, %v8287, %v8291
        %v8296 = vmul.f32 %v8295, %v7678
        %v8297 = vmul.f32 %v8292, %v7682
        %8298 = vrot.lane.b32.xlu0 %v8276, 16
        %v8299 = vpop.permute.xlu0 %8298
        %8301 = vrot.lane.b32.xlu0 %v8274, 16
        %v8302 = vpop.permute.xlu0 %8301
        %v8303 = vsel %vm1751, %v8302, %v8299
        %v8306 = vsel %vm1751, %v8299, %v8302
        %v8307 = vmul.f32 %v8306, %v7704
        %v8308 = vmul.f32 %v8303, %v7708
        %v8311 = vrot.slane %v8307, 1
        %v8312 = vrot.slane %v8308, 1
        %v8315 = vadd.f32 %v8296, %v8311
        %v8316 = vadd.f32 %v8297, %v8312
        %8317 = vrot.lane.b32.xlu0 %v8276, 15
        %v8318 = vpop.permute.xlu0 %8317
        %8320 = vrot.lane.b32.xlu0 %v8274, 15
        %v8321 = vpop.permute.xlu0 %8320
        %v8322 = vsel %vm7722, %v8321, %v8318
        %v8325 = vsel %vm7722, %v8318, %v8321
        %v8326 = vmul.f32 %v8325, %v7733
        %v8327 = vmul.f32 %v8322, %v7737
        %v8330 = vrot.slane %v8326, 2
        %v8331 = vrot.slane %v8327, 2
        %v8334 = vadd.f32 %v8315, %v8330
        %v8335 = vadd.f32 %v8316, %v8331
        %8336 = vrot.lane.b32.xlu0 %v8276, 1
        %v8337 = vpop.permute.xlu0 %8336
        %8339 = vrot.lane.b32.xlu0 %v8274, 1
        %v8340 = vpop.permute.xlu0 %8339
        %v8341 = vsel %vm6829, %v8340, %v8337
        %v8344 = vsel %vm6829, %v8337, %v8340
        %v8345 = vmul.f32 %v8344, %v7761
        %v8346 = vmul.f32 %v8341, %v7765
        %v8349 = vrot.slane %v8345, 3
        %v8350 = vrot.slane %v8346, 3
        %v8353 = vadd.f32 %v8334, %v8349
        %v8354 = vadd.f32 %v8335, %v8350
        %v8355 = vrot.slane %v8274, 4
        %v8356 = vrot.slane %v8276, 4
        %v8359 = vadd.f32 %v8353, %v8355
        %v8360 = vadd.f32 %v8354, %v8356
        %8361 = vrot.lane.b32.xlu0 %v8274, 127
        %v8362 = vpop.permute.xlu0 %8361
        %8363 = vrot.lane.b32.xlu0 %v8276, 127
        %v8364 = vpop.permute.xlu0 %8363
        %v8365 = vsel %vm7780, %v8362, %v8364
        %v8369 = vsel %vm7780, %v8364, %v8362
        %v8370 = vmul.f32 %v8365, %v7792
        %v8371 = vmul.f32 %v8369, %v7796
        %v8374 = vrot.slane %v8370, 5
        %v8375 = vrot.slane %v8371, 5
        %v8378 = vadd.f32 %v8359, %v8374
        %v8379 = vadd.f32 %v8360, %v8375
        %8380 = vrot.lane.b32.xlu0 %v8274, 113
        %v8381 = vpop.permute.xlu0 %8380
        %8382 = vrot.lane.b32.xlu0 %v8276, 113
        %v8383 = vpop.permute.xlu0 %8382
        %v8384 = vsel %vm7809, %v8381, %v8383
        %v8388 = vsel %vm7809, %v8383, %v8381
        %v8389 = vmul.f32 %v8384, %v7821
        %v8390 = vmul.f32 %v8388, %v7825
        %v8393 = vrot.slane %v8389, 6
        %v8394 = vrot.slane %v8390, 6
        %v8397 = vadd.f32 %v8378, %v8393
        %v8398 = vadd.f32 %v8379, %v8394
        %8399 = vrot.lane.b32.xlu0 %v8274, 112
        %v8400 = vpop.permute.xlu0 %8399
        %8401 = vrot.lane.b32.xlu0 %v8276, 112
        %v8402 = vpop.permute.xlu0 %8401
        %v8403 = vsel %vm7838, %v8400, %v8402
        %v8407 = vsel %vm7838, %v8402, %v8400
        %v8408 = vmul.f32 %v8403, %v7850
        %v8409 = vmul.f32 %v8407, %v7854
        %v8412 = vrot.slane %v8408, 7
        %v8413 = vrot.slane %v8409, 7
        %v8416 = vadd.f32 %v8397, %v8412
        %v8417 = vadd.f32 %v8398, %v8413
        %8420 = vrot.lane.b32.xlu0 %v8280, 111
        %v8421 = vpop.permute.xlu0 %8420
        %8422 = vrot.lane.b32.xlu0 %v8282, 111
        %v8423 = vpop.permute.xlu0 %8422
        %v8424 = vsel %vm7867, %v8421, %v8423
        %v8428 = vsel %vm7867, %v8423, %v8421
        %v8429 = vmul.f32 %v8424, %v7879
        %v8430 = vmul.f32 %v8428, %v7883
        %v8431 = vadd.f32 %v8416, %v8429
        %v8432 = vadd.f32 %v8417, %v8430
        %8434 = vset.pattern.permute.xlu0 0
        %8435 = vperm.xlu0 %8434, %v8284
        %v8436 = vpop.permute.xlu0 %8435
        %v8438 = vlaneseq
        %v8439 = vshrl.u32 %v8438, 7
        %v8440 = vsub.s32 0, %v8439
        %v8441 = vrot.slane %v8436, %v8440
        %v8442 = vadd.f32 %v8431, %v8441
        %v8443 = vadd.f32 %v8432, %v8441
        %v8446 = vcombine.low %v8442, %v8443
        %v8448 = vunpack.c.l.s4 1966171168
        %v8449 = vunpack.c.0.s8 %v8448
        %v8450 = vlaneseq
        %v8451 = vshrl.u32 %v8450, 7
        %v8452 = vsub.s32 %v8449, %v8451
        %v8453 = vrot.slane %v8446, %v8452
        %v8455 = vunpack.c.l.s4 1966171168
        %v8456 = vunpack.c.0.s8 %v8455
        %v8457 = vlaneseq
        %v8458 = vshrl.u32 %v8457, 7
        %v8459 = vsub.s32 %v8456, %v8458
        %v8460 = vrot.slane %v8453, %v8459
        %v8462 = vlaneseq
        %vm8463 = vcmp.ge.s32.totalorder %v8462, 0
        %vm8464 = vcmp.lt.s32.totalorder %v8462, 256
        %vm8465 = vmand %vm8463, %vm8464
        %8466 = vst.msk [vmem:[%s1419] sm:$0x3] %vm8465, %v8460
        %p8467 = scmp.lt.s32.totalorder %s103, 1
        %s8468 = scalar_select %p8467, %s103, 1
        %s8469 = smul.addr %s8468, 2
        %s8470 = scalar_lea.vmem %s83, %s8469
        // Predicated region
        $region237: #{transunet_forward.1} parent=183 // pred_check
          %p8471 = pneg %p987
        $region238: #{transunet_forward.1} parent=183 // pred_check_branch
          %8473 = sbr.rel (%p8471) target = $region240
        $region239: #{transunet_forward.1} parent=183 // pred_region
          _
        $region240: #{transunet_forward.1} parent=183 // pred_fallthru
          _
      $region184: #{transunet_forward.1} parent=5 // pred_fallthru
        _
      %p8474 = scmp.le.s32.totalorder 2, %s98
      // Predicated region
      $region241: #{transunet_forward.1} parent=5 // pred_check
        %p8475 = pneg %p8474
      $region242: #{transunet_forward.1} parent=5 // pred_check_branch
        %8477 = sbr.rel (%p8475) target = $region244
      $region243: #{transunet_forward.1} parent=5 // pred_region
        %s8478 = ssub.s32 %s98, 2
        // Predicated region
        $region245: #{transunet_forward.1} parent=243 // pred_check
          %p8479 = pneg %p993
        $region246: #{transunet_forward.1} parent=243 // pred_check_branch
          %8481 = sbr.rel (%p8479) target = $region248
        $region247: #{transunet_forward.1} parent=243 // pred_region
          %p8482 = scmp.lt.s32.totalorder %s104, 1
          %s8483 = scalar_select %p8482, %s104, 1
          %s8484 = smul.addr %s8483, 2
          %s8485 = scalar_lea.vmem %s83, %s8484
        $region248: #{transunet_forward.1} parent=243 // pred_fallthru
          _
      $region244: #{transunet_forward.1} parent=5 // pred_fallthru
        _
    $region6: #{transunet_forward.1} parent=1 // loop_footer
      %s102 = sadd.s32 1, %s98
    $region7: #{transunet_forward.1} parent=1 // loop_footer_branch
      %97 = sbr.rel target = $region3
    $region8: #{transunet_forward.1} parent=1 // loop_exit
      _
    %8486 = vsyncpa [#allocation4], 1
    %s8487 = scalar_lea.sflag [#allocation4], 1
    %8488 = vsyncpa %s8487, 1
    %8489 = vsyncpa [#allocation6], 1
    %8490 = vsyncpa [#allocation9], 1
    %8491 = vsyncpa [#allocation12], 1
    %8492 = vsyncpa [#allocation15], 1
    %8493 = vsyncpa [#allocation18], 1
    %8494 = vsyncpa [#allocation21], 1

</llo_original>
